<compile_context>
chip_gen: v5e
topology: v5e:2x2
jax: 0.10.0
libtpu: 0.0.40
codegen_flags: <defaults>
</compile_context>

<pallas_src>
import functools
import math

import jax
import jax.numpy as jnp
from jax import lax
from jax.experimental import pallas as pl
from jax.experimental.pallas import tpu as pltpu

LN_EPS = 1e-5          # nn.LayerNorm default
NEG_INF = -1e30        # large finite negative: exp() underflows to exactly 0, no NaN hazard


def _layernorm(v, w, b):
    mu = jnp.mean(v, axis=-1, keepdims=True)
    var = jnp.mean((v - mu) ** 2, axis=-1, keepdims=True)
    return (v - mu) * lax.rsqrt(var + LN_EPS) * w + b


def _gelu(x):
    # TODO(synk): PyTorch nn.GELU defaults to the exact erf formulation; the tanh approximation
    # is used for robust Mosaic lowering (max abs diff ~1e-3).
    c = math.sqrt(2.0 / math.pi)
    return 0.5 * x * (1.0 + jnp.tanh(c * (x + 0.044715 * x * x * x)))


# ------------------------------------------------------------------------------------------
# Fused kernel: whole transformer + pooled projection.  Grid = (batch_tile, layer).
# ------------------------------------------------------------------------------------------
def _text_encoder_kernel(x_ref, mask_ref,
                         ln1w_ref, ln1b_ref,
                         wq_ref, bq_ref, wk_ref, bk_ref, wv_ref, bv_ref,
                         wo_ref, bo_ref,
                         ln2w_ref, ln2b_ref,
                         w1_ref, b1_ref, w2_ref, b2_ref,
                         lnfw_ref, lnfb_ref, proj_ref,
                         out_ref, x_sc,
                         *, num_heads, head_dim, cls_idx):
    layer = pl.program_id(1)
    n_layers = pl.num_programs(1)

    # Load the residual stream for the whole batch tile once; it stays resident in VMEM (f32)
    # across all layer grid steps (weights are the only per-layer DMA traffic).
    @pl.when(layer == 0)
    def _():
        x_sc[...] = x_ref[...].astype(jnp.float32)

    x3 = x_sc[...]                                          # (B, Lp, D) f32
    B, Lp, D = x3.shape
    M = B * Lp
    xf = x3.reshape(M, D)                                   # leading-dim collapse (Lp % 8 == 0)

    # ---- pre-LN multi-head attention ----
    h = _layernorm(xf, ln1w_ref[...], ln1b_ref[...]).astype(jnp.bfloat16)     # (M, D)

    # Wide, lane-dense projections: (M, D) @ (D, D).  1/sqrt(hd) is folded into wq/bq.
    q = (jnp.dot(h, wq_ref[...], preferred_element_type=jnp.float32)
         + bq_ref[...]).astype(jnp.bfloat16).reshape(B, Lp, D)
    k = (jnp.dot(h, wk_ref[...], preferred_element_type=jnp.float32)
         + bk_ref[...]).astype(jnp.bfloat16).reshape(B, Lp, D)
    v = (jnp.dot(h, wv_ref[...], preferred_element_type=jnp.float32)
         + bv_ref[...]).astype(jnp.bfloat16).reshape(B, Lp, D)

    mask = mask_ref[...]                                    # (B, Lp, Lp) f32 (causal + cls pad)

    # Per-head score / softmax / p@v (small fraction of layer FLOPs); heads are static lane
    # slices of the wide q/k/v, context is re-assembled lane-dense for one wide out-proj.
    ctx_heads = []
    for hh in range(num_heads):
        lo = hh * head_dim
        qh = q[:, :, lo:lo + head_dim]                      # (B, Lp, hd)
        kh = k[:, :, lo:lo + head_dim]
        vh = v[:, :, lo:lo + head_dim]
        s = lax.dot_general(qh, kh, (((2,), (2,)), ((0,), (0,))),
                            preferred_element_type=jnp.float32) + mask        # (B, Lp, Lp)
        s = s - jnp.max(s, axis=-1, keepdims=True)
        p = jnp.exp(s)
        inv = pl.reciprocal(jnp.sum(p, axis=-1, keepdims=True), approx=True)  # EUP slot
        ctx_h = lax.dot_general(p.astype(jnp.bfloat16), vh,
                                (((2,), (1,)), ((0,), (0,))),
                                preferred_element_type=jnp.float32) * inv      # (B, Lp, hd)
        ctx_heads.append(ctx_h.astype(jnp.bfloat16))
    ctx = jnp.concatenate(ctx_heads, axis=-1).reshape(M, D)                    # (M, D) bf16

    # Single full-K output projection (replaces the per-head accumulation loop).
    attn = jnp.dot(ctx, wo_ref[...], preferred_element_type=jnp.float32) + bo_ref[...]
    x1 = xf + attn                                                             # (M, D) f32

    # ---- pre-LN MLP (wide M) ----
    h2 = _layernorm(x1, ln2w_ref[...], ln2b_ref[...]).astype(jnp.bfloat16)
    m = jnp.dot(h2, w1_ref[...], preferred_element_type=jnp.float32) + b1_ref[...]
    m = _gelu(m).astype(jnp.bfloat16)
    m = jnp.dot(m, w2_ref[...], preferred_element_type=jnp.float32) + b2_ref[...]
    x2 = x1 + m
    x2_3d = x2.reshape(B, Lp, D)
    x_sc[...] = x2_3d

    # ---- after the last layer: pool cls token, ln_final, projection, L2 normalize ----
    @pl.when(layer == n_layers - 1)
    def _():
        pooled = x2_3d[:, cls_idx, :]                                          # (B, D)
        pf = _layernorm(pooled, lnfw_ref[...], lnfb_ref[...]).astype(jnp.bfloat16)
        y = jnp.dot(pf, proj_ref[...], preferred_element_type=jnp.float32)     # (B, P)
        nrm = jnp.sqrt(jnp.sum(y * y, axis=-1, keepdims=True))
        y = y / jnp.maximum(nrm, 1e-12)                                        # F.normalize
        out_ref[...] = y.reshape(out_ref.shape).astype(out_ref.dtype)


# ------------------------------------------------------------------------------------------
# Host-side wrapper
# ------------------------------------------------------------------------------------------
def _round_up(x, m):
    return ((x + m - 1) // m) * m


def _pick_vmem_limit_bytes():
    """~75% of the device's physical VMEM (headroom for compiler scratch + prefetch)."""
    cap = None
    try:
        info = pltpu.get_tpu_info()
        for name in ("vmem_capacity_bytes", "vmem_bytes", "vmem_size_bytes"):
            cap = getattr(info, name, None)
            if cap:
                break
    except Exception:
        cap = None
    if not cap:
        cap = 64 * 1024 * 1024          # conservative fallback: smallest per-TC VMEM (v7x)
    limit = (int(cap) * 3) // 4
    return int(min(max(limit, 32 * 1024 * 1024), 112 * 1024 * 1024))


def text_encoder_forward(params, prompts, tokenized_prompts, *, batch_tile=8, seq_pad=128):
    H = params["num_heads"]
    prompts = prompts[:, :-1].astype(jnp.float32)
    N, Lm1, D = prompts.shape
    L = Lm1 + 1
    hd = D // H
    Fd = params["w1"].shape[2]
    P = params["text_projection"].shape[1]
    NL = params["ln1_w"].shape[0]

    # Pad sequence to a lane-dense multiple; pad keys are hidden by the causal mask and pad
    # query rows are never read, so numerics of real rows are bit-identical.
    Lp = _round_up(L, seq_pad)

    # Batch tile: largest divisor of N not exceeding `batch_tile` (amortizes weight DMA).
    b_tile = max(1, min(batch_tile, N))
    while N % b_tile:
        b_tile -= 1
    nb = N // b_tile

    # cls-token concat + positional embedding + pad (cheap plain-JAX glue).
    cls = jnp.broadcast_to(params["cls_emb"].reshape(1, 1, D), (N, 1, D))
    x = jnp.concatenate([prompts, cls], axis=1) + params["pos_emb"][:L]        # (N, L, D)
    x = jnp.pad(x, ((0, 0), (0, Lp - L), (0, 0)))                              # (N, Lp, D)

    # Full additive mask built ONCE on the host (layer-invariant, identical across heads):
    # causal triu(-inf, 1) + key-padding row applied only to the cls query (row L-1), matching
    # torch build_cls_mask exactly (key 0 unconditionally attendable, key j gated by text[j-1]).
    am = params["attn_mask"]
    if am.shape[0] >= Lp:
        causal = am[:Lp, :Lp]
    else:
        causal = jnp.triu(jnp.full((Lp, Lp), NEG_INF, jnp.float32), k=1)
    text = tokenized_prompts[:, :-1]
    valid = jnp.concatenate([jnp.ones((N, 1), dtype=bool), text != 0], axis=1)  # (N, L)
    valid = jnp.pad(valid, ((0, 0), (0, Lp - L)), constant_values=True)         # (N, Lp)
    kpad = jnp.where(valid, 0.0, NEG_INF).astype(jnp.float32)
    is_cls_row = (jnp.arange(Lp) == L - 1)[None, :, None]                       # (1, Lp, 1)
    mask = causal[None] + jnp.where(is_cls_row, kpad[:, None, :], 0.0)          # (N, Lp, Lp)

    def bmap(b, l):   # batch-tiled, layer-invariant (stays VMEM-resident across layers)
        return (b, 0, 0)

    def lmap(b, l):   # per-layer weight streams (pipelined behind layer l-1 compute)
        return (l, 0, 0)

    def cmap(b, l):   # constants
        return (0, 0)

    in_specs = [
        pl.BlockSpec((b_tile, Lp, D), bmap),       # token embeddings (read at layer 0)
        pl.BlockSpec((b_tile, Lp, Lp), bmap),      # additive attention mask
        pl.BlockSpec((None, 1, D), lmap),          # ln1_w
        pl.BlockSpec((None, 1, D), lmap),          # ln1_b
        pl.BlockSpec((None, D, D), lmap),          # wq (bf16, 1/sqrt(hd) folded)
        pl.BlockSpec((None, 1, D), lmap),          # bq
        pl.BlockSpec((None, D, D), lmap),          # wk
        pl.BlockSpec((None, 1, D), lmap),          # bk
        pl.BlockSpec((None, D, D), lmap),          # wv
        pl.BlockSpec((None, 1, D), lmap),          # bv
        pl.BlockSpec((None, D, D), lmap),          # wo (bf16)
        pl.BlockSpec((None, 1, D), lmap),          # bo
        pl.BlockSpec((None, 1, D), lmap),          # ln2_w
        pl.BlockSpec((None, 1, D), lmap),          # ln2_b
        pl.BlockSpec((None, D, Fd), lmap),         # w1 (bf16)
        pl.BlockSpec((None, 1, Fd), lmap),         # b1
        pl.BlockSpec((None, Fd, D), lmap),         # w2 (bf16)
        pl.BlockSpec((None, 1, D), lmap),          # b2
        pl.BlockSpec((1, D), cmap),                # ln_final_w
        pl.BlockSpec((1, D), cmap),                # ln_final_b
        pl.BlockSpec((D, P), cmap),                # text_projection (bf16)
    ]

    kernel = functools.partial(_text_encoder_kernel,
                               num_heads=H, head_dim=hd, cls_idx=L - 1)
    out = pl.pallas_call(
        kernel,
        out_shape=jax.ShapeDtypeStruct((N, 1, P), jnp.float32),
        grid=(nb, NL),
        in_specs=in_specs,
        out_specs=pl.BlockSpec((b_tile, 1, P), bmap),
        scratch_shapes=[pltpu.VMEM((b_tile, Lp, D), jnp.float32)],   # resident residual stream
        compiler_params=pltpu.CompilerParams(
            dimension_semantics=("parallel", "arbitrary"),
            vmem_limit_bytes=_pick_vmem_limit_bytes()),
    )(x, mask,
      params["ln1_w"], params["ln1_b"],
      params["wq"], params["bq"], params["wk"], params["bk"],
      params["wv"], params["bv"], params["wo"], params["bo"],
      params["ln2_w"], params["ln2_b"],
      params["w1"], params["b1"], params["w2"], params["b2"],
      params["ln_final_w"], params["ln_final_b"], params["text_projection"])
    return out[:, 0, :]


# ------------------------------------------------------------------------------------------
# Parameter construction / packing
# ------------------------------------------------------------------------------------------
def build_attention_mask(context_length=128):
    # torch: fill -inf then triu_(1); a large finite negative is used so double-masking can
    # never produce NaN in the softmax (numerically identical: exp underflows to 0).
    return jnp.triu(jnp.full((context_length, context_length), NEG_INF, jnp.float32), k=1)


def init_params(key, *, width=32, heads=4, layers=2, proj_dim=16, context=128):
    n_keys = 5 + 12 * layers
    keys = jax.random.split(key, n_keys)
    it = iter(range(n_keys))

    def nrm(shape):
        return 0.02 * jax.random.normal(keys[next(it)], shape, jnp.float32)

    raw = dict(
        num_heads=heads,
        cls_emb=nrm((width,)),
        pos_emb=nrm((context, width)),
        ln_final_w=1.0 + nrm((1, width)),
        ln_final_b=nrm((1, width)),
        text_projection=nrm((width, proj_dim)),
        attn_mask=build_attention_mask(context),
        layers=[],
    )
    for _ in range(layers):
        layer = (
            1.0 + nrm((1, width)), nrm((1, width)),              # ln_1 w, b
            nrm((width, 3 * width)), nrm((1, 3 * width)),        # attn in_proj  (D, 3D)
            nrm((width, width)), nrm((1, width)),                # attn out_proj (D, D)
            1.0 + nrm((1, width)), nrm((1, width)),              # ln_2 w, b
            nrm((width, 4 * width)), nrm((1, 4 * width)),        # mlp c_fc
            nrm((4 * width, width)), nrm((1, width)),            # mlp c_proj
        )
        raw["layers"].append(layer)
    return raw


def pack_params(raw):
    """Stack per-layer weights along a leading layer axis.  Heads stay concatenated along the
    lane axis (wq/wk/wv are full (D, D) matrices -> lane-dense VMEM / wide MXU matmuls); the
    1/sqrt(hd) scale is folded into Wq/bq; matmul operands are cast to bf16 (f32 accumulation
    in-kernel)."""
    H = raw["num_heads"]
    layers = raw["layers"]
    D = layers[0][2].shape[0]
    hd = D // H
    scale = 1.0 / math.sqrt(hd)

    def stk(i):
        return jnp.stack([l[i] for l in layers])

    return dict(
        num_heads=H,
        cls_emb=raw["cls_emb"],
        pos_emb=raw["pos_emb"],
        attn_mask=raw["attn_mask"],
        ln_final_w=raw["ln_final_w"],
        ln_final_b=raw["ln_final_b"],
        text_projection=raw["text_projection"].astype(jnp.bfloat16),
        ln1_w=stk(0), ln1_b=stk(1),
        wq=jnp.stack([l[2][:, 0 * D:1 * D] * scale for l in layers]).astype(jnp.bfloat16),
        bq=jnp.stack([l[3][:, 0 * D:1 * D] * scale for l in layers]),
        wk=jnp.stack([l[2][:, 1 * D:2 * D] for l in layers]).astype(jnp.bfloat16),
        bk=jnp.stack([l[3][:, 1 * D:2 * D] for l in layers]),
        wv=jnp.stack([l[2][:, 2 * D:3 * D] for l in layers]).astype(jnp.bfloat16),
        bv=jnp.stack([l[3][:, 2 * D:3 * D] for l in layers]),
        wo=jnp.stack([l[4] for l in layers]).astype(jnp.bfloat16),
        bo=stk(5),
        ln2_w=stk(6), ln2_b=stk(7),
        w1=jnp.stack([l[8] for l in layers]).astype(jnp.bfloat16),
        b1=stk(9),
        w2=jnp.stack([l[10] for l in layers]).astype(jnp.bfloat16),
        b2=stk(11),
    )


# ------------------------------------------------------------------------------------------
# Pure-JAX fp32 reference (mirrors the PyTorch forward) for a sanity comparison.
# ------------------------------------------------------------------------------------------
def text_encoder_reference(raw, prompts, tokenized_prompts):
    H = raw["num_heads"]
    prompts = prompts[:, :-1].astype(jnp.float32)
    N, Lm1, D = prompts.shape
    L = Lm1 + 1
    hd = D // H
    cls = jnp.broadcast_to(raw["cls_emb"].reshape(1, 1, D), (N, 1, D))
    x = jnp.concatenate([prompts, cls], axis=1) + raw["pos_emb"][:L]

    text = tokenized_prompts[:, :-1]
    cls_mask = (text != 0)[:, None, :]
    cls_mask = jnp.pad(cls_mask, ((0, 0), (Lm1, 0), (1, 0)), constant_values=True)
    mask = raw["attn_mask"][None, :L, :L] + jnp.where(cls_mask, 0.0, NEG_INF)     # (N, L, L)

    scale = 1.0 / math.sqrt(hd)
    for (ln1w, ln1b, wqkv, bqkv, wo, bo, ln2w, ln2b, w1, b1, w2, b2) in raw["layers"]:
        h = _layernorm(x, ln1w, ln1b)
        qkv = h @ wqkv + bqkv
        q, k, v = jnp.split(qkv, 3, axis=-1)
        q = q.reshape(N, L, H, hd).transpose(0, 2, 1, 3) * scale
        k = k.reshape(N, L, H, hd).transpose(0, 2, 1, 3)
        v = v.reshape(N, L, H, hd).transpose(0, 2, 1, 3)
        s = jnp.einsum("nhqd,nhkd->nhqk", q, k) + mask[:, None]
        p = jax.nn.softmax(s, axis=-1)
        ctx = jnp.einsum("nhqk,nhkd->nhqd", p, v).transpose(0, 2, 1, 3).reshape(N, L, D)
        x = x + ctx @ wo + bo
        h2 = _layernorm(x, ln2w, ln2b)
        x = x + _gelu(h2 @ w1 + b1) @ w2 + b2

    pooled = _layernorm(x[:, -1], raw["ln_final_w"], raw["ln_final_b"])
    y = pooled @ raw["text_projection"]
    return y / jnp.maximum(jnp.linalg.norm(y, axis=-1, keepdims=True), 1e-12)


if __name__ == "__main__":
    key = jax.random.PRNGKey(0)
    kp, kt, kparam = jax.random.split(key, 3)
    # N=4 with batch_tile=2 -> batch grid of 2 (keeps both TCs busy on v7x);
    # prompts drop last token then append cls -> real seq_len = 8 (lane-padded to 128 in-kernel).
    N, L0, D, H, P = 4, 8, 32, 4, 16
    raw = init_params(kparam, width=D, heads=H, layers=2, proj_dim=P)
    packed = pack_params(raw)

    prompts = jax.random.normal(kp, (N, L0, D), jnp.float32)        # token embeddings
    tokenized = jax.random.randint(kt, (N, L0), 0, 10, jnp.int32)   # zeros exercise the cls mask

    out = jax.block_until_ready(
        text_encoder_forward(packed, prompts, tokenized, batch_tile=2, seq_pad=128))
    ref = jax.block_until_ready(text_encoder_reference(raw, prompts, tokenized))

    assert out.shape == (N, P)
    assert bool(jnp.all(jnp.isfinite(out)))
    # bf16 matmul operands + approx reciprocal vs. a pure-f32 reference: generous tolerance.
    assert float(jnp.max(jnp.abs(out - ref))) < 0.08
    print("KERNEL_OK")
</pallas_src>

<mosaic_0001>
module attributes {stable_mosaic.version = 11 : i64} {
  func.func @_text_encoder_kernel(%arg0: i32, %arg1: i32, %arg2: memref<2x128x32xf32, #tpu.memory_space<vmem>>, %arg3: memref<2x128x128xf32, #tpu.memory_space<vmem>>, %arg4: memref<1x1x32xf32, #tpu.memory_space<vmem>>, %arg5: memref<1x1x32xf32, #tpu.memory_space<vmem>>, %arg6: memref<1x32x32xbf16, #tpu.memory_space<vmem>>, %arg7: memref<1x1x32xf32, #tpu.memory_space<vmem>>, %arg8: memref<1x32x32xbf16, #tpu.memory_space<vmem>>, %arg9: memref<1x1x32xf32, #tpu.memory_space<vmem>>, %arg10: memref<1x32x32xbf16, #tpu.memory_space<vmem>>, %arg11: memref<1x1x32xf32, #tpu.memory_space<vmem>>, %arg12: memref<1x32x32xbf16, #tpu.memory_space<vmem>>, %arg13: memref<1x1x32xf32, #tpu.memory_space<vmem>>, %arg14: memref<1x1x32xf32, #tpu.memory_space<vmem>>, %arg15: memref<1x1x32xf32, #tpu.memory_space<vmem>>, %arg16: memref<1x32x128xbf16, #tpu.memory_space<vmem>>, %arg17: memref<1x1x128xf32, #tpu.memory_space<vmem>>, %arg18: memref<1x128x32xbf16, #tpu.memory_space<vmem>>, %arg19: memref<1x1x32xf32, #tpu.memory_space<vmem>>, %arg20: memref<1x32xf32, #tpu.memory_space<vmem>>, %arg21: memref<1x32xf32, #tpu.memory_space<vmem>>, %arg22: memref<32x16xbf16, #tpu.memory_space<vmem>>, %arg23: memref<2x1x16xf32, #tpu.memory_space<vmem>>, %arg24: memref<2x128x32xf32, #tpu.memory_space<vmem>>) attributes {dimension_semantics = [#tpu.dimension_semantics<parallel>, #tpu.dimension_semantics<arbitrary>], iteration_bounds = array<i64: 2, 2>, scalar_prefetch = 0 : i64, scratch_operands = 1 : i64, tpu.core_type = #tpu.core_type<tc>, window_params = [{transform_indices = @transform_0, window_bounds = array<i64: 2, 128, 32>}, {transform_indices = @transform_1, window_bounds = array<i64: 2, 128, 128>}, {transform_indices = @transform_2, window_bounds = array<i64: 1, 1, 32>}, {transform_indices = @transform_3, window_bounds = array<i64: 1, 1, 32>}, {transform_indices = @transform_4, window_bounds = array<i64: 1, 32, 32>}, {transform_indices = @transform_5, window_bounds = array<i64: 1, 1, 32>}, {transform_indices = @transform_6, window_bounds = array<i64: 1, 32, 32>}, {transform_indices = @transform_7, window_bounds = array<i64: 1, 1, 32>}, {transform_indices = @transform_8, window_bounds = array<i64: 1, 32, 32>}, {transform_indices = @transform_9, window_bounds = array<i64: 1, 1, 32>}, {transform_indices = @transform_10, window_bounds = array<i64: 1, 32, 32>}, {transform_indices = @transform_11, window_bounds = array<i64: 1, 1, 32>}, {transform_indices = @transform_12, window_bounds = array<i64: 1, 1, 32>}, {transform_indices = @transform_13, window_bounds = array<i64: 1, 1, 32>}, {transform_indices = @transform_14, window_bounds = array<i64: 1, 32, 128>}, {transform_indices = @transform_15, window_bounds = array<i64: 1, 1, 128>}, {transform_indices = @transform_16, window_bounds = array<i64: 1, 128, 32>}, {transform_indices = @transform_17, window_bounds = array<i64: 1, 1, 32>}, {pipeline_mode = #tpu.pipeline_mode<synchronous>, transform_indices = @transform_18, window_bounds = array<i64: 1, 32>}, {pipeline_mode = #tpu.pipeline_mode<synchronous>, transform_indices = @transform_19, window_bounds = array<i64: 1, 32>}, {pipeline_mode = #tpu.pipeline_mode<synchronous>, transform_indices = @transform_20, window_bounds = array<i64: 32, 16>}, {transform_indices = @transform_21, window_bounds = array<i64: 2, 1, 16>}]} {
    %c0_i32 = arith.constant 0 : i32
    %0 = arith.cmpi eq, %arg1, %c0_i32 : i32
    %1 = arith.extui %0 : i1 to i32
    %c0_i32_0 = arith.constant 0 : i32
    %2 = arith.cmpi ne, %1, %c0_i32_0 : i32
    scf.if %2 {
      %c0_93 = arith.constant 0 : index
      %c0_94 = arith.constant 0 : index
      %c0_95 = arith.constant 0 : index
      %203 = vector.load %arg2[%c0_93, %c0_94, %c0_95] : memref<2x128x32xf32, #tpu.memory_space<vmem>>, vector<2x128x32xf32>
      %c0_96 = arith.constant 0 : index
      %c0_97 = arith.constant 0 : index
      %c0_98 = arith.constant 0 : index
      %204 = vector.load %arg24[%c0_96, %c0_97, %c0_98] : memref<2x128x32xf32, #tpu.memory_space<vmem>>, vector<2x128x32xf32>
      tpu.vector_store %arg24[%c0_96, %c0_97, %c0_98], %203 {strides = array<i32>} : memref<2x128x32xf32, #tpu.memory_space<vmem>>, vector<2x128x32xf32>,
    } else {
    }
    %c0 = arith.constant 0 : index
    %c0_1 = arith.constant 0 : index
    %c0_2 = arith.constant 0 : index
    %3 = vector.load %arg24[%c0, %c0_1, %c0_2] : memref<2x128x32xf32, #tpu.memory_space<vmem>>, vector<2x128x32xf32>
    %4 = vector.shape_cast %3 : vector<2x128x32xf32> to vector<256x32xf32>
    %c0_3 = arith.constant 0 : index
    %c0_4 = arith.constant 0 : index
    %c0_5 = arith.constant 0 : index
    %5 = vector.load %arg4[%c0_3, %c0_4, %c0_5] : memref<1x1x32xf32, #tpu.memory_space<vmem>>, vector<1x1x32xf32>
    %6 = vector.shape_cast %5 : vector<1x1x32xf32> to vector<1x32xf32>
    %c0_6 = arith.constant 0 : index
    %c0_7 = arith.constant 0 : index
    %c0_8 = arith.constant 0 : index
    %7 = vector.load %arg5[%c0_6, %c0_7, %c0_8] : memref<1x1x32xf32, #tpu.memory_space<vmem>>, vector<1x1x32xf32>
    %8 = vector.shape_cast %7 : vector<1x1x32xf32> to vector<1x32xf32>
    %cst = arith.constant dense<0.000000e+00> : vector<256xf32>
    %9 = vector.multi_reduction <add>, %4, %cst [1] : vector<256x32xf32> to vector<256xf32>
    %10 = vector.shape_cast %9 : vector<256xf32> to vector<256x1xf32>
    %cst_9 = arith.constant 3.200000e+01 : f32
    %11 = vector.broadcast %cst_9 : f32 to vector<256x1xf32>
    %12 = arith.divf %10, %11 : vector<256x1xf32>
    %13 = vector.broadcast %12 : vector<256x1xf32> to vector<256x32xf32>
    %14 = arith.subf %4, %13 : vector<256x32xf32>
    %15 = arith.mulf %14, %14 : vector<256x32xf32>
    %cst_10 = arith.constant dense<0.000000e+00> : vector<256xf32>
    %16 = vector.multi_reduction <add>, %15, %cst_10 [1] : vector<256x32xf32> to vector<256xf32>
    %17 = vector.shape_cast %16 : vector<256xf32> to vector<256x1xf32>
    %cst_11 = arith.constant 3.200000e+01 : f32
    %18 = vector.broadcast %cst_11 : f32 to vector<256x1xf32>
    %19 = arith.divf %17, %18 : vector<256x1xf32>
    %20 = vector.broadcast %12 : vector<256x1xf32> to vector<256x32xf32>
    %21 = arith.subf %4, %20 : vector<256x32xf32>
    %cst_12 = arith.constant 9.99999974E-6 : f32
    %22 = vector.broadcast %cst_12 : f32 to vector<256x1xf32>
    %23 = arith.addf %19, %22 : vector<256x1xf32>
    %24 = math.rsqrt %23 : vector<256x1xf32>
    %25 = vector.broadcast %24 : vector<256x1xf32> to vector<256x32xf32>
    %26 = arith.mulf %21, %25 : vector<256x32xf32>
    %27 = vector.broadcast %6 : vector<1x32xf32> to vector<256x32xf32>
    %28 = arith.mulf %26, %27 : vector<256x32xf32>
    %29 = vector.broadcast %8 : vector<1x32xf32> to vector<256x32xf32>
    %30 = arith.addf %28, %29 : vector<256x32xf32>
    %31 = arith.truncf %30 : vector<256x32xf32> to vector<256x32xbf16>
    %c0_13 = arith.constant 0 : index
    %c0_14 = arith.constant 0 : index
    %c0_15 = arith.constant 0 : index
    %32 = vector.load %arg6[%c0_13, %c0_14, %c0_15] : memref<1x32x32xbf16, #tpu.memory_space<vmem>>, vector<1x32x32xbf16>
    %33 = vector.shape_cast %32 : vector<1x32x32xbf16> to vector<32x32xbf16>
    %cst_16 = arith.constant dense<0.000000e+00> : vector<256x32xf32>
    %34 = tpu.matmul %31, %33, %cst_16 {dimension_numbers = #tpu.dot_dimension_numbers<[1], [0], [0], [1], [0, 0, 1, 1], [], []>} : vector<256x32xbf16>, vector<32x32xbf16>, vector<256x32xf32> -> vector<256x32xf32>
    %c0_17 = arith.constant 0 : index
    %c0_18 = arith.constant 0 : index
    %c0_19 = arith.constant 0 : index
    %35 = vector.load %arg7[%c0_17, %c0_18, %c0_19] : memref<1x1x32xf32, #tpu.memory_space<vmem>>, vector<1x1x32xf32>
    %36 = vector.shape_cast %35 : vector<1x1x32xf32> to vector<1x32xf32>
    %37 = vector.broadcast %36 : vector<1x32xf32> to vector<256x32xf32>
    %38 = arith.addf %34, %37 : vector<256x32xf32>
    %39 = arith.truncf %38 : vector<256x32xf32> to vector<256x32xbf16>
    %40 = vector.shape_cast %39 : vector<256x32xbf16> to vector<2x128x32xbf16>
    %c0_20 = arith.constant 0 : index
    %c0_21 = arith.constant 0 : index
    %c0_22 = arith.constant 0 : index
    %41 = vector.load %arg8[%c0_20, %c0_21, %c0_22] : memref<1x32x32xbf16, #tpu.memory_space<vmem>>, vector<1x32x32xbf16>
    %42 = vector.shape_cast %41 : vector<1x32x32xbf16> to vector<32x32xbf16>
    %cst_23 = arith.constant dense<0.000000e+00> : vector<256x32xf32>
    %43 = tpu.matmul %31, %42, %cst_23 {dimension_numbers = #tpu.dot_dimension_numbers<[1], [0], [0], [1], [0, 0, 1, 1], [], []>} : vector<256x32xbf16>, vector<32x32xbf16>, vector<256x32xf32> -> vector<256x32xf32>
    %c0_24 = arith.constant 0 : index
    %c0_25 = arith.constant 0 : index
    %c0_26 = arith.constant 0 : index
    %44 = vector.load %arg9[%c0_24, %c0_25, %c0_26] : memref<1x1x32xf32, #tpu.memory_space<vmem>>, vector<1x1x32xf32>
    %45 = vector.shape_cast %44 : vector<1x1x32xf32> to vector<1x32xf32>
    %46 = vector.broadcast %45 : vector<1x32xf32> to vector<256x32xf32>
    %47 = arith.addf %43, %46 : vector<256x32xf32>
    %48 = arith.truncf %47 : vector<256x32xf32> to vector<256x32xbf16>
    %49 = vector.shape_cast %48 : vector<256x32xbf16> to vector<2x128x32xbf16>
    %c0_27 = arith.constant 0 : index
    %c0_28 = arith.constant 0 : index
    %c0_29 = arith.constant 0 : index
    %50 = vector.load %arg10[%c0_27, %c0_28, %c0_29] : memref<1x32x32xbf16, #tpu.memory_space<vmem>>, vector<1x32x32xbf16>
    %51 = vector.shape_cast %50 : vector<1x32x32xbf16> to vector<32x32xbf16>
    %cst_30 = arith.constant dense<0.000000e+00> : vector<256x32xf32>
    %52 = tpu.matmul %31, %51, %cst_30 {dimension_numbers = #tpu.dot_dimension_numbers<[1], [0], [0], [1], [0, 0, 1, 1], [], []>} : vector<256x32xbf16>, vector<32x32xbf16>, vector<256x32xf32> -> vector<256x32xf32>
    %c0_31 = arith.constant 0 : index
    %c0_32 = arith.constant 0 : index
    %c0_33 = arith.constant 0 : index
    %53 = vector.load %arg11[%c0_31, %c0_32, %c0_33] : memref<1x1x32xf32, #tpu.memory_space<vmem>>, vector<1x1x32xf32>
    %54 = vector.shape_cast %53 : vector<1x1x32xf32> to vector<1x32xf32>
    %55 = vector.broadcast %54 : vector<1x32xf32> to vector<256x32xf32>
    %56 = arith.addf %52, %55 : vector<256x32xf32>
    %57 = arith.truncf %56 : vector<256x32xf32> to vector<256x32xbf16>
    %58 = vector.shape_cast %57 : vector<256x32xbf16> to vector<2x128x32xbf16>
    %c0_34 = arith.constant 0 : index
    %c0_35 = arith.constant 0 : index
    %c0_36 = arith.constant 0 : index
    %59 = vector.load %arg3[%c0_34, %c0_35, %c0_36] : memref<2x128x128xf32, #tpu.memory_space<vmem>>, vector<2x128x128xf32>
    %60 = vector.extract_strided_slice %40 {offsets = [0, 0, 0], sizes = [2, 128, 8], strides = [1, 1, 1]} : vector<2x128x32xbf16> to vector<2x128x8xbf16>
    %61 = vector.extract_strided_slice %49 {offsets = [0, 0, 0], sizes = [2, 128, 8], strides = [1, 1, 1]} : vector<2x128x32xbf16> to vector<2x128x8xbf16>
    %62 = vector.extract_strided_slice %58 {offsets = [0, 0, 0], sizes = [2, 128, 8], strides = [1, 1, 1]} : vector<2x128x32xbf16> to vector<2x128x8xbf16>
    %cst_37 = arith.constant dense<0.000000e+00> : vector<2x128x128xf32>
    %63 = tpu.matmul %60, %61, %cst_37 {dimension_numbers = #tpu.dot_dimension_numbers<[2], [2], [1], [1], [0, 0, 0, 1, 1, 1], [0], [0]>} : vector<2x128x8xbf16>, vector<2x128x8xbf16>, vector<2x128x128xf32> -> vector<2x128x128xf32>
    %64 = arith.addf %63, %59 : vector<2x128x128xf32>
    %cst_38 = arith.constant dense<0xFF800000> : vector<2x128xf32>
    %65 = vector.multi_reduction <maximumf>, %64, %cst_38 [2] : vector<2x128x128xf32> to vector<2x128xf32>
    %66 = vector.shape_cast %65 : vector<2x128xf32> to vector<2x128x1xf32>
    %67 = vector.broadcast %66 : vector<2x128x1xf32> to vector<2x128x128xf32>
    %68 = arith.subf %64, %67 : vector<2x128x128xf32>
    %69 = math.exp %68 : vector<2x128x128xf32>
    %cst_39 = arith.constant dense<0.000000e+00> : vector<2x128xf32>
    %70 = vector.multi_reduction <add>, %69, %cst_39 [2] : vector<2x128x128xf32> to vector<2x128xf32>
    %71 = vector.shape_cast %70 : vector<2x128xf32> to vector<2x128x1xf32>
    %72 = tpu.reciprocal %71 {approx = true} : vector<2x128x1xf32> -> vector<2x128x1xf32>
    %73 = arith.truncf %69 : vector<2x128x128xf32> to vector<2x128x128xbf16>
    %cst_40 = arith.constant dense<0.000000e+00> : vector<2x128x8xf32>
    %74 = tpu.matmul %73, %62, %cst_40 {dimension_numbers = #tpu.dot_dimension_numbers<[2], [1], [1], [2], [0, 0, 0, 1, 1, 2], [0], [0]>} : vector<2x128x128xbf16>, vector<2x128x8xbf16>, vector<2x128x8xf32> -> vector<2x128x8xf32>
    %75 = vector.broadcast %72 : vector<2x128x1xf32> to vector<2x128x8xf32>
    %76 = arith.mulf %74, %75 : vector<2x128x8xf32>
    %77 = arith.truncf %76 : vector<2x128x8xf32> to vector<2x128x8xbf16>
    %78 = vector.extract_strided_slice %40 {offsets = [0, 0, 8], sizes = [2, 128, 8], strides = [1, 1, 1]} : vector<2x128x32xbf16> to vector<2x128x8xbf16>
    %79 = vector.extract_strided_slice %49 {offsets = [0, 0, 8], sizes = [2, 128, 8], strides = [1, 1, 1]} : vector<2x128x32xbf16> to vector<2x128x8xbf16>
    %80 = vector.extract_strided_slice %58 {offsets = [0, 0, 8], sizes = [2, 128, 8], strides = [1, 1, 1]} : vector<2x128x32xbf16> to vector<2x128x8xbf16>
    %cst_41 = arith.constant dense<0.000000e+00> : vector<2x128x128xf32>
    %81 = tpu.matmul %78, %79, %cst_41 {dimension_numbers = #tpu.dot_dimension_numbers<[2], [2], [1], [1], [0, 0, 0, 1, 1, 1], [0], [0]>} : vector<2x128x8xbf16>, vector<2x128x8xbf16>, vector<2x128x128xf32> -> vector<2x128x128xf32>
    %82 = arith.addf %81, %59 : vector<2x128x128xf32>
    %cst_42 = arith.constant dense<0xFF800000> : vector<2x128xf32>
    %83 = vector.multi_reduction <maximumf>, %82, %cst_42 [2] : vector<2x128x128xf32> to vector<2x128xf32>
    %84 = vector.shape_cast %83 : vector<2x128xf32> to vector<2x128x1xf32>
    %85 = vector.broadcast %84 : vector<2x128x1xf32> to vector<2x128x128xf32>
    %86 = arith.subf %82, %85 : vector<2x128x128xf32>
    %87 = math.exp %86 : vector<2x128x128xf32>
    %cst_43 = arith.constant dense<0.000000e+00> : vector<2x128xf32>
    %88 = vector.multi_reduction <add>, %87, %cst_43 [2] : vector<2x128x128xf32> to vector<2x128xf32>
    %89 = vector.shape_cast %88 : vector<2x128xf32> to vector<2x128x1xf32>
    %90 = tpu.reciprocal %89 {approx = true} : vector<2x128x1xf32> -> vector<2x128x1xf32>
    %91 = arith.truncf %87 : vector<2x128x128xf32> to vector<2x128x128xbf16>
    %cst_44 = arith.constant dense<0.000000e+00> : vector<2x128x8xf32>
    %92 = tpu.matmul %91, %80, %cst_44 {dimension_numbers = #tpu.dot_dimension_numbers<[2], [1], [1], [2], [0, 0, 0, 1, 1, 2], [0], [0]>} : vector<2x128x128xbf16>, vector<2x128x8xbf16>, vector<2x128x8xf32> -> vector<2x128x8xf32>
    %93 = vector.broadcast %90 : vector<2x128x1xf32> to vector<2x128x8xf32>
    %94 = arith.mulf %92, %93 : vector<2x128x8xf32>
    %95 = arith.truncf %94 : vector<2x128x8xf32> to vector<2x128x8xbf16>
    %96 = vector.extract_strided_slice %40 {offsets = [0, 0, 16], sizes = [2, 128, 8], strides = [1, 1, 1]} : vector<2x128x32xbf16> to vector<2x128x8xbf16>
    %97 = vector.extract_strided_slice %49 {offsets = [0, 0, 16], sizes = [2, 128, 8], strides = [1, 1, 1]} : vector<2x128x32xbf16> to vector<2x128x8xbf16>
    %98 = vector.extract_strided_slice %58 {offsets = [0, 0, 16], sizes = [2, 128, 8], strides = [1, 1, 1]} : vector<2x128x32xbf16> to vector<2x128x8xbf16>
    %cst_45 = arith.constant dense<0.000000e+00> : vector<2x128x128xf32>
    %99 = tpu.matmul %96, %97, %cst_45 {dimension_numbers = #tpu.dot_dimension_numbers<[2], [2], [1], [1], [0, 0, 0, 1, 1, 1], [0], [0]>} : vector<2x128x8xbf16>, vector<2x128x8xbf16>, vector<2x128x128xf32> -> vector<2x128x128xf32>
    %100 = arith.addf %99, %59 : vector<2x128x128xf32>
    %cst_46 = arith.constant dense<0xFF800000> : vector<2x128xf32>
    %101 = vector.multi_reduction <maximumf>, %100, %cst_46 [2] : vector<2x128x128xf32> to vector<2x128xf32>
    %102 = vector.shape_cast %101 : vector<2x128xf32> to vector<2x128x1xf32>
    %103 = vector.broadcast %102 : vector<2x128x1xf32> to vector<2x128x128xf32>
    %104 = arith.subf %100, %103 : vector<2x128x128xf32>
    %105 = math.exp %104 : vector<2x128x128xf32>
    %cst_47 = arith.constant dense<0.000000e+00> : vector<2x128xf32>
    %106 = vector.multi_reduction <add>, %105, %cst_47 [2] : vector<2x128x128xf32> to vector<2x128xf32>
    %107 = vector.shape_cast %106 : vector<2x128xf32> to vector<2x128x1xf32>
    %108 = tpu.reciprocal %107 {approx = true} : vector<2x128x1xf32> -> vector<2x128x1xf32>
    %109 = arith.truncf %105 : vector<2x128x128xf32> to vector<2x128x128xbf16>
    %cst_48 = arith.constant dense<0.000000e+00> : vector<2x128x8xf32>
    %110 = tpu.matmul %109, %98, %cst_48 {dimension_numbers = #tpu.dot_dimension_numbers<[2], [1], [1], [2], [0, 0, 0, 1, 1, 2], [0], [0]>} : vector<2x128x128xbf16>, vector<2x128x8xbf16>, vector<2x128x8xf32> -> vector<2x128x8xf32>
    %111 = vector.broadcast %108 : vector<2x128x1xf32> to vector<2x128x8xf32>
    %112 = arith.mulf %110, %111 : vector<2x128x8xf32>
    %113 = arith.truncf %112 : vector<2x128x8xf32> to vector<2x128x8xbf16>
    %114 = vector.extract_strided_slice %40 {offsets = [0, 0, 24], sizes = [2, 128, 8], strides = [1, 1, 1]} : vector<2x128x32xbf16> to vector<2x128x8xbf16>
    %115 = vector.extract_strided_slice %49 {offsets = [0, 0, 24], sizes = [2, 128, 8], strides = [1, 1, 1]} : vector<2x128x32xbf16> to vector<2x128x8xbf16>
    %116 = vector.extract_strided_slice %58 {offsets = [0, 0, 24], sizes = [2, 128, 8], strides = [1, 1, 1]} : vector<2x128x32xbf16> to vector<2x128x8xbf16>
    %cst_49 = arith.constant dense<0.000000e+00> : vector<2x128x128xf32>
    %117 = tpu.matmul %114, %115, %cst_49 {dimension_numbers = #tpu.dot_dimension_numbers<[2], [2], [1], [1], [0, 0, 0, 1, 1, 1], [0], [0]>} : vector<2x128x8xbf16>, vector<2x128x8xbf16>, vector<2x128x128xf32> -> vector<2x128x128xf32>
    %118 = arith.addf %117, %59 : vector<2x128x128xf32>
    %cst_50 = arith.constant dense<0xFF800000> : vector<2x128xf32>
    %119 = vector.multi_reduction <maximumf>, %118, %cst_50 [2] : vector<2x128x128xf32> to vector<2x128xf32>
    %120 = vector.shape_cast %119 : vector<2x128xf32> to vector<2x128x1xf32>
    %121 = vector.broadcast %120 : vector<2x128x1xf32> to vector<2x128x128xf32>
    %122 = arith.subf %118, %121 : vector<2x128x128xf32>
    %123 = math.exp %122 : vector<2x128x128xf32>
    %cst_51 = arith.constant dense<0.000000e+00> : vector<2x128xf32>
    %124 = vector.multi_reduction <add>, %123, %cst_51 [2] : vector<2x128x128xf32> to vector<2x128xf32>
    %125 = vector.shape_cast %124 : vector<2x128xf32> to vector<2x128x1xf32>
    %126 = tpu.reciprocal %125 {approx = true} : vector<2x128x1xf32> -> vector<2x128x1xf32>
    %127 = arith.truncf %123 : vector<2x128x128xf32> to vector<2x128x128xbf16>
    %cst_52 = arith.constant dense<0.000000e+00> : vector<2x128x8xf32>
    %128 = tpu.matmul %127, %116, %cst_52 {dimension_numbers = #tpu.dot_dimension_numbers<[2], [1], [1], [2], [0, 0, 0, 1, 1, 2], [0], [0]>} : vector<2x128x128xbf16>, vector<2x128x8xbf16>, vector<2x128x8xf32> -> vector<2x128x8xf32>
    %129 = vector.broadcast %126 : vector<2x128x1xf32> to vector<2x128x8xf32>
    %130 = arith.mulf %128, %129 : vector<2x128x8xf32>
    %131 = arith.truncf %130 : vector<2x128x8xf32> to vector<2x128x8xbf16>
    %132 = tpu.concatenate %77, %95, %113, %131 in 2 : vector<2x128x8xbf16>, vector<2x128x8xbf16>, vector<2x128x8xbf16>, vector<2x128x8xbf16> -> vector<2x128x32xbf16>
    %133 = vector.shape_cast %132 : vector<2x128x32xbf16> to vector<256x32xbf16>
    %c0_53 = arith.constant 0 : index
    %c0_54 = arith.constant 0 : index
    %c0_55 = arith.constant 0 : index
    %134 = vector.load %arg12[%c0_53, %c0_54, %c0_55] : memref<1x32x32xbf16, #tpu.memory_space<vmem>>, vector<1x32x32xbf16>
    %135 = vector.shape_cast %134 : vector<1x32x32xbf16> to vector<32x32xbf16>
    %cst_56 = arith.constant dense<0.000000e+00> : vector<256x32xf32>
    %136 = tpu.matmul %133, %135, %cst_56 {dimension_numbers = #tpu.dot_dimension_numbers<[1], [0], [0], [1], [0, 0, 1, 1], [], []>} : vector<256x32xbf16>, vector<32x32xbf16>, vector<256x32xf32> -> vector<256x32xf32>
    %c0_57 = arith.constant 0 : index
    %c0_58 = arith.constant 0 : index
    %c0_59 = arith.constant 0 : index
    %137 = vector.load %arg13[%c0_57, %c0_58, %c0_59] : memref<1x1x32xf32, #tpu.memory_space<vmem>>, vector<1x1x32xf32>
    %138 = vector.shape_cast %137 : vector<1x1x32xf32> to vector<1x32xf32>
    %139 = vector.broadcast %138 : vector<1x32xf32> to vector<256x32xf32>
    %140 = arith.addf %136, %139 : vector<256x32xf32>
    %141 = arith.addf %4, %140 : vector<256x32xf32>
    %c0_60 = arith.constant 0 : index
    %c0_61 = arith.constant 0 : index
    %c0_62 = arith.constant 0 : index
    %142 = vector.load %arg14[%c0_60, %c0_61, %c0_62] : memref<1x1x32xf32, #tpu.memory_space<vmem>>, vector<1x1x32xf32>
    %143 = vector.shape_cast %142 : vector<1x1x32xf32> to vector<1x32xf32>
    %c0_63 = arith.constant 0 : index
    %c0_64 = arith.constant 0 : index
    %c0_65 = arith.constant 0 : index
    %144 = vector.load %arg15[%c0_63, %c0_64, %c0_65] : memref<1x1x32xf32, #tpu.memory_space<vmem>>, vector<1x1x32xf32>
    %145 = vector.shape_cast %144 : vector<1x1x32xf32> to vector<1x32xf32>
    %cst_66 = arith.constant dense<0.000000e+00> : vector<256xf32>
    %146 = vector.multi_reduction <add>, %141, %cst_66 [1] : vector<256x32xf32> to vector<256xf32>
    %147 = vector.shape_cast %146 : vector<256xf32> to vector<256x1xf32>
    %cst_67 = arith.constant 3.200000e+01 : f32
    %148 = vector.broadcast %cst_67 : f32 to vector<256x1xf32>
    %149 = arith.divf %147, %148 : vector<256x1xf32>
    %150 = vector.broadcast %149 : vector<256x1xf32> to vector<256x32xf32>
    %151 = arith.subf %141, %150 : vector<256x32xf32>
    %152 = arith.mulf %151, %151 : vector<256x32xf32>
    %cst_68 = arith.constant dense<0.000000e+00> : vector<256xf32>
    %153 = vector.multi_reduction <add>, %152, %cst_68 [1] : vector<256x32xf32> to vector<256xf32>
    %154 = vector.shape_cast %153 : vector<256xf32> to vector<256x1xf32>
    %cst_69 = arith.constant 3.200000e+01 : f32
    %155 = vector.broadcast %cst_69 : f32 to vector<256x1xf32>
    %156 = arith.divf %154, %155 : vector<256x1xf32>
    %157 = vector.broadcast %149 : vector<256x1xf32> to vector<256x32xf32>
    %158 = arith.subf %141, %157 : vector<256x32xf32>
    %cst_70 = arith.constant 9.99999974E-6 : f32
    %159 = vector.broadcast %cst_70 : f32 to vector<256x1xf32>
    %160 = arith.addf %156, %159 : vector<256x1xf32>
    %161 = math.rsqrt %160 : vector<256x1xf32>
    %162 = vector.broadcast %161 : vector<256x1xf32> to vector<256x32xf32>
    %163 = arith.mulf %158, %162 : vector<256x32xf32>
    %164 = vector.broadcast %143 : vector<1x32xf32> to vector<256x32xf32>
    %165 = arith.mulf %163, %164 : vector<256x32xf32>
    %166 = vector.broadcast %145 : vector<1x32xf32> to vector<256x32xf32>
    %167 = arith.addf %165, %166 : vector<256x32xf32>
    %168 = arith.truncf %167 : vector<256x32xf32> to vector<256x32xbf16>
    %c0_71 = arith.constant 0 : index
    %c0_72 = arith.constant 0 : index
    %c0_73 = arith.constant 0 : index
    %169 = vector.load %arg16[%c0_71, %c0_72, %c0_73] : memref<1x32x128xbf16, #tpu.memory_space<vmem>>, vector<1x32x128xbf16>
    %170 = vector.shape_cast %169 : vector<1x32x128xbf16> to vector<32x128xbf16>
    %cst_74 = arith.constant dense<0.000000e+00> : vector<256x128xf32>
    %171 = tpu.matmul %168, %170, %cst_74 {dimension_numbers = #tpu.dot_dimension_numbers<[1], [0], [0], [1], [0, 0, 1, 1], [], []>} : vector<256x32xbf16>, vector<32x128xbf16>, vector<256x128xf32> -> vector<256x128xf32>
    %c0_75 = arith.constant 0 : index
    %c0_76 = arith.constant 0 : index
    %c0_77 = arith.constant 0 : index
    %172 = vector.load %arg17[%c0_75, %c0_76, %c0_77] : memref<1x1x128xf32, #tpu.memory_space<vmem>>, vector<1x1x128xf32>
    %173 = vector.shape_cast %172 : vector<1x1x128xf32> to vector<1x128xf32>
    %174 = vector.broadcast %173 : vector<1x128xf32> to vector<256x128xf32>
    %175 = arith.addf %171, %174 : vector<256x128xf32>
    %cst_78 = arith.constant 5.000000e-01 : f32
    %176 = vector.broadcast %cst_78 : f32 to vector<256x128xf32>
    %177 = arith.mulf %176, %175 : vector<256x128xf32>
    %cst_79 = arith.constant 4.471500e-02 : f32
    %178 = vector.broadcast %cst_79 : f32 to vector<256x128xf32>
    %179 = arith.mulf %178, %175 : vector<256x128xf32>
    %180 = arith.mulf %179, %175 : vector<256x128xf32>
    %181 = arith.mulf %180, %175 : vector<256x128xf32>
    %182 = arith.addf %175, %181 : vector<256x128xf32>
    %cst_80 = arith.constant 0.797884583 : f32
    %183 = vector.broadcast %cst_80 : f32 to vector<256x128xf32>
    %184 = arith.mulf %183, %182 : vector<256x128xf32>
    %185 = math.tanh %184 : vector<256x128xf32>
    %cst_81 = arith.constant 1.000000e+00 : f32
    %186 = vector.broadcast %cst_81 : f32 to vector<256x128xf32>
    %187 = arith.addf %186, %185 : vector<256x128xf32>
    %188 = arith.mulf %177, %187 : vector<256x128xf32>
    %189 = arith.truncf %188 : vector<256x128xf32> to vector<256x128xbf16>
    %c0_82 = arith.constant 0 : index
    %c0_83 = arith.constant 0 : index
    %c0_84 = arith.constant 0 : index
    %190 = vector.load %arg18[%c0_82, %c0_83, %c0_84] : memref<1x128x32xbf16, #tpu.memory_space<vmem>>, vector<1x128x32xbf16>
    %191 = vector.shape_cast %190 : vector<1x128x32xbf16> to vector<128x32xbf16>
    %cst_85 = arith.constant dense<0.000000e+00> : vector<256x32xf32>
    %192 = tpu.matmul %189, %191, %cst_85 {dimension_numbers = #tpu.dot_dimension_numbers<[1], [0], [0], [1], [0, 0, 1, 1], [], []>} : vector<256x128xbf16>, vector<128x32xbf16>, vector<256x32xf32> -> vector<256x32xf32>
    %c0_86 = arith.constant 0 : index
    %c0_87 = arith.constant 0 : index
    %c0_88 = arith.constant 0 : index
    %193 = vector.load %arg19[%c0_86, %c0_87, %c0_88] : memref<1x1x32xf32, #tpu.memory_space<vmem>>, vector<1x1x32xf32>
    %194 = vector.shape_cast %193 : vector<1x1x32xf32> to vector<1x32xf32>
    %195 = vector.broadcast %194 : vector<1x32xf32> to vector<256x32xf32>
    %196 = arith.addf %192, %195 : vector<256x32xf32>
    %197 = arith.addf %141, %196 : vector<256x32xf32>
    %198 = vector.shape_cast %197 : vector<256x32xf32> to vector<2x128x32xf32>
    %c0_89 = arith.constant 0 : index
    %c0_90 = arith.constant 0 : index
    %c0_91 = arith.constant 0 : index
    %199 = vector.load %arg24[%c0_89, %c0_90, %c0_91] : memref<2x128x32xf32, #tpu.memory_space<vmem>>, vector<2x128x32xf32>
    tpu.vector_store %arg24[%c0_89, %c0_90, %c0_91], %198 {strides = array<i32>} : memref<2x128x32xf32, #tpu.memory_space<vmem>>, vector<2x128x32xf32>,
    %c1_i32 = arith.constant 1 : i32
    %200 = arith.cmpi eq, %arg1, %c1_i32 : i32
    %201 = arith.extui %200 : i1 to i32
    %c0_i32_92 = arith.constant 0 : i32
    %202 = arith.cmpi ne, %201, %c0_i32_92 : i32
    scf.if %202 {
      %203 = vector.extract_strided_slice %198 {offsets = [0, 7, 0], sizes = [2, 1, 32], strides = [1, 1, 1]} : vector<2x128x32xf32> to vector<2x1x32xf32>
      %204 = vector.shape_cast %203 : vector<2x1x32xf32> to vector<2x32xf32>
      %c0_93 = arith.constant 0 : index
      %c0_94 = arith.constant 0 : index
      %205 = vector.load %arg20[%c0_93, %c0_94] : memref<1x32xf32, #tpu.memory_space<vmem>>, vector<1x32xf32>
      %c0_95 = arith.constant 0 : index
      %c0_96 = arith.constant 0 : index
      %206 = vector.load %arg21[%c0_95, %c0_96] : memref<1x32xf32, #tpu.memory_space<vmem>>, vector<1x32xf32>
      %cst_97 = arith.constant dense<0.000000e+00> : vector<2xf32>
      %207 = vector.multi_reduction <add>, %204, %cst_97 [1] : vector<2x32xf32> to vector<2xf32>
      %208 = vector.shape_cast %207 : vector<2xf32> to vector<2x1xf32>
      %cst_98 = arith.constant 3.200000e+01 : f32
      %209 = vector.broadcast %cst_98 : f32 to vector<2x1xf32>
      %210 = arith.divf %208, %209 : vector<2x1xf32>
      %211 = vector.broadcast %210 : vector<2x1xf32> to vector<2x32xf32>
      %212 = arith.subf %204, %211 : vector<2x32xf32>
      %213 = arith.mulf %212, %212 : vector<2x32xf32>
      %cst_99 = arith.constant dense<0.000000e+00> : vector<2xf32>
      %214 = vector.multi_reduction <add>, %213, %cst_99 [1] : vector<2x32xf32> to vector<2xf32>
      %215 = vector.shape_cast %214 : vector<2xf32> to vector<2x1xf32>
      %cst_100 = arith.constant 3.200000e+01 : f32
      %216 = vector.broadcast %cst_100 : f32 to vector<2x1xf32>
      %217 = arith.divf %215, %216 : vector<2x1xf32>
      %218 = vector.broadcast %210 : vector<2x1xf32> to vector<2x32xf32>
      %219 = arith.subf %204, %218 : vector<2x32xf32>
      %cst_101 = arith.constant 9.99999974E-6 : f32
      %220 = vector.broadcast %cst_101 : f32 to vector<2x1xf32>
      %221 = arith.addf %217, %220 : vector<2x1xf32>
      %222 = math.rsqrt %221 : vector<2x1xf32>
      %223 = vector.broadcast %222 : vector<2x1xf32> to vector<2x32xf32>
      %224 = arith.mulf %219, %223 : vector<2x32xf32>
      %225 = vector.broadcast %205 : vector<1x32xf32> to vector<2x32xf32>
      %226 = arith.mulf %224, %225 : vector<2x32xf32>
      %227 = vector.broadcast %206 : vector<1x32xf32> to vector<2x32xf32>
      %228 = arith.addf %226, %227 : vector<2x32xf32>
      %229 = arith.truncf %228 : vector<2x32xf32> to vector<2x32xbf16>
      %c0_102 = arith.constant 0 : index
      %c0_103 = arith.constant 0 : index
      %230 = vector.load %arg22[%c0_102, %c0_103] : memref<32x16xbf16, #tpu.memory_space<vmem>>, vector<32x16xbf16>
      %cst_104 = arith.constant dense<0.000000e+00> : vector<2x16xf32>
      %231 = tpu.matmul %229, %230, %cst_104 {dimension_numbers = #tpu.dot_dimension_numbers<[1], [0], [0], [1], [0, 0, 1, 1], [], []>} : vector<2x32xbf16>, vector<32x16xbf16>, vector<2x16xf32> -> vector<2x16xf32>
      %232 = arith.mulf %231, %231 : vector<2x16xf32>
      %cst_105 = arith.constant dense<0.000000e+00> : vector<2xf32>
      %233 = vector.multi_reduction <add>, %232, %cst_105 [1] : vector<2x16xf32> to vector<2xf32>
      %234 = vector.shape_cast %233 : vector<2xf32> to vector<2x1xf32>
      %235 = math.sqrt %234 : vector<2x1xf32>
      %cst_106 = arith.constant 9.99999996E-13 : f32
      %236 = vector.broadcast %cst_106 : f32 to vector<2x1xf32>
      %237 = arith.maximumf %235, %236 : vector<2x1xf32>
      %238 = vector.broadcast %237 : vector<2x1xf32> to vector<2x16xf32>
      %239 = arith.divf %231, %238 : vector<2x16xf32>
      %240 = vector.shape_cast %239 : vector<2x16xf32> to vector<2x1x16xf32>
      %c0_107 = arith.constant 0 : index
      %c0_108 = arith.constant 0 : index
      %c0_109 = arith.constant 0 : index
      %241 = vector.load %arg23[%c0_107, %c0_108, %c0_109] : memref<2x1x16xf32, #tpu.memory_space<vmem>>, vector<2x1x16xf32>
      tpu.vector_store %arg23[%c0_107, %c0_108, %c0_109], %240 {strides = array<i32>} : memref<2x1x16xf32, #tpu.memory_space<vmem>>, vector<2x1x16xf32>,
    } else {
    }
    return
  }
  func.func @transform_0(%arg0: i32, %arg1: i32) -> (i32, i32, i32) {
    %c0_i32 = arith.constant 0 : i32
    %c0_i32_0 = arith.constant 0 : i32
    %c0_i32_1 = arith.constant 0 : i32
    return %arg0, %c0_i32, %c0_i32_0 : i32, i32, i32
  }
  func.func @transform_1(%arg0: i32, %arg1: i32) -> (i32, i32, i32) {
    %c0_i32 = arith.constant 0 : i32
    %c0_i32_0 = arith.constant 0 : i32
    %c0_i32_1 = arith.constant 0 : i32
    return %arg0, %c0_i32, %c0_i32_0 : i32, i32, i32
  }
  func.func @transform_2(%arg0: i32, %arg1: i32) -> (i32, i32, i32) {
    %c0_i32 = arith.constant 0 : i32
    %c0_i32_0 = arith.constant 0 : i32
    %c0_i32_1 = arith.constant 0 : i32
    return %arg1, %c0_i32, %c0_i32_0 : i32, i32, i32
  }
  func.func @transform_3(%arg0: i32, %arg1: i32) -> (i32, i32, i32) {
    %c0_i32 = arith.constant 0 : i32
    %c0_i32_0 = arith.constant 0 : i32
    %c0_i32_1 = arith.constant 0 : i32
    return %arg1, %c0_i32, %c0_i32_0 : i32, i32, i32
  }
  func.func @transform_4(%arg0: i32, %arg1: i32) -> (i32, i32, i32) {
    %c0_i32 = arith.constant 0 : i32
    %c0_i32_0 = arith.constant 0 : i32
    %c0_i32_1 = arith.constant 0 : i32
    return %arg1, %c0_i32, %c0_i32_0 : i32, i32, i32
  }
  func.func @transform_5(%arg0: i32, %arg1: i32) -> (i32, i32, i32) {
    %c0_i32 = arith.constant 0 : i32
    %c0_i32_0 = arith.constant 0 : i32
    %c0_i32_1 = arith.constant 0 : i32
    return %arg1, %c0_i32, %c0_i32_0 : i32, i32, i32
  }
  func.func @transform_6(%arg0: i32, %arg1: i32) -> (i32, i32, i32) {
    %c0_i32 = arith.constant 0 : i32
    %c0_i32_0 = arith.constant 0 : i32
    %c0_i32_1 = arith.constant 0 : i32
    return %arg1, %c0_i32, %c0_i32_0 : i32, i32, i32
  }
  func.func @transform_7(%arg0: i32, %arg1: i32) -> (i32, i32, i32) {
    %c0_i32 = arith.constant 0 : i32
    %c0_i32_0 = arith.constant 0 : i32
    %c0_i32_1 = arith.constant 0 : i32
    return %arg1, %c0_i32, %c0_i32_0 : i32, i32, i32
  }
  func.func @transform_8(%arg0: i32, %arg1: i32) -> (i32, i32, i32) {
    %c0_i32 = arith.constant 0 : i32
    %c0_i32_0 = arith.constant 0 : i32
    %c0_i32_1 = arith.constant 0 : i32
    return %arg1, %c0_i32, %c0_i32_0 : i32, i32, i32
  }
  func.func @transform_9(%arg0: i32, %arg1: i32) -> (i32, i32, i32) {
    %c0_i32 = arith.constant 0 : i32
    %c0_i32_0 = arith.constant 0 : i32
    %c0_i32_1 = arith.constant 0 : i32
    return %arg1, %c0_i32, %c0_i32_0 : i32, i32, i32
  }
  func.func @transform_10(%arg0: i32, %arg1: i32) -> (i32, i32, i32) {
    %c0_i32 = arith.constant 0 : i32
    %c0_i32_0 = arith.constant 0 : i32
    %c0_i32_1 = arith.constant 0 : i32
    return %arg1, %c0_i32, %c0_i32_0 : i32, i32, i32
  }
  func.func @transform_11(%arg0: i32, %arg1: i32) -> (i32, i32, i32) {
    %c0_i32 = arith.constant 0 : i32
    %c0_i32_0 = arith.constant 0 : i32
    %c0_i32_1 = arith.constant 0 : i32
    return %arg1, %c0_i32, %c0_i32_0 : i32, i32, i32
  }
  func.func @transform_12(%arg0: i32, %arg1: i32) -> (i32, i32, i32) {
    %c0_i32 = arith.constant 0 : i32
    %c0_i32_0 = arith.constant 0 : i32
    %c0_i32_1 = arith.constant 0 : i32
    return %arg1, %c0_i32, %c0_i32_0 : i32, i32, i32
  }
  func.func @transform_13(%arg0: i32, %arg1: i32) -> (i32, i32, i32) {
    %c0_i32 = arith.constant 0 : i32
    %c0_i32_0 = arith.constant 0 : i32
    %c0_i32_1 = arith.constant 0 : i32
    return %arg1, %c0_i32, %c0_i32_0 : i32, i32, i32
  }
  func.func @transform_14(%arg0: i32, %arg1: i32) -> (i32, i32, i32) {
    %c0_i32 = arith.constant 0 : i32
    %c0_i32_0 = arith.constant 0 : i32
    %c0_i32_1 = arith.constant 0 : i32
    return %arg1, %c0_i32, %c0_i32_0 : i32, i32, i32
  }
  func.func @transform_15(%arg0: i32, %arg1: i32) -> (i32, i32, i32) {
    %c0_i32 = arith.constant 0 : i32
    %c0_i32_0 = arith.constant 0 : i32
    %c0_i32_1 = arith.constant 0 : i32
    return %arg1, %c0_i32, %c0_i32_0 : i32, i32, i32
  }
  func.func @transform_16(%arg0: i32, %arg1: i32) -> (i32, i32, i32) {
    %c0_i32 = arith.constant 0 : i32
    %c0_i32_0 = arith.constant 0 : i32
    %c0_i32_1 = arith.constant 0 : i32
    return %arg1, %c0_i32, %c0_i32_0 : i32, i32, i32
  }
  func.func @transform_17(%arg0: i32, %arg1: i32) -> (i32, i32, i32) {
    %c0_i32 = arith.constant 0 : i32
    %c0_i32_0 = arith.constant 0 : i32
    %c0_i32_1 = arith.constant 0 : i32
    return %arg1, %c0_i32, %c0_i32_0 : i32, i32, i32
  }
  func.func @transform_18(%arg0: i32, %arg1: i32) -> (i32, i32) {
    %c0_i32 = arith.constant 0 : i32
    %c0_i32_0 = arith.constant 0 : i32
    %c0_i32_1 = arith.constant 0 : i32
    return %c0_i32, %c0_i32_0 : i32, i32
  }
  func.func @transform_19(%arg0: i32, %arg1: i32) -> (i32, i32) {
    %c0_i32 = arith.constant 0 : i32
    %c0_i32_0 = arith.constant 0 : i32
    %c0_i32_1 = arith.constant 0 : i32
    return %c0_i32, %c0_i32_0 : i32, i32
  }
  func.func @transform_20(%arg0: i32, %arg1: i32) -> (i32, i32) {
    %c0_i32 = arith.constant 0 : i32
    %c0_i32_0 = arith.constant 0 : i32
    %c0_i32_1 = arith.constant 0 : i32
    return %c0_i32, %c0_i32_0 : i32, i32
  }
  func.func @transform_21(%arg0: i32, %arg1: i32) -> (i32, i32, i32) {
    %c0_i32 = arith.constant 0 : i32
    %c0_i32_0 = arith.constant 0 : i32
    %c0_i32_1 = arith.constant 0 : i32
    return %arg0, %c0_i32, %c0_i32_0 : i32, i32, i32
  }
}

</mosaic_0001>

<llo_original>
// kernel: tpu_custom_call.1
$region0: #{tpu_custom_call.1}
  #allocation0 [shape = 'u32[]', space=smem, size = 0x4, offset = 0x4, fixed_abs, tag = 'smem constant byte address 0x4 - core index']
  #allocation1 [shape = 'u32[72,128]{1,0:T(1,128)}', space=vmem, size = 0x9000, scoped, tag = 'internal scratch']
  #allocation2 [shape = 'f32[2,128,32]{2,1,0:T(8,128)}', space=vmem, size = 0x20000, scoped, tag = 'scratch operand']
  %s0 = inlined_call_operand.vmem [shape: f32[4,128,32], index: 0, kind: input, shape index: {}]
  %s1 = inlined_call_operand.vmem [shape: f32[4,128,128], index: 1, kind: input, shape index: {}]
  %s2 = inlined_call_operand.hbm [shape: f32[2,1,32], index: 2, kind: input, shape index: {}]
  %s3 = inlined_call_operand.hbm [shape: f32[2,1,32], index: 3, kind: input, shape index: {}]
  %s4 = inlined_call_operand.vmem [shape: bf16[2,32,32], index: 4, kind: input, shape index: {}]
  %s5 = inlined_call_operand.hbm [shape: f32[2,1,32], index: 5, kind: input, shape index: {}]
  %s6 = inlined_call_operand.vmem [shape: bf16[2,32,32], index: 6, kind: input, shape index: {}]
  %s7 = inlined_call_operand.hbm [shape: f32[2,1,32], index: 7, kind: input, shape index: {}]
  %s8 = inlined_call_operand.vmem [shape: bf16[2,32,32], index: 8, kind: input, shape index: {}]
  %s9 = inlined_call_operand.hbm [shape: f32[2,1,32], index: 9, kind: input, shape index: {}]
  %s10 = inlined_call_operand.vmem [shape: bf16[2,32,32], index: 10, kind: input, shape index: {}]
  %s11 = inlined_call_operand.hbm [shape: f32[2,1,32], index: 11, kind: input, shape index: {}]
  %s12 = inlined_call_operand.hbm [shape: f32[2,1,32], index: 12, kind: input, shape index: {}]
  %s13 = inlined_call_operand.hbm [shape: f32[2,1,32], index: 13, kind: input, shape index: {}]
  %s14 = inlined_call_operand.vmem [shape: bf16[2,32,128], index: 14, kind: input, shape index: {}]
  %s15 = inlined_call_operand.hbm [shape: f32[2,1,128], index: 15, kind: input, shape index: {}]
  %s16 = inlined_call_operand.vmem [shape: bf16[2,128,32], index: 16, kind: input, shape index: {}]
  %s17 = inlined_call_operand.hbm [shape: f32[2,1,32], index: 17, kind: input, shape index: {}]
  %s18 = inlined_call_operand.vmem [shape: f32[1,32], index: 18, kind: input, shape index: {}]
  %s19 = inlined_call_operand.hbm [shape: f32[1,32], index: 19, kind: input, shape index: {}]
  %s20 = inlined_call_operand.vmem [shape: bf16[32,16], index: 20, kind: input, shape index: {}]
  %s21 = inlined_call_operand.hbm [shape: f32[4,1,16], index: 21, kind: output, shape index: {}]
  %s22 = sld [smem:[#allocation0]]
  $region169: #{tpu_custom_call.1} parent=0
    _
  %s24 = ssub.s32 1, %s22
  %s25 = scalar_select 0, %s24, %s22
  $region1: #{tpu_custom_call.1} parent=0
    #allocation3 [shape = 'u8[1024]{0}', space=vmem, size = 0x400, scoped, tag = 'input window, operand 2']
    #allocation4 [shape = 's32[2]{0}', space=sflag, size = 0x8, scoped, tag = 'scoped memory for tpu_custom_call.1']
    #allocation5 [shape = 's32[2]{0}', space=sflag, size = 0x8, scoped, tag = 'scoped memory for tpu_custom_call.1']
    #allocation6 [shape = 'u8[1024]{0}', space=vmem, size = 0x400, scoped, tag = 'input window, operand 3']
    #allocation7 [shape = 's32[2]{0}', space=sflag, size = 0x8, scoped, tag = 'scoped memory for tpu_custom_call.1']
    #allocation8 [shape = 'u8[1024]{0}', space=vmem, size = 0x400, scoped, tag = 'input window, operand 5']
    #allocation9 [shape = 'u8[1024]{0}', space=vmem, size = 0x400, scoped, tag = 'input window, operand 7']
    #allocation10 [shape = 's32[2]{0}', space=sflag, size = 0x8, scoped, tag = 'scoped memory for tpu_custom_call.1']
    #allocation11 [shape = 'u8[1024]{0}', space=vmem, size = 0x400, scoped, tag = 'input window, operand 9']
    #allocation12 [shape = 'u8[1024]{0}', space=vmem, size = 0x400, scoped, tag = 'input window, operand 11']
    #allocation13 [shape = 's32[2]{0}', space=sflag, size = 0x8, scoped, tag = 'scoped memory for tpu_custom_call.1']
    #allocation14 [shape = 'u8[1024]{0}', space=vmem, size = 0x400, scoped, tag = 'input window, operand 12']
    #allocation15 [shape = 'u8[1024]{0}', space=vmem, size = 0x400, scoped, tag = 'input window, operand 13']
    #allocation16 [shape = 's32[2]{0}', space=sflag, size = 0x8, scoped, tag = 'scoped memory for tpu_custom_call.1']
    #allocation17 [shape = 'u8[1024]{0}', space=vmem, size = 0x400, scoped, tag = 'input window, operand 15']
    #allocation18 [shape = 'u8[1024]{0}', space=vmem, size = 0x400, scoped, tag = 'input window, operand 17']
    #allocation19 [shape = 's32[2]{0}', space=sflag, size = 0x8, scoped, tag = 'scoped memory for tpu_custom_call.1']
    #allocation20 [shape = 'u8[512]{0}', space=vmem, size = 0x400, scoped, tag = 'input window, operand 19, single buffered']
    #allocation21 [shape = 'u8[2048]{0}', space=vmem, size = 0x800, scoped, tag = 'output window, operand 0']
    %26 = vsyncpa [#allocation4], 0
    %s27 = scalar_lea.sflag [#allocation4], 1
    %28 = vsyncpa %s27, 0
    %29 = vsyncpa [#allocation7], 0
    %s30 = scalar_lea.sflag [#allocation7], 1
    %31 = vsyncpa %s30, 0
    %32 = vsyncpa [#allocation10], 0
    %s33 = scalar_lea.sflag [#allocation10], 1
    %34 = vsyncpa %s33, 0
    %35 = vsyncpa [#allocation13], 0
    %s36 = scalar_lea.sflag [#allocation13], 1
    %37 = vsyncpa %s36, 0
    %38 = vsyncpa [#allocation16], 0
    %s39 = scalar_lea.sflag [#allocation16], 1
    %40 = vsyncpa %s39, 0
    %41 = vsyncpa [#allocation19], 0
    %s42 = scalar_lea.sflag [#allocation19], 1
    %43 = vsyncpa %s42, 0
    %44 = vsyncpa [#allocation5], 0
    %s45 = scalar_lea.sflag [#allocation5], 1
    %46 = vsyncpa %s45, 0
    loop: start=0, step=1, limit=6
    $region2: #{tpu_custom_call.1} parent=1 // loop_pre_header
      _
    $region3: #{tpu_custom_call.1} parent=1 // loop_header
      %s48 = sphi 0, %s52
      %p49 = scmp.ge.s32.totalorder %s48, 6
      %s55 = sphi 0, %s67
      %s56 = sphi 0, %s63
      %s57 = sphi 0, %s55
      %s58 = sphi 0, %s56
      %s59 = sphi 0, %s57
      %s60 = sphi 0, %s58
      %s70 = sphi 0, %s72
      %s73 = sphi 0, %s70
      %s74 = sphi 0, %s73
      %s90 = sphi 0, %s74
      %s96 = sphi 0, %s98
      %s99 = sphi 0, %s96
      %s100 = sphi 0, %s99
      %s116 = sphi 0, %s100
      %s122 = sphi 0, %s124
      %s125 = sphi 0, %s122
      %s126 = sphi 0, %s125
      %s142 = sphi 0, %s126
      %s148 = sphi 0, %s150
      %s151 = sphi 0, %s148
      %s152 = sphi 0, %s151
      %s168 = sphi 0, %s152
      %s174 = sphi 0, %s176
      %s177 = sphi 0, %s174
      %s178 = sphi 0, %s177
      %s194 = sphi 0, %s178
      %s200 = sphi 0, %s202
      %s203 = sphi 0, %s200
      %s204 = sphi 0, %s203
      %s220 = sphi 0, %s204
      %s226 = sphi 0, %s228
      %s229 = sphi 0, %s226
      %s230 = sphi 0, %s229
      %s246 = sphi 0, %s230
      %s252 = sphi 0, %s254
      %s255 = sphi 0, %s252
      %s256 = sphi 0, %s255
      %s272 = sphi 0, %s256
      %s278 = sphi 0, %s280
      %s281 = sphi 0, %s278
      %s282 = sphi 0, %s281
      %s298 = sphi 0, %s282
      %s304 = sphi 0, %s306
      %s307 = sphi 0, %s304
      %s308 = sphi 0, %s307
      %s324 = sphi 0, %s308
      %s330 = sphi 0, %s332
      %s333 = sphi 0, %s330
      %s334 = sphi 0, %s333
      %s350 = sphi 0, %s334
      %s356 = sphi 0, %s358
      %s359 = sphi 0, %s356
      %s360 = sphi 0, %s359
      %s376 = sphi 0, %s360
      %s382 = sphi 0, %s384
      %s385 = sphi 0, %s382
      %s386 = sphi 0, %s385
      %s402 = sphi 0, %s386
      %s408 = sphi 0, %s410
      %s411 = sphi 0, %s408
      %s412 = sphi 0, %s411
      %s428 = sphi 0, %s412
      %s434 = sphi 0, %s436
      %s437 = sphi 0, %s434
      %s438 = sphi 0, %s437
      %s454 = sphi 0, %s438
      %s460 = sphi 0, %s462
      %s463 = sphi 0, %s460
      %s464 = sphi 0, %s463
      %s480 = sphi 0, %s464
      %s486 = sphi 0, %s488
      %s489 = sphi 0, %s486
      %s490 = sphi 0, %s489
      %s506 = sphi 0, %s490
      %s512 = sphi 0, %s514
      %s515 = sphi 0, %s512
      %s516 = sphi 0, %s515
      %s532 = sphi 0, %s516
      %s536 = sphi 0, %s536
      %s538 = sphi 0, %s536
      %s539 = sphi 0, %s538
      %s553 = sphi 0, %s539
      %s557 = sphi 0, %s557
      %s559 = sphi 0, %s557
      %s560 = sphi 0, %s559
      %s574 = sphi 0, %s560
      %s578 = sphi 0, %s578
      %s580 = sphi 0, %s578
      %s581 = sphi 0, %s580
      %s595 = sphi 0, %s581
      %s601 = sphi 0, %s603
      %s604 = sphi 0, %s601
      %s605 = sphi 0, %s604
      %s621 = sphi 0, %s605
    $region4: #{tpu_custom_call.1} parent=1 // loop_header_branch
      %51 = sbr.rel (%p49) target = $region8
    $region5: #{tpu_custom_call.1} parent=1 // loop_body
      %s53 = ssub.s32 %s48, 1
      %s54 = ssub.s32 %s48, 2
      %s61 = sadd.s32 1, %s56
      %p62 = scmp.ge.s32.totalorder %s61, 2
      %s63 = scalar_select %p62, 0, %s61
      %s64 = sadd.s32 1, %s55
      %s65 = scalar_select %p62, %s64, %s55
      %p66 = scmp.ge.s32.totalorder %s65, 2
      %s67 = scalar_select %p66, 0, %s65
      %s68 = ssub.s32 %s55, %s67
      %p69 = scmp.eq.s32.totalorder %s68, 0
      %s71 = sadd.s32 %s70, 1
      %s72 = scalar_select %p69, %s70, %s71
      %p75 = pneg %p69
      %p76 = scmp.eq.s32.totalorder %s48, 3
      %p77 = por %p75, %p76
      %p78 = scmp.ne.s32.totalorder %s70, %s73
      %p79 = scmp.eq.s32.totalorder %s48, 0
      %p80 = por %p78, %p79
      %p81 = scmp.ne.s32.totalorder %s70, %s73
      %p82 = scmp.eq.s32.totalorder %s53, 3
      %p83 = por %p81, %p82
      %p84 = scmp.ne.s32.totalorder %s73, %s74
      %p85 = scmp.eq.s32.totalorder %s53, 0
      %p86 = por %p84, %p85
      %p87 = scmp.ne.s32.totalorder %s73, %s74
      %p88 = scmp.eq.s32.totalorder %s54, 3
      %p89 = por %p87, %p88
      %p91 = scmp.ne.s32.totalorder %s74, %s90
      %p92 = scmp.eq.s32.totalorder %s54, 0
      %p93 = por %p91, %p92
      %s94 = ssub.s32 %s55, %s67
      %p95 = scmp.eq.s32.totalorder %s94, 0
      %s97 = sadd.s32 %s96, 1
      %s98 = scalar_select %p95, %s96, %s97
      %p101 = pneg %p95
      %p102 = scmp.eq.s32.totalorder %s48, 3
      %p103 = por %p101, %p102
      %p104 = scmp.ne.s32.totalorder %s96, %s99
      %p105 = scmp.eq.s32.totalorder %s48, 0
      %p106 = por %p104, %p105
      %p107 = scmp.ne.s32.totalorder %s96, %s99
      %p108 = scmp.eq.s32.totalorder %s53, 3
      %p109 = por %p107, %p108
      %p110 = scmp.ne.s32.totalorder %s99, %s100
      %p111 = scmp.eq.s32.totalorder %s53, 0
      %p112 = por %p110, %p111
      %p113 = scmp.ne.s32.totalorder %s99, %s100
      %p114 = scmp.eq.s32.totalorder %s54, 3
      %p115 = por %p113, %p114
      %p117 = scmp.ne.s32.totalorder %s100, %s116
      %p118 = scmp.eq.s32.totalorder %s54, 0
      %p119 = por %p117, %p118
      %s120 = ssub.s32 %s56, %s63
      %p121 = scmp.eq.s32.totalorder %s120, 0
      %s123 = sadd.s32 %s122, 1
      %s124 = scalar_select %p121, %s122, %s123
      %p127 = pneg %p121
      %p128 = scmp.eq.s32.totalorder %s48, 3
      %p129 = por %p127, %p128
      %p130 = scmp.ne.s32.totalorder %s122, %s125
      %p131 = scmp.eq.s32.totalorder %s48, 0
      %p132 = por %p130, %p131
      %p133 = scmp.ne.s32.totalorder %s122, %s125
      %p134 = scmp.eq.s32.totalorder %s53, 3
      %p135 = por %p133, %p134
      %p136 = scmp.ne.s32.totalorder %s125, %s126
      %p137 = scmp.eq.s32.totalorder %s53, 0
      %p138 = por %p136, %p137
      %p139 = scmp.ne.s32.totalorder %s125, %s126
      %p140 = scmp.eq.s32.totalorder %s54, 3
      %p141 = por %p139, %p140
      %p143 = scmp.ne.s32.totalorder %s126, %s142
      %p144 = scmp.eq.s32.totalorder %s54, 0
      %p145 = por %p143, %p144
      %s146 = ssub.s32 %s56, %s63
      %p147 = scmp.eq.s32.totalorder %s146, 0
      %s149 = sadd.s32 %s148, 1
      %s150 = scalar_select %p147, %s148, %s149
      %p153 = pneg %p147
      %p154 = scmp.eq.s32.totalorder %s48, 3
      %p155 = por %p153, %p154
      %p156 = scmp.ne.s32.totalorder %s148, %s151
      %p157 = scmp.eq.s32.totalorder %s48, 0
      %p158 = por %p156, %p157
      %p159 = scmp.ne.s32.totalorder %s148, %s151
      %p160 = scmp.eq.s32.totalorder %s53, 3
      %p161 = por %p159, %p160
      %p162 = scmp.ne.s32.totalorder %s151, %s152
      %p163 = scmp.eq.s32.totalorder %s53, 0
      %p164 = por %p162, %p163
      %p165 = scmp.ne.s32.totalorder %s151, %s152
      %p166 = scmp.eq.s32.totalorder %s54, 3
      %p167 = por %p165, %p166
      %p169 = scmp.ne.s32.totalorder %s152, %s168
      %p170 = scmp.eq.s32.totalorder %s54, 0
      %p171 = por %p169, %p170
      %s172 = ssub.s32 %s56, %s63
      %p173 = scmp.eq.s32.totalorder %s172, 0
      %s175 = sadd.s32 %s174, 1
      %s176 = scalar_select %p173, %s174, %s175
      %p179 = pneg %p173
      %p180 = scmp.eq.s32.totalorder %s48, 3
      %p181 = por %p179, %p180
      %p182 = scmp.ne.s32.totalorder %s174, %s177
      %p183 = scmp.eq.s32.totalorder %s48, 0
      %p184 = por %p182, %p183
      %p185 = scmp.ne.s32.totalorder %s174, %s177
      %p186 = scmp.eq.s32.totalorder %s53, 3
      %p187 = por %p185, %p186
      %p188 = scmp.ne.s32.totalorder %s177, %s178
      %p189 = scmp.eq.s32.totalorder %s53, 0
      %p190 = por %p188, %p189
      %p191 = scmp.ne.s32.totalorder %s177, %s178
      %p192 = scmp.eq.s32.totalorder %s54, 3
      %p193 = por %p191, %p192
      %p195 = scmp.ne.s32.totalorder %s178, %s194
      %p196 = scmp.eq.s32.totalorder %s54, 0
      %p197 = por %p195, %p196
      %s198 = ssub.s32 %s56, %s63
      %p199 = scmp.eq.s32.totalorder %s198, 0
      %s201 = sadd.s32 %s200, 1
      %s202 = scalar_select %p199, %s200, %s201
      %p205 = pneg %p199
      %p206 = scmp.eq.s32.totalorder %s48, 3
      %p207 = por %p205, %p206
      %p208 = scmp.ne.s32.totalorder %s200, %s203
      %p209 = scmp.eq.s32.totalorder %s48, 0
      %p210 = por %p208, %p209
      %p211 = scmp.ne.s32.totalorder %s200, %s203
      %p212 = scmp.eq.s32.totalorder %s53, 3
      %p213 = por %p211, %p212
      %p214 = scmp.ne.s32.totalorder %s203, %s204
      %p215 = scmp.eq.s32.totalorder %s53, 0
      %p216 = por %p214, %p215
      %p217 = scmp.ne.s32.totalorder %s203, %s204
      %p218 = scmp.eq.s32.totalorder %s54, 3
      %p219 = por %p217, %p218
      %p221 = scmp.ne.s32.totalorder %s204, %s220
      %p222 = scmp.eq.s32.totalorder %s54, 0
      %p223 = por %p221, %p222
      %s224 = ssub.s32 %s56, %s63
      %p225 = scmp.eq.s32.totalorder %s224, 0
      %s227 = sadd.s32 %s226, 1
      %s228 = scalar_select %p225, %s226, %s227
      %p231 = pneg %p225
      %p232 = scmp.eq.s32.totalorder %s48, 3
      %p233 = por %p231, %p232
      %p234 = scmp.ne.s32.totalorder %s226, %s229
      %p235 = scmp.eq.s32.totalorder %s48, 0
      %p236 = por %p234, %p235
      %p237 = scmp.ne.s32.totalorder %s226, %s229
      %p238 = scmp.eq.s32.totalorder %s53, 3
      %p239 = por %p237, %p238
      %p240 = scmp.ne.s32.totalorder %s229, %s230
      %p241 = scmp.eq.s32.totalorder %s53, 0
      %p242 = por %p240, %p241
      %p243 = scmp.ne.s32.totalorder %s229, %s230
      %p244 = scmp.eq.s32.totalorder %s54, 3
      %p245 = por %p243, %p244
      %p247 = scmp.ne.s32.totalorder %s230, %s246
      %p248 = scmp.eq.s32.totalorder %s54, 0
      %p249 = por %p247, %p248
      %s250 = ssub.s32 %s56, %s63
      %p251 = scmp.eq.s32.totalorder %s250, 0
      %s253 = sadd.s32 %s252, 1
      %s254 = scalar_select %p251, %s252, %s253
      %p257 = pneg %p251
      %p258 = scmp.eq.s32.totalorder %s48, 3
      %p259 = por %p257, %p258
      %p260 = scmp.ne.s32.totalorder %s252, %s255
      %p261 = scmp.eq.s32.totalorder %s48, 0
      %p262 = por %p260, %p261
      %p263 = scmp.ne.s32.totalorder %s252, %s255
      %p264 = scmp.eq.s32.totalorder %s53, 3
      %p265 = por %p263, %p264
      %p266 = scmp.ne.s32.totalorder %s255, %s256
      %p267 = scmp.eq.s32.totalorder %s53, 0
      %p268 = por %p266, %p267
      %p269 = scmp.ne.s32.totalorder %s255, %s256
      %p270 = scmp.eq.s32.totalorder %s54, 3
      %p271 = por %p269, %p270
      %p273 = scmp.ne.s32.totalorder %s256, %s272
      %p274 = scmp.eq.s32.totalorder %s54, 0
      %p275 = por %p273, %p274
      %s276 = ssub.s32 %s56, %s63
      %p277 = scmp.eq.s32.totalorder %s276, 0
      %s279 = sadd.s32 %s278, 1
      %s280 = scalar_select %p277, %s278, %s279
      %p283 = pneg %p277
      %p284 = scmp.eq.s32.totalorder %s48, 3
      %p285 = por %p283, %p284
      %p286 = scmp.ne.s32.totalorder %s278, %s281
      %p287 = scmp.eq.s32.totalorder %s48, 0
      %p288 = por %p286, %p287
      %p289 = scmp.ne.s32.totalorder %s278, %s281
      %p290 = scmp.eq.s32.totalorder %s53, 3
      %p291 = por %p289, %p290
      %p292 = scmp.ne.s32.totalorder %s281, %s282
      %p293 = scmp.eq.s32.totalorder %s53, 0
      %p294 = por %p292, %p293
      %p295 = scmp.ne.s32.totalorder %s281, %s282
      %p296 = scmp.eq.s32.totalorder %s54, 3
      %p297 = por %p295, %p296
      %p299 = scmp.ne.s32.totalorder %s282, %s298
      %p300 = scmp.eq.s32.totalorder %s54, 0
      %p301 = por %p299, %p300
      %s302 = ssub.s32 %s56, %s63
      %p303 = scmp.eq.s32.totalorder %s302, 0
      %s305 = sadd.s32 %s304, 1
      %s306 = scalar_select %p303, %s304, %s305
      %p309 = pneg %p303
      %p310 = scmp.eq.s32.totalorder %s48, 3
      %p311 = por %p309, %p310
      %p312 = scmp.ne.s32.totalorder %s304, %s307
      %p313 = scmp.eq.s32.totalorder %s48, 0
      %p314 = por %p312, %p313
      %p315 = scmp.ne.s32.totalorder %s304, %s307
      %p316 = scmp.eq.s32.totalorder %s53, 3
      %p317 = por %p315, %p316
      %p318 = scmp.ne.s32.totalorder %s307, %s308
      %p319 = scmp.eq.s32.totalorder %s53, 0
      %p320 = por %p318, %p319
      %p321 = scmp.ne.s32.totalorder %s307, %s308
      %p322 = scmp.eq.s32.totalorder %s54, 3
      %p323 = por %p321, %p322
      %p325 = scmp.ne.s32.totalorder %s308, %s324
      %p326 = scmp.eq.s32.totalorder %s54, 0
      %p327 = por %p325, %p326
      %s328 = ssub.s32 %s56, %s63
      %p329 = scmp.eq.s32.totalorder %s328, 0
      %s331 = sadd.s32 %s330, 1
      %s332 = scalar_select %p329, %s330, %s331
      %p335 = pneg %p329
      %p336 = scmp.eq.s32.totalorder %s48, 3
      %p337 = por %p335, %p336
      %p338 = scmp.ne.s32.totalorder %s330, %s333
      %p339 = scmp.eq.s32.totalorder %s48, 0
      %p340 = por %p338, %p339
      %p341 = scmp.ne.s32.totalorder %s330, %s333
      %p342 = scmp.eq.s32.totalorder %s53, 3
      %p343 = por %p341, %p342
      %p344 = scmp.ne.s32.totalorder %s333, %s334
      %p345 = scmp.eq.s32.totalorder %s53, 0
      %p346 = por %p344, %p345
      %p347 = scmp.ne.s32.totalorder %s333, %s334
      %p348 = scmp.eq.s32.totalorder %s54, 3
      %p349 = por %p347, %p348
      %p351 = scmp.ne.s32.totalorder %s334, %s350
      %p352 = scmp.eq.s32.totalorder %s54, 0
      %p353 = por %p351, %p352
      %s354 = ssub.s32 %s56, %s63
      %p355 = scmp.eq.s32.totalorder %s354, 0
      %s357 = sadd.s32 %s356, 1
      %s358 = scalar_select %p355, %s356, %s357
      %p361 = pneg %p355
      %p362 = scmp.eq.s32.totalorder %s48, 3
      %p363 = por %p361, %p362
      %p364 = scmp.ne.s32.totalorder %s356, %s359
      %p365 = scmp.eq.s32.totalorder %s48, 0
      %p366 = por %p364, %p365
      %p367 = scmp.ne.s32.totalorder %s356, %s359
      %p368 = scmp.eq.s32.totalorder %s53, 3
      %p369 = por %p367, %p368
      %p370 = scmp.ne.s32.totalorder %s359, %s360
      %p371 = scmp.eq.s32.totalorder %s53, 0
      %p372 = por %p370, %p371
      %p373 = scmp.ne.s32.totalorder %s359, %s360
      %p374 = scmp.eq.s32.totalorder %s54, 3
      %p375 = por %p373, %p374
      %p377 = scmp.ne.s32.totalorder %s360, %s376
      %p378 = scmp.eq.s32.totalorder %s54, 0
      %p379 = por %p377, %p378
      %s380 = ssub.s32 %s56, %s63
      %p381 = scmp.eq.s32.totalorder %s380, 0
      %s383 = sadd.s32 %s382, 1
      %s384 = scalar_select %p381, %s382, %s383
      %p387 = pneg %p381
      %p388 = scmp.eq.s32.totalorder %s48, 3
      %p389 = por %p387, %p388
      %p390 = scmp.ne.s32.totalorder %s382, %s385
      %p391 = scmp.eq.s32.totalorder %s48, 0
      %p392 = por %p390, %p391
      %p393 = scmp.ne.s32.totalorder %s382, %s385
      %p394 = scmp.eq.s32.totalorder %s53, 3
      %p395 = por %p393, %p394
      %p396 = scmp.ne.s32.totalorder %s385, %s386
      %p397 = scmp.eq.s32.totalorder %s53, 0
      %p398 = por %p396, %p397
      %p399 = scmp.ne.s32.totalorder %s385, %s386
      %p400 = scmp.eq.s32.totalorder %s54, 3
      %p401 = por %p399, %p400
      %p403 = scmp.ne.s32.totalorder %s386, %s402
      %p404 = scmp.eq.s32.totalorder %s54, 0
      %p405 = por %p403, %p404
      %s406 = ssub.s32 %s56, %s63
      %p407 = scmp.eq.s32.totalorder %s406, 0
      %s409 = sadd.s32 %s408, 1
      %s410 = scalar_select %p407, %s408, %s409
      %p413 = pneg %p407
      %p414 = scmp.eq.s32.totalorder %s48, 3
      %p415 = por %p413, %p414
      %p416 = scmp.ne.s32.totalorder %s408, %s411
      %p417 = scmp.eq.s32.totalorder %s48, 0
      %p418 = por %p416, %p417
      %p419 = scmp.ne.s32.totalorder %s408, %s411
      %p420 = scmp.eq.s32.totalorder %s53, 3
      %p421 = por %p419, %p420
      %p422 = scmp.ne.s32.totalorder %s411, %s412
      %p423 = scmp.eq.s32.totalorder %s53, 0
      %p424 = por %p422, %p423
      %p425 = scmp.ne.s32.totalorder %s411, %s412
      %p426 = scmp.eq.s32.totalorder %s54, 3
      %p427 = por %p425, %p426
      %p429 = scmp.ne.s32.totalorder %s412, %s428
      %p430 = scmp.eq.s32.totalorder %s54, 0
      %p431 = por %p429, %p430
      %s432 = ssub.s32 %s56, %s63
      %p433 = scmp.eq.s32.totalorder %s432, 0
      %s435 = sadd.s32 %s434, 1
      %s436 = scalar_select %p433, %s434, %s435
      %p439 = pneg %p433
      %p440 = scmp.eq.s32.totalorder %s48, 3
      %p441 = por %p439, %p440
      %p442 = scmp.ne.s32.totalorder %s434, %s437
      %p443 = scmp.eq.s32.totalorder %s48, 0
      %p444 = por %p442, %p443
      %p445 = scmp.ne.s32.totalorder %s434, %s437
      %p446 = scmp.eq.s32.totalorder %s53, 3
      %p447 = por %p445, %p446
      %p448 = scmp.ne.s32.totalorder %s437, %s438
      %p449 = scmp.eq.s32.totalorder %s53, 0
      %p450 = por %p448, %p449
      %p451 = scmp.ne.s32.totalorder %s437, %s438
      %p452 = scmp.eq.s32.totalorder %s54, 3
      %p453 = por %p451, %p452
      %p455 = scmp.ne.s32.totalorder %s438, %s454
      %p456 = scmp.eq.s32.totalorder %s54, 0
      %p457 = por %p455, %p456
      %s458 = ssub.s32 %s56, %s63
      %p459 = scmp.eq.s32.totalorder %s458, 0
      %s461 = sadd.s32 %s460, 1
      %s462 = scalar_select %p459, %s460, %s461
      %p465 = pneg %p459
      %p466 = scmp.eq.s32.totalorder %s48, 3
      %p467 = por %p465, %p466
      %p468 = scmp.ne.s32.totalorder %s460, %s463
      %p469 = scmp.eq.s32.totalorder %s48, 0
      %p470 = por %p468, %p469
      %p471 = scmp.ne.s32.totalorder %s460, %s463
      %p472 = scmp.eq.s32.totalorder %s53, 3
      %p473 = por %p471, %p472
      %p474 = scmp.ne.s32.totalorder %s463, %s464
      %p475 = scmp.eq.s32.totalorder %s53, 0
      %p476 = por %p474, %p475
      %p477 = scmp.ne.s32.totalorder %s463, %s464
      %p478 = scmp.eq.s32.totalorder %s54, 3
      %p479 = por %p477, %p478
      %p481 = scmp.ne.s32.totalorder %s464, %s480
      %p482 = scmp.eq.s32.totalorder %s54, 0
      %p483 = por %p481, %p482
      %s484 = ssub.s32 %s56, %s63
      %p485 = scmp.eq.s32.totalorder %s484, 0
      %s487 = sadd.s32 %s486, 1
      %s488 = scalar_select %p485, %s486, %s487
      %p491 = pneg %p485
      %p492 = scmp.eq.s32.totalorder %s48, 3
      %p493 = por %p491, %p492
      %p494 = scmp.ne.s32.totalorder %s486, %s489
      %p495 = scmp.eq.s32.totalorder %s48, 0
      %p496 = por %p494, %p495
      %p497 = scmp.ne.s32.totalorder %s486, %s489
      %p498 = scmp.eq.s32.totalorder %s53, 3
      %p499 = por %p497, %p498
      %p500 = scmp.ne.s32.totalorder %s489, %s490
      %p501 = scmp.eq.s32.totalorder %s53, 0
      %p502 = por %p500, %p501
      %p503 = scmp.ne.s32.totalorder %s489, %s490
      %p504 = scmp.eq.s32.totalorder %s54, 3
      %p505 = por %p503, %p504
      %p507 = scmp.ne.s32.totalorder %s490, %s506
      %p508 = scmp.eq.s32.totalorder %s54, 0
      %p509 = por %p507, %p508
      %s510 = ssub.s32 %s56, %s63
      %p511 = scmp.eq.s32.totalorder %s510, 0
      %s513 = sadd.s32 %s512, 1
      %s514 = scalar_select %p511, %s512, %s513
      %p517 = pneg %p511
      %p518 = scmp.eq.s32.totalorder %s48, 3
      %p519 = por %p517, %p518
      %p520 = scmp.ne.s32.totalorder %s512, %s515
      %p521 = scmp.eq.s32.totalorder %s48, 0
      %p522 = por %p520, %p521
      %p523 = scmp.ne.s32.totalorder %s512, %s515
      %p524 = scmp.eq.s32.totalorder %s53, 3
      %p525 = por %p523, %p524
      %p526 = scmp.ne.s32.totalorder %s515, %s516
      %p527 = scmp.eq.s32.totalorder %s53, 0
      %p528 = por %p526, %p527
      %p529 = scmp.ne.s32.totalorder %s515, %s516
      %p530 = scmp.eq.s32.totalorder %s54, 3
      %p531 = por %p529, %p530
      %p533 = scmp.ne.s32.totalorder %s516, %s532
      %p534 = scmp.eq.s32.totalorder %s54, 0
      %p535 = por %p533, %p534
      %s537 = sadd.s32 %s536, 1
      %p540 = scmp.eq.s32.totalorder %s48, 3
      %p541 = scmp.ne.s32.totalorder %s536, %s538
      %p542 = scmp.eq.s32.totalorder %s48, 0
      %p543 = por %p541, %p542
      %p544 = scmp.ne.s32.totalorder %s536, %s538
      %p545 = scmp.eq.s32.totalorder %s53, 3
      %p546 = por %p544, %p545
      %p547 = scmp.ne.s32.totalorder %s538, %s539
      %p548 = scmp.eq.s32.totalorder %s53, 0
      %p549 = por %p547, %p548
      %p550 = scmp.ne.s32.totalorder %s538, %s539
      %p551 = scmp.eq.s32.totalorder %s54, 3
      %p552 = por %p550, %p551
      %p554 = scmp.ne.s32.totalorder %s539, %s553
      %p555 = scmp.eq.s32.totalorder %s54, 0
      %p556 = por %p554, %p555
      %s558 = sadd.s32 %s557, 1
      %p561 = scmp.eq.s32.totalorder %s48, 3
      %p562 = scmp.ne.s32.totalorder %s557, %s559
      %p563 = scmp.eq.s32.totalorder %s48, 0
      %p564 = por %p562, %p563
      %p565 = scmp.ne.s32.totalorder %s557, %s559
      %p566 = scmp.eq.s32.totalorder %s53, 3
      %p567 = por %p565, %p566
      %p568 = scmp.ne.s32.totalorder %s559, %s560
      %p569 = scmp.eq.s32.totalorder %s53, 0
      %p570 = por %p568, %p569
      %p571 = scmp.ne.s32.totalorder %s559, %s560
      %p572 = scmp.eq.s32.totalorder %s54, 3
      %p573 = por %p571, %p572
      %p575 = scmp.ne.s32.totalorder %s560, %s574
      %p576 = scmp.eq.s32.totalorder %s54, 0
      %p577 = por %p575, %p576
      %s579 = sadd.s32 %s578, 1
      %p582 = scmp.eq.s32.totalorder %s48, 3
      %p583 = scmp.ne.s32.totalorder %s578, %s580
      %p584 = scmp.eq.s32.totalorder %s48, 0
      %p585 = por %p583, %p584
      %p586 = scmp.ne.s32.totalorder %s578, %s580
      %p587 = scmp.eq.s32.totalorder %s53, 3
      %p588 = por %p586, %p587
      %p589 = scmp.ne.s32.totalorder %s580, %s581
      %p590 = scmp.eq.s32.totalorder %s53, 0
      %p591 = por %p589, %p590
      %p592 = scmp.ne.s32.totalorder %s580, %s581
      %p593 = scmp.eq.s32.totalorder %s54, 3
      %p594 = por %p592, %p593
      %p596 = scmp.ne.s32.totalorder %s581, %s595
      %p597 = scmp.eq.s32.totalorder %s54, 0
      %p598 = por %p596, %p597
      %s599 = ssub.s32 %s55, %s67
      %p600 = scmp.eq.s32.totalorder %s599, 0
      %s602 = sadd.s32 %s601, 1
      %s603 = scalar_select %p600, %s601, %s602
      %p606 = pneg %p600
      %p607 = scmp.eq.s32.totalorder %s48, 3
      %p608 = por %p606, %p607
      %p609 = scmp.ne.s32.totalorder %s601, %s604
      %p610 = scmp.eq.s32.totalorder %s48, 0
      %p611 = por %p609, %p610
      %p612 = scmp.ne.s32.totalorder %s601, %s604
      %p613 = scmp.eq.s32.totalorder %s53, 3
      %p614 = por %p612, %p613
      %p615 = scmp.ne.s32.totalorder %s604, %s605
      %p616 = scmp.eq.s32.totalorder %s53, 0
      %p617 = por %p615, %p616
      %p618 = scmp.ne.s32.totalorder %s604, %s605
      %p619 = scmp.eq.s32.totalorder %s54, 3
      %p620 = por %p618, %p619
      %p622 = scmp.ne.s32.totalorder %s605, %s621
      %p623 = scmp.eq.s32.totalorder %s54, 0
      %p624 = por %p622, %p623
      %p625 = scmp.le.s32.totalorder 1, %s48
      %p626 = scmp.lt.s32.totalorder %s48, 5
      %p627 = pnand %p625, %p626
      %p628 = pneg %p627
      // Predicated region
      $region9: #{tpu_custom_call.1} parent=5 // pred_check
        _
      $region10: #{tpu_custom_call.1} parent=5 // pred_check_branch
        %630 = sbr.rel (%p627) target = $region12
      $region11: #{tpu_custom_call.1} parent=5 // pred_region
        %s631 = ssub.s32 %s48, 1
        // Predicated region
        $region13: #{tpu_custom_call.1} parent=11 // pred_check
          %p632 = pneg %p549
        $region14: #{tpu_custom_call.1} parent=11 // pred_check_branch
          %634 = sbr.rel (%p632) target = $region16
        $region15: #{tpu_custom_call.1} parent=11 // pred_region
          _
        $region16: #{tpu_custom_call.1} parent=11 // pred_fallthru
          _
        // Predicated region
        $region17: #{tpu_custom_call.1} parent=11 // pred_check
          %p635 = pneg %p570
        $region18: #{tpu_custom_call.1} parent=11 // pred_check_branch
          %637 = sbr.rel (%p635) target = $region20
        $region19: #{tpu_custom_call.1} parent=11 // pred_region
          %639 = vsyncadd [#allocation19], 0
          %s641 = sshll.u32 %s19, 4
          %s642 = int_to_ptr.hbm [resolvable:$true] %s641
          %s643 = sshll.u32 [#allocation20], 4
          %s644 = int_to_ptr.vmem [resolvable:$true] %s643
          %646 = dma.hbm_to_vmem [thread:$0]  %s642, 16, %s644, [#allocation19]
        $region20: #{tpu_custom_call.1} parent=11 // pred_fallthru
          _
        // Predicated region
        $region21: #{tpu_custom_call.1} parent=11 // pred_check
          %p647 = pneg %p591
        $region22: #{tpu_custom_call.1} parent=11 // pred_check_branch
          %649 = sbr.rel (%p647) target = $region24
        $region23: #{tpu_custom_call.1} parent=11 // pred_region
          _
        $region24: #{tpu_custom_call.1} parent=11 // pred_fallthru
          _
      $region12: #{tpu_custom_call.1} parent=5 // pred_fallthru
        _
      %p650 = scmp.lt.s32.totalorder %s48, 4
      // Predicated region
      $region25: #{tpu_custom_call.1} parent=5 // pred_check
        %p651 = pneg %p650
      $region26: #{tpu_custom_call.1} parent=5 // pred_check_branch
        %653 = sbr.rel (%p651) target = $region28
      $region27: #{tpu_custom_call.1} parent=5 // pred_region
        // Predicated region
        $region29: #{tpu_custom_call.1} parent=27 // pred_check
          %p654 = pneg %p80
        $region30: #{tpu_custom_call.1} parent=27 // pred_check_branch
          %656 = sbr.rel (%p654) target = $region32
        $region31: #{tpu_custom_call.1} parent=27 // pred_region
          %s657 = smul.u32 2, %s55
          %p658 = scmp.lt.s32.totalorder %s657, 3
          %s659 = scalar_select %p658, %s657, 3
          %s660 = smul.addr %s659, 16
          %s661 = smul.addr %s660, 8
          %s662 = scalar_lea.vmem %s0, %s661
          %s663 = smul.u32 2, %s55
        $region32: #{tpu_custom_call.1} parent=27 // pred_fallthru
          _
        // Predicated region
        $region33: #{tpu_custom_call.1} parent=27 // pred_check
          %p664 = pneg %p106
        $region34: #{tpu_custom_call.1} parent=27 // pred_check_branch
          %666 = sbr.rel (%p664) target = $region36
        $region35: #{tpu_custom_call.1} parent=27 // pred_region
          %s667 = smul.u32 2, %s55
          %p668 = scmp.lt.s32.totalorder %s667, 3
          %s669 = scalar_select %p668, %s667, 3
          %s670 = smul.addr %s669, 16
          %s671 = smul.addr %s670, 8
          %s672 = scalar_lea.vmem %s1, %s671
          %s673 = smul.u32 2, %s55
        $region36: #{tpu_custom_call.1} parent=27 // pred_fallthru
          _
        // Predicated region
        $region37: #{tpu_custom_call.1} parent=27 // pred_check
          %p674 = pneg %p132
        $region38: #{tpu_custom_call.1} parent=27 // pred_check_branch
          %676 = sbr.rel (%p674) target = $region40
        $region39: #{tpu_custom_call.1} parent=27 // pred_region
          %s677 = sand.u32 %s122, 1
          %s678 = scalar_lea.sflag [#allocation4], %s677
          %s679 = sand.u32 %s122, 1
          %s680 = scalar_lea.vmem [#allocation3], %s679
          %682 = vsyncadd %s678, 0
          %s683 = scalar_lea.hbm %s2, %s56
          %s685 = sshll.u32 %s683, 4
          %s686 = int_to_ptr.hbm [resolvable:$true] %s685
          %s687 = sshll.u32 %s680, 4
          %s688 = int_to_ptr.vmem [resolvable:$true] %s687
          %690 = dma.hbm_to_vmem [thread:$0]  %s686, 16, %s688, %s678
        $region40: #{tpu_custom_call.1} parent=27 // pred_fallthru
          _
        // Predicated region
        $region41: #{tpu_custom_call.1} parent=27 // pred_check
          %p691 = pneg %p158
        $region42: #{tpu_custom_call.1} parent=27 // pred_check_branch
          %693 = sbr.rel (%p691) target = $region44
        $region43: #{tpu_custom_call.1} parent=27 // pred_region
          %s694 = sand.u32 %s48, 1
          %s695 = scalar_lea.sflag [#allocation7], %s694
          %s696 = sand.u32 %s148, 1
          %s697 = scalar_lea.vmem [#allocation6], %s696
          %699 = vsyncadd %s695, 0
          %s700 = scalar_lea.hbm %s3, %s56
          %s702 = sshll.u32 %s700, 4
          %s703 = int_to_ptr.hbm [resolvable:$true] %s702
          %s704 = sshll.u32 %s697, 4
          %s705 = int_to_ptr.vmem [resolvable:$true] %s704
          %707 = dma.hbm_to_vmem [thread:$0]  %s703, 16, %s705, %s695
        $region44: #{tpu_custom_call.1} parent=27 // pred_fallthru
          _
        // Predicated region
        $region45: #{tpu_custom_call.1} parent=27 // pred_check
          %p708 = pneg %p184
        $region46: #{tpu_custom_call.1} parent=27 // pred_check_branch
          %710 = sbr.rel (%p708) target = $region48
        $region47: #{tpu_custom_call.1} parent=27 // pred_region
          %p711 = scmp.lt.s32.totalorder %s56, 1
          %s712 = scalar_select %p711, %s56, 1
          %s713 = smul.addr %s712, 4
          %s714 = smul.addr %s713, 4
          %s715 = scalar_lea.vmem %s4, %s714
        $region48: #{tpu_custom_call.1} parent=27 // pred_fallthru
          _
        // Predicated region
        $region49: #{tpu_custom_call.1} parent=27 // pred_check
          %p716 = pneg %p210
        $region50: #{tpu_custom_call.1} parent=27 // pred_check_branch
          %718 = sbr.rel (%p716) target = $region52
        $region51: #{tpu_custom_call.1} parent=27 // pred_region
          %s719 = sand.u32 %s48, 1
          %s720 = scalar_lea.sflag [#allocation7], %s719
          %s721 = sand.u32 %s200, 1
          %s722 = scalar_lea.vmem [#allocation8], %s721
          %724 = vsyncadd %s720, 0
          %s725 = scalar_lea.hbm %s5, %s56
          %s727 = sshll.u32 %s725, 4
          %s728 = int_to_ptr.hbm [resolvable:$true] %s727
          %s729 = sshll.u32 %s722, 4
          %s730 = int_to_ptr.vmem [resolvable:$true] %s729
          %732 = dma.hbm_to_vmem [thread:$0]  %s728, 16, %s730, %s720
        $region52: #{tpu_custom_call.1} parent=27 // pred_fallthru
          _
        // Predicated region
        $region53: #{tpu_custom_call.1} parent=27 // pred_check
          %p733 = pneg %p236
        $region54: #{tpu_custom_call.1} parent=27 // pred_check_branch
          %735 = sbr.rel (%p733) target = $region56
        $region55: #{tpu_custom_call.1} parent=27 // pred_region
          %p736 = scmp.lt.s32.totalorder %s56, 1
          %s737 = scalar_select %p736, %s56, 1
          %s738 = smul.addr %s737, 4
          %s739 = smul.addr %s738, 4
          %s740 = scalar_lea.vmem %s6, %s739
        $region56: #{tpu_custom_call.1} parent=27 // pred_fallthru
          _
        // Predicated region
        $region57: #{tpu_custom_call.1} parent=27 // pred_check
          %p741 = pneg %p262
        $region58: #{tpu_custom_call.1} parent=27 // pred_check_branch
          %743 = sbr.rel (%p741) target = $region60
        $region59: #{tpu_custom_call.1} parent=27 // pred_region
          %s744 = sand.u32 %s48, 1
          %s745 = scalar_lea.sflag [#allocation10], %s744
          %s746 = sand.u32 %s252, 1
          %s747 = scalar_lea.vmem [#allocation9], %s746
          %749 = vsyncadd %s745, 0
          %s750 = scalar_lea.hbm %s7, %s56
          %s752 = sshll.u32 %s750, 4
          %s753 = int_to_ptr.hbm [resolvable:$true] %s752
          %s754 = sshll.u32 %s747, 4
          %s755 = int_to_ptr.vmem [resolvable:$true] %s754
          %757 = dma.hbm_to_vmem [thread:$0]  %s753, 16, %s755, %s745
        $region60: #{tpu_custom_call.1} parent=27 // pred_fallthru
          _
        // Predicated region
        $region61: #{tpu_custom_call.1} parent=27 // pred_check
          %p758 = pneg %p288
        $region62: #{tpu_custom_call.1} parent=27 // pred_check_branch
          %760 = sbr.rel (%p758) target = $region64
        $region63: #{tpu_custom_call.1} parent=27 // pred_region
          %p761 = scmp.lt.s32.totalorder %s56, 1
          %s762 = scalar_select %p761, %s56, 1
          %s763 = smul.addr %s762, 4
          %s764 = smul.addr %s763, 4
          %s765 = scalar_lea.vmem %s8, %s764
        $region64: #{tpu_custom_call.1} parent=27 // pred_fallthru
          _
        // Predicated region
        $region65: #{tpu_custom_call.1} parent=27 // pred_check
          %p766 = pneg %p314
        $region66: #{tpu_custom_call.1} parent=27 // pred_check_branch
          %768 = sbr.rel (%p766) target = $region68
        $region67: #{tpu_custom_call.1} parent=27 // pred_region
          %s769 = sand.u32 %s48, 1
          %s770 = scalar_lea.sflag [#allocation10], %s769
          %s771 = sand.u32 %s304, 1
          %s772 = scalar_lea.vmem [#allocation11], %s771
          %774 = vsyncadd %s770, 0
          %s775 = scalar_lea.hbm %s9, %s56
          %s777 = sshll.u32 %s775, 4
          %s778 = int_to_ptr.hbm [resolvable:$true] %s777
          %s779 = sshll.u32 %s772, 4
          %s780 = int_to_ptr.vmem [resolvable:$true] %s779
          %782 = dma.hbm_to_vmem [thread:$0]  %s778, 16, %s780, %s770
        $region68: #{tpu_custom_call.1} parent=27 // pred_fallthru
          _
        // Predicated region
        $region69: #{tpu_custom_call.1} parent=27 // pred_check
          %p783 = pneg %p340
        $region70: #{tpu_custom_call.1} parent=27 // pred_check_branch
          %785 = sbr.rel (%p783) target = $region72
        $region71: #{tpu_custom_call.1} parent=27 // pred_region
          %p786 = scmp.lt.s32.totalorder %s56, 1
          %s787 = scalar_select %p786, %s56, 1
          %s788 = smul.addr %s787, 4
          %s789 = smul.addr %s788, 4
          %s790 = scalar_lea.vmem %s10, %s789
        $region72: #{tpu_custom_call.1} parent=27 // pred_fallthru
          _
        // Predicated region
        $region73: #{tpu_custom_call.1} parent=27 // pred_check
          %p791 = pneg %p366
        $region74: #{tpu_custom_call.1} parent=27 // pred_check_branch
          %793 = sbr.rel (%p791) target = $region76
        $region75: #{tpu_custom_call.1} parent=27 // pred_region
          %s794 = sand.u32 %s48, 1
          %s795 = scalar_lea.sflag [#allocation13], %s794
          %s796 = sand.u32 %s356, 1
          %s797 = scalar_lea.vmem [#allocation12], %s796
          %799 = vsyncadd %s795, 0
          %s800 = scalar_lea.hbm %s11, %s56
          %s802 = sshll.u32 %s800, 4
          %s803 = int_to_ptr.hbm [resolvable:$true] %s802
          %s804 = sshll.u32 %s797, 4
          %s805 = int_to_ptr.vmem [resolvable:$true] %s804
          %807 = dma.hbm_to_vmem [thread:$0]  %s803, 16, %s805, %s795
        $region76: #{tpu_custom_call.1} parent=27 // pred_fallthru
          _
        // Predicated region
        $region77: #{tpu_custom_call.1} parent=27 // pred_check
          %p808 = pneg %p392
        $region78: #{tpu_custom_call.1} parent=27 // pred_check_branch
          %810 = sbr.rel (%p808) target = $region80
        $region79: #{tpu_custom_call.1} parent=27 // pred_region
          %s811 = sand.u32 %s48, 1
          %s812 = scalar_lea.sflag [#allocation13], %s811
          %s813 = sand.u32 %s382, 1
          %s814 = scalar_lea.vmem [#allocation14], %s813
          %816 = vsyncadd %s812, 0
          %s817 = scalar_lea.hbm %s12, %s56
          %s819 = sshll.u32 %s817, 4
          %s820 = int_to_ptr.hbm [resolvable:$true] %s819
          %s821 = sshll.u32 %s814, 4
          %s822 = int_to_ptr.vmem [resolvable:$true] %s821
          %824 = dma.hbm_to_vmem [thread:$0]  %s820, 16, %s822, %s812
        $region80: #{tpu_custom_call.1} parent=27 // pred_fallthru
          _
        // Predicated region
        $region81: #{tpu_custom_call.1} parent=27 // pred_check
          %p825 = pneg %p418
        $region82: #{tpu_custom_call.1} parent=27 // pred_check_branch
          %827 = sbr.rel (%p825) target = $region84
        $region83: #{tpu_custom_call.1} parent=27 // pred_region
          %s828 = sand.u32 %s48, 1
          %s829 = scalar_lea.sflag [#allocation16], %s828
          %s830 = sand.u32 %s408, 1
          %s831 = scalar_lea.vmem [#allocation15], %s830
          %833 = vsyncadd %s829, 0
          %s834 = scalar_lea.hbm %s13, %s56
          %s836 = sshll.u32 %s834, 4
          %s837 = int_to_ptr.hbm [resolvable:$true] %s836
          %s838 = sshll.u32 %s831, 4
          %s839 = int_to_ptr.vmem [resolvable:$true] %s838
          %841 = dma.hbm_to_vmem [thread:$0]  %s837, 16, %s839, %s829
        $region84: #{tpu_custom_call.1} parent=27 // pred_fallthru
          _
        // Predicated region
        $region85: #{tpu_custom_call.1} parent=27 // pred_check
          %p842 = pneg %p444
        $region86: #{tpu_custom_call.1} parent=27 // pred_check_branch
          %844 = sbr.rel (%p842) target = $region88
        $region87: #{tpu_custom_call.1} parent=27 // pred_region
          %p845 = scmp.lt.s32.totalorder %s56, 1
          %s846 = scalar_select %p845, %s56, 1
          %s847 = smul.addr %s846, 4
          %s848 = smul.addr %s847, 4
          %s849 = scalar_lea.vmem %s14, %s848
        $region88: #{tpu_custom_call.1} parent=27 // pred_fallthru
          _
        // Predicated region
        $region89: #{tpu_custom_call.1} parent=27 // pred_check
          %p850 = pneg %p470
        $region90: #{tpu_custom_call.1} parent=27 // pred_check_branch
          %852 = sbr.rel (%p850) target = $region92
        $region91: #{tpu_custom_call.1} parent=27 // pred_region
          %s853 = sand.u32 %s48, 1
          %s854 = scalar_lea.sflag [#allocation16], %s853
          %s855 = sand.u32 %s460, 1
          %s856 = scalar_lea.vmem [#allocation17], %s855
          %858 = vsyncadd %s854, 0
          %s859 = scalar_lea.hbm %s15, %s56
          %s861 = sshll.u32 %s859, 4
          %s862 = int_to_ptr.hbm [resolvable:$true] %s861
          %s863 = sshll.u32 %s856, 4
          %s864 = int_to_ptr.vmem [resolvable:$true] %s863
          %866 = dma.hbm_to_vmem [thread:$0]  %s862, 16, %s864, %s854
        $region92: #{tpu_custom_call.1} parent=27 // pred_fallthru
          _
        // Predicated region
        $region93: #{tpu_custom_call.1} parent=27 // pred_check
          %p867 = pneg %p496
        $region94: #{tpu_custom_call.1} parent=27 // pred_check_branch
          %869 = sbr.rel (%p867) target = $region96
        $region95: #{tpu_custom_call.1} parent=27 // pred_region
          %p870 = scmp.lt.s32.totalorder %s56, 1
          %s871 = scalar_select %p870, %s56, 1
          %s872 = smul.addr %s871, 16
          %s873 = smul.addr %s872, 4
          %s874 = scalar_lea.vmem %s16, %s873
        $region96: #{tpu_custom_call.1} parent=27 // pred_fallthru
          _
        // Predicated region
        $region97: #{tpu_custom_call.1} parent=27 // pred_check
          %p875 = pneg %p522
        $region98: #{tpu_custom_call.1} parent=27 // pred_check_branch
          %877 = sbr.rel (%p875) target = $region100
        $region99: #{tpu_custom_call.1} parent=27 // pred_region
          %s878 = sand.u32 %s48, 1
          %s879 = scalar_lea.sflag [#allocation19], %s878
          %s880 = sand.u32 %s512, 1
          %s881 = scalar_lea.vmem [#allocation18], %s880
          %883 = vsyncadd %s879, 0
          %s884 = scalar_lea.hbm %s17, %s56
          %s886 = sshll.u32 %s884, 4
          %s887 = int_to_ptr.hbm [resolvable:$true] %s886
          %s888 = sshll.u32 %s881, 4
          %s889 = int_to_ptr.vmem [resolvable:$true] %s888
          %891 = dma.hbm_to_vmem [thread:$0]  %s887, 16, %s889, %s879
        $region100: #{tpu_custom_call.1} parent=27 // pred_fallthru
          _
      $region28: #{tpu_custom_call.1} parent=5 // pred_fallthru
        _
      %p892 = scmp.le.s32.totalorder 1, %s48
      %p893 = scmp.lt.s32.totalorder %s48, 5
      %p894 = pnand %p892, %p893
      %p895 = pneg %p894
      // Predicated region
      $region101: #{tpu_custom_call.1} parent=5 // pred_check
        _
      $region102: #{tpu_custom_call.1} parent=5 // pred_check_branch
        %897 = sbr.rel (%p894) target = $region104
      $region103: #{tpu_custom_call.1} parent=5 // pred_region
        %s898 = ssub.s32 %s48, 1
        %s899 = sand.u32 %s125, 1
        %s900 = scalar_lea.sflag [#allocation4], %s899
        %s901 = sand.u32 %s125, 1
        %s902 = scalar_lea.vmem [#allocation3], %s901
        // Predicated region
        $region105: #{tpu_custom_call.1} parent=103 // pred_check
          %p903 = pneg %p138
        $region106: #{tpu_custom_call.1} parent=103 // pred_check_branch
          %905 = sbr.rel (%p903) target = $region108
        $region107: #{tpu_custom_call.1} parent=103 // pred_region
          %907 = dma.done %s900, 16
        $region108: #{tpu_custom_call.1} parent=103 // pred_fallthru
          _
        %s908 = sand.u32 %s53, 1
        %s909 = scalar_lea.sflag [#allocation7], %s908
        %s910 = sand.u32 %s151, 1
        %s911 = scalar_lea.vmem [#allocation6], %s910
        // Predicated region
        $region109: #{tpu_custom_call.1} parent=103 // pred_check
          %p912 = pneg %p164
        $region110: #{tpu_custom_call.1} parent=103 // pred_check_branch
          %914 = sbr.rel (%p912) target = $region112
        $region111: #{tpu_custom_call.1} parent=103 // pred_region
          %916 = dma.done %s909, 16
        $region112: #{tpu_custom_call.1} parent=103 // pred_fallthru
          _
        %s917 = sand.u32 %s53, 1
        %s918 = scalar_lea.sflag [#allocation7], %s917
        %s919 = sand.u32 %s203, 1
        %s920 = scalar_lea.vmem [#allocation8], %s919
        // Predicated region
        $region113: #{tpu_custom_call.1} parent=103 // pred_check
          %p921 = pneg %p216
        $region114: #{tpu_custom_call.1} parent=103 // pred_check_branch
          %923 = sbr.rel (%p921) target = $region116
        $region115: #{tpu_custom_call.1} parent=103 // pred_region
          %925 = dma.done %s918, 16
        $region116: #{tpu_custom_call.1} parent=103 // pred_fallthru
          _
        %s926 = sand.u32 %s53, 1
        %s927 = scalar_lea.sflag [#allocation10], %s926
        %s928 = sand.u32 %s255, 1
        %s929 = scalar_lea.vmem [#allocation9], %s928
        // Predicated region
        $region117: #{tpu_custom_call.1} parent=103 // pred_check
          %p930 = pneg %p268
        $region118: #{tpu_custom_call.1} parent=103 // pred_check_branch
          %932 = sbr.rel (%p930) target = $region120
        $region119: #{tpu_custom_call.1} parent=103 // pred_region
          %934 = dma.done %s927, 16
        $region120: #{tpu_custom_call.1} parent=103 // pred_fallthru
          _
        %s935 = sand.u32 %s53, 1
        %s936 = scalar_lea.sflag [#allocation10], %s935
        %s937 = sand.u32 %s307, 1
        %s938 = scalar_lea.vmem [#allocation11], %s937
        // Predicated region
        $region121: #{tpu_custom_call.1} parent=103 // pred_check
          %p939 = pneg %p320
        $region122: #{tpu_custom_call.1} parent=103 // pred_check_branch
          %941 = sbr.rel (%p939) target = $region124
        $region123: #{tpu_custom_call.1} parent=103 // pred_region
          %943 = dma.done %s936, 16
        $region124: #{tpu_custom_call.1} parent=103 // pred_fallthru
          _
        %s944 = sand.u32 %s53, 1
        %s945 = scalar_lea.sflag [#allocation13], %s944
        %s946 = sand.u32 %s359, 1
        %s947 = scalar_lea.vmem [#allocation12], %s946
        // Predicated region
        $region125: #{tpu_custom_call.1} parent=103 // pred_check
          %p948 = pneg %p372
        $region126: #{tpu_custom_call.1} parent=103 // pred_check_branch
          %950 = sbr.rel (%p948) target = $region128
        $region127: #{tpu_custom_call.1} parent=103 // pred_region
          %952 = dma.done %s945, 16
        $region128: #{tpu_custom_call.1} parent=103 // pred_fallthru
          _
        %s953 = sand.u32 %s53, 1
        %s954 = scalar_lea.sflag [#allocation13], %s953
        %s955 = sand.u32 %s385, 1
        %s956 = scalar_lea.vmem [#allocation14], %s955
        // Predicated region
        $region129: #{tpu_custom_call.1} parent=103 // pred_check
          %p957 = pneg %p398
        $region130: #{tpu_custom_call.1} parent=103 // pred_check_branch
          %959 = sbr.rel (%p957) target = $region132
        $region131: #{tpu_custom_call.1} parent=103 // pred_region
          %961 = dma.done %s954, 16
        $region132: #{tpu_custom_call.1} parent=103 // pred_fallthru
          _
        %s962 = sand.u32 %s53, 1
        %s963 = scalar_lea.sflag [#allocation16], %s962
        %s964 = sand.u32 %s411, 1
        %s965 = scalar_lea.vmem [#allocation15], %s964
        // Predicated region
        $region133: #{tpu_custom_call.1} parent=103 // pred_check
          %p966 = pneg %p424
        $region134: #{tpu_custom_call.1} parent=103 // pred_check_branch
          %968 = sbr.rel (%p966) target = $region136
        $region135: #{tpu_custom_call.1} parent=103 // pred_region
          %970 = dma.done %s963, 16
        $region136: #{tpu_custom_call.1} parent=103 // pred_fallthru
          _
        %s971 = sand.u32 %s53, 1
        %s972 = scalar_lea.sflag [#allocation16], %s971
        %s973 = sand.u32 %s463, 1
        %s974 = scalar_lea.vmem [#allocation17], %s973
        // Predicated region
        $region137: #{tpu_custom_call.1} parent=103 // pred_check
          %p975 = pneg %p476
        $region138: #{tpu_custom_call.1} parent=103 // pred_check_branch
          %977 = sbr.rel (%p975) target = $region140
        $region139: #{tpu_custom_call.1} parent=103 // pred_region
          %979 = dma.done %s972, 16
        $region140: #{tpu_custom_call.1} parent=103 // pred_fallthru
          _
        %s980 = sand.u32 %s53, 1
        %s981 = scalar_lea.sflag [#allocation19], %s980
        %s982 = sand.u32 %s515, 1
        %s983 = scalar_lea.vmem [#allocation18], %s982
        // Predicated region
        $region141: #{tpu_custom_call.1} parent=103 // pred_check
          %p984 = pneg %p528
        $region142: #{tpu_custom_call.1} parent=103 // pred_check_branch
          %986 = sbr.rel (%p984) target = $region144
        $region143: #{tpu_custom_call.1} parent=103 // pred_region
          %988 = dma.done %s981, 16
        $region144: #{tpu_custom_call.1} parent=103 // pred_fallthru
          _
        // Predicated region
        $region145: #{tpu_custom_call.1} parent=103 // pred_check
          %p989 = pneg %p570
        $region146: #{tpu_custom_call.1} parent=103 // pred_check_branch
          %991 = sbr.rel (%p989) target = $region148
        $region147: #{tpu_custom_call.1} parent=103 // pred_region
          %993 = dma.done [#allocation19], 16
        $region148: #{tpu_custom_call.1} parent=103 // pred_fallthru
          _
        %s994 = smul.u32 2, %s57
        %p995 = scmp.lt.s32.totalorder %s994, 3
        %s996 = scalar_select %p995, %s994, 3
        %s997 = smul.addr %s996, 16
        %s998 = smul.addr %s997, 8
        %s999 = scalar_lea.vmem %s0, %s998
        %p1000 = pneg %p86
        %p1001 = pneg %p83
        %s1002 = smul.u32 2, %s57
        %p1003 = scmp.lt.s32.totalorder %s1002, 3
        %s1004 = scalar_select %p1003, %s1002, 3
        %s1005 = smul.addr %s1004, 16
        %s1006 = smul.addr %s1005, 8
        %s1007 = scalar_lea.vmem %s1, %s1006
        %p1008 = pneg %p112
        %p1009 = pneg %p109
        %s1010 = sand.u32 %s125, 1
        %s1011 = scalar_lea.sflag [#allocation4], %s1010
        %s1012 = sand.u32 %s125, 1
        %s1013 = scalar_lea.vmem [#allocation3], %s1012
        %p1014 = pneg %p138
        %p1015 = pneg %p135
        %s1016 = sand.u32 %s53, 1
        %s1017 = scalar_lea.sflag [#allocation7], %s1016
        %s1018 = sand.u32 %s151, 1
        %s1019 = scalar_lea.vmem [#allocation6], %s1018
        %p1020 = pneg %p164
        %p1021 = pneg %p161
        %p1022 = scmp.lt.s32.totalorder %s58, 1
        %s1023 = scalar_select %p1022, %s58, 1
        %s1024 = smul.addr %s1023, 4
        %s1025 = smul.addr %s1024, 4
        %s1026 = scalar_lea.vmem %s4, %s1025
        %p1027 = pneg %p190
        %p1028 = pneg %p187
        %s1029 = sand.u32 %s53, 1
        %s1030 = scalar_lea.sflag [#allocation7], %s1029
        %s1031 = sand.u32 %s203, 1
        %s1032 = scalar_lea.vmem [#allocation8], %s1031
        %p1033 = pneg %p216
        %p1034 = pneg %p213
        %p1035 = scmp.lt.s32.totalorder %s58, 1
        %s1036 = scalar_select %p1035, %s58, 1
        %s1037 = smul.addr %s1036, 4
        %s1038 = smul.addr %s1037, 4
        %s1039 = scalar_lea.vmem %s6, %s1038
        %p1040 = pneg %p242
        %p1041 = pneg %p239
        %s1042 = sand.u32 %s53, 1
        %s1043 = scalar_lea.sflag [#allocation10], %s1042
        %s1044 = sand.u32 %s255, 1
        %s1045 = scalar_lea.vmem [#allocation9], %s1044
        %p1046 = pneg %p268
        %p1047 = pneg %p265
        %p1048 = scmp.lt.s32.totalorder %s58, 1
        %s1049 = scalar_select %p1048, %s58, 1
        %s1050 = smul.addr %s1049, 4
        %s1051 = smul.addr %s1050, 4
        %s1052 = scalar_lea.vmem %s8, %s1051
        %p1053 = pneg %p294
        %p1054 = pneg %p291
        %s1055 = sand.u32 %s53, 1
        %s1056 = scalar_lea.sflag [#allocation10], %s1055
        %s1057 = sand.u32 %s307, 1
        %s1058 = scalar_lea.vmem [#allocation11], %s1057
        %p1059 = pneg %p320
        %p1060 = pneg %p317
        %p1061 = scmp.lt.s32.totalorder %s58, 1
        %s1062 = scalar_select %p1061, %s58, 1
        %s1063 = smul.addr %s1062, 4
        %s1064 = smul.addr %s1063, 4
        %s1065 = scalar_lea.vmem %s10, %s1064
        %p1066 = pneg %p346
        %p1067 = pneg %p343
        %s1068 = sand.u32 %s53, 1
        %s1069 = scalar_lea.sflag [#allocation13], %s1068
        %s1070 = sand.u32 %s359, 1
        %s1071 = scalar_lea.vmem [#allocation12], %s1070
        %p1072 = pneg %p372
        %p1073 = pneg %p369
        %s1074 = sand.u32 %s53, 1
        %s1075 = scalar_lea.sflag [#allocation13], %s1074
        %s1076 = sand.u32 %s385, 1
        %s1077 = scalar_lea.vmem [#allocation14], %s1076
        %p1078 = pneg %p398
        %p1079 = pneg %p395
        %s1080 = sand.u32 %s53, 1
        %s1081 = scalar_lea.sflag [#allocation16], %s1080
        %s1082 = sand.u32 %s411, 1
        %s1083 = scalar_lea.vmem [#allocation15], %s1082
        %p1084 = pneg %p424
        %p1085 = pneg %p421
        %p1086 = scmp.lt.s32.totalorder %s58, 1
        %s1087 = scalar_select %p1086, %s58, 1
        %s1088 = smul.addr %s1087, 4
        %s1089 = smul.addr %s1088, 4
        %s1090 = scalar_lea.vmem %s14, %s1089
        %p1091 = pneg %p450
        %p1092 = pneg %p447
        %s1093 = sand.u32 %s53, 1
        %s1094 = scalar_lea.sflag [#allocation16], %s1093
        %s1095 = sand.u32 %s463, 1
        %s1096 = scalar_lea.vmem [#allocation17], %s1095
        %p1097 = pneg %p476
        %p1098 = pneg %p473
        %p1099 = scmp.lt.s32.totalorder %s58, 1
        %s1100 = scalar_select %p1099, %s58, 1
        %s1101 = smul.addr %s1100, 16
        %s1102 = smul.addr %s1101, 4
        %s1103 = scalar_lea.vmem %s16, %s1102
        %p1104 = pneg %p502
        %p1105 = pneg %p499
        %s1106 = sand.u32 %s53, 1
        %s1107 = scalar_lea.sflag [#allocation19], %s1106
        %s1108 = sand.u32 %s515, 1
        %s1109 = scalar_lea.vmem [#allocation18], %s1108
        %p1110 = pneg %p528
        %p1111 = pneg %p525
        %p1112 = pneg %p549
        %p1113 = pneg %p546
        %p1114 = pneg %p570
        %p1115 = pneg %p567
        %p1116 = pneg %p591
        %p1117 = pneg %p588
        %p1118 = pneg %p617
        %p1119 = pneg %p614
        %s1120 = sand.u32 %s604, 1
        %s1121 = scalar_lea.sflag [#allocation5], %s1120
        %s1122 = sand.u32 %s604, 1
        %s1123 = smul.addr %s1122, 2
        %s1124 = scalar_lea.vmem [#allocation21], %s1123
        %s1125 = smul.u32 2, %s57
        %p1126 = scmp.lt.s32.totalorder %s1125, 3
        %s1127 = scalar_select %p1126, %s1125, 3
        %s1128 = smul.addr %s1127, 16
        %s1129 = smul.addr %s1128, 8
        %s1130 = scalar_lea.vmem %s0, %s1129
        %s1131 = smul.u32 2, %s57
        %s1132 = smul.u32 2, %s57
        %p1133 = scmp.lt.s32.totalorder %s1132, 3
        %s1134 = scalar_select %p1133, %s1132, 3
        %s1135 = smul.addr %s1134, 16
        %s1136 = smul.addr %s1135, 8
        %s1137 = scalar_lea.vmem %s1, %s1136
        %s1138 = smul.u32 2, %s57
        %p1139 = scmp.lt.s32.totalorder %s58, 1
        %s1140 = scalar_select %p1139, %s58, 1
        %s1141 = smul.addr %s1140, 4
        %s1142 = smul.addr %s1141, 4
        %s1143 = scalar_lea.vmem %s4, %s1142
        %p1144 = scmp.lt.s32.totalorder %s58, 1
        %s1145 = scalar_select %p1144, %s58, 1
        %s1146 = smul.addr %s1145, 4
        %s1147 = smul.addr %s1146, 4
        %s1148 = scalar_lea.vmem %s6, %s1147
        %p1149 = scmp.lt.s32.totalorder %s58, 1
        %s1150 = scalar_select %p1149, %s58, 1
        %s1151 = smul.addr %s1150, 4
        %s1152 = smul.addr %s1151, 4
        %s1153 = scalar_lea.vmem %s8, %s1152
        %p1154 = scmp.lt.s32.totalorder %s58, 1
        %s1155 = scalar_select %p1154, %s58, 1
        %s1156 = smul.addr %s1155, 4
        %s1157 = smul.addr %s1156, 4
        %s1158 = scalar_lea.vmem %s10, %s1157
        %p1159 = scmp.lt.s32.totalorder %s58, 1
        %s1160 = scalar_select %p1159, %s58, 1
        %s1161 = smul.addr %s1160, 4
        %s1162 = smul.addr %s1161, 4
        %s1163 = scalar_lea.vmem %s14, %s1162
        %p1164 = scmp.lt.s32.totalorder %s58, 1
        %s1165 = scalar_select %p1164, %s58, 1
        %s1166 = smul.addr %s1165, 16
        %s1167 = smul.addr %s1166, 4
        %s1168 = scalar_lea.vmem %s16, %s1167
        %s1169 = smul.u32 2, %s57
        %p1171 = scmp.eq.s32.totalorder %s58, 0
        // Predicated region
        $region149: #{tpu_custom_call.1} parent=103 // pred_check
          %p1172 = pneg %p1171
        $region150: #{tpu_custom_call.1} parent=103 // pred_check_branch
          %1174 = sbr.rel (%p1172) target = $region152
        $region151: #{tpu_custom_call.1} parent=103 // pred_region
          %v1175 = vld [vmem:[%s1130] sm:$0xff]
          %v1176 = vld [vmem:[%s1130 + $0x8] sm:$0xff]
          %v1177 = vld [vmem:[%s1130 + $0x10] sm:$0xff]
          %v1178 = vld [vmem:[%s1130 + $0x18] sm:$0xff]
          %v1179 = vld [vmem:[%s1130 + $0x20] sm:$0xff]
          %v1180 = vld [vmem:[%s1130 + $0x28] sm:$0xff]
          %v1181 = vld [vmem:[%s1130 + $0x30] sm:$0xff]
          %v1182 = vld [vmem:[%s1130 + $0x38] sm:$0xff]
          %v1183 = vld [vmem:[%s1130 + $0x40] sm:$0xff]
          %v1184 = vld [vmem:[%s1130 + $0x48] sm:$0xff]
          %v1185 = vld [vmem:[%s1130 + $0x50] sm:$0xff]
          %v1186 = vld [vmem:[%s1130 + $0x58] sm:$0xff]
          %v1187 = vld [vmem:[%s1130 + $0x60] sm:$0xff]
          %v1188 = vld [vmem:[%s1130 + $0x68] sm:$0xff]
          %v1189 = vld [vmem:[%s1130 + $0x70] sm:$0xff]
          %v1190 = vld [vmem:[%s1130 + $0x78] sm:$0xff]
          %v1191 = vld [vmem:[%s1130 + $0x80] sm:$0xff]
          %v1192 = vld [vmem:[%s1130 + $0x88] sm:$0xff]
          %v1193 = vld [vmem:[%s1130 + $0x90] sm:$0xff]
          %v1194 = vld [vmem:[%s1130 + $0x98] sm:$0xff]
          %v1195 = vld [vmem:[%s1130 + $0xa0] sm:$0xff]
          %v1196 = vld [vmem:[%s1130 + $0xa8] sm:$0xff]
          %v1197 = vld [vmem:[%s1130 + $0xb0] sm:$0xff]
          %v1198 = vld [vmem:[%s1130 + $0xb8] sm:$0xff]
          %v1199 = vld [vmem:[%s1130 + $0xc0] sm:$0xff]
          %v1200 = vld [vmem:[%s1130 + $0xc8] sm:$0xff]
          %v1201 = vld [vmem:[%s1130 + $0xd0] sm:$0xff]
          %v1202 = vld [vmem:[%s1130 + $0xd8] sm:$0xff]
          %v1203 = vld [vmem:[%s1130 + $0xe0] sm:$0xff]
          %v1204 = vld [vmem:[%s1130 + $0xe8] sm:$0xff]
          %v1205 = vld [vmem:[%s1130 + $0xf0] sm:$0xff]
          %v1206 = vld [vmem:[%s1130 + $0xf8] sm:$0xff]
          %vm1207 = vcmask 261120
          %1208 = vst.msk [vmem:[#allocation2] sm:$0xff] %vm1207, %v1175
          %1209 = vst.msk [vmem:[#allocation2 + $0x8] sm:$0xff] %vm1207, %v1176
          %1210 = vst.msk [vmem:[#allocation2 + $0x10] sm:$0xff] %vm1207, %v1177
          %1211 = vst.msk [vmem:[#allocation2 + $0x18] sm:$0xff] %vm1207, %v1178
          %1212 = vst.msk [vmem:[#allocation2 + $0x20] sm:$0xff] %vm1207, %v1179
          %1213 = vst.msk [vmem:[#allocation2 + $0x28] sm:$0xff] %vm1207, %v1180
          %1214 = vst.msk [vmem:[#allocation2 + $0x30] sm:$0xff] %vm1207, %v1181
          %1215 = vst.msk [vmem:[#allocation2 + $0x38] sm:$0xff] %vm1207, %v1182
          %1216 = vst.msk [vmem:[#allocation2 + $0x40] sm:$0xff] %vm1207, %v1183
          %1217 = vst.msk [vmem:[#allocation2 + $0x48] sm:$0xff] %vm1207, %v1184
          %1218 = vst.msk [vmem:[#allocation2 + $0x50] sm:$0xff] %vm1207, %v1185
          %1219 = vst.msk [vmem:[#allocation2 + $0x58] sm:$0xff] %vm1207, %v1186
          %1220 = vst.msk [vmem:[#allocation2 + $0x60] sm:$0xff] %vm1207, %v1187
          %1221 = vst.msk [vmem:[#allocation2 + $0x68] sm:$0xff] %vm1207, %v1188
          %1222 = vst.msk [vmem:[#allocation2 + $0x70] sm:$0xff] %vm1207, %v1189
          %1223 = vst.msk [vmem:[#allocation2 + $0x78] sm:$0xff] %vm1207, %v1190
          %1224 = vst.msk [vmem:[#allocation2 + $0x80] sm:$0xff] %vm1207, %v1191
          %1225 = vst.msk [vmem:[#allocation2 + $0x88] sm:$0xff] %vm1207, %v1192
          %1226 = vst.msk [vmem:[#allocation2 + $0x90] sm:$0xff] %vm1207, %v1193
          %1227 = vst.msk [vmem:[#allocation2 + $0x98] sm:$0xff] %vm1207, %v1194
          %1228 = vst.msk [vmem:[#allocation2 + $0xa0] sm:$0xff] %vm1207, %v1195
          %1229 = vst.msk [vmem:[#allocation2 + $0xa8] sm:$0xff] %vm1207, %v1196
          %1230 = vst.msk [vmem:[#allocation2 + $0xb0] sm:$0xff] %vm1207, %v1197
          %1231 = vst.msk [vmem:[#allocation2 + $0xb8] sm:$0xff] %vm1207, %v1198
          %1232 = vst.msk [vmem:[#allocation2 + $0xc0] sm:$0xff] %vm1207, %v1199
          %1233 = vst.msk [vmem:[#allocation2 + $0xc8] sm:$0xff] %vm1207, %v1200
          %1234 = vst.msk [vmem:[#allocation2 + $0xd0] sm:$0xff] %vm1207, %v1201
          %1235 = vst.msk [vmem:[#allocation2 + $0xd8] sm:$0xff] %vm1207, %v1202
          %1236 = vst.msk [vmem:[#allocation2 + $0xe0] sm:$0xff] %vm1207, %v1203
          %1237 = vst.msk [vmem:[#allocation2 + $0xe8] sm:$0xff] %vm1207, %v1204
          %1238 = vst.msk [vmem:[#allocation2 + $0xf0] sm:$0xff] %vm1207, %v1205
          %1239 = vst.msk [vmem:[#allocation2 + $0xf8] sm:$0xff] %vm1207, %v1206
        $region152: #{tpu_custom_call.1} parent=103 // pred_fallthru
          _
        %v1240 = vld [vmem:[#allocation2] sm:$0xff]
        %v1241 = vld [vmem:[#allocation2 + $0x8] sm:$0xff]
        %v1242 = vld [vmem:[#allocation2 + $0x10] sm:$0xff]
        %v1243 = vld [vmem:[#allocation2 + $0x18] sm:$0xff]
        %v1244 = vld [vmem:[#allocation2 + $0x20] sm:$0xff]
        %v1245 = vld [vmem:[#allocation2 + $0x28] sm:$0xff]
        %v1246 = vld [vmem:[#allocation2 + $0x30] sm:$0xff]
        %v1247 = vld [vmem:[#allocation2 + $0x38] sm:$0xff]
        %v1248 = vld [vmem:[#allocation2 + $0x40] sm:$0xff]
        %v1249 = vld [vmem:[#allocation2 + $0x48] sm:$0xff]
        %v1250 = vld [vmem:[#allocation2 + $0x50] sm:$0xff]
        %v1251 = vld [vmem:[#allocation2 + $0x58] sm:$0xff]
        %v1252 = vld [vmem:[#allocation2 + $0x60] sm:$0xff]
        %v1253 = vld [vmem:[#allocation2 + $0x68] sm:$0xff]
        %v1254 = vld [vmem:[#allocation2 + $0x70] sm:$0xff]
        %v1255 = vld [vmem:[#allocation2 + $0x78] sm:$0xff]
        %v1256 = vld [vmem:[#allocation2 + $0x80] sm:$0xff]
        %v1257 = vld [vmem:[#allocation2 + $0x88] sm:$0xff]
        %v1258 = vld [vmem:[#allocation2 + $0x90] sm:$0xff]
        %v1259 = vld [vmem:[#allocation2 + $0x98] sm:$0xff]
        %v1260 = vld [vmem:[#allocation2 + $0xa0] sm:$0xff]
        %v1261 = vld [vmem:[#allocation2 + $0xa8] sm:$0xff]
        %v1262 = vld [vmem:[#allocation2 + $0xb0] sm:$0xff]
        %v1263 = vld [vmem:[#allocation2 + $0xb8] sm:$0xff]
        %v1264 = vld [vmem:[#allocation2 + $0xc0] sm:$0xff]
        %v1265 = vld [vmem:[#allocation2 + $0xc8] sm:$0xff]
        %v1266 = vld [vmem:[#allocation2 + $0xd0] sm:$0xff]
        %v1267 = vld [vmem:[#allocation2 + $0xd8] sm:$0xff]
        %v1268 = vld [vmem:[#allocation2 + $0xe0] sm:$0xff]
        %v1269 = vld [vmem:[#allocation2 + $0xe8] sm:$0xff]
        %v1270 = vld [vmem:[#allocation2 + $0xf0] sm:$0xff]
        %v1271 = vld [vmem:[#allocation2 + $0xf8] sm:$0xff]
        %v1272 = vld [vmem:[%s902] sm:$0x1]
        %v1273 = vld [vmem:[%s911] sm:$0x1]
        %vm1274 = vcmask 261120
        %v1275 = vsel %vm1274, %v1240, 0.0
        %1276 = vadd.xlane.f32.xlu0 %v1275
        %v1277 = vpop.xlane.xlu0 %1276
        %v1278 = vsel %vm1274, %v1241, 0.0
        %1279 = vadd.xlane.f32.xlu0 %v1278
        %v1280 = vpop.xlane.xlu0 %1279
        %v1281 = vsel %vm1274, %v1242, 0.0
        %1282 = vadd.xlane.f32.xlu0 %v1281
        %v1283 = vpop.xlane.xlu0 %1282
        %v1284 = vsel %vm1274, %v1243, 0.0
        %1285 = vadd.xlane.f32.xlu0 %v1284
        %v1286 = vpop.xlane.xlu0 %1285
        %v1287 = vsel %vm1274, %v1244, 0.0
        %1288 = vadd.xlane.f32.xlu0 %v1287
        %v1289 = vpop.xlane.xlu0 %1288
        %v1290 = vsel %vm1274, %v1245, 0.0
        %1291 = vadd.xlane.f32.xlu0 %v1290
        %v1292 = vpop.xlane.xlu0 %1291
        %v1293 = vsel %vm1274, %v1246, 0.0
        %1294 = vadd.xlane.f32.xlu0 %v1293
        %v1295 = vpop.xlane.xlu0 %1294
        %v1296 = vsel %vm1274, %v1247, 0.0
        %1297 = vadd.xlane.f32.xlu0 %v1296
        %v1298 = vpop.xlane.xlu0 %1297
        %v1299 = vsel %vm1274, %v1248, 0.0
        %1300 = vadd.xlane.f32.xlu0 %v1299
        %v1301 = vpop.xlane.xlu0 %1300
        %v1302 = vsel %vm1274, %v1249, 0.0
        %1303 = vadd.xlane.f32.xlu0 %v1302
        %v1304 = vpop.xlane.xlu0 %1303
        %v1305 = vsel %vm1274, %v1250, 0.0
        %1306 = vadd.xlane.f32.xlu0 %v1305
        %v1307 = vpop.xlane.xlu0 %1306
        %v1308 = vsel %vm1274, %v1251, 0.0
        %1309 = vadd.xlane.f32.xlu0 %v1308
        %v1310 = vpop.xlane.xlu0 %1309
        %v1311 = vsel %vm1274, %v1252, 0.0
        %1312 = vadd.xlane.f32.xlu0 %v1311
        %v1313 = vpop.xlane.xlu0 %1312
        %v1314 = vsel %vm1274, %v1253, 0.0
        %1315 = vadd.xlane.f32.xlu0 %v1314
        %v1316 = vpop.xlane.xlu0 %1315
        %v1317 = vsel %vm1274, %v1254, 0.0
        %1318 = vadd.xlane.f32.xlu0 %v1317
        %v1319 = vpop.xlane.xlu0 %1318
        %v1320 = vsel %vm1274, %v1255, 0.0
        %1321 = vadd.xlane.f32.xlu0 %v1320
        %v1322 = vpop.xlane.xlu0 %1321
        %v1323 = vsel %vm1274, %v1256, 0.0
        %1324 = vadd.xlane.f32.xlu0 %v1323
        %v1325 = vpop.xlane.xlu0 %1324
        %v1326 = vsel %vm1274, %v1257, 0.0
        %1327 = vadd.xlane.f32.xlu0 %v1326
        %v1328 = vpop.xlane.xlu0 %1327
        %v1329 = vsel %vm1274, %v1258, 0.0
        %1330 = vadd.xlane.f32.xlu0 %v1329
        %v1331 = vpop.xlane.xlu0 %1330
        %v1332 = vsel %vm1274, %v1259, 0.0
        %1333 = vadd.xlane.f32.xlu0 %v1332
        %v1334 = vpop.xlane.xlu0 %1333
        %v1335 = vsel %vm1274, %v1260, 0.0
        %1336 = vadd.xlane.f32.xlu0 %v1335
        %v1337 = vpop.xlane.xlu0 %1336
        %v1338 = vsel %vm1274, %v1261, 0.0
        %1339 = vadd.xlane.f32.xlu0 %v1338
        %v1340 = vpop.xlane.xlu0 %1339
        %v1341 = vsel %vm1274, %v1262, 0.0
        %1342 = vadd.xlane.f32.xlu0 %v1341
        %v1343 = vpop.xlane.xlu0 %1342
        %v1344 = vsel %vm1274, %v1263, 0.0
        %1345 = vadd.xlane.f32.xlu0 %v1344
        %v1346 = vpop.xlane.xlu0 %1345
        %v1347 = vsel %vm1274, %v1264, 0.0
        %1348 = vadd.xlane.f32.xlu0 %v1347
        %v1349 = vpop.xlane.xlu0 %1348
        %v1350 = vsel %vm1274, %v1265, 0.0
        %1351 = vadd.xlane.f32.xlu0 %v1350
        %v1352 = vpop.xlane.xlu0 %1351
        %v1353 = vsel %vm1274, %v1266, 0.0
        %1354 = vadd.xlane.f32.xlu0 %v1353
        %v1355 = vpop.xlane.xlu0 %1354
        %v1356 = vsel %vm1274, %v1267, 0.0
        %1357 = vadd.xlane.f32.xlu0 %v1356
        %v1358 = vpop.xlane.xlu0 %1357
        %v1359 = vsel %vm1274, %v1268, 0.0
        %1360 = vadd.xlane.f32.xlu0 %v1359
        %v1361 = vpop.xlane.xlu0 %1360
        %v1362 = vsel %vm1274, %v1269, 0.0
        %1363 = vadd.xlane.f32.xlu0 %v1362
        %v1364 = vpop.xlane.xlu0 %1363
        %v1365 = vsel %vm1274, %v1270, 0.0
        %1366 = vadd.xlane.f32.xlu0 %v1365
        %v1367 = vpop.xlane.xlu0 %1366
        %v1368 = vsel %vm1274, %v1271, 0.0
        %1369 = vadd.xlane.f32.xlu0 %v1368
        %v1370 = vpop.xlane.xlu0 %1369
        %v1371 = vrcp.pop 32.0
        %v1372 = vmul.f32 32.0, %v1371
        %v1373 = vsub.f32 1.0, %v1372
        %v1374 = vmul.f32 %v1371, %v1373
        %v1375 = vadd.f32 %v1371, %v1374
        %vm1376 = vweird.f32 %v1371
        %v1377 = vsel %vm1376, %v1371, %v1375
        %v1378 = vmul.f32 %v1277, %v1377
        %v1379 = vmul.f32 %v1280, %v1377
        %v1380 = vmul.f32 %v1283, %v1377
        %v1381 = vmul.f32 %v1286, %v1377
        %v1382 = vmul.f32 %v1289, %v1377
        %v1383 = vmul.f32 %v1292, %v1377
        %v1384 = vmul.f32 %v1295, %v1377
        %v1385 = vmul.f32 %v1298, %v1377
        %v1386 = vmul.f32 %v1301, %v1377
        %v1387 = vmul.f32 %v1304, %v1377
        %v1388 = vmul.f32 %v1307, %v1377
        %v1389 = vmul.f32 %v1310, %v1377
        %v1390 = vmul.f32 %v1313, %v1377
        %v1391 = vmul.f32 %v1316, %v1377
        %v1392 = vmul.f32 %v1319, %v1377
        %v1393 = vmul.f32 %v1322, %v1377
        %v1394 = vmul.f32 %v1325, %v1377
        %v1395 = vmul.f32 %v1328, %v1377
        %v1396 = vmul.f32 %v1331, %v1377
        %v1397 = vmul.f32 %v1334, %v1377
        %v1398 = vmul.f32 %v1337, %v1377
        %v1399 = vmul.f32 %v1340, %v1377
        %v1400 = vmul.f32 %v1343, %v1377
        %v1401 = vmul.f32 %v1346, %v1377
        %v1402 = vmul.f32 %v1349, %v1377
        %v1403 = vmul.f32 %v1352, %v1377
        %v1404 = vmul.f32 %v1355, %v1377
        %v1405 = vmul.f32 %v1358, %v1377
        %v1406 = vmul.f32 %v1361, %v1377
        %v1407 = vmul.f32 %v1364, %v1377
        %v1408 = vmul.f32 %v1367, %v1377
        %v1409 = vmul.f32 %v1370, %v1377
        %v1410 = vsub.f32 %v1240, %v1378
        %v1411 = vsub.f32 %v1241, %v1379
        %v1412 = vsub.f32 %v1242, %v1380
        %v1413 = vsub.f32 %v1243, %v1381
        %v1414 = vsub.f32 %v1244, %v1382
        %v1415 = vsub.f32 %v1245, %v1383
        %v1416 = vsub.f32 %v1246, %v1384
        %v1417 = vsub.f32 %v1247, %v1385
        %v1418 = vsub.f32 %v1248, %v1386
        %v1419 = vsub.f32 %v1249, %v1387
        %v1420 = vsub.f32 %v1250, %v1388
        %v1421 = vsub.f32 %v1251, %v1389
        %v1422 = vsub.f32 %v1252, %v1390
        %v1423 = vsub.f32 %v1253, %v1391
        %v1424 = vsub.f32 %v1254, %v1392
        %v1425 = vsub.f32 %v1255, %v1393
        %v1426 = vsub.f32 %v1256, %v1394
        %v1427 = vsub.f32 %v1257, %v1395
        %v1428 = vsub.f32 %v1258, %v1396
        %v1429 = vsub.f32 %v1259, %v1397
        %v1430 = vsub.f32 %v1260, %v1398
        %v1431 = vsub.f32 %v1261, %v1399
        %v1432 = vsub.f32 %v1262, %v1400
        %v1433 = vsub.f32 %v1263, %v1401
        %v1434 = vsub.f32 %v1264, %v1402
        %v1435 = vsub.f32 %v1265, %v1403
        %v1436 = vsub.f32 %v1266, %v1404
        %v1437 = vsub.f32 %v1267, %v1405
        %v1438 = vsub.f32 %v1268, %v1406
        %v1439 = vsub.f32 %v1269, %v1407
        %v1440 = vsub.f32 %v1270, %v1408
        %v1441 = vsub.f32 %v1271, %v1409
        %v1442 = vmul.f32 %v1410, %v1410
        %v1443 = vmul.f32 %v1411, %v1411
        %v1444 = vmul.f32 %v1412, %v1412
        %v1445 = vmul.f32 %v1413, %v1413
        %v1446 = vmul.f32 %v1414, %v1414
        %v1447 = vmul.f32 %v1415, %v1415
        %v1448 = vmul.f32 %v1416, %v1416
        %v1449 = vmul.f32 %v1417, %v1417
        %v1450 = vmul.f32 %v1418, %v1418
        %v1451 = vmul.f32 %v1419, %v1419
        %v1452 = vmul.f32 %v1420, %v1420
        %v1453 = vmul.f32 %v1421, %v1421
        %v1454 = vmul.f32 %v1422, %v1422
        %v1455 = vmul.f32 %v1423, %v1423
        %v1456 = vmul.f32 %v1424, %v1424
        %v1457 = vmul.f32 %v1425, %v1425
        %v1458 = vmul.f32 %v1426, %v1426
        %v1459 = vmul.f32 %v1427, %v1427
        %v1460 = vmul.f32 %v1428, %v1428
        %v1461 = vmul.f32 %v1429, %v1429
        %v1462 = vmul.f32 %v1430, %v1430
        %v1463 = vmul.f32 %v1431, %v1431
        %v1464 = vmul.f32 %v1432, %v1432
        %v1465 = vmul.f32 %v1433, %v1433
        %v1466 = vmul.f32 %v1434, %v1434
        %v1467 = vmul.f32 %v1435, %v1435
        %v1468 = vmul.f32 %v1436, %v1436
        %v1469 = vmul.f32 %v1437, %v1437
        %v1470 = vmul.f32 %v1438, %v1438
        %v1471 = vmul.f32 %v1439, %v1439
        %v1472 = vmul.f32 %v1440, %v1440
        %v1473 = vmul.f32 %v1441, %v1441
        %v1474 = vsel %vm1274, %v1442, 0.0
        %1475 = vadd.xlane.f32.xlu0 %v1474
        %v1476 = vpop.xlane.xlu0 %1475
        %v1477 = vsel %vm1274, %v1443, 0.0
        %1478 = vadd.xlane.f32.xlu0 %v1477
        %v1479 = vpop.xlane.xlu0 %1478
        %v1480 = vsel %vm1274, %v1444, 0.0
        %1481 = vadd.xlane.f32.xlu0 %v1480
        %v1482 = vpop.xlane.xlu0 %1481
        %v1483 = vsel %vm1274, %v1445, 0.0
        %1484 = vadd.xlane.f32.xlu0 %v1483
        %v1485 = vpop.xlane.xlu0 %1484
        %v1486 = vsel %vm1274, %v1446, 0.0
        %1487 = vadd.xlane.f32.xlu0 %v1486
        %v1488 = vpop.xlane.xlu0 %1487
        %v1489 = vsel %vm1274, %v1447, 0.0
        %1490 = vadd.xlane.f32.xlu0 %v1489
        %v1491 = vpop.xlane.xlu0 %1490
        %v1492 = vsel %vm1274, %v1448, 0.0
        %1493 = vadd.xlane.f32.xlu0 %v1492
        %v1494 = vpop.xlane.xlu0 %1493
        %v1495 = vsel %vm1274, %v1449, 0.0
        %1496 = vadd.xlane.f32.xlu0 %v1495
        %v1497 = vpop.xlane.xlu0 %1496
        %v1498 = vsel %vm1274, %v1450, 0.0
        %1499 = vadd.xlane.f32.xlu0 %v1498
        %v1500 = vpop.xlane.xlu0 %1499
        %v1501 = vsel %vm1274, %v1451, 0.0
        %1502 = vadd.xlane.f32.xlu0 %v1501
        %v1503 = vpop.xlane.xlu0 %1502
        %v1504 = vsel %vm1274, %v1452, 0.0
        %1505 = vadd.xlane.f32.xlu0 %v1504
        %v1506 = vpop.xlane.xlu0 %1505
        %v1507 = vsel %vm1274, %v1453, 0.0
        %1508 = vadd.xlane.f32.xlu0 %v1507
        %v1509 = vpop.xlane.xlu0 %1508
        %v1510 = vsel %vm1274, %v1454, 0.0
        %1511 = vadd.xlane.f32.xlu0 %v1510
        %v1512 = vpop.xlane.xlu0 %1511
        %v1513 = vsel %vm1274, %v1455, 0.0
        %1514 = vadd.xlane.f32.xlu0 %v1513
        %v1515 = vpop.xlane.xlu0 %1514
        %v1516 = vsel %vm1274, %v1456, 0.0
        %1517 = vadd.xlane.f32.xlu0 %v1516
        %v1518 = vpop.xlane.xlu0 %1517
        %v1519 = vsel %vm1274, %v1457, 0.0
        %1520 = vadd.xlane.f32.xlu0 %v1519
        %v1521 = vpop.xlane.xlu0 %1520
        %v1522 = vsel %vm1274, %v1458, 0.0
        %1523 = vadd.xlane.f32.xlu0 %v1522
        %v1524 = vpop.xlane.xlu0 %1523
        %v1525 = vsel %vm1274, %v1459, 0.0
        %1526 = vadd.xlane.f32.xlu0 %v1525
        %v1527 = vpop.xlane.xlu0 %1526
        %v1528 = vsel %vm1274, %v1460, 0.0
        %1529 = vadd.xlane.f32.xlu0 %v1528
        %v1530 = vpop.xlane.xlu0 %1529
        %v1531 = vsel %vm1274, %v1461, 0.0
        %1532 = vadd.xlane.f32.xlu0 %v1531
        %v1533 = vpop.xlane.xlu0 %1532
        %v1534 = vsel %vm1274, %v1462, 0.0
        %1535 = vadd.xlane.f32.xlu0 %v1534
        %v1536 = vpop.xlane.xlu0 %1535
        %v1537 = vsel %vm1274, %v1463, 0.0
        %1538 = vadd.xlane.f32.xlu0 %v1537
        %v1539 = vpop.xlane.xlu0 %1538
        %v1540 = vsel %vm1274, %v1464, 0.0
        %1541 = vadd.xlane.f32.xlu0 %v1540
        %v1542 = vpop.xlane.xlu0 %1541
        %v1543 = vsel %vm1274, %v1465, 0.0
        %1544 = vadd.xlane.f32.xlu0 %v1543
        %v1545 = vpop.xlane.xlu0 %1544
        %v1546 = vsel %vm1274, %v1466, 0.0
        %1547 = vadd.xlane.f32.xlu0 %v1546
        %v1548 = vpop.xlane.xlu0 %1547
        %v1549 = vsel %vm1274, %v1467, 0.0
        %1550 = vadd.xlane.f32.xlu0 %v1549
        %v1551 = vpop.xlane.xlu0 %1550
        %v1552 = vsel %vm1274, %v1468, 0.0
        %1553 = vadd.xlane.f32.xlu0 %v1552
        %v1554 = vpop.xlane.xlu0 %1553
        %v1555 = vsel %vm1274, %v1469, 0.0
        %1556 = vadd.xlane.f32.xlu0 %v1555
        %v1557 = vpop.xlane.xlu0 %1556
        %v1558 = vsel %vm1274, %v1470, 0.0
        %1559 = vadd.xlane.f32.xlu0 %v1558
        %v1560 = vpop.xlane.xlu0 %1559
        %v1561 = vsel %vm1274, %v1471, 0.0
        %1562 = vadd.xlane.f32.xlu0 %v1561
        %v1563 = vpop.xlane.xlu0 %1562
        %v1564 = vsel %vm1274, %v1472, 0.0
        %1565 = vadd.xlane.f32.xlu0 %v1564
        %v1566 = vpop.xlane.xlu0 %1565
        %v1567 = vsel %vm1274, %v1473, 0.0
        %1568 = vadd.xlane.f32.xlu0 %v1567
        %v1569 = vpop.xlane.xlu0 %1568
        %v1570 = vmul.f32 %v1476, %v1377
        %v1571 = vmul.f32 %v1479, %v1377
        %v1572 = vmul.f32 %v1482, %v1377
        %v1573 = vmul.f32 %v1485, %v1377
        %v1574 = vmul.f32 %v1488, %v1377
        %v1575 = vmul.f32 %v1491, %v1377
        %v1576 = vmul.f32 %v1494, %v1377
        %v1577 = vmul.f32 %v1497, %v1377
        %v1578 = vmul.f32 %v1500, %v1377
        %v1579 = vmul.f32 %v1503, %v1377
        %v1580 = vmul.f32 %v1506, %v1377
        %v1581 = vmul.f32 %v1509, %v1377
        %v1582 = vmul.f32 %v1512, %v1377
        %v1583 = vmul.f32 %v1515, %v1377
        %v1584 = vmul.f32 %v1518, %v1377
        %v1585 = vmul.f32 %v1521, %v1377
        %v1586 = vmul.f32 %v1524, %v1377
        %v1587 = vmul.f32 %v1527, %v1377
        %v1588 = vmul.f32 %v1530, %v1377
        %v1589 = vmul.f32 %v1533, %v1377
        %v1590 = vmul.f32 %v1536, %v1377
        %v1591 = vmul.f32 %v1539, %v1377
        %v1592 = vmul.f32 %v1542, %v1377
        %v1593 = vmul.f32 %v1545, %v1377
        %v1594 = vmul.f32 %v1548, %v1377
        %v1595 = vmul.f32 %v1551, %v1377
        %v1596 = vmul.f32 %v1554, %v1377
        %v1597 = vmul.f32 %v1557, %v1377
        %v1598 = vmul.f32 %v1560, %v1377
        %v1599 = vmul.f32 %v1563, %v1377
        %v1600 = vmul.f32 %v1566, %v1377
        %v1601 = vmul.f32 %v1569, %v1377
        %v1602 = vadd.f32 %v1570, 1e-05
        %v1603 = vadd.f32 %v1571, 1e-05
        %v1604 = vadd.f32 %v1572, 1e-05
        %v1605 = vadd.f32 %v1573, 1e-05
        %v1606 = vadd.f32 %v1574, 1e-05
        %v1607 = vadd.f32 %v1575, 1e-05
        %v1608 = vadd.f32 %v1576, 1e-05
        %v1609 = vadd.f32 %v1577, 1e-05
        %v1610 = vadd.f32 %v1578, 1e-05
        %v1611 = vadd.f32 %v1579, 1e-05
        %v1612 = vadd.f32 %v1580, 1e-05
        %v1613 = vadd.f32 %v1581, 1e-05
        %v1614 = vadd.f32 %v1582, 1e-05
        %v1615 = vadd.f32 %v1583, 1e-05
        %v1616 = vadd.f32 %v1584, 1e-05
        %v1617 = vadd.f32 %v1585, 1e-05
        %v1618 = vadd.f32 %v1586, 1e-05
        %v1619 = vadd.f32 %v1587, 1e-05
        %v1620 = vadd.f32 %v1588, 1e-05
        %v1621 = vadd.f32 %v1589, 1e-05
        %v1622 = vadd.f32 %v1590, 1e-05
        %v1623 = vadd.f32 %v1591, 1e-05
        %v1624 = vadd.f32 %v1592, 1e-05
        %v1625 = vadd.f32 %v1593, 1e-05
        %v1626 = vadd.f32 %v1594, 1e-05
        %v1627 = vadd.f32 %v1595, 1e-05
        %v1628 = vadd.f32 %v1596, 1e-05
        %v1629 = vadd.f32 %v1597, 1e-05
        %v1630 = vadd.f32 %v1598, 1e-05
        %v1631 = vadd.f32 %v1599, 1e-05
        %v1632 = vadd.f32 %v1600, 1e-05
        %v1633 = vadd.f32 %v1601, 1e-05
        %v1634 = vrsqrt.pop %v1602
        %v1635 = vmul.f32 %v1634, %v1602
        %v1636 = vmul.f32 %v1635, %v1634
        %v1637 = vmul.f32 0.5, %v1636
        %v1638 = vsub.f32 1.5, %v1637
        %v1639 = vmul.f32 %v1634, %v1638
        %vm1640 = vweird.f32 %v1602
        %vm1641 = vweird.f32 %v1634
        %vm1642 = vmor %vm1640, %vm1641
        %v1643 = vsel %vm1642, %v1634, %v1639
        %v1644 = vrsqrt.pop %v1603
        %v1645 = vmul.f32 %v1644, %v1603
        %v1646 = vmul.f32 %v1645, %v1644
        %v1647 = vmul.f32 0.5, %v1646
        %v1648 = vsub.f32 1.5, %v1647
        %v1649 = vmul.f32 %v1644, %v1648
        %vm1650 = vweird.f32 %v1603
        %vm1651 = vweird.f32 %v1644
        %vm1652 = vmor %vm1650, %vm1651
        %v1653 = vsel %vm1652, %v1644, %v1649
        %v1654 = vrsqrt.pop %v1604
        %v1655 = vmul.f32 %v1654, %v1604
        %v1656 = vmul.f32 %v1655, %v1654
        %v1657 = vmul.f32 0.5, %v1656
        %v1658 = vsub.f32 1.5, %v1657
        %v1659 = vmul.f32 %v1654, %v1658
        %vm1660 = vweird.f32 %v1604
        %vm1661 = vweird.f32 %v1654
        %vm1662 = vmor %vm1660, %vm1661
        %v1663 = vsel %vm1662, %v1654, %v1659
        %v1664 = vrsqrt.pop %v1605
        %v1665 = vmul.f32 %v1664, %v1605
        %v1666 = vmul.f32 %v1665, %v1664
        %v1667 = vmul.f32 0.5, %v1666
        %v1668 = vsub.f32 1.5, %v1667
        %v1669 = vmul.f32 %v1664, %v1668
        %vm1670 = vweird.f32 %v1605
        %vm1671 = vweird.f32 %v1664
        %vm1672 = vmor %vm1670, %vm1671
        %v1673 = vsel %vm1672, %v1664, %v1669
        %v1674 = vrsqrt.pop %v1606
        %v1675 = vmul.f32 %v1674, %v1606
        %v1676 = vmul.f32 %v1675, %v1674
        %v1677 = vmul.f32 0.5, %v1676
        %v1678 = vsub.f32 1.5, %v1677
        %v1679 = vmul.f32 %v1674, %v1678
        %vm1680 = vweird.f32 %v1606
        %vm1681 = vweird.f32 %v1674
        %vm1682 = vmor %vm1680, %vm1681
        %v1683 = vsel %vm1682, %v1674, %v1679
        %v1684 = vrsqrt.pop %v1607
        %v1685 = vmul.f32 %v1684, %v1607
        %v1686 = vmul.f32 %v1685, %v1684
        %v1687 = vmul.f32 0.5, %v1686
        %v1688 = vsub.f32 1.5, %v1687
        %v1689 = vmul.f32 %v1684, %v1688
        %vm1690 = vweird.f32 %v1607
        %vm1691 = vweird.f32 %v1684
        %vm1692 = vmor %vm1690, %vm1691
        %v1693 = vsel %vm1692, %v1684, %v1689
        %v1694 = vrsqrt.pop %v1608
        %v1695 = vmul.f32 %v1694, %v1608
        %v1696 = vmul.f32 %v1695, %v1694
        %v1697 = vmul.f32 0.5, %v1696
        %v1698 = vsub.f32 1.5, %v1697
        %v1699 = vmul.f32 %v1694, %v1698
        %vm1700 = vweird.f32 %v1608
        %vm1701 = vweird.f32 %v1694
        %vm1702 = vmor %vm1700, %vm1701
        %v1703 = vsel %vm1702, %v1694, %v1699
        %v1704 = vrsqrt.pop %v1609
        %v1705 = vmul.f32 %v1704, %v1609
        %v1706 = vmul.f32 %v1705, %v1704
        %v1707 = vmul.f32 0.5, %v1706
        %v1708 = vsub.f32 1.5, %v1707
        %v1709 = vmul.f32 %v1704, %v1708
        %vm1710 = vweird.f32 %v1609
        %vm1711 = vweird.f32 %v1704
        %vm1712 = vmor %vm1710, %vm1711
        %v1713 = vsel %vm1712, %v1704, %v1709
        %v1714 = vrsqrt.pop %v1610
        %v1715 = vmul.f32 %v1714, %v1610
        %v1716 = vmul.f32 %v1715, %v1714
        %v1717 = vmul.f32 0.5, %v1716
        %v1718 = vsub.f32 1.5, %v1717
        %v1719 = vmul.f32 %v1714, %v1718
        %vm1720 = vweird.f32 %v1610
        %vm1721 = vweird.f32 %v1714
        %vm1722 = vmor %vm1720, %vm1721
        %v1723 = vsel %vm1722, %v1714, %v1719
        %v1724 = vrsqrt.pop %v1611
        %v1725 = vmul.f32 %v1724, %v1611
        %v1726 = vmul.f32 %v1725, %v1724
        %v1727 = vmul.f32 0.5, %v1726
        %v1728 = vsub.f32 1.5, %v1727
        %v1729 = vmul.f32 %v1724, %v1728
        %vm1730 = vweird.f32 %v1611
        %vm1731 = vweird.f32 %v1724
        %vm1732 = vmor %vm1730, %vm1731
        %v1733 = vsel %vm1732, %v1724, %v1729
        %v1734 = vrsqrt.pop %v1612
        %v1735 = vmul.f32 %v1734, %v1612
        %v1736 = vmul.f32 %v1735, %v1734
        %v1737 = vmul.f32 0.5, %v1736
        %v1738 = vsub.f32 1.5, %v1737
        %v1739 = vmul.f32 %v1734, %v1738
        %vm1740 = vweird.f32 %v1612
        %vm1741 = vweird.f32 %v1734
        %vm1742 = vmor %vm1740, %vm1741
        %v1743 = vsel %vm1742, %v1734, %v1739
        %v1744 = vrsqrt.pop %v1613
        %v1745 = vmul.f32 %v1744, %v1613
        %v1746 = vmul.f32 %v1745, %v1744
        %v1747 = vmul.f32 0.5, %v1746
        %v1748 = vsub.f32 1.5, %v1747
        %v1749 = vmul.f32 %v1744, %v1748
        %vm1750 = vweird.f32 %v1613
        %vm1751 = vweird.f32 %v1744
        %vm1752 = vmor %vm1750, %vm1751
        %v1753 = vsel %vm1752, %v1744, %v1749
        %v1754 = vrsqrt.pop %v1614
        %v1755 = vmul.f32 %v1754, %v1614
        %v1756 = vmul.f32 %v1755, %v1754
        %v1757 = vmul.f32 0.5, %v1756
        %v1758 = vsub.f32 1.5, %v1757
        %v1759 = vmul.f32 %v1754, %v1758
        %vm1760 = vweird.f32 %v1614
        %vm1761 = vweird.f32 %v1754
        %vm1762 = vmor %vm1760, %vm1761
        %v1763 = vsel %vm1762, %v1754, %v1759
        %v1764 = vrsqrt.pop %v1615
        %v1765 = vmul.f32 %v1764, %v1615
        %v1766 = vmul.f32 %v1765, %v1764
        %v1767 = vmul.f32 0.5, %v1766
        %v1768 = vsub.f32 1.5, %v1767
        %v1769 = vmul.f32 %v1764, %v1768
        %vm1770 = vweird.f32 %v1615
        %vm1771 = vweird.f32 %v1764
        %vm1772 = vmor %vm1770, %vm1771
        %v1773 = vsel %vm1772, %v1764, %v1769
        %v1774 = vrsqrt.pop %v1616
        %v1775 = vmul.f32 %v1774, %v1616
        %v1776 = vmul.f32 %v1775, %v1774
        %v1777 = vmul.f32 0.5, %v1776
        %v1778 = vsub.f32 1.5, %v1777
        %v1779 = vmul.f32 %v1774, %v1778
        %vm1780 = vweird.f32 %v1616
        %vm1781 = vweird.f32 %v1774
        %vm1782 = vmor %vm1780, %vm1781
        %v1783 = vsel %vm1782, %v1774, %v1779
        %v1784 = vrsqrt.pop %v1617
        %v1785 = vmul.f32 %v1784, %v1617
        %v1786 = vmul.f32 %v1785, %v1784
        %v1787 = vmul.f32 0.5, %v1786
        %v1788 = vsub.f32 1.5, %v1787
        %v1789 = vmul.f32 %v1784, %v1788
        %vm1790 = vweird.f32 %v1617
        %vm1791 = vweird.f32 %v1784
        %vm1792 = vmor %vm1790, %vm1791
        %v1793 = vsel %vm1792, %v1784, %v1789
        %v1794 = vrsqrt.pop %v1618
        %v1795 = vmul.f32 %v1794, %v1618
        %v1796 = vmul.f32 %v1795, %v1794
        %v1797 = vmul.f32 0.5, %v1796
        %v1798 = vsub.f32 1.5, %v1797
        %v1799 = vmul.f32 %v1794, %v1798
        %vm1800 = vweird.f32 %v1618
        %vm1801 = vweird.f32 %v1794
        %vm1802 = vmor %vm1800, %vm1801
        %v1803 = vsel %vm1802, %v1794, %v1799
        %v1804 = vrsqrt.pop %v1619
        %v1805 = vmul.f32 %v1804, %v1619
        %v1806 = vmul.f32 %v1805, %v1804
        %v1807 = vmul.f32 0.5, %v1806
        %v1808 = vsub.f32 1.5, %v1807
        %v1809 = vmul.f32 %v1804, %v1808
        %vm1810 = vweird.f32 %v1619
        %vm1811 = vweird.f32 %v1804
        %vm1812 = vmor %vm1810, %vm1811
        %v1813 = vsel %vm1812, %v1804, %v1809
        %v1814 = vrsqrt.pop %v1620
        %v1815 = vmul.f32 %v1814, %v1620
        %v1816 = vmul.f32 %v1815, %v1814
        %v1817 = vmul.f32 0.5, %v1816
        %v1818 = vsub.f32 1.5, %v1817
        %v1819 = vmul.f32 %v1814, %v1818
        %vm1820 = vweird.f32 %v1620
        %vm1821 = vweird.f32 %v1814
        %vm1822 = vmor %vm1820, %vm1821
        %v1823 = vsel %vm1822, %v1814, %v1819
        %v1824 = vrsqrt.pop %v1621
        %v1825 = vmul.f32 %v1824, %v1621
        %v1826 = vmul.f32 %v1825, %v1824
        %v1827 = vmul.f32 0.5, %v1826
        %v1828 = vsub.f32 1.5, %v1827
        %v1829 = vmul.f32 %v1824, %v1828
        %vm1830 = vweird.f32 %v1621
        %vm1831 = vweird.f32 %v1824
        %vm1832 = vmor %vm1830, %vm1831
        %v1833 = vsel %vm1832, %v1824, %v1829
        %v1834 = vrsqrt.pop %v1622
        %v1835 = vmul.f32 %v1834, %v1622
        %v1836 = vmul.f32 %v1835, %v1834
        %v1837 = vmul.f32 0.5, %v1836
        %v1838 = vsub.f32 1.5, %v1837
        %v1839 = vmul.f32 %v1834, %v1838
        %vm1840 = vweird.f32 %v1622
        %vm1841 = vweird.f32 %v1834
        %vm1842 = vmor %vm1840, %vm1841
        %v1843 = vsel %vm1842, %v1834, %v1839
        %v1844 = vrsqrt.pop %v1623
        %v1845 = vmul.f32 %v1844, %v1623
        %v1846 = vmul.f32 %v1845, %v1844
        %v1847 = vmul.f32 0.5, %v1846
        %v1848 = vsub.f32 1.5, %v1847
        %v1849 = vmul.f32 %v1844, %v1848
        %vm1850 = vweird.f32 %v1623
        %vm1851 = vweird.f32 %v1844
        %vm1852 = vmor %vm1850, %vm1851
        %v1853 = vsel %vm1852, %v1844, %v1849
        %v1854 = vrsqrt.pop %v1624
        %v1855 = vmul.f32 %v1854, %v1624
        %v1856 = vmul.f32 %v1855, %v1854
        %v1857 = vmul.f32 0.5, %v1856
        %v1858 = vsub.f32 1.5, %v1857
        %v1859 = vmul.f32 %v1854, %v1858
        %vm1860 = vweird.f32 %v1624
        %vm1861 = vweird.f32 %v1854
        %vm1862 = vmor %vm1860, %vm1861
        %v1863 = vsel %vm1862, %v1854, %v1859
        %v1864 = vrsqrt.pop %v1625
        %v1865 = vmul.f32 %v1864, %v1625
        %v1866 = vmul.f32 %v1865, %v1864
        %v1867 = vmul.f32 0.5, %v1866
        %v1868 = vsub.f32 1.5, %v1867
        %v1869 = vmul.f32 %v1864, %v1868
        %vm1870 = vweird.f32 %v1625
        %vm1871 = vweird.f32 %v1864
        %vm1872 = vmor %vm1870, %vm1871
        %v1873 = vsel %vm1872, %v1864, %v1869
        %v1874 = vrsqrt.pop %v1626
        %v1875 = vmul.f32 %v1874, %v1626
        %v1876 = vmul.f32 %v1875, %v1874
        %v1877 = vmul.f32 0.5, %v1876
        %v1878 = vsub.f32 1.5, %v1877
        %v1879 = vmul.f32 %v1874, %v1878
        %vm1880 = vweird.f32 %v1626
        %vm1881 = vweird.f32 %v1874
        %vm1882 = vmor %vm1880, %vm1881
        %v1883 = vsel %vm1882, %v1874, %v1879
        %v1884 = vrsqrt.pop %v1627
        %v1885 = vmul.f32 %v1884, %v1627
        %v1886 = vmul.f32 %v1885, %v1884
        %v1887 = vmul.f32 0.5, %v1886
        %v1888 = vsub.f32 1.5, %v1887
        %v1889 = vmul.f32 %v1884, %v1888
        %vm1890 = vweird.f32 %v1627
        %vm1891 = vweird.f32 %v1884
        %vm1892 = vmor %vm1890, %vm1891
        %v1893 = vsel %vm1892, %v1884, %v1889
        %v1894 = vrsqrt.pop %v1628
        %v1895 = vmul.f32 %v1894, %v1628
        %v1896 = vmul.f32 %v1895, %v1894
        %v1897 = vmul.f32 0.5, %v1896
        %v1898 = vsub.f32 1.5, %v1897
        %v1899 = vmul.f32 %v1894, %v1898
        %vm1900 = vweird.f32 %v1628
        %vm1901 = vweird.f32 %v1894
        %vm1902 = vmor %vm1900, %vm1901
        %v1903 = vsel %vm1902, %v1894, %v1899
        %v1904 = vrsqrt.pop %v1629
        %v1905 = vmul.f32 %v1904, %v1629
        %v1906 = vmul.f32 %v1905, %v1904
        %v1907 = vmul.f32 0.5, %v1906
        %v1908 = vsub.f32 1.5, %v1907
        %v1909 = vmul.f32 %v1904, %v1908
        %vm1910 = vweird.f32 %v1629
        %vm1911 = vweird.f32 %v1904
        %vm1912 = vmor %vm1910, %vm1911
        %v1913 = vsel %vm1912, %v1904, %v1909
        %v1914 = vrsqrt.pop %v1630
        %v1915 = vmul.f32 %v1914, %v1630
        %v1916 = vmul.f32 %v1915, %v1914
        %v1917 = vmul.f32 0.5, %v1916
        %v1918 = vsub.f32 1.5, %v1917
        %v1919 = vmul.f32 %v1914, %v1918
        %vm1920 = vweird.f32 %v1630
        %vm1921 = vweird.f32 %v1914
        %vm1922 = vmor %vm1920, %vm1921
        %v1923 = vsel %vm1922, %v1914, %v1919
        %v1924 = vrsqrt.pop %v1631
        %v1925 = vmul.f32 %v1924, %v1631
        %v1926 = vmul.f32 %v1925, %v1924
        %v1927 = vmul.f32 0.5, %v1926
        %v1928 = vsub.f32 1.5, %v1927
        %v1929 = vmul.f32 %v1924, %v1928
        %vm1930 = vweird.f32 %v1631
        %vm1931 = vweird.f32 %v1924
        %vm1932 = vmor %vm1930, %vm1931
        %v1933 = vsel %vm1932, %v1924, %v1929
        %v1934 = vrsqrt.pop %v1632
        %v1935 = vmul.f32 %v1934, %v1632
        %v1936 = vmul.f32 %v1935, %v1934
        %v1937 = vmul.f32 0.5, %v1936
        %v1938 = vsub.f32 1.5, %v1937
        %v1939 = vmul.f32 %v1934, %v1938
        %vm1940 = vweird.f32 %v1632
        %vm1941 = vweird.f32 %v1934
        %vm1942 = vmor %vm1940, %vm1941
        %v1943 = vsel %vm1942, %v1934, %v1939
        %v1944 = vrsqrt.pop %v1633
        %v1945 = vmul.f32 %v1944, %v1633
        %v1946 = vmul.f32 %v1945, %v1944
        %v1947 = vmul.f32 0.5, %v1946
        %v1948 = vsub.f32 1.5, %v1947
        %v1949 = vmul.f32 %v1944, %v1948
        %vm1950 = vweird.f32 %v1633
        %vm1951 = vweird.f32 %v1944
        %vm1952 = vmor %vm1950, %vm1951
        %v1953 = vsel %vm1952, %v1944, %v1949
        %v1954 = vmul.f32 %v1410, %v1643
        %v1955 = vmul.f32 %v1411, %v1653
        %v1956 = vmul.f32 %v1412, %v1663
        %v1957 = vmul.f32 %v1413, %v1673
        %v1958 = vmul.f32 %v1414, %v1683
        %v1959 = vmul.f32 %v1415, %v1693
        %v1960 = vmul.f32 %v1416, %v1703
        %v1961 = vmul.f32 %v1417, %v1713
        %v1962 = vmul.f32 %v1418, %v1723
        %v1963 = vmul.f32 %v1419, %v1733
        %v1964 = vmul.f32 %v1420, %v1743
        %v1965 = vmul.f32 %v1421, %v1753
        %v1966 = vmul.f32 %v1422, %v1763
        %v1967 = vmul.f32 %v1423, %v1773
        %v1968 = vmul.f32 %v1424, %v1783
        %v1969 = vmul.f32 %v1425, %v1793
        %v1970 = vmul.f32 %v1426, %v1803
        %v1971 = vmul.f32 %v1427, %v1813
        %v1972 = vmul.f32 %v1428, %v1823
        %v1973 = vmul.f32 %v1429, %v1833
        %v1974 = vmul.f32 %v1430, %v1843
        %v1975 = vmul.f32 %v1431, %v1853
        %v1976 = vmul.f32 %v1432, %v1863
        %v1977 = vmul.f32 %v1433, %v1873
        %v1978 = vmul.f32 %v1434, %v1883
        %v1979 = vmul.f32 %v1435, %v1893
        %v1980 = vmul.f32 %v1436, %v1903
        %v1981 = vmul.f32 %v1437, %v1913
        %v1982 = vmul.f32 %v1438, %v1923
        %v1983 = vmul.f32 %v1439, %v1933
        %v1984 = vmul.f32 %v1440, %v1943
        %v1985 = vmul.f32 %v1441, %v1953
        %v1987 = vperm.slane %v1272, 0
        %v1989 = vmul.f32 %v1954, %v1987
        %v1990 = vmul.f32 %v1955, %v1987
        %v1991 = vmul.f32 %v1956, %v1987
        %v1992 = vmul.f32 %v1957, %v1987
        %v1993 = vmul.f32 %v1958, %v1987
        %v1994 = vmul.f32 %v1959, %v1987
        %v1995 = vmul.f32 %v1960, %v1987
        %v1996 = vmul.f32 %v1961, %v1987
        %v1997 = vmul.f32 %v1962, %v1987
        %v1998 = vmul.f32 %v1963, %v1987
        %v1999 = vmul.f32 %v1964, %v1987
        %v2000 = vmul.f32 %v1965, %v1987
        %v2001 = vmul.f32 %v1966, %v1987
        %v2002 = vmul.f32 %v1967, %v1987
        %v2003 = vmul.f32 %v1968, %v1987
        %v2004 = vmul.f32 %v1969, %v1987
        %v2005 = vmul.f32 %v1970, %v1987
        %v2006 = vmul.f32 %v1971, %v1987
        %v2007 = vmul.f32 %v1972, %v1987
        %v2008 = vmul.f32 %v1973, %v1987
        %v2009 = vmul.f32 %v1974, %v1987
        %v2010 = vmul.f32 %v1975, %v1987
        %v2011 = vmul.f32 %v1976, %v1987
        %v2012 = vmul.f32 %v1977, %v1987
        %v2013 = vmul.f32 %v1978, %v1987
        %v2014 = vmul.f32 %v1979, %v1987
        %v2015 = vmul.f32 %v1980, %v1987
        %v2016 = vmul.f32 %v1981, %v1987
        %v2017 = vmul.f32 %v1982, %v1987
        %v2018 = vmul.f32 %v1983, %v1987
        %v2019 = vmul.f32 %v1984, %v1987
        %v2020 = vmul.f32 %v1985, %v1987
        %v2022 = vperm.slane %v1273, 0
        %v2024 = vadd.f32 %v1989, %v2022
        %v2025 = vadd.f32 %v1990, %v2022
        %v2026 = vadd.f32 %v1991, %v2022
        %v2027 = vadd.f32 %v1992, %v2022
        %v2028 = vadd.f32 %v1993, %v2022
        %v2029 = vadd.f32 %v1994, %v2022
        %v2030 = vadd.f32 %v1995, %v2022
        %v2031 = vadd.f32 %v1996, %v2022
        %v2032 = vadd.f32 %v1997, %v2022
        %v2033 = vadd.f32 %v1998, %v2022
        %v2034 = vadd.f32 %v1999, %v2022
        %v2035 = vadd.f32 %v2000, %v2022
        %v2036 = vadd.f32 %v2001, %v2022
        %v2037 = vadd.f32 %v2002, %v2022
        %v2038 = vadd.f32 %v2003, %v2022
        %v2039 = vadd.f32 %v2004, %v2022
        %v2040 = vadd.f32 %v2005, %v2022
        %v2041 = vadd.f32 %v2006, %v2022
        %v2042 = vadd.f32 %v2007, %v2022
        %v2043 = vadd.f32 %v2008, %v2022
        %v2044 = vadd.f32 %v2009, %v2022
        %v2045 = vadd.f32 %v2010, %v2022
        %v2046 = vadd.f32 %v2011, %v2022
        %v2047 = vadd.f32 %v2012, %v2022
        %v2048 = vadd.f32 %v2013, %v2022
        %v2049 = vadd.f32 %v2014, %v2022
        %v2050 = vadd.f32 %v2015, %v2022
        %v2051 = vadd.f32 %v2016, %v2022
        %v2052 = vadd.f32 %v2017, %v2022
        %v2053 = vadd.f32 %v2018, %v2022
        %v2054 = vadd.f32 %v2019, %v2022
        %v2055 = vadd.f32 %v2020, %v2022
        %v2056 = vpack.c.bf16 %v2025, %v2024
        %v2057 = vpack.c.bf16 %v2027, %v2026
        %v2058 = vpack.c.bf16 %v2029, %v2028
        %v2059 = vpack.c.bf16 %v2031, %v2030
        %v2060 = vpack.c.bf16 %v2033, %v2032
        %v2061 = vpack.c.bf16 %v2035, %v2034
        %v2062 = vpack.c.bf16 %v2037, %v2036
        %v2063 = vpack.c.bf16 %v2039, %v2038
        %v2064 = vpack.c.bf16 %v2041, %v2040
        %v2065 = vpack.c.bf16 %v2043, %v2042
        %v2066 = vpack.c.bf16 %v2045, %v2044
        %v2067 = vpack.c.bf16 %v2047, %v2046
        %v2068 = vpack.c.bf16 %v2049, %v2048
        %v2069 = vpack.c.bf16 %v2051, %v2050
        %v2070 = vpack.c.bf16 %v2053, %v2052
        %v2071 = vpack.c.bf16 %v2055, %v2054
        %v2072 = vld [vmem:[%s1143] sm:$0xf]
        %v2073 = vld [vmem:[%s1143 + $0x4] sm:$0xf]
        %v2074 = vld [vmem:[%s1143 + $0x8] sm:$0xf]
        %v2075 = vld [vmem:[%s1143 + $0xc] sm:$0xf]
        %v2076 = vld [vmem:[%s920] sm:$0x1]
        %v2078 = vperm.slane %v2076, 0
        %v2084 = vunpack.c.l.b16 %v2072
        %v2085 = vunpack.c.l.b16 %v2073
        %v2086 = vunpack.c.l.b16 %v2074
        %v2087 = vunpack.c.l.b16 %v2075
        %v2088 = vpack.c.b16 %v2085, %v2084
        %v2089 = vpack.c.b16 %v2087, %v2086
        %v2093 = vsel %vm1274, %v2056, 0
        %v2096 = vsel %vm1274, %v2057, 0
        %v2099 = vsel %vm1274, %v2058, 0
        %v2102 = vsel %vm1274, %v2059, 0
        %v2105 = vsel %vm1274, %v2060, 0
        %v2108 = vsel %vm1274, %v2061, 0
        %v2111 = vsel %vm1274, %v2062, 0
        %v2114 = vsel %vm1274, %v2063, 0
        %v2117 = vsel %vm1274, %v2064, 0
        %v2120 = vsel %vm1274, %v2065, 0
        %v2123 = vsel %vm1274, %v2066, 0
        %v2126 = vsel %vm1274, %v2067, 0
        %v2129 = vsel %vm1274, %v2068, 0
        %v2132 = vsel %vm1274, %v2069, 0
        %v2135 = vsel %vm1274, %v2070, 0
        %v2138 = vsel %vm1274, %v2071, 0
        %2140 = vmatpush.bf16.msra.mxu0 0
        %2141 = vmatpush.bf16.msra.mxu0 0
        %2142 = vmatpush.bf16.msra.mxu0 0
        %2143 = vmatpush.bf16.msra.mxu0 0
        %2144 = vmatpush.bf16.msra.mxu0 0
        %2145 = vmatpush.bf16.msra.mxu0 0
        %2146 = vmatpush.bf16.msra.mxu0 %v2089
        %2147 = vmatpush.bf16.msra.mxu0 %v2088
        %2148 = vmatmul.bf16.gmra.mxu0 %v2093
        %v2149 = vpop.f32.mrf.mxu0
        %v2150 = vadd.f32 %v2078, %v2149
        %v2151 = vpop.f32.mrf.mxu0
        %v2152 = vadd.f32 %v2078, %v2151
        %2153 = vmatmul.bf16.gmra.mxu0 %v2096
        %v2154 = vpop.f32.mrf.mxu0
        %v2155 = vadd.f32 %v2078, %v2154
        %v2156 = vpop.f32.mrf.mxu0
        %v2157 = vadd.f32 %v2078, %v2156
        %2158 = vmatmul.bf16.gmra.mxu0 %v2099
        %v2159 = vpop.f32.mrf.mxu0
        %v2160 = vadd.f32 %v2078, %v2159
        %v2161 = vpop.f32.mrf.mxu0
        %v2162 = vadd.f32 %v2078, %v2161
        %2163 = vmatmul.bf16.gmra.mxu0 %v2102
        %v2164 = vpop.f32.mrf.mxu0
        %v2165 = vadd.f32 %v2078, %v2164
        %v2166 = vpop.f32.mrf.mxu0
        %v2167 = vadd.f32 %v2078, %v2166
        %2168 = vmatmul.bf16.gmra.mxu0 %v2105
        %v2169 = vpop.f32.mrf.mxu0
        %v2170 = vadd.f32 %v2078, %v2169
        %v2171 = vpop.f32.mrf.mxu0
        %v2172 = vadd.f32 %v2078, %v2171
        %2173 = vmatmul.bf16.gmra.mxu0 %v2108
        %v2174 = vpop.f32.mrf.mxu0
        %v2175 = vadd.f32 %v2078, %v2174
        %v2176 = vpop.f32.mrf.mxu0
        %v2177 = vadd.f32 %v2078, %v2176
        %2178 = vmatmul.bf16.gmra.mxu0 %v2111
        %v2179 = vpop.f32.mrf.mxu0
        %v2180 = vadd.f32 %v2078, %v2179
        %v2181 = vpop.f32.mrf.mxu0
        %v2182 = vadd.f32 %v2078, %v2181
        %2183 = vmatmul.bf16.gmra.mxu0 %v2114
        %v2184 = vpop.f32.mrf.mxu0
        %v2185 = vadd.f32 %v2078, %v2184
        %v2186 = vpop.f32.mrf.mxu0
        %v2187 = vadd.f32 %v2078, %v2186
        %2188 = vmatmul.bf16.gmra.mxu0 %v2117
        %v2189 = vpop.f32.mrf.mxu0
        %v2190 = vadd.f32 %v2078, %v2189
        %v2191 = vpop.f32.mrf.mxu0
        %v2192 = vadd.f32 %v2078, %v2191
        %2193 = vmatmul.bf16.gmra.mxu0 %v2120
        %v2194 = vpop.f32.mrf.mxu0
        %v2195 = vadd.f32 %v2078, %v2194
        %v2196 = vpop.f32.mrf.mxu0
        %v2197 = vadd.f32 %v2078, %v2196
        %2198 = vmatmul.bf16.gmra.mxu0 %v2123
        %v2199 = vpop.f32.mrf.mxu0
        %v2200 = vadd.f32 %v2078, %v2199
        %v2201 = vpop.f32.mrf.mxu0
        %v2202 = vadd.f32 %v2078, %v2201
        %2203 = vmatmul.bf16.gmra.mxu0 %v2126
        %v2204 = vpop.f32.mrf.mxu0
        %v2205 = vadd.f32 %v2078, %v2204
        %v2206 = vpop.f32.mrf.mxu0
        %v2207 = vadd.f32 %v2078, %v2206
        %2208 = vmatmul.bf16.gmra.mxu0 %v2129
        %v2209 = vpop.f32.mrf.mxu0
        %v2210 = vadd.f32 %v2078, %v2209
        %v2211 = vpop.f32.mrf.mxu0
        %v2212 = vadd.f32 %v2078, %v2211
        %2213 = vmatmul.bf16.gmra.mxu0 %v2132
        %v2214 = vpop.f32.mrf.mxu0
        %v2215 = vadd.f32 %v2078, %v2214
        %v2216 = vpop.f32.mrf.mxu0
        %v2217 = vadd.f32 %v2078, %v2216
        %2218 = vmatmul.bf16.gmra.mxu0 %v2135
        %v2219 = vpop.f32.mrf.mxu0
        %v2220 = vadd.f32 %v2078, %v2219
        %v2221 = vpop.f32.mrf.mxu0
        %v2222 = vadd.f32 %v2078, %v2221
        %2223 = vmatmul.bf16.gmra.mxu0 %v2138
        %v2224 = vpop.f32.mrf.mxu0
        %v2225 = vadd.f32 %v2078, %v2224
        %v2226 = vpop.f32.mrf.mxu0
        %v2227 = vadd.f32 %v2078, %v2226
        %2228 = vdwg.mxu0
        %v2229 = vpack.c.bf16 %v2150, %v2150
        %v2230 = vpack.c.bf16 %v2152, %v2152
        %v2231 = vpack.c.bf16 %v2155, %v2155
        %v2232 = vpack.c.bf16 %v2157, %v2157
        %v2233 = vpack.c.bf16 %v2160, %v2160
        %v2234 = vpack.c.bf16 %v2162, %v2162
        %v2235 = vpack.c.bf16 %v2165, %v2165
        %v2236 = vpack.c.bf16 %v2167, %v2167
        %v2237 = vpack.c.bf16 %v2170, %v2170
        %v2238 = vpack.c.bf16 %v2172, %v2172
        %v2239 = vpack.c.bf16 %v2175, %v2175
        %v2240 = vpack.c.bf16 %v2177, %v2177
        %v2241 = vpack.c.bf16 %v2180, %v2180
        %v2242 = vpack.c.bf16 %v2182, %v2182
        %v2243 = vpack.c.bf16 %v2185, %v2185
        %v2244 = vpack.c.bf16 %v2187, %v2187
        %v2245 = vpack.c.bf16 %v2190, %v2190
        %v2246 = vpack.c.bf16 %v2192, %v2192
        %v2247 = vpack.c.bf16 %v2195, %v2195
        %v2248 = vpack.c.bf16 %v2197, %v2197
        %v2249 = vpack.c.bf16 %v2200, %v2200
        %v2250 = vpack.c.bf16 %v2202, %v2202
        %v2251 = vpack.c.bf16 %v2205, %v2205
        %v2252 = vpack.c.bf16 %v2207, %v2207
        %v2253 = vpack.c.bf16 %v2210, %v2210
        %v2254 = vpack.c.bf16 %v2212, %v2212
        %v2255 = vpack.c.bf16 %v2215, %v2215
        %v2256 = vpack.c.bf16 %v2217, %v2217
        %v2257 = vpack.c.bf16 %v2220, %v2220
        %v2258 = vpack.c.bf16 %v2222, %v2222
        %v2259 = vpack.c.bf16 %v2225, %v2225
        %v2260 = vpack.c.bf16 %v2227, %v2227
        %v2261 = vld [vmem:[%s1148] sm:$0xf]
        %v2262 = vld [vmem:[%s1148 + $0x4] sm:$0xf]
        %v2263 = vld [vmem:[%s1148 + $0x8] sm:$0xf]
        %v2264 = vld [vmem:[%s1148 + $0xc] sm:$0xf]
        %v2265 = vld [vmem:[%s929] sm:$0x1]
        %v2267 = vperm.slane %v2265, 0
        %v2273 = vunpack.c.l.b16 %v2261
        %v2274 = vunpack.c.l.b16 %v2262
        %v2275 = vunpack.c.l.b16 %v2263
        %v2276 = vunpack.c.l.b16 %v2264
        %v2277 = vpack.c.b16 %v2274, %v2273
        %v2278 = vpack.c.b16 %v2276, %v2275
        %2281 = vmatpush.bf16.msra.mxu0 0
        %2282 = vmatpush.bf16.msra.mxu0 0
        %2283 = vmatpush.bf16.msra.mxu0 0
        %2284 = vmatpush.bf16.msra.mxu0 0
        %2285 = vmatpush.bf16.msra.mxu0 0
        %2286 = vmatpush.bf16.msra.mxu0 0
        %2287 = vmatpush.bf16.msra.mxu0 %v2278
        %2288 = vmatpush.bf16.msra.mxu0 %v2277
        %2289 = vmatmul.bf16.gmra.mxu0 %v2093
        %v2290 = vpop.f32.mrf.mxu0
        %v2291 = vadd.f32 %v2267, %v2290
        %v2292 = vpop.f32.mrf.mxu0
        %v2293 = vadd.f32 %v2267, %v2292
        %2294 = vmatmul.bf16.gmra.mxu0 %v2096
        %v2295 = vpop.f32.mrf.mxu0
        %v2296 = vadd.f32 %v2267, %v2295
        %v2297 = vpop.f32.mrf.mxu0
        %v2298 = vadd.f32 %v2267, %v2297
        %2299 = vmatmul.bf16.gmra.mxu0 %v2099
        %v2300 = vpop.f32.mrf.mxu0
        %v2301 = vadd.f32 %v2267, %v2300
        %v2302 = vpop.f32.mrf.mxu0
        %v2303 = vadd.f32 %v2267, %v2302
        %2304 = vmatmul.bf16.gmra.mxu0 %v2102
        %v2305 = vpop.f32.mrf.mxu0
        %v2306 = vadd.f32 %v2267, %v2305
        %v2307 = vpop.f32.mrf.mxu0
        %v2308 = vadd.f32 %v2267, %v2307
        %2309 = vmatmul.bf16.gmra.mxu0 %v2105
        %v2310 = vpop.f32.mrf.mxu0
        %v2311 = vadd.f32 %v2267, %v2310
        %v2312 = vpop.f32.mrf.mxu0
        %v2313 = vadd.f32 %v2267, %v2312
        %2314 = vmatmul.bf16.gmra.mxu0 %v2108
        %v2315 = vpop.f32.mrf.mxu0
        %v2316 = vadd.f32 %v2267, %v2315
        %v2317 = vpop.f32.mrf.mxu0
        %v2318 = vadd.f32 %v2267, %v2317
        %2319 = vmatmul.bf16.gmra.mxu0 %v2111
        %v2320 = vpop.f32.mrf.mxu0
        %v2321 = vadd.f32 %v2267, %v2320
        %v2322 = vpop.f32.mrf.mxu0
        %v2323 = vadd.f32 %v2267, %v2322
        %2324 = vmatmul.bf16.gmra.mxu0 %v2114
        %v2325 = vpop.f32.mrf.mxu0
        %v2326 = vadd.f32 %v2267, %v2325
        %v2327 = vpop.f32.mrf.mxu0
        %v2328 = vadd.f32 %v2267, %v2327
        %2329 = vmatmul.bf16.gmra.mxu0 %v2117
        %v2330 = vpop.f32.mrf.mxu0
        %v2331 = vadd.f32 %v2267, %v2330
        %v2332 = vpop.f32.mrf.mxu0
        %v2333 = vadd.f32 %v2267, %v2332
        %2334 = vmatmul.bf16.gmra.mxu0 %v2120
        %v2335 = vpop.f32.mrf.mxu0
        %v2336 = vadd.f32 %v2267, %v2335
        %v2337 = vpop.f32.mrf.mxu0
        %v2338 = vadd.f32 %v2267, %v2337
        %2339 = vmatmul.bf16.gmra.mxu0 %v2123
        %v2340 = vpop.f32.mrf.mxu0
        %v2341 = vadd.f32 %v2267, %v2340
        %v2342 = vpop.f32.mrf.mxu0
        %v2343 = vadd.f32 %v2267, %v2342
        %2344 = vmatmul.bf16.gmra.mxu0 %v2126
        %v2345 = vpop.f32.mrf.mxu0
        %v2346 = vadd.f32 %v2267, %v2345
        %v2347 = vpop.f32.mrf.mxu0
        %v2348 = vadd.f32 %v2267, %v2347
        %2349 = vmatmul.bf16.gmra.mxu0 %v2129
        %v2350 = vpop.f32.mrf.mxu0
        %v2351 = vadd.f32 %v2267, %v2350
        %v2352 = vpop.f32.mrf.mxu0
        %v2353 = vadd.f32 %v2267, %v2352
        %2354 = vmatmul.bf16.gmra.mxu0 %v2132
        %v2355 = vpop.f32.mrf.mxu0
        %v2356 = vadd.f32 %v2267, %v2355
        %v2357 = vpop.f32.mrf.mxu0
        %v2358 = vadd.f32 %v2267, %v2357
        %2359 = vmatmul.bf16.gmra.mxu0 %v2135
        %v2360 = vpop.f32.mrf.mxu0
        %v2361 = vadd.f32 %v2267, %v2360
        %v2362 = vpop.f32.mrf.mxu0
        %v2363 = vadd.f32 %v2267, %v2362
        %2364 = vmatmul.bf16.gmra.mxu0 %v2138
        %v2365 = vpop.f32.mrf.mxu0
        %v2366 = vadd.f32 %v2267, %v2365
        %v2367 = vpop.f32.mrf.mxu0
        %v2368 = vadd.f32 %v2267, %v2367
        %2369 = vdwg.mxu0
        %v2370 = vpack.c.bf16 %v2291, %v2291
        %v2371 = vpack.c.bf16 %v2293, %v2293
        %v2372 = vpack.c.bf16 %v2296, %v2296
        %v2373 = vpack.c.bf16 %v2298, %v2298
        %v2374 = vpack.c.bf16 %v2301, %v2301
        %v2375 = vpack.c.bf16 %v2303, %v2303
        %v2376 = vpack.c.bf16 %v2306, %v2306
        %v2377 = vpack.c.bf16 %v2308, %v2308
        %v2378 = vpack.c.bf16 %v2311, %v2311
        %v2379 = vpack.c.bf16 %v2313, %v2313
        %v2380 = vpack.c.bf16 %v2316, %v2316
        %v2381 = vpack.c.bf16 %v2318, %v2318
        %v2382 = vpack.c.bf16 %v2321, %v2321
        %v2383 = vpack.c.bf16 %v2323, %v2323
        %v2384 = vpack.c.bf16 %v2326, %v2326
        %v2385 = vpack.c.bf16 %v2328, %v2328
        %v2386 = vpack.c.bf16 %v2331, %v2331
        %v2387 = vpack.c.bf16 %v2333, %v2333
        %v2388 = vpack.c.bf16 %v2336, %v2336
        %v2389 = vpack.c.bf16 %v2338, %v2338
        %v2390 = vpack.c.bf16 %v2341, %v2341
        %v2391 = vpack.c.bf16 %v2343, %v2343
        %v2392 = vpack.c.bf16 %v2346, %v2346
        %v2393 = vpack.c.bf16 %v2348, %v2348
        %v2394 = vpack.c.bf16 %v2351, %v2351
        %v2395 = vpack.c.bf16 %v2353, %v2353
        %v2396 = vpack.c.bf16 %v2356, %v2356
        %v2397 = vpack.c.bf16 %v2358, %v2358
        %v2398 = vpack.c.bf16 %v2361, %v2361
        %v2399 = vpack.c.bf16 %v2363, %v2363
        %v2400 = vpack.c.bf16 %v2366, %v2366
        %v2401 = vpack.c.bf16 %v2368, %v2368
        %v2402 = vld [vmem:[%s1153] sm:$0xf]
        %v2403 = vld [vmem:[%s1153 + $0x4] sm:$0xf]
        %v2404 = vld [vmem:[%s1153 + $0x8] sm:$0xf]
        %v2405 = vld [vmem:[%s1153 + $0xc] sm:$0xf]
        %v2406 = vld [vmem:[%s938] sm:$0x1]
        %v2408 = vperm.slane %v2406, 0
        %v2414 = vunpack.c.l.b16 %v2402
        %v2415 = vunpack.c.l.b16 %v2403
        %v2416 = vunpack.c.l.b16 %v2404
        %v2417 = vunpack.c.l.b16 %v2405
        %v2418 = vpack.c.b16 %v2415, %v2414
        %v2419 = vpack.c.b16 %v2417, %v2416
        %2422 = vmatpush.bf16.msra.mxu0 0
        %2423 = vmatpush.bf16.msra.mxu0 0
        %2424 = vmatpush.bf16.msra.mxu0 0
        %2425 = vmatpush.bf16.msra.mxu0 0
        %2426 = vmatpush.bf16.msra.mxu0 0
        %2427 = vmatpush.bf16.msra.mxu0 0
        %2428 = vmatpush.bf16.msra.mxu0 %v2419
        %2429 = vmatpush.bf16.msra.mxu0 %v2418
        %2430 = vmatmul.bf16.gmra.mxu0 %v2093
        %v2431 = vpop.f32.mrf.mxu0
        %v2432 = vadd.f32 %v2408, %v2431
        %v2433 = vpop.f32.mrf.mxu0
        %v2434 = vadd.f32 %v2408, %v2433
        %2435 = vmatmul.bf16.gmra.mxu0 %v2096
        %v2436 = vpop.f32.mrf.mxu0
        %v2437 = vadd.f32 %v2408, %v2436
        %v2438 = vpop.f32.mrf.mxu0
        %v2439 = vadd.f32 %v2408, %v2438
        %2440 = vmatmul.bf16.gmra.mxu0 %v2099
        %v2441 = vpop.f32.mrf.mxu0
        %v2442 = vadd.f32 %v2408, %v2441
        %v2443 = vpop.f32.mrf.mxu0
        %v2444 = vadd.f32 %v2408, %v2443
        %2445 = vmatmul.bf16.gmra.mxu0 %v2102
        %v2446 = vpop.f32.mrf.mxu0
        %v2447 = vadd.f32 %v2408, %v2446
        %v2448 = vpop.f32.mrf.mxu0
        %v2449 = vadd.f32 %v2408, %v2448
        %2450 = vmatmul.bf16.gmra.mxu0 %v2105
        %v2451 = vpop.f32.mrf.mxu0
        %v2452 = vadd.f32 %v2408, %v2451
        %v2453 = vpop.f32.mrf.mxu0
        %v2454 = vadd.f32 %v2408, %v2453
        %2455 = vmatmul.bf16.gmra.mxu0 %v2108
        %v2456 = vpop.f32.mrf.mxu0
        %v2457 = vadd.f32 %v2408, %v2456
        %v2458 = vpop.f32.mrf.mxu0
        %v2459 = vadd.f32 %v2408, %v2458
        %2460 = vmatmul.bf16.gmra.mxu0 %v2111
        %v2461 = vpop.f32.mrf.mxu0
        %v2462 = vadd.f32 %v2408, %v2461
        %v2463 = vpop.f32.mrf.mxu0
        %v2464 = vadd.f32 %v2408, %v2463
        %2465 = vmatmul.bf16.gmra.mxu0 %v2114
        %v2466 = vpop.f32.mrf.mxu0
        %v2467 = vadd.f32 %v2408, %v2466
        %v2468 = vpop.f32.mrf.mxu0
        %v2469 = vadd.f32 %v2408, %v2468
        %2470 = vmatmul.bf16.gmra.mxu0 %v2117
        %v2471 = vpop.f32.mrf.mxu0
        %v2472 = vadd.f32 %v2408, %v2471
        %v2473 = vpop.f32.mrf.mxu0
        %v2474 = vadd.f32 %v2408, %v2473
        %2475 = vmatmul.bf16.gmra.mxu0 %v2120
        %v2476 = vpop.f32.mrf.mxu0
        %v2477 = vadd.f32 %v2408, %v2476
        %v2478 = vpop.f32.mrf.mxu0
        %v2479 = vadd.f32 %v2408, %v2478
        %2480 = vmatmul.bf16.gmra.mxu0 %v2123
        %v2481 = vpop.f32.mrf.mxu0
        %v2482 = vadd.f32 %v2408, %v2481
        %v2483 = vpop.f32.mrf.mxu0
        %v2484 = vadd.f32 %v2408, %v2483
        %2485 = vmatmul.bf16.gmra.mxu0 %v2126
        %v2486 = vpop.f32.mrf.mxu0
        %v2487 = vadd.f32 %v2408, %v2486
        %v2488 = vpop.f32.mrf.mxu0
        %v2489 = vadd.f32 %v2408, %v2488
        %2490 = vmatmul.bf16.gmra.mxu0 %v2129
        %v2491 = vpop.f32.mrf.mxu0
        %v2492 = vadd.f32 %v2408, %v2491
        %v2493 = vpop.f32.mrf.mxu0
        %v2494 = vadd.f32 %v2408, %v2493
        %2495 = vmatmul.bf16.gmra.mxu0 %v2132
        %v2496 = vpop.f32.mrf.mxu0
        %v2497 = vadd.f32 %v2408, %v2496
        %v2498 = vpop.f32.mrf.mxu0
        %v2499 = vadd.f32 %v2408, %v2498
        %2500 = vmatmul.bf16.gmra.mxu0 %v2135
        %v2501 = vpop.f32.mrf.mxu0
        %v2502 = vadd.f32 %v2408, %v2501
        %v2503 = vpop.f32.mrf.mxu0
        %v2504 = vadd.f32 %v2408, %v2503
        %2505 = vmatmul.bf16.gmra.mxu0 %v2138
        %v2506 = vpop.f32.mrf.mxu0
        %v2507 = vadd.f32 %v2408, %v2506
        %v2508 = vpop.f32.mrf.mxu0
        %v2509 = vadd.f32 %v2408, %v2508
        %2510 = vdwg.mxu0
        %v2511 = vpack.c.bf16 %v2432, %v2432
        %v2512 = vpack.c.bf16 %v2434, %v2434
        %v2513 = vpack.c.bf16 %v2437, %v2437
        %v2514 = vpack.c.bf16 %v2439, %v2439
        %v2515 = vpack.c.bf16 %v2442, %v2442
        %v2516 = vpack.c.bf16 %v2444, %v2444
        %v2517 = vpack.c.bf16 %v2447, %v2447
        %v2518 = vpack.c.bf16 %v2449, %v2449
        %v2519 = vpack.c.bf16 %v2452, %v2452
        %v2520 = vpack.c.bf16 %v2454, %v2454
        %v2521 = vpack.c.bf16 %v2457, %v2457
        %v2522 = vpack.c.bf16 %v2459, %v2459
        %v2523 = vpack.c.bf16 %v2462, %v2462
        %v2524 = vpack.c.bf16 %v2464, %v2464
        %v2525 = vpack.c.bf16 %v2467, %v2467
        %v2526 = vpack.c.bf16 %v2469, %v2469
        %v2527 = vpack.c.bf16 %v2472, %v2472
        %v2528 = vpack.c.bf16 %v2474, %v2474
        %v2529 = vpack.c.bf16 %v2477, %v2477
        %v2530 = vpack.c.bf16 %v2479, %v2479
        %v2531 = vpack.c.bf16 %v2482, %v2482
        %v2532 = vpack.c.bf16 %v2484, %v2484
        %v2533 = vpack.c.bf16 %v2487, %v2487
        %v2534 = vpack.c.bf16 %v2489, %v2489
        %v2535 = vpack.c.bf16 %v2492, %v2492
        %v2536 = vpack.c.bf16 %v2494, %v2494
        %v2537 = vpack.c.bf16 %v2497, %v2497
        %v2538 = vpack.c.bf16 %v2499, %v2499
        %v2539 = vpack.c.bf16 %v2502, %v2502
        %v2540 = vpack.c.bf16 %v2504, %v2504
        %v2541 = vpack.c.bf16 %v2507, %v2507
        %v2542 = vpack.c.bf16 %v2509, %v2509
        %v2543 = vld [vmem:[%s1137] sm:$0xff]
        %v2544 = vld [vmem:[%s1137 + $0x8] sm:$0xff]
        %v2545 = vld [vmem:[%s1137 + $0x10] sm:$0xff]
        %v2546 = vld [vmem:[%s1137 + $0x18] sm:$0xff]
        %v2547 = vld [vmem:[%s1137 + $0x20] sm:$0xff]
        %v2548 = vld [vmem:[%s1137 + $0x28] sm:$0xff]
        %v2549 = vld [vmem:[%s1137 + $0x30] sm:$0xff]
        %v2550 = vld [vmem:[%s1137 + $0x38] sm:$0xff]
        %v2551 = vld [vmem:[%s1137 + $0x40] sm:$0xff]
        %v2552 = vld [vmem:[%s1137 + $0x48] sm:$0xff]
        %v2553 = vld [vmem:[%s1137 + $0x50] sm:$0xff]
        %v2554 = vld [vmem:[%s1137 + $0x58] sm:$0xff]
        %v2555 = vld [vmem:[%s1137 + $0x60] sm:$0xff]
        %v2556 = vld [vmem:[%s1137 + $0x68] sm:$0xff]
        %v2557 = vld [vmem:[%s1137 + $0x70] sm:$0xff]
        %v2558 = vld [vmem:[%s1137 + $0x78] sm:$0xff]
        %v2559 = vld [vmem:[%s1137 + $0x80] sm:$0xff]
        %v2560 = vld [vmem:[%s1137 + $0x88] sm:$0xff]
        %v2561 = vld [vmem:[%s1137 + $0x90] sm:$0xff]
        %v2562 = vld [vmem:[%s1137 + $0x98] sm:$0xff]
        %v2563 = vld [vmem:[%s1137 + $0xa0] sm:$0xff]
        %v2564 = vld [vmem:[%s1137 + $0xa8] sm:$0xff]
        %v2565 = vld [vmem:[%s1137 + $0xb0] sm:$0xff]
        %v2566 = vld [vmem:[%s1137 + $0xb8] sm:$0xff]
        %v2567 = vld [vmem:[%s1137 + $0xc0] sm:$0xff]
        %v2568 = vld [vmem:[%s1137 + $0xc8] sm:$0xff]
        %v2569 = vld [vmem:[%s1137 + $0xd0] sm:$0xff]
        %v2570 = vld [vmem:[%s1137 + $0xd8] sm:$0xff]
        %v2571 = vld [vmem:[%s1137 + $0xe0] sm:$0xff]
        %v2572 = vld [vmem:[%s1137 + $0xe8] sm:$0xff]
        %v2573 = vld [vmem:[%s1137 + $0xf0] sm:$0xff]
        %v2574 = vld [vmem:[%s1137 + $0xf8] sm:$0xff]
        %v2591 = vunpack.c.l.b16 %v2229
        %v2592 = vunpack.c.l.b16 %v2230
        %v2593 = vunpack.c.l.b16 %v2231
        %v2594 = vunpack.c.l.b16 %v2232
        %v2595 = vunpack.c.l.b16 %v2233
        %v2596 = vunpack.c.l.b16 %v2234
        %v2597 = vunpack.c.l.b16 %v2235
        %v2598 = vunpack.c.l.b16 %v2236
        %v2599 = vunpack.c.l.b16 %v2237
        %v2600 = vunpack.c.l.b16 %v2238
        %v2601 = vunpack.c.l.b16 %v2239
        %v2602 = vunpack.c.l.b16 %v2240
        %v2603 = vunpack.c.l.b16 %v2241
        %v2604 = vunpack.c.l.b16 %v2242
        %v2605 = vunpack.c.l.b16 %v2243
        %v2606 = vunpack.c.l.b16 %v2244
        %v2607 = vpack.c.b16 %v2592, %v2591
        %v2608 = vpack.c.b16 %v2594, %v2593
        %v2609 = vpack.c.b16 %v2596, %v2595
        %v2610 = vpack.c.b16 %v2598, %v2597
        %v2611 = vpack.c.b16 %v2600, %v2599
        %v2612 = vpack.c.b16 %v2602, %v2601
        %v2613 = vpack.c.b16 %v2604, %v2603
        %v2614 = vpack.c.b16 %v2606, %v2605
        %v2631 = vunpack.c.l.b16 %v2370
        %v2632 = vunpack.c.l.b16 %v2371
        %v2633 = vunpack.c.l.b16 %v2372
        %v2634 = vunpack.c.l.b16 %v2373
        %v2635 = vunpack.c.l.b16 %v2374
        %v2636 = vunpack.c.l.b16 %v2375
        %v2637 = vunpack.c.l.b16 %v2376
        %v2638 = vunpack.c.l.b16 %v2377
        %v2639 = vunpack.c.l.b16 %v2378
        %v2640 = vunpack.c.l.b16 %v2379
        %v2641 = vunpack.c.l.b16 %v2380
        %v2642 = vunpack.c.l.b16 %v2381
        %v2643 = vunpack.c.l.b16 %v2382
        %v2644 = vunpack.c.l.b16 %v2383
        %v2645 = vunpack.c.l.b16 %v2384
        %v2646 = vunpack.c.l.b16 %v2385
        %v2647 = vpack.c.b16 %v2632, %v2631
        %v2648 = vpack.c.b16 %v2634, %v2633
        %v2649 = vpack.c.b16 %v2636, %v2635
        %v2650 = vpack.c.b16 %v2638, %v2637
        %v2651 = vpack.c.b16 %v2640, %v2639
        %v2652 = vpack.c.b16 %v2642, %v2641
        %v2653 = vpack.c.b16 %v2644, %v2643
        %v2654 = vpack.c.b16 %v2646, %v2645
        %vm2655 = vcmask 64512
        %v2657 = vsel %vm2655, %v2607, 0
        %v2660 = vsel %vm2655, %v2608, 0
        %v2663 = vsel %vm2655, %v2609, 0
        %v2666 = vsel %vm2655, %v2610, 0
        %v2669 = vsel %vm2655, %v2611, 0
        %v2672 = vsel %vm2655, %v2612, 0
        %v2675 = vsel %vm2655, %v2613, 0
        %v2678 = vsel %vm2655, %v2614, 0
        %v2681 = vsel %vm2655, %v2647, 0
        %v2684 = vsel %vm2655, %v2648, 0
        %v2687 = vsel %vm2655, %v2649, 0
        %v2690 = vsel %vm2655, %v2650, 0
        %v2693 = vsel %vm2655, %v2651, 0
        %v2696 = vsel %vm2655, %v2652, 0
        %v2699 = vsel %vm2655, %v2653, 0
        %v2702 = vsel %vm2655, %v2654, 0
        %2704 = vmatpush.bf16.xpose.msra.mxu0 %v2702
        %2705 = vmatpush.bf16.xpose.msra.mxu0 %v2699
        %2706 = vmatpush.bf16.xpose.msra.mxu0 %v2696
        %2707 = vmatpush.bf16.xpose.msra.mxu0 %v2693
        %2708 = vmatpush.bf16.xpose.msra.mxu0 %v2690
        %2709 = vmatpush.bf16.xpose.msra.mxu0 %v2687
        %2710 = vmatpush.bf16.xpose.msra.mxu0 %v2684
        %2711 = vmatpush.bf16.xpose.msra.mxu0 %v2681
        %2712 = vmatmul.bf16.gmra.mxu0 %v2657
        %v2713 = vpop.f32.mrf.mxu0
        %v2714 = vadd.f32 %v2543, %v2713
        %v2715 = vpop.f32.mrf.mxu0
        %v2716 = vadd.f32 %v2544, %v2715
        %2717 = vmatmul.bf16.gmra.mxu0 %v2660
        %v2718 = vpop.f32.mrf.mxu0
        %v2719 = vadd.f32 %v2545, %v2718
        %v2720 = vpop.f32.mrf.mxu0
        %v2721 = vadd.f32 %v2546, %v2720
        %2722 = vmatmul.bf16.gmra.mxu0 %v2663
        %v2723 = vpop.f32.mrf.mxu0
        %v2724 = vadd.f32 %v2547, %v2723
        %v2725 = vpop.f32.mrf.mxu0
        %v2726 = vadd.f32 %v2548, %v2725
        %2727 = vmatmul.bf16.gmra.mxu0 %v2666
        %v2728 = vpop.f32.mrf.mxu0
        %v2729 = vadd.f32 %v2549, %v2728
        %v2730 = vpop.f32.mrf.mxu0
        %v2731 = vadd.f32 %v2550, %v2730
        %2732 = vmatmul.bf16.gmra.mxu0 %v2669
        %v2733 = vpop.f32.mrf.mxu0
        %v2734 = vadd.f32 %v2551, %v2733
        %v2735 = vpop.f32.mrf.mxu0
        %v2736 = vadd.f32 %v2552, %v2735
        %2737 = vmatmul.bf16.gmra.mxu0 %v2672
        %v2738 = vpop.f32.mrf.mxu0
        %v2739 = vadd.f32 %v2553, %v2738
        %v2740 = vpop.f32.mrf.mxu0
        %v2741 = vadd.f32 %v2554, %v2740
        %2742 = vmatmul.bf16.gmra.mxu0 %v2675
        %v2743 = vpop.f32.mrf.mxu0
        %v2744 = vadd.f32 %v2555, %v2743
        %v2745 = vpop.f32.mrf.mxu0
        %v2746 = vadd.f32 %v2556, %v2745
        %2747 = vmatmul.bf16.gmra.mxu0 %v2678
        %v2748 = vpop.f32.mrf.mxu0
        %v2749 = vadd.f32 %v2557, %v2748
        %v2750 = vpop.f32.mrf.mxu0
        %v2751 = vadd.f32 %v2558, %v2750
        %2752 = vdwg.mxu0
        %v2769 = vunpack.c.l.b16 %v2245
        %v2770 = vunpack.c.l.b16 %v2246
        %v2771 = vunpack.c.l.b16 %v2247
        %v2772 = vunpack.c.l.b16 %v2248
        %v2773 = vunpack.c.l.b16 %v2249
        %v2774 = vunpack.c.l.b16 %v2250
        %v2775 = vunpack.c.l.b16 %v2251
        %v2776 = vunpack.c.l.b16 %v2252
        %v2777 = vunpack.c.l.b16 %v2253
        %v2778 = vunpack.c.l.b16 %v2254
        %v2779 = vunpack.c.l.b16 %v2255
        %v2780 = vunpack.c.l.b16 %v2256
        %v2781 = vunpack.c.l.b16 %v2257
        %v2782 = vunpack.c.l.b16 %v2258
        %v2783 = vunpack.c.l.b16 %v2259
        %v2784 = vunpack.c.l.b16 %v2260
        %v2785 = vpack.c.b16 %v2770, %v2769
        %v2786 = vpack.c.b16 %v2772, %v2771
        %v2787 = vpack.c.b16 %v2774, %v2773
        %v2788 = vpack.c.b16 %v2776, %v2775
        %v2789 = vpack.c.b16 %v2778, %v2777
        %v2790 = vpack.c.b16 %v2780, %v2779
        %v2791 = vpack.c.b16 %v2782, %v2781
        %v2792 = vpack.c.b16 %v2784, %v2783
        %v2809 = vunpack.c.l.b16 %v2386
        %v2810 = vunpack.c.l.b16 %v2387
        %v2811 = vunpack.c.l.b16 %v2388
        %v2812 = vunpack.c.l.b16 %v2389
        %v2813 = vunpack.c.l.b16 %v2390
        %v2814 = vunpack.c.l.b16 %v2391
        %v2815 = vunpack.c.l.b16 %v2392
        %v2816 = vunpack.c.l.b16 %v2393
        %v2817 = vunpack.c.l.b16 %v2394
        %v2818 = vunpack.c.l.b16 %v2395
        %v2819 = vunpack.c.l.b16 %v2396
        %v2820 = vunpack.c.l.b16 %v2397
        %v2821 = vunpack.c.l.b16 %v2398
        %v2822 = vunpack.c.l.b16 %v2399
        %v2823 = vunpack.c.l.b16 %v2400
        %v2824 = vunpack.c.l.b16 %v2401
        %v2825 = vpack.c.b16 %v2810, %v2809
        %v2826 = vpack.c.b16 %v2812, %v2811
        %v2827 = vpack.c.b16 %v2814, %v2813
        %v2828 = vpack.c.b16 %v2816, %v2815
        %v2829 = vpack.c.b16 %v2818, %v2817
        %v2830 = vpack.c.b16 %v2820, %v2819
        %v2831 = vpack.c.b16 %v2822, %v2821
        %v2832 = vpack.c.b16 %v2824, %v2823
        %v2834 = vsel %vm2655, %v2785, 0
        %v2837 = vsel %vm2655, %v2786, 0
        %v2840 = vsel %vm2655, %v2787, 0
        %v2843 = vsel %vm2655, %v2788, 0
        %v2846 = vsel %vm2655, %v2789, 0
        %v2849 = vsel %vm2655, %v2790, 0
        %v2852 = vsel %vm2655, %v2791, 0
        %v2855 = vsel %vm2655, %v2792, 0
        %v2858 = vsel %vm2655, %v2825, 0
        %v2861 = vsel %vm2655, %v2826, 0
        %v2864 = vsel %vm2655, %v2827, 0
        %v2867 = vsel %vm2655, %v2828, 0
        %v2870 = vsel %vm2655, %v2829, 0
        %v2873 = vsel %vm2655, %v2830, 0
        %v2876 = vsel %vm2655, %v2831, 0
        %v2879 = vsel %vm2655, %v2832, 0
        %2881 = vmatpush.bf16.xpose.msra.mxu0 %v2879
        %2882 = vmatpush.bf16.xpose.msra.mxu0 %v2876
        %2883 = vmatpush.bf16.xpose.msra.mxu0 %v2873
        %2884 = vmatpush.bf16.xpose.msra.mxu0 %v2870
        %2885 = vmatpush.bf16.xpose.msra.mxu0 %v2867
        %2886 = vmatpush.bf16.xpose.msra.mxu0 %v2864
        %2887 = vmatpush.bf16.xpose.msra.mxu0 %v2861
        %2888 = vmatpush.bf16.xpose.msra.mxu0 %v2858
        %2889 = vmatmul.bf16.gmra.mxu0 %v2834
        %v2890 = vpop.f32.mrf.mxu0
        %v2891 = vadd.f32 %v2559, %v2890
        %v2892 = vpop.f32.mrf.mxu0
        %v2893 = vadd.f32 %v2560, %v2892
        %2894 = vmatmul.bf16.gmra.mxu0 %v2837
        %v2895 = vpop.f32.mrf.mxu0
        %v2896 = vadd.f32 %v2561, %v2895
        %v2897 = vpop.f32.mrf.mxu0
        %v2898 = vadd.f32 %v2562, %v2897
        %2899 = vmatmul.bf16.gmra.mxu0 %v2840
        %v2900 = vpop.f32.mrf.mxu0
        %v2901 = vadd.f32 %v2563, %v2900
        %v2902 = vpop.f32.mrf.mxu0
        %v2903 = vadd.f32 %v2564, %v2902
        %2904 = vmatmul.bf16.gmra.mxu0 %v2843
        %v2905 = vpop.f32.mrf.mxu0
        %v2906 = vadd.f32 %v2565, %v2905
        %v2907 = vpop.f32.mrf.mxu0
        %v2908 = vadd.f32 %v2566, %v2907
        %2909 = vmatmul.bf16.gmra.mxu0 %v2846
        %v2910 = vpop.f32.mrf.mxu0
        %v2911 = vadd.f32 %v2567, %v2910
        %v2912 = vpop.f32.mrf.mxu0
        %v2913 = vadd.f32 %v2568, %v2912
        %2914 = vmatmul.bf16.gmra.mxu0 %v2849
        %v2915 = vpop.f32.mrf.mxu0
        %v2916 = vadd.f32 %v2569, %v2915
        %v2917 = vpop.f32.mrf.mxu0
        %v2918 = vadd.f32 %v2570, %v2917
        %2919 = vmatmul.bf16.gmra.mxu0 %v2852
        %v2920 = vpop.f32.mrf.mxu0
        %v2921 = vadd.f32 %v2571, %v2920
        %v2922 = vpop.f32.mrf.mxu0
        %v2923 = vadd.f32 %v2572, %v2922
        %2924 = vmatmul.bf16.gmra.mxu0 %v2855
        %v2925 = vpop.f32.mrf.mxu0
        %v2926 = vadd.f32 %v2573, %v2925
        %v2927 = vpop.f32.mrf.mxu0
        %v2928 = vadd.f32 %v2574, %v2927
        %2929 = vdwg.mxu0
        %2930 = vmax.xlane.f32.xlu0 %v2714
        %v2931 = vpop.xlane.xlu0 %2930
        %2932 = vmax.xlane.f32.xlu0 %v2716
        %v2933 = vpop.xlane.xlu0 %2932
        %2934 = vmax.xlane.f32.xlu0 %v2719
        %v2935 = vpop.xlane.xlu0 %2934
        %2936 = vmax.xlane.f32.xlu0 %v2721
        %v2937 = vpop.xlane.xlu0 %2936
        %2938 = vmax.xlane.f32.xlu0 %v2724
        %v2939 = vpop.xlane.xlu0 %2938
        %2940 = vmax.xlane.f32.xlu0 %v2726
        %v2941 = vpop.xlane.xlu0 %2940
        %2942 = vmax.xlane.f32.xlu0 %v2729
        %v2943 = vpop.xlane.xlu0 %2942
        %2944 = vmax.xlane.f32.xlu0 %v2731
        %v2945 = vpop.xlane.xlu0 %2944
        %2946 = vmax.xlane.f32.xlu0 %v2734
        %v2947 = vpop.xlane.xlu0 %2946
        %2948 = vmax.xlane.f32.xlu0 %v2736
        %v2949 = vpop.xlane.xlu0 %2948
        %2950 = vmax.xlane.f32.xlu0 %v2739
        %v2951 = vpop.xlane.xlu0 %2950
        %2952 = vmax.xlane.f32.xlu0 %v2741
        %v2953 = vpop.xlane.xlu0 %2952
        %2954 = vmax.xlane.f32.xlu0 %v2744
        %v2955 = vpop.xlane.xlu0 %2954
        %2956 = vmax.xlane.f32.xlu0 %v2746
        %v2957 = vpop.xlane.xlu0 %2956
        %2958 = vmax.xlane.f32.xlu0 %v2749
        %v2959 = vpop.xlane.xlu0 %2958
        %2960 = vmax.xlane.f32.xlu0 %v2751
        %v2961 = vpop.xlane.xlu0 %2960
        %2962 = vmax.xlane.f32.xlu0 %v2891
        %v2963 = vpop.xlane.xlu0 %2962
        %2964 = vmax.xlane.f32.xlu0 %v2893
        %v2965 = vpop.xlane.xlu0 %2964
        %2966 = vmax.xlane.f32.xlu0 %v2896
        %v2967 = vpop.xlane.xlu0 %2966
        %2968 = vmax.xlane.f32.xlu0 %v2898
        %v2969 = vpop.xlane.xlu0 %2968
        %2970 = vmax.xlane.f32.xlu0 %v2901
        %v2971 = vpop.xlane.xlu0 %2970
        %2972 = vmax.xlane.f32.xlu0 %v2903
        %v2973 = vpop.xlane.xlu0 %2972
        %2974 = vmax.xlane.f32.xlu0 %v2906
        %v2975 = vpop.xlane.xlu0 %2974
        %2976 = vmax.xlane.f32.xlu0 %v2908
        %v2977 = vpop.xlane.xlu0 %2976
        %2978 = vmax.xlane.f32.xlu0 %v2911
        %v2979 = vpop.xlane.xlu0 %2978
        %2980 = vmax.xlane.f32.xlu0 %v2913
        %v2981 = vpop.xlane.xlu0 %2980
        %2982 = vmax.xlane.f32.xlu0 %v2916
        %v2983 = vpop.xlane.xlu0 %2982
        %2984 = vmax.xlane.f32.xlu0 %v2918
        %v2985 = vpop.xlane.xlu0 %2984
        %2986 = vmax.xlane.f32.xlu0 %v2921
        %v2987 = vpop.xlane.xlu0 %2986
        %2988 = vmax.xlane.f32.xlu0 %v2923
        %v2989 = vpop.xlane.xlu0 %2988
        %2990 = vmax.xlane.f32.xlu0 %v2926
        %v2991 = vpop.xlane.xlu0 %2990
        %2992 = vmax.xlane.f32.xlu0 %v2928
        %v2993 = vpop.xlane.xlu0 %2992
        %v2994 = vsub.f32 %v2714, %v2931
        %v2995 = vsub.f32 %v2716, %v2933
        %v2996 = vsub.f32 %v2719, %v2935
        %v2997 = vsub.f32 %v2721, %v2937
        %v2998 = vsub.f32 %v2724, %v2939
        %v2999 = vsub.f32 %v2726, %v2941
        %v3000 = vsub.f32 %v2729, %v2943
        %v3001 = vsub.f32 %v2731, %v2945
        %v3002 = vsub.f32 %v2734, %v2947
        %v3003 = vsub.f32 %v2736, %v2949
        %v3004 = vsub.f32 %v2739, %v2951
        %v3005 = vsub.f32 %v2741, %v2953
        %v3006 = vsub.f32 %v2744, %v2955
        %v3007 = vsub.f32 %v2746, %v2957
        %v3008 = vsub.f32 %v2749, %v2959
        %v3009 = vsub.f32 %v2751, %v2961
        %v3010 = vsub.f32 %v2891, %v2963
        %v3011 = vsub.f32 %v2893, %v2965
        %v3012 = vsub.f32 %v2896, %v2967
        %v3013 = vsub.f32 %v2898, %v2969
        %v3014 = vsub.f32 %v2901, %v2971
        %v3015 = vsub.f32 %v2903, %v2973
        %v3016 = vsub.f32 %v2906, %v2975
        %v3017 = vsub.f32 %v2908, %v2977
        %v3018 = vsub.f32 %v2911, %v2979
        %v3019 = vsub.f32 %v2913, %v2981
        %v3020 = vsub.f32 %v2916, %v2983
        %v3021 = vsub.f32 %v2918, %v2985
        %v3022 = vsub.f32 %v2921, %v2987
        %v3023 = vsub.f32 %v2923, %v2989
        %v3024 = vsub.f32 %v2926, %v2991
        %v3025 = vsub.f32 %v2928, %v2993
        %v3026 = vmul.f32 %v2994, 1.442695
        %v3027 = vpow.pop %v3026
        %v3028 = vmul.f32 %v2995, 1.442695
        %v3029 = vpow.pop %v3028
        %v3030 = vmul.f32 %v2996, 1.442695
        %v3031 = vpow.pop %v3030
        %v3032 = vmul.f32 %v2997, 1.442695
        %v3033 = vpow.pop %v3032
        %v3034 = vmul.f32 %v2998, 1.442695
        %v3035 = vpow.pop %v3034
        %v3036 = vmul.f32 %v2999, 1.442695
        %v3037 = vpow.pop %v3036
        %v3038 = vmul.f32 %v3000, 1.442695
        %v3039 = vpow.pop %v3038
        %v3040 = vmul.f32 %v3001, 1.442695
        %v3041 = vpow.pop %v3040
        %v3042 = vmul.f32 %v3002, 1.442695
        %v3043 = vpow.pop %v3042
        %v3044 = vmul.f32 %v3003, 1.442695
        %v3045 = vpow.pop %v3044
        %v3046 = vmul.f32 %v3004, 1.442695
        %v3047 = vpow.pop %v3046
        %v3048 = vmul.f32 %v3005, 1.442695
        %v3049 = vpow.pop %v3048
        %v3050 = vmul.f32 %v3006, 1.442695
        %v3051 = vpow.pop %v3050
        %v3052 = vmul.f32 %v3007, 1.442695
        %v3053 = vpow.pop %v3052
        %v3054 = vmul.f32 %v3008, 1.442695
        %v3055 = vpow.pop %v3054
        %v3056 = vmul.f32 %v3009, 1.442695
        %v3057 = vpow.pop %v3056
        %v3058 = vmul.f32 %v3010, 1.442695
        %v3059 = vpow.pop %v3058
        %v3060 = vmul.f32 %v3011, 1.442695
        %v3061 = vpow.pop %v3060
        %v3062 = vmul.f32 %v3012, 1.442695
        %v3063 = vpow.pop %v3062
        %v3064 = vmul.f32 %v3013, 1.442695
        %v3065 = vpow.pop %v3064
        %v3066 = vmul.f32 %v3014, 1.442695
        %v3067 = vpow.pop %v3066
        %v3068 = vmul.f32 %v3015, 1.442695
        %v3069 = vpow.pop %v3068
        %v3070 = vmul.f32 %v3016, 1.442695
        %v3071 = vpow.pop %v3070
        %v3072 = vmul.f32 %v3017, 1.442695
        %v3073 = vpow.pop %v3072
        %v3074 = vmul.f32 %v3018, 1.442695
        %v3075 = vpow.pop %v3074
        %v3076 = vmul.f32 %v3019, 1.442695
        %v3077 = vpow.pop %v3076
        %v3078 = vmul.f32 %v3020, 1.442695
        %v3079 = vpow.pop %v3078
        %v3080 = vmul.f32 %v3021, 1.442695
        %v3081 = vpow.pop %v3080
        %v3082 = vmul.f32 %v3022, 1.442695
        %v3083 = vpow.pop %v3082
        %v3084 = vmul.f32 %v3023, 1.442695
        %v3085 = vpow.pop %v3084
        %v3086 = vmul.f32 %v3024, 1.442695
        %v3087 = vpow.pop %v3086
        %v3088 = vmul.f32 %v3025, 1.442695
        %v3089 = vpow.pop %v3088
        %3090 = vadd.xlane.f32.xlu0 %v3027
        %v3091 = vpop.xlane.xlu0 %3090
        %3092 = vadd.xlane.f32.xlu0 %v3029
        %v3093 = vpop.xlane.xlu0 %3092
        %3094 = vadd.xlane.f32.xlu0 %v3031
        %v3095 = vpop.xlane.xlu0 %3094
        %3096 = vadd.xlane.f32.xlu0 %v3033
        %v3097 = vpop.xlane.xlu0 %3096
        %3098 = vadd.xlane.f32.xlu0 %v3035
        %v3099 = vpop.xlane.xlu0 %3098
        %3100 = vadd.xlane.f32.xlu0 %v3037
        %v3101 = vpop.xlane.xlu0 %3100
        %3102 = vadd.xlane.f32.xlu0 %v3039
        %v3103 = vpop.xlane.xlu0 %3102
        %3104 = vadd.xlane.f32.xlu0 %v3041
        %v3105 = vpop.xlane.xlu0 %3104
        %3106 = vadd.xlane.f32.xlu0 %v3043
        %v3107 = vpop.xlane.xlu0 %3106
        %3108 = vadd.xlane.f32.xlu0 %v3045
        %v3109 = vpop.xlane.xlu0 %3108
        %3110 = vadd.xlane.f32.xlu0 %v3047
        %v3111 = vpop.xlane.xlu0 %3110
        %3112 = vadd.xlane.f32.xlu0 %v3049
        %v3113 = vpop.xlane.xlu0 %3112
        %3114 = vadd.xlane.f32.xlu0 %v3051
        %v3115 = vpop.xlane.xlu0 %3114
        %3116 = vadd.xlane.f32.xlu0 %v3053
        %v3117 = vpop.xlane.xlu0 %3116
        %3118 = vadd.xlane.f32.xlu0 %v3055
        %v3119 = vpop.xlane.xlu0 %3118
        %3120 = vadd.xlane.f32.xlu0 %v3057
        %v3121 = vpop.xlane.xlu0 %3120
        %3122 = vadd.xlane.f32.xlu0 %v3059
        %v3123 = vpop.xlane.xlu0 %3122
        %3124 = vadd.xlane.f32.xlu0 %v3061
        %v3125 = vpop.xlane.xlu0 %3124
        %3126 = vadd.xlane.f32.xlu0 %v3063
        %v3127 = vpop.xlane.xlu0 %3126
        %3128 = vadd.xlane.f32.xlu0 %v3065
        %v3129 = vpop.xlane.xlu0 %3128
        %3130 = vadd.xlane.f32.xlu0 %v3067
        %v3131 = vpop.xlane.xlu0 %3130
        %3132 = vadd.xlane.f32.xlu0 %v3069
        %v3133 = vpop.xlane.xlu0 %3132
        %3134 = vadd.xlane.f32.xlu0 %v3071
        %v3135 = vpop.xlane.xlu0 %3134
        %3136 = vadd.xlane.f32.xlu0 %v3073
        %v3137 = vpop.xlane.xlu0 %3136
        %3138 = vadd.xlane.f32.xlu0 %v3075
        %v3139 = vpop.xlane.xlu0 %3138
        %3140 = vadd.xlane.f32.xlu0 %v3077
        %v3141 = vpop.xlane.xlu0 %3140
        %3142 = vadd.xlane.f32.xlu0 %v3079
        %v3143 = vpop.xlane.xlu0 %3142
        %3144 = vadd.xlane.f32.xlu0 %v3081
        %v3145 = vpop.xlane.xlu0 %3144
        %3146 = vadd.xlane.f32.xlu0 %v3083
        %v3147 = vpop.xlane.xlu0 %3146
        %3148 = vadd.xlane.f32.xlu0 %v3085
        %v3149 = vpop.xlane.xlu0 %3148
        %3150 = vadd.xlane.f32.xlu0 %v3087
        %v3151 = vpop.xlane.xlu0 %3150
        %3152 = vadd.xlane.f32.xlu0 %v3089
        %v3153 = vpop.xlane.xlu0 %3152
        %v3154 = vrcp.pop %v3091
        %v3155 = vrcp.pop %v3093
        %v3156 = vrcp.pop %v3095
        %v3157 = vrcp.pop %v3097
        %v3158 = vrcp.pop %v3099
        %v3159 = vrcp.pop %v3101
        %v3160 = vrcp.pop %v3103
        %v3161 = vrcp.pop %v3105
        %v3162 = vrcp.pop %v3107
        %v3163 = vrcp.pop %v3109
        %v3164 = vrcp.pop %v3111
        %v3165 = vrcp.pop %v3113
        %v3166 = vrcp.pop %v3115
        %v3167 = vrcp.pop %v3117
        %v3168 = vrcp.pop %v3119
        %v3169 = vrcp.pop %v3121
        %v3170 = vrcp.pop %v3123
        %v3171 = vrcp.pop %v3125
        %v3172 = vrcp.pop %v3127
        %v3173 = vrcp.pop %v3129
        %v3174 = vrcp.pop %v3131
        %v3175 = vrcp.pop %v3133
        %v3176 = vrcp.pop %v3135
        %v3177 = vrcp.pop %v3137
        %v3178 = vrcp.pop %v3139
        %v3179 = vrcp.pop %v3141
        %v3180 = vrcp.pop %v3143
        %v3181 = vrcp.pop %v3145
        %v3182 = vrcp.pop %v3147
        %v3183 = vrcp.pop %v3149
        %v3184 = vrcp.pop %v3151
        %v3185 = vrcp.pop %v3153
        %v3186 = vpack.c.bf16 %v3027, %v3027
        %v3187 = vpack.c.bf16 %v3029, %v3029
        %v3188 = vpack.c.bf16 %v3031, %v3031
        %v3189 = vpack.c.bf16 %v3033, %v3033
        %v3190 = vpack.c.bf16 %v3035, %v3035
        %v3191 = vpack.c.bf16 %v3037, %v3037
        %v3192 = vpack.c.bf16 %v3039, %v3039
        %v3193 = vpack.c.bf16 %v3041, %v3041
        %v3194 = vpack.c.bf16 %v3043, %v3043
        %v3195 = vpack.c.bf16 %v3045, %v3045
        %v3196 = vpack.c.bf16 %v3047, %v3047
        %v3197 = vpack.c.bf16 %v3049, %v3049
        %v3198 = vpack.c.bf16 %v3051, %v3051
        %v3199 = vpack.c.bf16 %v3053, %v3053
        %v3200 = vpack.c.bf16 %v3055, %v3055
        %v3201 = vpack.c.bf16 %v3057, %v3057
        %v3202 = vpack.c.bf16 %v3059, %v3059
        %v3203 = vpack.c.bf16 %v3061, %v3061
        %v3204 = vpack.c.bf16 %v3063, %v3063
        %v3205 = vpack.c.bf16 %v3065, %v3065
        %v3206 = vpack.c.bf16 %v3067, %v3067
        %v3207 = vpack.c.bf16 %v3069, %v3069
        %v3208 = vpack.c.bf16 %v3071, %v3071
        %v3209 = vpack.c.bf16 %v3073, %v3073
        %v3210 = vpack.c.bf16 %v3075, %v3075
        %v3211 = vpack.c.bf16 %v3077, %v3077
        %v3212 = vpack.c.bf16 %v3079, %v3079
        %v3213 = vpack.c.bf16 %v3081, %v3081
        %v3214 = vpack.c.bf16 %v3083, %v3083
        %v3215 = vpack.c.bf16 %v3085, %v3085
        %v3216 = vpack.c.bf16 %v3087, %v3087
        %v3217 = vpack.c.bf16 %v3089, %v3089
        %v3234 = vunpack.c.l.b16 %v3186
        %v3235 = vunpack.c.l.b16 %v3187
        %v3236 = vunpack.c.l.b16 %v3188
        %v3237 = vunpack.c.l.b16 %v3189
        %v3238 = vunpack.c.l.b16 %v3190
        %v3239 = vunpack.c.l.b16 %v3191
        %v3240 = vunpack.c.l.b16 %v3192
        %v3241 = vunpack.c.l.b16 %v3193
        %v3242 = vunpack.c.l.b16 %v3194
        %v3243 = vunpack.c.l.b16 %v3195
        %v3244 = vunpack.c.l.b16 %v3196
        %v3245 = vunpack.c.l.b16 %v3197
        %v3246 = vunpack.c.l.b16 %v3198
        %v3247 = vunpack.c.l.b16 %v3199
        %v3248 = vunpack.c.l.b16 %v3200
        %v3249 = vunpack.c.l.b16 %v3201
        %v3250 = vpack.c.b16 %v3235, %v3234
        %v3251 = vpack.c.b16 %v3237, %v3236
        %v3252 = vpack.c.b16 %v3239, %v3238
        %v3253 = vpack.c.b16 %v3241, %v3240
        %v3254 = vpack.c.b16 %v3243, %v3242
        %v3255 = vpack.c.b16 %v3245, %v3244
        %v3256 = vpack.c.b16 %v3247, %v3246
        %v3257 = vpack.c.b16 %v3249, %v3248
        %v3282 = vunpack.c.l.b16 %v2511
        %v3283 = vunpack.c.l.b16 %v2512
        %v3284 = vunpack.c.l.b16 %v2513
        %v3285 = vunpack.c.l.b16 %v2514
        %v3286 = vunpack.c.l.b16 %v2515
        %v3287 = vunpack.c.l.b16 %v2516
        %v3288 = vunpack.c.l.b16 %v2517
        %v3289 = vunpack.c.l.b16 %v2518
        %v3290 = vunpack.c.l.b16 %v2519
        %v3291 = vunpack.c.l.b16 %v2520
        %v3292 = vunpack.c.l.b16 %v2521
        %v3293 = vunpack.c.l.b16 %v2522
        %v3294 = vunpack.c.l.b16 %v2523
        %v3295 = vunpack.c.l.b16 %v2524
        %v3296 = vunpack.c.l.b16 %v2525
        %v3297 = vunpack.c.l.b16 %v2526
        %v3298 = vpack.c.b16 %v3283, %v3282
        %v3299 = vpack.c.b16 %v3285, %v3284
        %v3300 = vpack.c.b16 %v3287, %v3286
        %v3301 = vpack.c.b16 %v3289, %v3288
        %v3302 = vpack.c.b16 %v3291, %v3290
        %v3303 = vpack.c.b16 %v3293, %v3292
        %v3304 = vpack.c.b16 %v3295, %v3294
        %v3305 = vpack.c.b16 %v3297, %v3296
        %3314 = vmatpush.bf16.msra.mxu0 %v3305
        %3315 = vmatpush.bf16.msra.mxu0 %v3304
        %3316 = vmatpush.bf16.msra.mxu0 %v3303
        %3317 = vmatpush.bf16.msra.mxu0 %v3302
        %3318 = vmatpush.bf16.msra.mxu0 %v3301
        %3319 = vmatpush.bf16.msra.mxu0 %v3300
        %3320 = vmatpush.bf16.msra.mxu0 %v3299
        %3321 = vmatpush.bf16.msra.mxu0 %v3298
        %3322 = vmatmul.bf16.gmra.mxu0 %v3250
        %v3323 = vpop.f32.mrf.mxu0
        %v3324 = vadd.f32 0.0, %v3323
        %v3325 = vpop.f32.mrf.mxu0
        %v3326 = vadd.f32 0.0, %v3325
        %3327 = vmatmul.bf16.gmra.mxu0 %v3251
        %v3328 = vpop.f32.mrf.mxu0
        %v3329 = vadd.f32 0.0, %v3328
        %v3330 = vpop.f32.mrf.mxu0
        %v3331 = vadd.f32 0.0, %v3330
        %3332 = vmatmul.bf16.gmra.mxu0 %v3252
        %v3333 = vpop.f32.mrf.mxu0
        %v3334 = vadd.f32 0.0, %v3333
        %v3335 = vpop.f32.mrf.mxu0
        %v3336 = vadd.f32 0.0, %v3335
        %3337 = vmatmul.bf16.gmra.mxu0 %v3253
        %v3338 = vpop.f32.mrf.mxu0
        %v3339 = vadd.f32 0.0, %v3338
        %v3340 = vpop.f32.mrf.mxu0
        %v3341 = vadd.f32 0.0, %v3340
        %3342 = vmatmul.bf16.gmra.mxu0 %v3254
        %v3343 = vpop.f32.mrf.mxu0
        %v3344 = vadd.f32 0.0, %v3343
        %v3345 = vpop.f32.mrf.mxu0
        %v3346 = vadd.f32 0.0, %v3345
        %3347 = vmatmul.bf16.gmra.mxu0 %v3255
        %v3348 = vpop.f32.mrf.mxu0
        %v3349 = vadd.f32 0.0, %v3348
        %v3350 = vpop.f32.mrf.mxu0
        %v3351 = vadd.f32 0.0, %v3350
        %3352 = vmatmul.bf16.gmra.mxu0 %v3256
        %v3353 = vpop.f32.mrf.mxu0
        %v3354 = vadd.f32 0.0, %v3353
        %v3355 = vpop.f32.mrf.mxu0
        %v3356 = vadd.f32 0.0, %v3355
        %3357 = vmatmul.bf16.gmra.mxu0 %v3257
        %v3358 = vpop.f32.mrf.mxu0
        %v3359 = vadd.f32 0.0, %v3358
        %v3360 = vpop.f32.mrf.mxu0
        %v3361 = vadd.f32 0.0, %v3360
        %3362 = vdwg.mxu0
        %v3379 = vunpack.c.l.b16 %v3202
        %v3380 = vunpack.c.l.b16 %v3203
        %v3381 = vunpack.c.l.b16 %v3204
        %v3382 = vunpack.c.l.b16 %v3205
        %v3383 = vunpack.c.l.b16 %v3206
        %v3384 = vunpack.c.l.b16 %v3207
        %v3385 = vunpack.c.l.b16 %v3208
        %v3386 = vunpack.c.l.b16 %v3209
        %v3387 = vunpack.c.l.b16 %v3210
        %v3388 = vunpack.c.l.b16 %v3211
        %v3389 = vunpack.c.l.b16 %v3212
        %v3390 = vunpack.c.l.b16 %v3213
        %v3391 = vunpack.c.l.b16 %v3214
        %v3392 = vunpack.c.l.b16 %v3215
        %v3393 = vunpack.c.l.b16 %v3216
        %v3394 = vunpack.c.l.b16 %v3217
        %v3395 = vpack.c.b16 %v3380, %v3379
        %v3396 = vpack.c.b16 %v3382, %v3381
        %v3397 = vpack.c.b16 %v3384, %v3383
        %v3398 = vpack.c.b16 %v3386, %v3385
        %v3399 = vpack.c.b16 %v3388, %v3387
        %v3400 = vpack.c.b16 %v3390, %v3389
        %v3401 = vpack.c.b16 %v3392, %v3391
        %v3402 = vpack.c.b16 %v3394, %v3393
        %v3427 = vunpack.c.l.b16 %v2527
        %v3428 = vunpack.c.l.b16 %v2528
        %v3429 = vunpack.c.l.b16 %v2529
        %v3430 = vunpack.c.l.b16 %v2530
        %v3431 = vunpack.c.l.b16 %v2531
        %v3432 = vunpack.c.l.b16 %v2532
        %v3433 = vunpack.c.l.b16 %v2533
        %v3434 = vunpack.c.l.b16 %v2534
        %v3435 = vunpack.c.l.b16 %v2535
        %v3436 = vunpack.c.l.b16 %v2536
        %v3437 = vunpack.c.l.b16 %v2537
        %v3438 = vunpack.c.l.b16 %v2538
        %v3439 = vunpack.c.l.b16 %v2539
        %v3440 = vunpack.c.l.b16 %v2540
        %v3441 = vunpack.c.l.b16 %v2541
        %v3442 = vunpack.c.l.b16 %v2542
        %v3443 = vpack.c.b16 %v3428, %v3427
        %v3444 = vpack.c.b16 %v3430, %v3429
        %v3445 = vpack.c.b16 %v3432, %v3431
        %v3446 = vpack.c.b16 %v3434, %v3433
        %v3447 = vpack.c.b16 %v3436, %v3435
        %v3448 = vpack.c.b16 %v3438, %v3437
        %v3449 = vpack.c.b16 %v3440, %v3439
        %v3450 = vpack.c.b16 %v3442, %v3441
        %3459 = vmatpush.bf16.msra.mxu0 %v3450
        %3460 = vmatpush.bf16.msra.mxu0 %v3449
        %3461 = vmatpush.bf16.msra.mxu0 %v3448
        %3462 = vmatpush.bf16.msra.mxu0 %v3447
        %3463 = vmatpush.bf16.msra.mxu0 %v3446
        %3464 = vmatpush.bf16.msra.mxu0 %v3445
        %3465 = vmatpush.bf16.msra.mxu0 %v3444
        %3466 = vmatpush.bf16.msra.mxu0 %v3443
        %3467 = vmatmul.bf16.gmra.mxu0 %v3395
        %v3468 = vpop.f32.mrf.mxu0
        %v3469 = vadd.f32 0.0, %v3468
        %v3470 = vpop.f32.mrf.mxu0
        %v3471 = vadd.f32 0.0, %v3470
        %3472 = vmatmul.bf16.gmra.mxu0 %v3396
        %v3473 = vpop.f32.mrf.mxu0
        %v3474 = vadd.f32 0.0, %v3473
        %v3475 = vpop.f32.mrf.mxu0
        %v3476 = vadd.f32 0.0, %v3475
        %3477 = vmatmul.bf16.gmra.mxu0 %v3397
        %v3478 = vpop.f32.mrf.mxu0
        %v3479 = vadd.f32 0.0, %v3478
        %v3480 = vpop.f32.mrf.mxu0
        %v3481 = vadd.f32 0.0, %v3480
        %3482 = vmatmul.bf16.gmra.mxu0 %v3398
        %v3483 = vpop.f32.mrf.mxu0
        %v3484 = vadd.f32 0.0, %v3483
        %v3485 = vpop.f32.mrf.mxu0
        %v3486 = vadd.f32 0.0, %v3485
        %3487 = vmatmul.bf16.gmra.mxu0 %v3399
        %v3488 = vpop.f32.mrf.mxu0
        %v3489 = vadd.f32 0.0, %v3488
        %v3490 = vpop.f32.mrf.mxu0
        %v3491 = vadd.f32 0.0, %v3490
        %3492 = vmatmul.bf16.gmra.mxu0 %v3400
        %v3493 = vpop.f32.mrf.mxu0
        %v3494 = vadd.f32 0.0, %v3493
        %v3495 = vpop.f32.mrf.mxu0
        %v3496 = vadd.f32 0.0, %v3495
        %3497 = vmatmul.bf16.gmra.mxu0 %v3401
        %v3498 = vpop.f32.mrf.mxu0
        %v3499 = vadd.f32 0.0, %v3498
        %v3500 = vpop.f32.mrf.mxu0
        %v3501 = vadd.f32 0.0, %v3500
        %3502 = vmatmul.bf16.gmra.mxu0 %v3402
        %v3503 = vpop.f32.mrf.mxu0
        %v3504 = vadd.f32 0.0, %v3503
        %v3505 = vpop.f32.mrf.mxu0
        %v3506 = vadd.f32 0.0, %v3505
        %3507 = vdwg.mxu0
        %v3508 = vmul.f32 %v3324, %v3154
        %v3509 = vmul.f32 %v3326, %v3155
        %v3510 = vmul.f32 %v3329, %v3156
        %v3511 = vmul.f32 %v3331, %v3157
        %v3512 = vmul.f32 %v3334, %v3158
        %v3513 = vmul.f32 %v3336, %v3159
        %v3514 = vmul.f32 %v3339, %v3160
        %v3515 = vmul.f32 %v3341, %v3161
        %v3516 = vmul.f32 %v3344, %v3162
        %v3517 = vmul.f32 %v3346, %v3163
        %v3518 = vmul.f32 %v3349, %v3164
        %v3519 = vmul.f32 %v3351, %v3165
        %v3520 = vmul.f32 %v3354, %v3166
        %v3521 = vmul.f32 %v3356, %v3167
        %v3522 = vmul.f32 %v3359, %v3168
        %v3523 = vmul.f32 %v3361, %v3169
        %v3524 = vmul.f32 %v3469, %v3170
        %v3525 = vmul.f32 %v3471, %v3171
        %v3526 = vmul.f32 %v3474, %v3172
        %v3527 = vmul.f32 %v3476, %v3173
        %v3528 = vmul.f32 %v3479, %v3174
        %v3529 = vmul.f32 %v3481, %v3175
        %v3530 = vmul.f32 %v3484, %v3176
        %v3531 = vmul.f32 %v3486, %v3177
        %v3532 = vmul.f32 %v3489, %v3178
        %v3533 = vmul.f32 %v3491, %v3179
        %v3534 = vmul.f32 %v3494, %v3180
        %v3535 = vmul.f32 %v3496, %v3181
        %v3536 = vmul.f32 %v3499, %v3182
        %v3537 = vmul.f32 %v3501, %v3183
        %v3538 = vmul.f32 %v3504, %v3184
        %v3539 = vmul.f32 %v3506, %v3185
        %v3540 = vpack.c.bf16 %v3508, %v3508
        %v3541 = vpack.c.bf16 %v3509, %v3509
        %v3542 = vpack.c.bf16 %v3510, %v3510
        %v3543 = vpack.c.bf16 %v3511, %v3511
        %v3544 = vpack.c.bf16 %v3512, %v3512
        %v3545 = vpack.c.bf16 %v3513, %v3513
        %v3546 = vpack.c.bf16 %v3514, %v3514
        %v3547 = vpack.c.bf16 %v3515, %v3515
        %v3548 = vpack.c.bf16 %v3516, %v3516
        %v3549 = vpack.c.bf16 %v3517, %v3517
        %v3550 = vpack.c.bf16 %v3518, %v3518
        %v3551 = vpack.c.bf16 %v3519, %v3519
        %v3552 = vpack.c.bf16 %v3520, %v3520
        %v3553 = vpack.c.bf16 %v3521, %v3521
        %v3554 = vpack.c.bf16 %v3522, %v3522
        %v3555 = vpack.c.bf16 %v3523, %v3523
        %v3556 = vpack.c.bf16 %v3524, %v3524
        %v3557 = vpack.c.bf16 %v3525, %v3525
        %v3558 = vpack.c.bf16 %v3526, %v3526
        %v3559 = vpack.c.bf16 %v3527, %v3527
        %v3560 = vpack.c.bf16 %v3528, %v3528
        %v3561 = vpack.c.bf16 %v3529, %v3529
        %v3562 = vpack.c.bf16 %v3530, %v3530
        %v3563 = vpack.c.bf16 %v3531, %v3531
        %v3564 = vpack.c.bf16 %v3532, %v3532
        %v3565 = vpack.c.bf16 %v3533, %v3533
        %v3566 = vpack.c.bf16 %v3534, %v3534
        %v3567 = vpack.c.bf16 %v3535, %v3535
        %v3568 = vpack.c.bf16 %v3536, %v3536
        %v3569 = vpack.c.bf16 %v3537, %v3537
        %v3570 = vpack.c.bf16 %v3538, %v3538
        %v3571 = vpack.c.bf16 %v3539, %v3539
        %3572 = vrot.lane.b32.xlu0 %v2607, 120
        %v3573 = vpop.permute.xlu0 %3572
        %3574 = vrot.lane.b32.xlu0 %v2608, 120
        %v3575 = vpop.permute.xlu0 %3574
        %3576 = vrot.lane.b32.xlu0 %v2609, 120
        %v3577 = vpop.permute.xlu0 %3576
        %3578 = vrot.lane.b32.xlu0 %v2610, 120
        %v3579 = vpop.permute.xlu0 %3578
        %3580 = vrot.lane.b32.xlu0 %v2611, 120
        %v3581 = vpop.permute.xlu0 %3580
        %3582 = vrot.lane.b32.xlu0 %v2612, 120
        %v3583 = vpop.permute.xlu0 %3582
        %3584 = vrot.lane.b32.xlu0 %v2613, 120
        %v3585 = vpop.permute.xlu0 %3584
        %3586 = vrot.lane.b32.xlu0 %v2614, 120
        %v3587 = vpop.permute.xlu0 %3586
        %3588 = vrot.lane.b32.xlu0 %v2647, 120
        %v3589 = vpop.permute.xlu0 %3588
        %3590 = vrot.lane.b32.xlu0 %v2648, 120
        %v3591 = vpop.permute.xlu0 %3590
        %3592 = vrot.lane.b32.xlu0 %v2649, 120
        %v3593 = vpop.permute.xlu0 %3592
        %3594 = vrot.lane.b32.xlu0 %v2650, 120
        %v3595 = vpop.permute.xlu0 %3594
        %3596 = vrot.lane.b32.xlu0 %v2651, 120
        %v3597 = vpop.permute.xlu0 %3596
        %3598 = vrot.lane.b32.xlu0 %v2652, 120
        %v3599 = vpop.permute.xlu0 %3598
        %3600 = vrot.lane.b32.xlu0 %v2653, 120
        %v3601 = vpop.permute.xlu0 %3600
        %3602 = vrot.lane.b32.xlu0 %v2654, 120
        %v3603 = vpop.permute.xlu0 %3602
        %v3605 = vsel %vm2655, %v3573, 0
        %v3608 = vsel %vm2655, %v3575, 0
        %v3611 = vsel %vm2655, %v3577, 0
        %v3614 = vsel %vm2655, %v3579, 0
        %v3617 = vsel %vm2655, %v3581, 0
        %v3620 = vsel %vm2655, %v3583, 0
        %v3623 = vsel %vm2655, %v3585, 0
        %v3626 = vsel %vm2655, %v3587, 0
        %v3629 = vsel %vm2655, %v3589, 0
        %v3632 = vsel %vm2655, %v3591, 0
        %v3635 = vsel %vm2655, %v3593, 0
        %v3638 = vsel %vm2655, %v3595, 0
        %v3641 = vsel %vm2655, %v3597, 0
        %v3644 = vsel %vm2655, %v3599, 0
        %v3647 = vsel %vm2655, %v3601, 0
        %v3650 = vsel %vm2655, %v3603, 0
        %3652 = vmatpush.bf16.xpose.msra.mxu0 %v3650
        %3653 = vmatpush.bf16.xpose.msra.mxu0 %v3647
        %3654 = vmatpush.bf16.xpose.msra.mxu0 %v3644
        %3655 = vmatpush.bf16.xpose.msra.mxu0 %v3641
        %3656 = vmatpush.bf16.xpose.msra.mxu0 %v3638
        %3657 = vmatpush.bf16.xpose.msra.mxu0 %v3635
        %3658 = vmatpush.bf16.xpose.msra.mxu0 %v3632
        %3659 = vmatpush.bf16.xpose.msra.mxu0 %v3629
        %3660 = vmatmul.bf16.gmra.mxu0 %v3605
        %v3661 = vpop.f32.mrf.mxu0
        %v3662 = vadd.f32 %v2543, %v3661
        %v3663 = vpop.f32.mrf.mxu0
        %v3664 = vadd.f32 %v2544, %v3663
        %3665 = vmatmul.bf16.gmra.mxu0 %v3608
        %v3666 = vpop.f32.mrf.mxu0
        %v3667 = vadd.f32 %v2545, %v3666
        %v3668 = vpop.f32.mrf.mxu0
        %v3669 = vadd.f32 %v2546, %v3668
        %3670 = vmatmul.bf16.gmra.mxu0 %v3611
        %v3671 = vpop.f32.mrf.mxu0
        %v3672 = vadd.f32 %v2547, %v3671
        %v3673 = vpop.f32.mrf.mxu0
        %v3674 = vadd.f32 %v2548, %v3673
        %3675 = vmatmul.bf16.gmra.mxu0 %v3614
        %v3676 = vpop.f32.mrf.mxu0
        %v3677 = vadd.f32 %v2549, %v3676
        %v3678 = vpop.f32.mrf.mxu0
        %v3679 = vadd.f32 %v2550, %v3678
        %3680 = vmatmul.bf16.gmra.mxu0 %v3617
        %v3681 = vpop.f32.mrf.mxu0
        %v3682 = vadd.f32 %v2551, %v3681
        %v3683 = vpop.f32.mrf.mxu0
        %v3684 = vadd.f32 %v2552, %v3683
        %3685 = vmatmul.bf16.gmra.mxu0 %v3620
        %v3686 = vpop.f32.mrf.mxu0
        %v3687 = vadd.f32 %v2553, %v3686
        %v3688 = vpop.f32.mrf.mxu0
        %v3689 = vadd.f32 %v2554, %v3688
        %3690 = vmatmul.bf16.gmra.mxu0 %v3623
        %v3691 = vpop.f32.mrf.mxu0
        %v3692 = vadd.f32 %v2555, %v3691
        %v3693 = vpop.f32.mrf.mxu0
        %v3694 = vadd.f32 %v2556, %v3693
        %3695 = vmatmul.bf16.gmra.mxu0 %v3626
        %v3696 = vpop.f32.mrf.mxu0
        %v3697 = vadd.f32 %v2557, %v3696
        %v3698 = vpop.f32.mrf.mxu0
        %v3699 = vadd.f32 %v2558, %v3698
        %3700 = vdwg.mxu0
        %3701 = vrot.lane.b32.xlu0 %v2785, 120
        %v3702 = vpop.permute.xlu0 %3701
        %3703 = vrot.lane.b32.xlu0 %v2786, 120
        %v3704 = vpop.permute.xlu0 %3703
        %3705 = vrot.lane.b32.xlu0 %v2787, 120
        %v3706 = vpop.permute.xlu0 %3705
        %3707 = vrot.lane.b32.xlu0 %v2788, 120
        %v3708 = vpop.permute.xlu0 %3707
        %3709 = vrot.lane.b32.xlu0 %v2789, 120
        %v3710 = vpop.permute.xlu0 %3709
        %3711 = vrot.lane.b32.xlu0 %v2790, 120
        %v3712 = vpop.permute.xlu0 %3711
        %3713 = vrot.lane.b32.xlu0 %v2791, 120
        %v3714 = vpop.permute.xlu0 %3713
        %3715 = vrot.lane.b32.xlu0 %v2792, 120
        %v3716 = vpop.permute.xlu0 %3715
        %3717 = vrot.lane.b32.xlu0 %v2825, 120
        %v3718 = vpop.permute.xlu0 %3717
        %3719 = vrot.lane.b32.xlu0 %v2826, 120
        %v3720 = vpop.permute.xlu0 %3719
        %3721 = vrot.lane.b32.xlu0 %v2827, 120
        %v3722 = vpop.permute.xlu0 %3721
        %3723 = vrot.lane.b32.xlu0 %v2828, 120
        %v3724 = vpop.permute.xlu0 %3723
        %3725 = vrot.lane.b32.xlu0 %v2829, 120
        %v3726 = vpop.permute.xlu0 %3725
        %3727 = vrot.lane.b32.xlu0 %v2830, 120
        %v3728 = vpop.permute.xlu0 %3727
        %3729 = vrot.lane.b32.xlu0 %v2831, 120
        %v3730 = vpop.permute.xlu0 %3729
        %3731 = vrot.lane.b32.xlu0 %v2832, 120
        %v3732 = vpop.permute.xlu0 %3731
        %v3734 = vsel %vm2655, %v3702, 0
        %v3737 = vsel %vm2655, %v3704, 0
        %v3740 = vsel %vm2655, %v3706, 0
        %v3743 = vsel %vm2655, %v3708, 0
        %v3746 = vsel %vm2655, %v3710, 0
        %v3749 = vsel %vm2655, %v3712, 0
        %v3752 = vsel %vm2655, %v3714, 0
        %v3755 = vsel %vm2655, %v3716, 0
        %v3758 = vsel %vm2655, %v3718, 0
        %v3761 = vsel %vm2655, %v3720, 0
        %v3764 = vsel %vm2655, %v3722, 0
        %v3767 = vsel %vm2655, %v3724, 0
        %v3770 = vsel %vm2655, %v3726, 0
        %v3773 = vsel %vm2655, %v3728, 0
        %v3776 = vsel %vm2655, %v3730, 0
        %v3779 = vsel %vm2655, %v3732, 0
        %3781 = vmatpush.bf16.xpose.msra.mxu0 %v3779
        %3782 = vmatpush.bf16.xpose.msra.mxu0 %v3776
        %3783 = vmatpush.bf16.xpose.msra.mxu0 %v3773
        %3784 = vmatpush.bf16.xpose.msra.mxu0 %v3770
        %3785 = vmatpush.bf16.xpose.msra.mxu0 %v3767
        %3786 = vmatpush.bf16.xpose.msra.mxu0 %v3764
        %3787 = vmatpush.bf16.xpose.msra.mxu0 %v3761
        %3788 = vmatpush.bf16.xpose.msra.mxu0 %v3758
        %3789 = vmatmul.bf16.gmra.mxu0 %v3734
        %v3790 = vpop.f32.mrf.mxu0
        %v3791 = vadd.f32 %v2559, %v3790
        %v3792 = vpop.f32.mrf.mxu0
        %v3793 = vadd.f32 %v2560, %v3792
        %3794 = vmatmul.bf16.gmra.mxu0 %v3737
        %v3795 = vpop.f32.mrf.mxu0
        %v3796 = vadd.f32 %v2561, %v3795
        %v3797 = vpop.f32.mrf.mxu0
        %v3798 = vadd.f32 %v2562, %v3797
        %3799 = vmatmul.bf16.gmra.mxu0 %v3740
        %v3800 = vpop.f32.mrf.mxu0
        %v3801 = vadd.f32 %v2563, %v3800
        %v3802 = vpop.f32.mrf.mxu0
        %v3803 = vadd.f32 %v2564, %v3802
        %3804 = vmatmul.bf16.gmra.mxu0 %v3743
        %v3805 = vpop.f32.mrf.mxu0
        %v3806 = vadd.f32 %v2565, %v3805
        %v3807 = vpop.f32.mrf.mxu0
        %v3808 = vadd.f32 %v2566, %v3807
        %3809 = vmatmul.bf16.gmra.mxu0 %v3746
        %v3810 = vpop.f32.mrf.mxu0
        %v3811 = vadd.f32 %v2567, %v3810
        %v3812 = vpop.f32.mrf.mxu0
        %v3813 = vadd.f32 %v2568, %v3812
        %3814 = vmatmul.bf16.gmra.mxu0 %v3749
        %v3815 = vpop.f32.mrf.mxu0
        %v3816 = vadd.f32 %v2569, %v3815
        %v3817 = vpop.f32.mrf.mxu0
        %v3818 = vadd.f32 %v2570, %v3817
        %3819 = vmatmul.bf16.gmra.mxu0 %v3752
        %v3820 = vpop.f32.mrf.mxu0
        %v3821 = vadd.f32 %v2571, %v3820
        %v3822 = vpop.f32.mrf.mxu0
        %v3823 = vadd.f32 %v2572, %v3822
        %3824 = vmatmul.bf16.gmra.mxu0 %v3755
        %v3825 = vpop.f32.mrf.mxu0
        %v3826 = vadd.f32 %v2573, %v3825
        %v3827 = vpop.f32.mrf.mxu0
        %v3828 = vadd.f32 %v2574, %v3827
        %3829 = vdwg.mxu0
        %3830 = vmax.xlane.f32.xlu0 %v3662
        %v3831 = vpop.xlane.xlu0 %3830
        %3832 = vmax.xlane.f32.xlu0 %v3664
        %v3833 = vpop.xlane.xlu0 %3832
        %3834 = vmax.xlane.f32.xlu0 %v3667
        %v3835 = vpop.xlane.xlu0 %3834
        %3836 = vmax.xlane.f32.xlu0 %v3669
        %v3837 = vpop.xlane.xlu0 %3836
        %3838 = vmax.xlane.f32.xlu0 %v3672
        %v3839 = vpop.xlane.xlu0 %3838
        %3840 = vmax.xlane.f32.xlu0 %v3674
        %v3841 = vpop.xlane.xlu0 %3840
        %3842 = vmax.xlane.f32.xlu0 %v3677
        %v3843 = vpop.xlane.xlu0 %3842
        %3844 = vmax.xlane.f32.xlu0 %v3679
        %v3845 = vpop.xlane.xlu0 %3844
        %3846 = vmax.xlane.f32.xlu0 %v3682
        %v3847 = vpop.xlane.xlu0 %3846
        %3848 = vmax.xlane.f32.xlu0 %v3684
        %v3849 = vpop.xlane.xlu0 %3848
        %3850 = vmax.xlane.f32.xlu0 %v3687
        %v3851 = vpop.xlane.xlu0 %3850
        %3852 = vmax.xlane.f32.xlu0 %v3689
        %v3853 = vpop.xlane.xlu0 %3852
        %3854 = vmax.xlane.f32.xlu0 %v3692
        %v3855 = vpop.xlane.xlu0 %3854
        %3856 = vmax.xlane.f32.xlu0 %v3694
        %v3857 = vpop.xlane.xlu0 %3856
        %3858 = vmax.xlane.f32.xlu0 %v3697
        %v3859 = vpop.xlane.xlu0 %3858
        %3860 = vmax.xlane.f32.xlu0 %v3699
        %v3861 = vpop.xlane.xlu0 %3860
        %3862 = vmax.xlane.f32.xlu0 %v3791
        %v3863 = vpop.xlane.xlu0 %3862
        %3864 = vmax.xlane.f32.xlu0 %v3793
        %v3865 = vpop.xlane.xlu0 %3864
        %3866 = vmax.xlane.f32.xlu0 %v3796
        %v3867 = vpop.xlane.xlu0 %3866
        %3868 = vmax.xlane.f32.xlu0 %v3798
        %v3869 = vpop.xlane.xlu0 %3868
        %3870 = vmax.xlane.f32.xlu0 %v3801
        %v3871 = vpop.xlane.xlu0 %3870
        %3872 = vmax.xlane.f32.xlu0 %v3803
        %v3873 = vpop.xlane.xlu0 %3872
        %3874 = vmax.xlane.f32.xlu0 %v3806
        %v3875 = vpop.xlane.xlu0 %3874
        %3876 = vmax.xlane.f32.xlu0 %v3808
        %v3877 = vpop.xlane.xlu0 %3876
        %3878 = vmax.xlane.f32.xlu0 %v3811
        %v3879 = vpop.xlane.xlu0 %3878
        %3880 = vmax.xlane.f32.xlu0 %v3813
        %v3881 = vpop.xlane.xlu0 %3880
        %3882 = vmax.xlane.f32.xlu0 %v3816
        %v3883 = vpop.xlane.xlu0 %3882
        %3884 = vmax.xlane.f32.xlu0 %v3818
        %v3885 = vpop.xlane.xlu0 %3884
        %3886 = vmax.xlane.f32.xlu0 %v3821
        %v3887 = vpop.xlane.xlu0 %3886
        %3888 = vmax.xlane.f32.xlu0 %v3823
        %v3889 = vpop.xlane.xlu0 %3888
        %3890 = vmax.xlane.f32.xlu0 %v3826
        %v3891 = vpop.xlane.xlu0 %3890
        %3892 = vmax.xlane.f32.xlu0 %v3828
        %v3893 = vpop.xlane.xlu0 %3892
        %v3894 = vsub.f32 %v3662, %v3831
        %v3895 = vsub.f32 %v3664, %v3833
        %v3896 = vsub.f32 %v3667, %v3835
        %v3897 = vsub.f32 %v3669, %v3837
        %v3898 = vsub.f32 %v3672, %v3839
        %v3899 = vsub.f32 %v3674, %v3841
        %v3900 = vsub.f32 %v3677, %v3843
        %v3901 = vsub.f32 %v3679, %v3845
        %v3902 = vsub.f32 %v3682, %v3847
        %v3903 = vsub.f32 %v3684, %v3849
        %v3904 = vsub.f32 %v3687, %v3851
        %v3905 = vsub.f32 %v3689, %v3853
        %v3906 = vsub.f32 %v3692, %v3855
        %v3907 = vsub.f32 %v3694, %v3857
        %v3908 = vsub.f32 %v3697, %v3859
        %v3909 = vsub.f32 %v3699, %v3861
        %v3910 = vsub.f32 %v3791, %v3863
        %v3911 = vsub.f32 %v3793, %v3865
        %v3912 = vsub.f32 %v3796, %v3867
        %v3913 = vsub.f32 %v3798, %v3869
        %v3914 = vsub.f32 %v3801, %v3871
        %v3915 = vsub.f32 %v3803, %v3873
        %v3916 = vsub.f32 %v3806, %v3875
        %v3917 = vsub.f32 %v3808, %v3877
        %v3918 = vsub.f32 %v3811, %v3879
        %v3919 = vsub.f32 %v3813, %v3881
        %v3920 = vsub.f32 %v3816, %v3883
        %v3921 = vsub.f32 %v3818, %v3885
        %v3922 = vsub.f32 %v3821, %v3887
        %v3923 = vsub.f32 %v3823, %v3889
        %v3924 = vsub.f32 %v3826, %v3891
        %v3925 = vsub.f32 %v3828, %v3893
        %v3926 = vmul.f32 %v3894, 1.442695
        %v3927 = vpow.pop %v3926
        %v3928 = vmul.f32 %v3895, 1.442695
        %v3929 = vpow.pop %v3928
        %v3930 = vmul.f32 %v3896, 1.442695
        %v3931 = vpow.pop %v3930
        %v3932 = vmul.f32 %v3897, 1.442695
        %v3933 = vpow.pop %v3932
        %v3934 = vmul.f32 %v3898, 1.442695
        %v3935 = vpow.pop %v3934
        %v3936 = vmul.f32 %v3899, 1.442695
        %v3937 = vpow.pop %v3936
        %v3938 = vmul.f32 %v3900, 1.442695
        %v3939 = vpow.pop %v3938
        %v3940 = vmul.f32 %v3901, 1.442695
        %v3941 = vpow.pop %v3940
        %v3942 = vmul.f32 %v3902, 1.442695
        %v3943 = vpow.pop %v3942
        %v3944 = vmul.f32 %v3903, 1.442695
        %v3945 = vpow.pop %v3944
        %v3946 = vmul.f32 %v3904, 1.442695
        %v3947 = vpow.pop %v3946
        %v3948 = vmul.f32 %v3905, 1.442695
        %v3949 = vpow.pop %v3948
        %v3950 = vmul.f32 %v3906, 1.442695
        %v3951 = vpow.pop %v3950
        %v3952 = vmul.f32 %v3907, 1.442695
        %v3953 = vpow.pop %v3952
        %v3954 = vmul.f32 %v3908, 1.442695
        %v3955 = vpow.pop %v3954
        %v3956 = vmul.f32 %v3909, 1.442695
        %v3957 = vpow.pop %v3956
        %v3958 = vmul.f32 %v3910, 1.442695
        %v3959 = vpow.pop %v3958
        %v3960 = vmul.f32 %v3911, 1.442695
        %v3961 = vpow.pop %v3960
        %v3962 = vmul.f32 %v3912, 1.442695
        %v3963 = vpow.pop %v3962
        %v3964 = vmul.f32 %v3913, 1.442695
        %v3965 = vpow.pop %v3964
        %v3966 = vmul.f32 %v3914, 1.442695
        %v3967 = vpow.pop %v3966
        %v3968 = vmul.f32 %v3915, 1.442695
        %v3969 = vpow.pop %v3968
        %v3970 = vmul.f32 %v3916, 1.442695
        %v3971 = vpow.pop %v3970
        %v3972 = vmul.f32 %v3917, 1.442695
        %v3973 = vpow.pop %v3972
        %v3974 = vmul.f32 %v3918, 1.442695
        %v3975 = vpow.pop %v3974
        %v3976 = vmul.f32 %v3919, 1.442695
        %v3977 = vpow.pop %v3976
        %v3978 = vmul.f32 %v3920, 1.442695
        %v3979 = vpow.pop %v3978
        %v3980 = vmul.f32 %v3921, 1.442695
        %v3981 = vpow.pop %v3980
        %v3982 = vmul.f32 %v3922, 1.442695
        %v3983 = vpow.pop %v3982
        %v3984 = vmul.f32 %v3923, 1.442695
        %v3985 = vpow.pop %v3984
        %v3986 = vmul.f32 %v3924, 1.442695
        %v3987 = vpow.pop %v3986
        %v3988 = vmul.f32 %v3925, 1.442695
        %v3989 = vpow.pop %v3988
        %3990 = vadd.xlane.f32.xlu0 %v3927
        %v3991 = vpop.xlane.xlu0 %3990
        %3992 = vadd.xlane.f32.xlu0 %v3929
        %v3993 = vpop.xlane.xlu0 %3992
        %3994 = vadd.xlane.f32.xlu0 %v3931
        %v3995 = vpop.xlane.xlu0 %3994
        %3996 = vadd.xlane.f32.xlu0 %v3933
        %v3997 = vpop.xlane.xlu0 %3996
        %3998 = vadd.xlane.f32.xlu0 %v3935
        %v3999 = vpop.xlane.xlu0 %3998
        %4000 = vadd.xlane.f32.xlu0 %v3937
        %v4001 = vpop.xlane.xlu0 %4000
        %4002 = vadd.xlane.f32.xlu0 %v3939
        %v4003 = vpop.xlane.xlu0 %4002
        %4004 = vadd.xlane.f32.xlu0 %v3941
        %v4005 = vpop.xlane.xlu0 %4004
        %4006 = vadd.xlane.f32.xlu0 %v3943
        %v4007 = vpop.xlane.xlu0 %4006
        %4008 = vadd.xlane.f32.xlu0 %v3945
        %v4009 = vpop.xlane.xlu0 %4008
        %4010 = vadd.xlane.f32.xlu0 %v3947
        %v4011 = vpop.xlane.xlu0 %4010
        %4012 = vadd.xlane.f32.xlu0 %v3949
        %v4013 = vpop.xlane.xlu0 %4012
        %4014 = vadd.xlane.f32.xlu0 %v3951
        %v4015 = vpop.xlane.xlu0 %4014
        %4016 = vadd.xlane.f32.xlu0 %v3953
        %v4017 = vpop.xlane.xlu0 %4016
        %4018 = vadd.xlane.f32.xlu0 %v3955
        %v4019 = vpop.xlane.xlu0 %4018
        %4020 = vadd.xlane.f32.xlu0 %v3957
        %v4021 = vpop.xlane.xlu0 %4020
        %4022 = vadd.xlane.f32.xlu0 %v3959
        %v4023 = vpop.xlane.xlu0 %4022
        %4024 = vadd.xlane.f32.xlu0 %v3961
        %v4025 = vpop.xlane.xlu0 %4024
        %4026 = vadd.xlane.f32.xlu0 %v3963
        %v4027 = vpop.xlane.xlu0 %4026
        %4028 = vadd.xlane.f32.xlu0 %v3965
        %v4029 = vpop.xlane.xlu0 %4028
        %4030 = vadd.xlane.f32.xlu0 %v3967
        %v4031 = vpop.xlane.xlu0 %4030
        %4032 = vadd.xlane.f32.xlu0 %v3969
        %v4033 = vpop.xlane.xlu0 %4032
        %4034 = vadd.xlane.f32.xlu0 %v3971
        %v4035 = vpop.xlane.xlu0 %4034
        %4036 = vadd.xlane.f32.xlu0 %v3973
        %v4037 = vpop.xlane.xlu0 %4036
        %4038 = vadd.xlane.f32.xlu0 %v3975
        %v4039 = vpop.xlane.xlu0 %4038
        %4040 = vadd.xlane.f32.xlu0 %v3977
        %v4041 = vpop.xlane.xlu0 %4040
        %4042 = vadd.xlane.f32.xlu0 %v3979
        %v4043 = vpop.xlane.xlu0 %4042
        %4044 = vadd.xlane.f32.xlu0 %v3981
        %v4045 = vpop.xlane.xlu0 %4044
        %4046 = vadd.xlane.f32.xlu0 %v3983
        %v4047 = vpop.xlane.xlu0 %4046
        %4048 = vadd.xlane.f32.xlu0 %v3985
        %v4049 = vpop.xlane.xlu0 %4048
        %4050 = vadd.xlane.f32.xlu0 %v3987
        %v4051 = vpop.xlane.xlu0 %4050
        %4052 = vadd.xlane.f32.xlu0 %v3989
        %v4053 = vpop.xlane.xlu0 %4052
        %v4054 = vrcp.pop %v3991
        %v4055 = vrcp.pop %v3993
        %v4056 = vrcp.pop %v3995
        %v4057 = vrcp.pop %v3997
        %v4058 = vrcp.pop %v3999
        %v4059 = vrcp.pop %v4001
        %v4060 = vrcp.pop %v4003
        %v4061 = vrcp.pop %v4005
        %v4062 = vrcp.pop %v4007
        %v4063 = vrcp.pop %v4009
        %v4064 = vrcp.pop %v4011
        %v4065 = vrcp.pop %v4013
        %v4066 = vrcp.pop %v4015
        %v4067 = vrcp.pop %v4017
        %v4068 = vrcp.pop %v4019
        %v4069 = vrcp.pop %v4021
        %v4070 = vrcp.pop %v4023
        %v4071 = vrcp.pop %v4025
        %v4072 = vrcp.pop %v4027
        %v4073 = vrcp.pop %v4029
        %v4074 = vrcp.pop %v4031
        %v4075 = vrcp.pop %v4033
        %v4076 = vrcp.pop %v4035
        %v4077 = vrcp.pop %v4037
        %v4078 = vrcp.pop %v4039
        %v4079 = vrcp.pop %v4041
        %v4080 = vrcp.pop %v4043
        %v4081 = vrcp.pop %v4045
        %v4082 = vrcp.pop %v4047
        %v4083 = vrcp.pop %v4049
        %v4084 = vrcp.pop %v4051
        %v4085 = vrcp.pop %v4053
        %v4086 = vpack.c.bf16 %v3927, %v3927
        %v4087 = vpack.c.bf16 %v3929, %v3929
        %v4088 = vpack.c.bf16 %v3931, %v3931
        %v4089 = vpack.c.bf16 %v3933, %v3933
        %v4090 = vpack.c.bf16 %v3935, %v3935
        %v4091 = vpack.c.bf16 %v3937, %v3937
        %v4092 = vpack.c.bf16 %v3939, %v3939
        %v4093 = vpack.c.bf16 %v3941, %v3941
        %v4094 = vpack.c.bf16 %v3943, %v3943
        %v4095 = vpack.c.bf16 %v3945, %v3945
        %v4096 = vpack.c.bf16 %v3947, %v3947
        %v4097 = vpack.c.bf16 %v3949, %v3949
        %v4098 = vpack.c.bf16 %v3951, %v3951
        %v4099 = vpack.c.bf16 %v3953, %v3953
        %v4100 = vpack.c.bf16 %v3955, %v3955
        %v4101 = vpack.c.bf16 %v3957, %v3957
        %v4102 = vpack.c.bf16 %v3959, %v3959
        %v4103 = vpack.c.bf16 %v3961, %v3961
        %v4104 = vpack.c.bf16 %v3963, %v3963
        %v4105 = vpack.c.bf16 %v3965, %v3965
        %v4106 = vpack.c.bf16 %v3967, %v3967
        %v4107 = vpack.c.bf16 %v3969, %v3969
        %v4108 = vpack.c.bf16 %v3971, %v3971
        %v4109 = vpack.c.bf16 %v3973, %v3973
        %v4110 = vpack.c.bf16 %v3975, %v3975
        %v4111 = vpack.c.bf16 %v3977, %v3977
        %v4112 = vpack.c.bf16 %v3979, %v3979
        %v4113 = vpack.c.bf16 %v3981, %v3981
        %v4114 = vpack.c.bf16 %v3983, %v3983
        %v4115 = vpack.c.bf16 %v3985, %v3985
        %v4116 = vpack.c.bf16 %v3987, %v3987
        %v4117 = vpack.c.bf16 %v3989, %v3989
        %v4134 = vunpack.c.l.b16 %v4086
        %v4135 = vunpack.c.l.b16 %v4087
        %v4136 = vunpack.c.l.b16 %v4088
        %v4137 = vunpack.c.l.b16 %v4089
        %v4138 = vunpack.c.l.b16 %v4090
        %v4139 = vunpack.c.l.b16 %v4091
        %v4140 = vunpack.c.l.b16 %v4092
        %v4141 = vunpack.c.l.b16 %v4093
        %v4142 = vunpack.c.l.b16 %v4094
        %v4143 = vunpack.c.l.b16 %v4095
        %v4144 = vunpack.c.l.b16 %v4096
        %v4145 = vunpack.c.l.b16 %v4097
        %v4146 = vunpack.c.l.b16 %v4098
        %v4147 = vunpack.c.l.b16 %v4099
        %v4148 = vunpack.c.l.b16 %v4100
        %v4149 = vunpack.c.l.b16 %v4101
        %v4150 = vpack.c.b16 %v4135, %v4134
        %v4151 = vpack.c.b16 %v4137, %v4136
        %v4152 = vpack.c.b16 %v4139, %v4138
        %v4153 = vpack.c.b16 %v4141, %v4140
        %v4154 = vpack.c.b16 %v4143, %v4142
        %v4155 = vpack.c.b16 %v4145, %v4144
        %v4156 = vpack.c.b16 %v4147, %v4146
        %v4157 = vpack.c.b16 %v4149, %v4148
        %4166 = vrot.lane.b32.xlu0 %v3298, 120
        %v4167 = vpop.permute.xlu0 %4166
        %4168 = vrot.lane.b32.xlu0 %v3299, 120
        %v4169 = vpop.permute.xlu0 %4168
        %4170 = vrot.lane.b32.xlu0 %v3300, 120
        %v4171 = vpop.permute.xlu0 %4170
        %4172 = vrot.lane.b32.xlu0 %v3301, 120
        %v4173 = vpop.permute.xlu0 %4172
        %4174 = vrot.lane.b32.xlu0 %v3302, 120
        %v4175 = vpop.permute.xlu0 %4174
        %4176 = vrot.lane.b32.xlu0 %v3303, 120
        %v4177 = vpop.permute.xlu0 %4176
        %4178 = vrot.lane.b32.xlu0 %v3304, 120
        %v4179 = vpop.permute.xlu0 %4178
        %4180 = vrot.lane.b32.xlu0 %v3305, 120
        %v4181 = vpop.permute.xlu0 %4180
        %4190 = vmatpush.bf16.msra.mxu0 %v4181
        %4191 = vmatpush.bf16.msra.mxu0 %v4179
        %4192 = vmatpush.bf16.msra.mxu0 %v4177
        %4193 = vmatpush.bf16.msra.mxu0 %v4175
        %4194 = vmatpush.bf16.msra.mxu0 %v4173
        %4195 = vmatpush.bf16.msra.mxu0 %v4171
        %4196 = vmatpush.bf16.msra.mxu0 %v4169
        %4197 = vmatpush.bf16.msra.mxu0 %v4167
        %4198 = vmatmul.bf16.gmra.mxu0 %v4150
        %v4199 = vpop.f32.mrf.mxu0
        %v4200 = vadd.f32 0.0, %v4199
        %v4201 = vpop.f32.mrf.mxu0
        %v4202 = vadd.f32 0.0, %v4201
        %4203 = vmatmul.bf16.gmra.mxu0 %v4151
        %v4204 = vpop.f32.mrf.mxu0
        %v4205 = vadd.f32 0.0, %v4204
        %v4206 = vpop.f32.mrf.mxu0
        %v4207 = vadd.f32 0.0, %v4206
        %4208 = vmatmul.bf16.gmra.mxu0 %v4152
        %v4209 = vpop.f32.mrf.mxu0
        %v4210 = vadd.f32 0.0, %v4209
        %v4211 = vpop.f32.mrf.mxu0
        %v4212 = vadd.f32 0.0, %v4211
        %4213 = vmatmul.bf16.gmra.mxu0 %v4153
        %v4214 = vpop.f32.mrf.mxu0
        %v4215 = vadd.f32 0.0, %v4214
        %v4216 = vpop.f32.mrf.mxu0
        %v4217 = vadd.f32 0.0, %v4216
        %4218 = vmatmul.bf16.gmra.mxu0 %v4154
        %v4219 = vpop.f32.mrf.mxu0
        %v4220 = vadd.f32 0.0, %v4219
        %v4221 = vpop.f32.mrf.mxu0
        %v4222 = vadd.f32 0.0, %v4221
        %4223 = vmatmul.bf16.gmra.mxu0 %v4155
        %v4224 = vpop.f32.mrf.mxu0
        %v4225 = vadd.f32 0.0, %v4224
        %v4226 = vpop.f32.mrf.mxu0
        %v4227 = vadd.f32 0.0, %v4226
        %4228 = vmatmul.bf16.gmra.mxu0 %v4156
        %v4229 = vpop.f32.mrf.mxu0
        %v4230 = vadd.f32 0.0, %v4229
        %v4231 = vpop.f32.mrf.mxu0
        %v4232 = vadd.f32 0.0, %v4231
        %4233 = vmatmul.bf16.gmra.mxu0 %v4157
        %v4234 = vpop.f32.mrf.mxu0
        %v4235 = vadd.f32 0.0, %v4234
        %v4236 = vpop.f32.mrf.mxu0
        %v4237 = vadd.f32 0.0, %v4236
        %4238 = vdwg.mxu0
        %v4255 = vunpack.c.l.b16 %v4102
        %v4256 = vunpack.c.l.b16 %v4103
        %v4257 = vunpack.c.l.b16 %v4104
        %v4258 = vunpack.c.l.b16 %v4105
        %v4259 = vunpack.c.l.b16 %v4106
        %v4260 = vunpack.c.l.b16 %v4107
        %v4261 = vunpack.c.l.b16 %v4108
        %v4262 = vunpack.c.l.b16 %v4109
        %v4263 = vunpack.c.l.b16 %v4110
        %v4264 = vunpack.c.l.b16 %v4111
        %v4265 = vunpack.c.l.b16 %v4112
        %v4266 = vunpack.c.l.b16 %v4113
        %v4267 = vunpack.c.l.b16 %v4114
        %v4268 = vunpack.c.l.b16 %v4115
        %v4269 = vunpack.c.l.b16 %v4116
        %v4270 = vunpack.c.l.b16 %v4117
        %v4271 = vpack.c.b16 %v4256, %v4255
        %v4272 = vpack.c.b16 %v4258, %v4257
        %v4273 = vpack.c.b16 %v4260, %v4259
        %v4274 = vpack.c.b16 %v4262, %v4261
        %v4275 = vpack.c.b16 %v4264, %v4263
        %v4276 = vpack.c.b16 %v4266, %v4265
        %v4277 = vpack.c.b16 %v4268, %v4267
        %v4278 = vpack.c.b16 %v4270, %v4269
        %4287 = vrot.lane.b32.xlu0 %v3443, 120
        %v4288 = vpop.permute.xlu0 %4287
        %4289 = vrot.lane.b32.xlu0 %v3444, 120
        %v4290 = vpop.permute.xlu0 %4289
        %4291 = vrot.lane.b32.xlu0 %v3445, 120
        %v4292 = vpop.permute.xlu0 %4291
        %4293 = vrot.lane.b32.xlu0 %v3446, 120
        %v4294 = vpop.permute.xlu0 %4293
        %4295 = vrot.lane.b32.xlu0 %v3447, 120
        %v4296 = vpop.permute.xlu0 %4295
        %4297 = vrot.lane.b32.xlu0 %v3448, 120
        %v4298 = vpop.permute.xlu0 %4297
        %4299 = vrot.lane.b32.xlu0 %v3449, 120
        %v4300 = vpop.permute.xlu0 %4299
        %4301 = vrot.lane.b32.xlu0 %v3450, 120
        %v4302 = vpop.permute.xlu0 %4301
        %4311 = vmatpush.bf16.msra.mxu0 %v4302
        %4312 = vmatpush.bf16.msra.mxu0 %v4300
        %4313 = vmatpush.bf16.msra.mxu0 %v4298
        %4314 = vmatpush.bf16.msra.mxu0 %v4296
        %4315 = vmatpush.bf16.msra.mxu0 %v4294
        %4316 = vmatpush.bf16.msra.mxu0 %v4292
        %4317 = vmatpush.bf16.msra.mxu0 %v4290
        %4318 = vmatpush.bf16.msra.mxu0 %v4288
        %4319 = vmatmul.bf16.gmra.mxu0 %v4271
        %v4320 = vpop.f32.mrf.mxu0
        %v4321 = vadd.f32 0.0, %v4320
        %v4322 = vpop.f32.mrf.mxu0
        %v4323 = vadd.f32 0.0, %v4322
        %4324 = vmatmul.bf16.gmra.mxu0 %v4272
        %v4325 = vpop.f32.mrf.mxu0
        %v4326 = vadd.f32 0.0, %v4325
        %v4327 = vpop.f32.mrf.mxu0
        %v4328 = vadd.f32 0.0, %v4327
        %4329 = vmatmul.bf16.gmra.mxu0 %v4273
        %v4330 = vpop.f32.mrf.mxu0
        %v4331 = vadd.f32 0.0, %v4330
        %v4332 = vpop.f32.mrf.mxu0
        %v4333 = vadd.f32 0.0, %v4332
        %4334 = vmatmul.bf16.gmra.mxu0 %v4274
        %v4335 = vpop.f32.mrf.mxu0
        %v4336 = vadd.f32 0.0, %v4335
        %v4337 = vpop.f32.mrf.mxu0
        %v4338 = vadd.f32 0.0, %v4337
        %4339 = vmatmul.bf16.gmra.mxu0 %v4275
        %v4340 = vpop.f32.mrf.mxu0
        %v4341 = vadd.f32 0.0, %v4340
        %v4342 = vpop.f32.mrf.mxu0
        %v4343 = vadd.f32 0.0, %v4342
        %4344 = vmatmul.bf16.gmra.mxu0 %v4276
        %v4345 = vpop.f32.mrf.mxu0
        %v4346 = vadd.f32 0.0, %v4345
        %v4347 = vpop.f32.mrf.mxu0
        %v4348 = vadd.f32 0.0, %v4347
        %4349 = vmatmul.bf16.gmra.mxu0 %v4277
        %v4350 = vpop.f32.mrf.mxu0
        %v4351 = vadd.f32 0.0, %v4350
        %v4352 = vpop.f32.mrf.mxu0
        %v4353 = vadd.f32 0.0, %v4352
        %4354 = vmatmul.bf16.gmra.mxu0 %v4278
        %v4355 = vpop.f32.mrf.mxu0
        %v4356 = vadd.f32 0.0, %v4355
        %v4357 = vpop.f32.mrf.mxu0
        %v4358 = vadd.f32 0.0, %v4357
        %4359 = vdwg.mxu0
        %v4360 = vmul.f32 %v4200, %v4054
        %v4361 = vmul.f32 %v4202, %v4055
        %v4362 = vmul.f32 %v4205, %v4056
        %v4363 = vmul.f32 %v4207, %v4057
        %v4364 = vmul.f32 %v4210, %v4058
        %v4365 = vmul.f32 %v4212, %v4059
        %v4366 = vmul.f32 %v4215, %v4060
        %v4367 = vmul.f32 %v4217, %v4061
        %v4368 = vmul.f32 %v4220, %v4062
        %v4369 = vmul.f32 %v4222, %v4063
        %v4370 = vmul.f32 %v4225, %v4064
        %v4371 = vmul.f32 %v4227, %v4065
        %v4372 = vmul.f32 %v4230, %v4066
        %v4373 = vmul.f32 %v4232, %v4067
        %v4374 = vmul.f32 %v4235, %v4068
        %v4375 = vmul.f32 %v4237, %v4069
        %v4376 = vmul.f32 %v4321, %v4070
        %v4377 = vmul.f32 %v4323, %v4071
        %v4378 = vmul.f32 %v4326, %v4072
        %v4379 = vmul.f32 %v4328, %v4073
        %v4380 = vmul.f32 %v4331, %v4074
        %v4381 = vmul.f32 %v4333, %v4075
        %v4382 = vmul.f32 %v4336, %v4076
        %v4383 = vmul.f32 %v4338, %v4077
        %v4384 = vmul.f32 %v4341, %v4078
        %v4385 = vmul.f32 %v4343, %v4079
        %v4386 = vmul.f32 %v4346, %v4080
        %v4387 = vmul.f32 %v4348, %v4081
        %v4388 = vmul.f32 %v4351, %v4082
        %v4389 = vmul.f32 %v4353, %v4083
        %v4390 = vmul.f32 %v4356, %v4084
        %v4391 = vmul.f32 %v4358, %v4085
        %v4392 = vpack.c.bf16 %v4360, %v4360
        %v4393 = vpack.c.bf16 %v4361, %v4361
        %v4394 = vpack.c.bf16 %v4362, %v4362
        %v4395 = vpack.c.bf16 %v4363, %v4363
        %v4396 = vpack.c.bf16 %v4364, %v4364
        %v4397 = vpack.c.bf16 %v4365, %v4365
        %v4398 = vpack.c.bf16 %v4366, %v4366
        %v4399 = vpack.c.bf16 %v4367, %v4367
        %v4400 = vpack.c.bf16 %v4368, %v4368
        %v4401 = vpack.c.bf16 %v4369, %v4369
        %v4402 = vpack.c.bf16 %v4370, %v4370
        %v4403 = vpack.c.bf16 %v4371, %v4371
        %v4404 = vpack.c.bf16 %v4372, %v4372
        %v4405 = vpack.c.bf16 %v4373, %v4373
        %v4406 = vpack.c.bf16 %v4374, %v4374
        %v4407 = vpack.c.bf16 %v4375, %v4375
        %v4408 = vpack.c.bf16 %v4376, %v4376
        %v4409 = vpack.c.bf16 %v4377, %v4377
        %v4410 = vpack.c.bf16 %v4378, %v4378
        %v4411 = vpack.c.bf16 %v4379, %v4379
        %v4412 = vpack.c.bf16 %v4380, %v4380
        %v4413 = vpack.c.bf16 %v4381, %v4381
        %v4414 = vpack.c.bf16 %v4382, %v4382
        %v4415 = vpack.c.bf16 %v4383, %v4383
        %v4416 = vpack.c.bf16 %v4384, %v4384
        %v4417 = vpack.c.bf16 %v4385, %v4385
        %v4418 = vpack.c.bf16 %v4386, %v4386
        %v4419 = vpack.c.bf16 %v4387, %v4387
        %v4420 = vpack.c.bf16 %v4388, %v4388
        %v4421 = vpack.c.bf16 %v4389, %v4389
        %v4422 = vpack.c.bf16 %v4390, %v4390
        %v4423 = vpack.c.bf16 %v4391, %v4391
        %4424 = vrot.lane.b32.xlu0 %v2607, 112
        %v4425 = vpop.permute.xlu0 %4424
        %4426 = vrot.lane.b32.xlu0 %v2608, 112
        %v4427 = vpop.permute.xlu0 %4426
        %4428 = vrot.lane.b32.xlu0 %v2609, 112
        %v4429 = vpop.permute.xlu0 %4428
        %4430 = vrot.lane.b32.xlu0 %v2610, 112
        %v4431 = vpop.permute.xlu0 %4430
        %4432 = vrot.lane.b32.xlu0 %v2611, 112
        %v4433 = vpop.permute.xlu0 %4432
        %4434 = vrot.lane.b32.xlu0 %v2612, 112
        %v4435 = vpop.permute.xlu0 %4434
        %4436 = vrot.lane.b32.xlu0 %v2613, 112
        %v4437 = vpop.permute.xlu0 %4436
        %4438 = vrot.lane.b32.xlu0 %v2614, 112
        %v4439 = vpop.permute.xlu0 %4438
        %4440 = vrot.lane.b32.xlu0 %v2647, 112
        %v4441 = vpop.permute.xlu0 %4440
        %4442 = vrot.lane.b32.xlu0 %v2648, 112
        %v4443 = vpop.permute.xlu0 %4442
        %4444 = vrot.lane.b32.xlu0 %v2649, 112
        %v4445 = vpop.permute.xlu0 %4444
        %4446 = vrot.lane.b32.xlu0 %v2650, 112
        %v4447 = vpop.permute.xlu0 %4446
        %4448 = vrot.lane.b32.xlu0 %v2651, 112
        %v4449 = vpop.permute.xlu0 %4448
        %4450 = vrot.lane.b32.xlu0 %v2652, 112
        %v4451 = vpop.permute.xlu0 %4450
        %4452 = vrot.lane.b32.xlu0 %v2653, 112
        %v4453 = vpop.permute.xlu0 %4452
        %4454 = vrot.lane.b32.xlu0 %v2654, 112
        %v4455 = vpop.permute.xlu0 %4454
        %v4457 = vsel %vm2655, %v4425, 0
        %v4460 = vsel %vm2655, %v4427, 0
        %v4463 = vsel %vm2655, %v4429, 0
        %v4466 = vsel %vm2655, %v4431, 0
        %v4469 = vsel %vm2655, %v4433, 0
        %v4472 = vsel %vm2655, %v4435, 0
        %v4475 = vsel %vm2655, %v4437, 0
        %v4478 = vsel %vm2655, %v4439, 0
        %v4481 = vsel %vm2655, %v4441, 0
        %v4484 = vsel %vm2655, %v4443, 0
        %v4487 = vsel %vm2655, %v4445, 0
        %v4490 = vsel %vm2655, %v4447, 0
        %v4493 = vsel %vm2655, %v4449, 0
        %v4496 = vsel %vm2655, %v4451, 0
        %v4499 = vsel %vm2655, %v4453, 0
        %v4502 = vsel %vm2655, %v4455, 0
        %4504 = vmatpush.bf16.xpose.msra.mxu0 %v4502
        %4505 = vmatpush.bf16.xpose.msra.mxu0 %v4499
        %4506 = vmatpush.bf16.xpose.msra.mxu0 %v4496
        %4507 = vmatpush.bf16.xpose.msra.mxu0 %v4493
        %4508 = vmatpush.bf16.xpose.msra.mxu0 %v4490
        %4509 = vmatpush.bf16.xpose.msra.mxu0 %v4487
        %4510 = vmatpush.bf16.xpose.msra.mxu0 %v4484
        %4511 = vmatpush.bf16.xpose.msra.mxu0 %v4481
        %4512 = vmatmul.bf16.gmra.mxu0 %v4457
        %v4513 = vpop.f32.mrf.mxu0
        %v4514 = vadd.f32 %v2543, %v4513
        %v4515 = vpop.f32.mrf.mxu0
        %v4516 = vadd.f32 %v2544, %v4515
        %4517 = vmatmul.bf16.gmra.mxu0 %v4460
        %v4518 = vpop.f32.mrf.mxu0
        %v4519 = vadd.f32 %v2545, %v4518
        %v4520 = vpop.f32.mrf.mxu0
        %v4521 = vadd.f32 %v2546, %v4520
        %4522 = vmatmul.bf16.gmra.mxu0 %v4463
        %v4523 = vpop.f32.mrf.mxu0
        %v4524 = vadd.f32 %v2547, %v4523
        %v4525 = vpop.f32.mrf.mxu0
        %v4526 = vadd.f32 %v2548, %v4525
        %4527 = vmatmul.bf16.gmra.mxu0 %v4466
        %v4528 = vpop.f32.mrf.mxu0
        %v4529 = vadd.f32 %v2549, %v4528
        %v4530 = vpop.f32.mrf.mxu0
        %v4531 = vadd.f32 %v2550, %v4530
        %4532 = vmatmul.bf16.gmra.mxu0 %v4469
        %v4533 = vpop.f32.mrf.mxu0
        %v4534 = vadd.f32 %v2551, %v4533
        %v4535 = vpop.f32.mrf.mxu0
        %v4536 = vadd.f32 %v2552, %v4535
        %4537 = vmatmul.bf16.gmra.mxu0 %v4472
        %v4538 = vpop.f32.mrf.mxu0
        %v4539 = vadd.f32 %v2553, %v4538
        %v4540 = vpop.f32.mrf.mxu0
        %v4541 = vadd.f32 %v2554, %v4540
        %4542 = vmatmul.bf16.gmra.mxu0 %v4475
        %v4543 = vpop.f32.mrf.mxu0
        %v4544 = vadd.f32 %v2555, %v4543
        %v4545 = vpop.f32.mrf.mxu0
        %v4546 = vadd.f32 %v2556, %v4545
        %4547 = vmatmul.bf16.gmra.mxu0 %v4478
        %v4548 = vpop.f32.mrf.mxu0
        %v4549 = vadd.f32 %v2557, %v4548
        %v4550 = vpop.f32.mrf.mxu0
        %v4551 = vadd.f32 %v2558, %v4550
        %4552 = vdwg.mxu0
        %4553 = vrot.lane.b32.xlu0 %v2785, 112
        %v4554 = vpop.permute.xlu0 %4553
        %4555 = vrot.lane.b32.xlu0 %v2786, 112
        %v4556 = vpop.permute.xlu0 %4555
        %4557 = vrot.lane.b32.xlu0 %v2787, 112
        %v4558 = vpop.permute.xlu0 %4557
        %4559 = vrot.lane.b32.xlu0 %v2788, 112
        %v4560 = vpop.permute.xlu0 %4559
        %4561 = vrot.lane.b32.xlu0 %v2789, 112
        %v4562 = vpop.permute.xlu0 %4561
        %4563 = vrot.lane.b32.xlu0 %v2790, 112
        %v4564 = vpop.permute.xlu0 %4563
        %4565 = vrot.lane.b32.xlu0 %v2791, 112
        %v4566 = vpop.permute.xlu0 %4565
        %4567 = vrot.lane.b32.xlu0 %v2792, 112
        %v4568 = vpop.permute.xlu0 %4567
        %4569 = vrot.lane.b32.xlu0 %v2825, 112
        %v4570 = vpop.permute.xlu0 %4569
        %4571 = vrot.lane.b32.xlu0 %v2826, 112
        %v4572 = vpop.permute.xlu0 %4571
        %4573 = vrot.lane.b32.xlu0 %v2827, 112
        %v4574 = vpop.permute.xlu0 %4573
        %4575 = vrot.lane.b32.xlu0 %v2828, 112
        %v4576 = vpop.permute.xlu0 %4575
        %4577 = vrot.lane.b32.xlu0 %v2829, 112
        %v4578 = vpop.permute.xlu0 %4577
        %4579 = vrot.lane.b32.xlu0 %v2830, 112
        %v4580 = vpop.permute.xlu0 %4579
        %4581 = vrot.lane.b32.xlu0 %v2831, 112
        %v4582 = vpop.permute.xlu0 %4581
        %4583 = vrot.lane.b32.xlu0 %v2832, 112
        %v4584 = vpop.permute.xlu0 %4583
        %v4586 = vsel %vm2655, %v4554, 0
        %v4589 = vsel %vm2655, %v4556, 0
        %v4592 = vsel %vm2655, %v4558, 0
        %v4595 = vsel %vm2655, %v4560, 0
        %v4598 = vsel %vm2655, %v4562, 0
        %v4601 = vsel %vm2655, %v4564, 0
        %v4604 = vsel %vm2655, %v4566, 0
        %v4607 = vsel %vm2655, %v4568, 0
        %v4610 = vsel %vm2655, %v4570, 0
        %v4613 = vsel %vm2655, %v4572, 0
        %v4616 = vsel %vm2655, %v4574, 0
        %v4619 = vsel %vm2655, %v4576, 0
        %v4622 = vsel %vm2655, %v4578, 0
        %v4625 = vsel %vm2655, %v4580, 0
        %v4628 = vsel %vm2655, %v4582, 0
        %v4631 = vsel %vm2655, %v4584, 0
        %4633 = vmatpush.bf16.xpose.msra.mxu0 %v4631
        %4634 = vmatpush.bf16.xpose.msra.mxu0 %v4628
        %4635 = vmatpush.bf16.xpose.msra.mxu0 %v4625
        %4636 = vmatpush.bf16.xpose.msra.mxu0 %v4622
        %4637 = vmatpush.bf16.xpose.msra.mxu0 %v4619
        %4638 = vmatpush.bf16.xpose.msra.mxu0 %v4616
        %4639 = vmatpush.bf16.xpose.msra.mxu0 %v4613
        %4640 = vmatpush.bf16.xpose.msra.mxu0 %v4610
        %4641 = vmatmul.bf16.gmra.mxu0 %v4586
        %v4642 = vpop.f32.mrf.mxu0
        %v4643 = vadd.f32 %v2559, %v4642
        %v4644 = vpop.f32.mrf.mxu0
        %v4645 = vadd.f32 %v2560, %v4644
        %4646 = vmatmul.bf16.gmra.mxu0 %v4589
        %v4647 = vpop.f32.mrf.mxu0
        %v4648 = vadd.f32 %v2561, %v4647
        %v4649 = vpop.f32.mrf.mxu0
        %v4650 = vadd.f32 %v2562, %v4649
        %4651 = vmatmul.bf16.gmra.mxu0 %v4592
        %v4652 = vpop.f32.mrf.mxu0
        %v4653 = vadd.f32 %v2563, %v4652
        %v4654 = vpop.f32.mrf.mxu0
        %v4655 = vadd.f32 %v2564, %v4654
        %4656 = vmatmul.bf16.gmra.mxu0 %v4595
        %v4657 = vpop.f32.mrf.mxu0
        %v4658 = vadd.f32 %v2565, %v4657
        %v4659 = vpop.f32.mrf.mxu0
        %v4660 = vadd.f32 %v2566, %v4659
        %4661 = vmatmul.bf16.gmra.mxu0 %v4598
        %v4662 = vpop.f32.mrf.mxu0
        %v4663 = vadd.f32 %v2567, %v4662
        %v4664 = vpop.f32.mrf.mxu0
        %v4665 = vadd.f32 %v2568, %v4664
        %4666 = vmatmul.bf16.gmra.mxu0 %v4601
        %v4667 = vpop.f32.mrf.mxu0
        %v4668 = vadd.f32 %v2569, %v4667
        %v4669 = vpop.f32.mrf.mxu0
        %v4670 = vadd.f32 %v2570, %v4669
        %4671 = vmatmul.bf16.gmra.mxu0 %v4604
        %v4672 = vpop.f32.mrf.mxu0
        %v4673 = vadd.f32 %v2571, %v4672
        %v4674 = vpop.f32.mrf.mxu0
        %v4675 = vadd.f32 %v2572, %v4674
        %4676 = vmatmul.bf16.gmra.mxu0 %v4607
        %v4677 = vpop.f32.mrf.mxu0
        %v4678 = vadd.f32 %v2573, %v4677
        %v4679 = vpop.f32.mrf.mxu0
        %v4680 = vadd.f32 %v2574, %v4679
        %4681 = vdwg.mxu0
        %4682 = vmax.xlane.f32.xlu0 %v4514
        %v4683 = vpop.xlane.xlu0 %4682
        %4684 = vmax.xlane.f32.xlu0 %v4516
        %v4685 = vpop.xlane.xlu0 %4684
        %4686 = vmax.xlane.f32.xlu0 %v4519
        %v4687 = vpop.xlane.xlu0 %4686
        %4688 = vmax.xlane.f32.xlu0 %v4521
        %v4689 = vpop.xlane.xlu0 %4688
        %4690 = vmax.xlane.f32.xlu0 %v4524
        %v4691 = vpop.xlane.xlu0 %4690
        %4692 = vmax.xlane.f32.xlu0 %v4526
        %v4693 = vpop.xlane.xlu0 %4692
        %4694 = vmax.xlane.f32.xlu0 %v4529
        %v4695 = vpop.xlane.xlu0 %4694
        %4696 = vmax.xlane.f32.xlu0 %v4531
        %v4697 = vpop.xlane.xlu0 %4696
        %4698 = vmax.xlane.f32.xlu0 %v4534
        %v4699 = vpop.xlane.xlu0 %4698
        %4700 = vmax.xlane.f32.xlu0 %v4536
        %v4701 = vpop.xlane.xlu0 %4700
        %4702 = vmax.xlane.f32.xlu0 %v4539
        %v4703 = vpop.xlane.xlu0 %4702
        %4704 = vmax.xlane.f32.xlu0 %v4541
        %v4705 = vpop.xlane.xlu0 %4704
        %4706 = vmax.xlane.f32.xlu0 %v4544
        %v4707 = vpop.xlane.xlu0 %4706
        %4708 = vmax.xlane.f32.xlu0 %v4546
        %v4709 = vpop.xlane.xlu0 %4708
        %4710 = vmax.xlane.f32.xlu0 %v4549
        %v4711 = vpop.xlane.xlu0 %4710
        %4712 = vmax.xlane.f32.xlu0 %v4551
        %v4713 = vpop.xlane.xlu0 %4712
        %4714 = vmax.xlane.f32.xlu0 %v4643
        %v4715 = vpop.xlane.xlu0 %4714
        %4716 = vmax.xlane.f32.xlu0 %v4645
        %v4717 = vpop.xlane.xlu0 %4716
        %4718 = vmax.xlane.f32.xlu0 %v4648
        %v4719 = vpop.xlane.xlu0 %4718
        %4720 = vmax.xlane.f32.xlu0 %v4650
        %v4721 = vpop.xlane.xlu0 %4720
        %4722 = vmax.xlane.f32.xlu0 %v4653
        %v4723 = vpop.xlane.xlu0 %4722
        %4724 = vmax.xlane.f32.xlu0 %v4655
        %v4725 = vpop.xlane.xlu0 %4724
        %4726 = vmax.xlane.f32.xlu0 %v4658
        %v4727 = vpop.xlane.xlu0 %4726
        %4728 = vmax.xlane.f32.xlu0 %v4660
        %v4729 = vpop.xlane.xlu0 %4728
        %4730 = vmax.xlane.f32.xlu0 %v4663
        %v4731 = vpop.xlane.xlu0 %4730
        %4732 = vmax.xlane.f32.xlu0 %v4665
        %v4733 = vpop.xlane.xlu0 %4732
        %4734 = vmax.xlane.f32.xlu0 %v4668
        %v4735 = vpop.xlane.xlu0 %4734
        %4736 = vmax.xlane.f32.xlu0 %v4670
        %v4737 = vpop.xlane.xlu0 %4736
        %4738 = vmax.xlane.f32.xlu0 %v4673
        %v4739 = vpop.xlane.xlu0 %4738
        %4740 = vmax.xlane.f32.xlu0 %v4675
        %v4741 = vpop.xlane.xlu0 %4740
        %4742 = vmax.xlane.f32.xlu0 %v4678
        %v4743 = vpop.xlane.xlu0 %4742
        %4744 = vmax.xlane.f32.xlu0 %v4680
        %v4745 = vpop.xlane.xlu0 %4744
        %v4746 = vsub.f32 %v4514, %v4683
        %v4747 = vsub.f32 %v4516, %v4685
        %v4748 = vsub.f32 %v4519, %v4687
        %v4749 = vsub.f32 %v4521, %v4689
        %v4750 = vsub.f32 %v4524, %v4691
        %v4751 = vsub.f32 %v4526, %v4693
        %v4752 = vsub.f32 %v4529, %v4695
        %v4753 = vsub.f32 %v4531, %v4697
        %v4754 = vsub.f32 %v4534, %v4699
        %v4755 = vsub.f32 %v4536, %v4701
        %v4756 = vsub.f32 %v4539, %v4703
        %v4757 = vsub.f32 %v4541, %v4705
        %v4758 = vsub.f32 %v4544, %v4707
        %v4759 = vsub.f32 %v4546, %v4709
        %v4760 = vsub.f32 %v4549, %v4711
        %v4761 = vsub.f32 %v4551, %v4713
        %v4762 = vsub.f32 %v4643, %v4715
        %v4763 = vsub.f32 %v4645, %v4717
        %v4764 = vsub.f32 %v4648, %v4719
        %v4765 = vsub.f32 %v4650, %v4721
        %v4766 = vsub.f32 %v4653, %v4723
        %v4767 = vsub.f32 %v4655, %v4725
        %v4768 = vsub.f32 %v4658, %v4727
        %v4769 = vsub.f32 %v4660, %v4729
        %v4770 = vsub.f32 %v4663, %v4731
        %v4771 = vsub.f32 %v4665, %v4733
        %v4772 = vsub.f32 %v4668, %v4735
        %v4773 = vsub.f32 %v4670, %v4737
        %v4774 = vsub.f32 %v4673, %v4739
        %v4775 = vsub.f32 %v4675, %v4741
        %v4776 = vsub.f32 %v4678, %v4743
        %v4777 = vsub.f32 %v4680, %v4745
        %v4778 = vmul.f32 %v4746, 1.442695
        %v4779 = vpow.pop %v4778
        %v4780 = vmul.f32 %v4747, 1.442695
        %v4781 = vpow.pop %v4780
        %v4782 = vmul.f32 %v4748, 1.442695
        %v4783 = vpow.pop %v4782
        %v4784 = vmul.f32 %v4749, 1.442695
        %v4785 = vpow.pop %v4784
        %v4786 = vmul.f32 %v4750, 1.442695
        %v4787 = vpow.pop %v4786
        %v4788 = vmul.f32 %v4751, 1.442695
        %v4789 = vpow.pop %v4788
        %v4790 = vmul.f32 %v4752, 1.442695
        %v4791 = vpow.pop %v4790
        %v4792 = vmul.f32 %v4753, 1.442695
        %v4793 = vpow.pop %v4792
        %v4794 = vmul.f32 %v4754, 1.442695
        %v4795 = vpow.pop %v4794
        %v4796 = vmul.f32 %v4755, 1.442695
        %v4797 = vpow.pop %v4796
        %v4798 = vmul.f32 %v4756, 1.442695
        %v4799 = vpow.pop %v4798
        %v4800 = vmul.f32 %v4757, 1.442695
        %v4801 = vpow.pop %v4800
        %v4802 = vmul.f32 %v4758, 1.442695
        %v4803 = vpow.pop %v4802
        %v4804 = vmul.f32 %v4759, 1.442695
        %v4805 = vpow.pop %v4804
        %v4806 = vmul.f32 %v4760, 1.442695
        %v4807 = vpow.pop %v4806
        %v4808 = vmul.f32 %v4761, 1.442695
        %v4809 = vpow.pop %v4808
        %v4810 = vmul.f32 %v4762, 1.442695
        %v4811 = vpow.pop %v4810
        %v4812 = vmul.f32 %v4763, 1.442695
        %v4813 = vpow.pop %v4812
        %v4814 = vmul.f32 %v4764, 1.442695
        %v4815 = vpow.pop %v4814
        %v4816 = vmul.f32 %v4765, 1.442695
        %v4817 = vpow.pop %v4816
        %v4818 = vmul.f32 %v4766, 1.442695
        %v4819 = vpow.pop %v4818
        %v4820 = vmul.f32 %v4767, 1.442695
        %v4821 = vpow.pop %v4820
        %v4822 = vmul.f32 %v4768, 1.442695
        %v4823 = vpow.pop %v4822
        %v4824 = vmul.f32 %v4769, 1.442695
        %v4825 = vpow.pop %v4824
        %v4826 = vmul.f32 %v4770, 1.442695
        %v4827 = vpow.pop %v4826
        %v4828 = vmul.f32 %v4771, 1.442695
        %v4829 = vpow.pop %v4828
        %v4830 = vmul.f32 %v4772, 1.442695
        %v4831 = vpow.pop %v4830
        %v4832 = vmul.f32 %v4773, 1.442695
        %v4833 = vpow.pop %v4832
        %v4834 = vmul.f32 %v4774, 1.442695
        %v4835 = vpow.pop %v4834
        %v4836 = vmul.f32 %v4775, 1.442695
        %v4837 = vpow.pop %v4836
        %v4838 = vmul.f32 %v4776, 1.442695
        %v4839 = vpow.pop %v4838
        %v4840 = vmul.f32 %v4777, 1.442695
        %v4841 = vpow.pop %v4840
        %4842 = vadd.xlane.f32.xlu0 %v4779
        %v4843 = vpop.xlane.xlu0 %4842
        %4844 = vadd.xlane.f32.xlu0 %v4781
        %v4845 = vpop.xlane.xlu0 %4844
        %4846 = vadd.xlane.f32.xlu0 %v4783
        %v4847 = vpop.xlane.xlu0 %4846
        %4848 = vadd.xlane.f32.xlu0 %v4785
        %v4849 = vpop.xlane.xlu0 %4848
        %4850 = vadd.xlane.f32.xlu0 %v4787
        %v4851 = vpop.xlane.xlu0 %4850
        %4852 = vadd.xlane.f32.xlu0 %v4789
        %v4853 = vpop.xlane.xlu0 %4852
        %4854 = vadd.xlane.f32.xlu0 %v4791
        %v4855 = vpop.xlane.xlu0 %4854
        %4856 = vadd.xlane.f32.xlu0 %v4793
        %v4857 = vpop.xlane.xlu0 %4856
        %4858 = vadd.xlane.f32.xlu0 %v4795
        %v4859 = vpop.xlane.xlu0 %4858
        %4860 = vadd.xlane.f32.xlu0 %v4797
        %v4861 = vpop.xlane.xlu0 %4860
        %4862 = vadd.xlane.f32.xlu0 %v4799
        %v4863 = vpop.xlane.xlu0 %4862
        %4864 = vadd.xlane.f32.xlu0 %v4801
        %v4865 = vpop.xlane.xlu0 %4864
        %4866 = vadd.xlane.f32.xlu0 %v4803
        %v4867 = vpop.xlane.xlu0 %4866
        %4868 = vadd.xlane.f32.xlu0 %v4805
        %v4869 = vpop.xlane.xlu0 %4868
        %4870 = vadd.xlane.f32.xlu0 %v4807
        %v4871 = vpop.xlane.xlu0 %4870
        %4872 = vadd.xlane.f32.xlu0 %v4809
        %v4873 = vpop.xlane.xlu0 %4872
        %4874 = vadd.xlane.f32.xlu0 %v4811
        %v4875 = vpop.xlane.xlu0 %4874
        %4876 = vadd.xlane.f32.xlu0 %v4813
        %v4877 = vpop.xlane.xlu0 %4876
        %4878 = vadd.xlane.f32.xlu0 %v4815
        %v4879 = vpop.xlane.xlu0 %4878
        %4880 = vadd.xlane.f32.xlu0 %v4817
        %v4881 = vpop.xlane.xlu0 %4880
        %4882 = vadd.xlane.f32.xlu0 %v4819
        %v4883 = vpop.xlane.xlu0 %4882
        %4884 = vadd.xlane.f32.xlu0 %v4821
        %v4885 = vpop.xlane.xlu0 %4884
        %4886 = vadd.xlane.f32.xlu0 %v4823
        %v4887 = vpop.xlane.xlu0 %4886
        %4888 = vadd.xlane.f32.xlu0 %v4825
        %v4889 = vpop.xlane.xlu0 %4888
        %4890 = vadd.xlane.f32.xlu0 %v4827
        %v4891 = vpop.xlane.xlu0 %4890
        %4892 = vadd.xlane.f32.xlu0 %v4829
        %v4893 = vpop.xlane.xlu0 %4892
        %4894 = vadd.xlane.f32.xlu0 %v4831
        %v4895 = vpop.xlane.xlu0 %4894
        %4896 = vadd.xlane.f32.xlu0 %v4833
        %v4897 = vpop.xlane.xlu0 %4896
        %4898 = vadd.xlane.f32.xlu0 %v4835
        %v4899 = vpop.xlane.xlu0 %4898
        %4900 = vadd.xlane.f32.xlu0 %v4837
        %v4901 = vpop.xlane.xlu0 %4900
        %4902 = vadd.xlane.f32.xlu0 %v4839
        %v4903 = vpop.xlane.xlu0 %4902
        %4904 = vadd.xlane.f32.xlu0 %v4841
        %v4905 = vpop.xlane.xlu0 %4904
        %v4906 = vrcp.pop %v4843
        %v4907 = vrcp.pop %v4845
        %v4908 = vrcp.pop %v4847
        %v4909 = vrcp.pop %v4849
        %v4910 = vrcp.pop %v4851
        %v4911 = vrcp.pop %v4853
        %v4912 = vrcp.pop %v4855
        %v4913 = vrcp.pop %v4857
        %v4914 = vrcp.pop %v4859
        %v4915 = vrcp.pop %v4861
        %v4916 = vrcp.pop %v4863
        %v4917 = vrcp.pop %v4865
        %v4918 = vrcp.pop %v4867
        %v4919 = vrcp.pop %v4869
        %v4920 = vrcp.pop %v4871
        %v4921 = vrcp.pop %v4873
        %v4922 = vrcp.pop %v4875
        %v4923 = vrcp.pop %v4877
        %v4924 = vrcp.pop %v4879
        %v4925 = vrcp.pop %v4881
        %v4926 = vrcp.pop %v4883
        %v4927 = vrcp.pop %v4885
        %v4928 = vrcp.pop %v4887
        %v4929 = vrcp.pop %v4889
        %v4930 = vrcp.pop %v4891
        %v4931 = vrcp.pop %v4893
        %v4932 = vrcp.pop %v4895
        %v4933 = vrcp.pop %v4897
        %v4934 = vrcp.pop %v4899
        %v4935 = vrcp.pop %v4901
        %v4936 = vrcp.pop %v4903
        %v4937 = vrcp.pop %v4905
        %v4938 = vpack.c.bf16 %v4779, %v4779
        %v4939 = vpack.c.bf16 %v4781, %v4781
        %v4940 = vpack.c.bf16 %v4783, %v4783
        %v4941 = vpack.c.bf16 %v4785, %v4785
        %v4942 = vpack.c.bf16 %v4787, %v4787
        %v4943 = vpack.c.bf16 %v4789, %v4789
        %v4944 = vpack.c.bf16 %v4791, %v4791
        %v4945 = vpack.c.bf16 %v4793, %v4793
        %v4946 = vpack.c.bf16 %v4795, %v4795
        %v4947 = vpack.c.bf16 %v4797, %v4797
        %v4948 = vpack.c.bf16 %v4799, %v4799
        %v4949 = vpack.c.bf16 %v4801, %v4801
        %v4950 = vpack.c.bf16 %v4803, %v4803
        %v4951 = vpack.c.bf16 %v4805, %v4805
        %v4952 = vpack.c.bf16 %v4807, %v4807
        %v4953 = vpack.c.bf16 %v4809, %v4809
        %v4954 = vpack.c.bf16 %v4811, %v4811
        %v4955 = vpack.c.bf16 %v4813, %v4813
        %v4956 = vpack.c.bf16 %v4815, %v4815
        %v4957 = vpack.c.bf16 %v4817, %v4817
        %v4958 = vpack.c.bf16 %v4819, %v4819
        %v4959 = vpack.c.bf16 %v4821, %v4821
        %v4960 = vpack.c.bf16 %v4823, %v4823
        %v4961 = vpack.c.bf16 %v4825, %v4825
        %v4962 = vpack.c.bf16 %v4827, %v4827
        %v4963 = vpack.c.bf16 %v4829, %v4829
        %v4964 = vpack.c.bf16 %v4831, %v4831
        %v4965 = vpack.c.bf16 %v4833, %v4833
        %v4966 = vpack.c.bf16 %v4835, %v4835
        %v4967 = vpack.c.bf16 %v4837, %v4837
        %v4968 = vpack.c.bf16 %v4839, %v4839
        %v4969 = vpack.c.bf16 %v4841, %v4841
        %v4986 = vunpack.c.l.b16 %v4938
        %v4987 = vunpack.c.l.b16 %v4939
        %v4988 = vunpack.c.l.b16 %v4940
        %v4989 = vunpack.c.l.b16 %v4941
        %v4990 = vunpack.c.l.b16 %v4942
        %v4991 = vunpack.c.l.b16 %v4943
        %v4992 = vunpack.c.l.b16 %v4944
        %v4993 = vunpack.c.l.b16 %v4945
        %v4994 = vunpack.c.l.b16 %v4946
        %v4995 = vunpack.c.l.b16 %v4947
        %v4996 = vunpack.c.l.b16 %v4948
        %v4997 = vunpack.c.l.b16 %v4949
        %v4998 = vunpack.c.l.b16 %v4950
        %v4999 = vunpack.c.l.b16 %v4951
        %v5000 = vunpack.c.l.b16 %v4952
        %v5001 = vunpack.c.l.b16 %v4953
        %v5002 = vpack.c.b16 %v4987, %v4986
        %v5003 = vpack.c.b16 %v4989, %v4988
        %v5004 = vpack.c.b16 %v4991, %v4990
        %v5005 = vpack.c.b16 %v4993, %v4992
        %v5006 = vpack.c.b16 %v4995, %v4994
        %v5007 = vpack.c.b16 %v4997, %v4996
        %v5008 = vpack.c.b16 %v4999, %v4998
        %v5009 = vpack.c.b16 %v5001, %v5000
        %5018 = vrot.lane.b32.xlu0 %v3298, 112
        %v5019 = vpop.permute.xlu0 %5018
        %5020 = vrot.lane.b32.xlu0 %v3299, 112
        %v5021 = vpop.permute.xlu0 %5020
        %5022 = vrot.lane.b32.xlu0 %v3300, 112
        %v5023 = vpop.permute.xlu0 %5022
        %5024 = vrot.lane.b32.xlu0 %v3301, 112
        %v5025 = vpop.permute.xlu0 %5024
        %5026 = vrot.lane.b32.xlu0 %v3302, 112
        %v5027 = vpop.permute.xlu0 %5026
        %5028 = vrot.lane.b32.xlu0 %v3303, 112
        %v5029 = vpop.permute.xlu0 %5028
        %5030 = vrot.lane.b32.xlu0 %v3304, 112
        %v5031 = vpop.permute.xlu0 %5030
        %5032 = vrot.lane.b32.xlu0 %v3305, 112
        %v5033 = vpop.permute.xlu0 %5032
        %5042 = vmatpush.bf16.msra.mxu0 %v5033
        %5043 = vmatpush.bf16.msra.mxu0 %v5031
        %5044 = vmatpush.bf16.msra.mxu0 %v5029
        %5045 = vmatpush.bf16.msra.mxu0 %v5027
        %5046 = vmatpush.bf16.msra.mxu0 %v5025
        %5047 = vmatpush.bf16.msra.mxu0 %v5023
        %5048 = vmatpush.bf16.msra.mxu0 %v5021
        %5049 = vmatpush.bf16.msra.mxu0 %v5019
        %5050 = vmatmul.bf16.gmra.mxu0 %v5002
        %v5051 = vpop.f32.mrf.mxu0
        %v5052 = vadd.f32 0.0, %v5051
        %v5053 = vpop.f32.mrf.mxu0
        %v5054 = vadd.f32 0.0, %v5053
        %5055 = vmatmul.bf16.gmra.mxu0 %v5003
        %v5056 = vpop.f32.mrf.mxu0
        %v5057 = vadd.f32 0.0, %v5056
        %v5058 = vpop.f32.mrf.mxu0
        %v5059 = vadd.f32 0.0, %v5058
        %5060 = vmatmul.bf16.gmra.mxu0 %v5004
        %v5061 = vpop.f32.mrf.mxu0
        %v5062 = vadd.f32 0.0, %v5061
        %v5063 = vpop.f32.mrf.mxu0
        %v5064 = vadd.f32 0.0, %v5063
        %5065 = vmatmul.bf16.gmra.mxu0 %v5005
        %v5066 = vpop.f32.mrf.mxu0
        %v5067 = vadd.f32 0.0, %v5066
        %v5068 = vpop.f32.mrf.mxu0
        %v5069 = vadd.f32 0.0, %v5068
        %5070 = vmatmul.bf16.gmra.mxu0 %v5006
        %v5071 = vpop.f32.mrf.mxu0
        %v5072 = vadd.f32 0.0, %v5071
        %v5073 = vpop.f32.mrf.mxu0
        %v5074 = vadd.f32 0.0, %v5073
        %5075 = vmatmul.bf16.gmra.mxu0 %v5007
        %v5076 = vpop.f32.mrf.mxu0
        %v5077 = vadd.f32 0.0, %v5076
        %v5078 = vpop.f32.mrf.mxu0
        %v5079 = vadd.f32 0.0, %v5078
        %5080 = vmatmul.bf16.gmra.mxu0 %v5008
        %v5081 = vpop.f32.mrf.mxu0
        %v5082 = vadd.f32 0.0, %v5081
        %v5083 = vpop.f32.mrf.mxu0
        %v5084 = vadd.f32 0.0, %v5083
        %5085 = vmatmul.bf16.gmra.mxu0 %v5009
        %v5086 = vpop.f32.mrf.mxu0
        %v5087 = vadd.f32 0.0, %v5086
        %v5088 = vpop.f32.mrf.mxu0
        %v5089 = vadd.f32 0.0, %v5088
        %5090 = vdwg.mxu0
        %v5107 = vunpack.c.l.b16 %v4954
        %v5108 = vunpack.c.l.b16 %v4955
        %v5109 = vunpack.c.l.b16 %v4956
        %v5110 = vunpack.c.l.b16 %v4957
        %v5111 = vunpack.c.l.b16 %v4958
        %v5112 = vunpack.c.l.b16 %v4959
        %v5113 = vunpack.c.l.b16 %v4960
        %v5114 = vunpack.c.l.b16 %v4961
        %v5115 = vunpack.c.l.b16 %v4962
        %v5116 = vunpack.c.l.b16 %v4963
        %v5117 = vunpack.c.l.b16 %v4964
        %v5118 = vunpack.c.l.b16 %v4965
        %v5119 = vunpack.c.l.b16 %v4966
        %v5120 = vunpack.c.l.b16 %v4967
        %v5121 = vunpack.c.l.b16 %v4968
        %v5122 = vunpack.c.l.b16 %v4969
        %v5123 = vpack.c.b16 %v5108, %v5107
        %v5124 = vpack.c.b16 %v5110, %v5109
        %v5125 = vpack.c.b16 %v5112, %v5111
        %v5126 = vpack.c.b16 %v5114, %v5113
        %v5127 = vpack.c.b16 %v5116, %v5115
        %v5128 = vpack.c.b16 %v5118, %v5117
        %v5129 = vpack.c.b16 %v5120, %v5119
        %v5130 = vpack.c.b16 %v5122, %v5121
        %5139 = vrot.lane.b32.xlu0 %v3443, 112
        %v5140 = vpop.permute.xlu0 %5139
        %5141 = vrot.lane.b32.xlu0 %v3444, 112
        %v5142 = vpop.permute.xlu0 %5141
        %5143 = vrot.lane.b32.xlu0 %v3445, 112
        %v5144 = vpop.permute.xlu0 %5143
        %5145 = vrot.lane.b32.xlu0 %v3446, 112
        %v5146 = vpop.permute.xlu0 %5145
        %5147 = vrot.lane.b32.xlu0 %v3447, 112
        %v5148 = vpop.permute.xlu0 %5147
        %5149 = vrot.lane.b32.xlu0 %v3448, 112
        %v5150 = vpop.permute.xlu0 %5149
        %5151 = vrot.lane.b32.xlu0 %v3449, 112
        %v5152 = vpop.permute.xlu0 %5151
        %5153 = vrot.lane.b32.xlu0 %v3450, 112
        %v5154 = vpop.permute.xlu0 %5153
        %5163 = vmatpush.bf16.msra.mxu0 %v5154
        %5164 = vmatpush.bf16.msra.mxu0 %v5152
        %5165 = vmatpush.bf16.msra.mxu0 %v5150
        %5166 = vmatpush.bf16.msra.mxu0 %v5148
        %5167 = vmatpush.bf16.msra.mxu0 %v5146
        %5168 = vmatpush.bf16.msra.mxu0 %v5144
        %5169 = vmatpush.bf16.msra.mxu0 %v5142
        %5170 = vmatpush.bf16.msra.mxu0 %v5140
        %5171 = vmatmul.bf16.gmra.mxu0 %v5123
        %v5172 = vpop.f32.mrf.mxu0
        %v5173 = vadd.f32 0.0, %v5172
        %v5174 = vpop.f32.mrf.mxu0
        %v5175 = vadd.f32 0.0, %v5174
        %5176 = vmatmul.bf16.gmra.mxu0 %v5124
        %v5177 = vpop.f32.mrf.mxu0
        %v5178 = vadd.f32 0.0, %v5177
        %v5179 = vpop.f32.mrf.mxu0
        %v5180 = vadd.f32 0.0, %v5179
        %5181 = vmatmul.bf16.gmra.mxu0 %v5125
        %v5182 = vpop.f32.mrf.mxu0
        %v5183 = vadd.f32 0.0, %v5182
        %v5184 = vpop.f32.mrf.mxu0
        %v5185 = vadd.f32 0.0, %v5184
        %5186 = vmatmul.bf16.gmra.mxu0 %v5126
        %v5187 = vpop.f32.mrf.mxu0
        %v5188 = vadd.f32 0.0, %v5187
        %v5189 = vpop.f32.mrf.mxu0
        %v5190 = vadd.f32 0.0, %v5189
        %5191 = vmatmul.bf16.gmra.mxu0 %v5127
        %v5192 = vpop.f32.mrf.mxu0
        %v5193 = vadd.f32 0.0, %v5192
        %v5194 = vpop.f32.mrf.mxu0
        %v5195 = vadd.f32 0.0, %v5194
        %5196 = vmatmul.bf16.gmra.mxu0 %v5128
        %v5197 = vpop.f32.mrf.mxu0
        %v5198 = vadd.f32 0.0, %v5197
        %v5199 = vpop.f32.mrf.mxu0
        %v5200 = vadd.f32 0.0, %v5199
        %5201 = vmatmul.bf16.gmra.mxu0 %v5129
        %v5202 = vpop.f32.mrf.mxu0
        %v5203 = vadd.f32 0.0, %v5202
        %v5204 = vpop.f32.mrf.mxu0
        %v5205 = vadd.f32 0.0, %v5204
        %5206 = vmatmul.bf16.gmra.mxu0 %v5130
        %v5207 = vpop.f32.mrf.mxu0
        %v5208 = vadd.f32 0.0, %v5207
        %v5209 = vpop.f32.mrf.mxu0
        %v5210 = vadd.f32 0.0, %v5209
        %5211 = vdwg.mxu0
        %v5212 = vmul.f32 %v5052, %v4906
        %v5213 = vmul.f32 %v5054, %v4907
        %v5214 = vmul.f32 %v5057, %v4908
        %v5215 = vmul.f32 %v5059, %v4909
        %v5216 = vmul.f32 %v5062, %v4910
        %v5217 = vmul.f32 %v5064, %v4911
        %v5218 = vmul.f32 %v5067, %v4912
        %v5219 = vmul.f32 %v5069, %v4913
        %v5220 = vmul.f32 %v5072, %v4914
        %v5221 = vmul.f32 %v5074, %v4915
        %v5222 = vmul.f32 %v5077, %v4916
        %v5223 = vmul.f32 %v5079, %v4917
        %v5224 = vmul.f32 %v5082, %v4918
        %v5225 = vmul.f32 %v5084, %v4919
        %v5226 = vmul.f32 %v5087, %v4920
        %v5227 = vmul.f32 %v5089, %v4921
        %v5228 = vmul.f32 %v5173, %v4922
        %v5229 = vmul.f32 %v5175, %v4923
        %v5230 = vmul.f32 %v5178, %v4924
        %v5231 = vmul.f32 %v5180, %v4925
        %v5232 = vmul.f32 %v5183, %v4926
        %v5233 = vmul.f32 %v5185, %v4927
        %v5234 = vmul.f32 %v5188, %v4928
        %v5235 = vmul.f32 %v5190, %v4929
        %v5236 = vmul.f32 %v5193, %v4930
        %v5237 = vmul.f32 %v5195, %v4931
        %v5238 = vmul.f32 %v5198, %v4932
        %v5239 = vmul.f32 %v5200, %v4933
        %v5240 = vmul.f32 %v5203, %v4934
        %v5241 = vmul.f32 %v5205, %v4935
        %v5242 = vmul.f32 %v5208, %v4936
        %v5243 = vmul.f32 %v5210, %v4937
        %v5244 = vpack.c.bf16 %v5212, %v5212
        %v5245 = vpack.c.bf16 %v5213, %v5213
        %v5246 = vpack.c.bf16 %v5214, %v5214
        %v5247 = vpack.c.bf16 %v5215, %v5215
        %v5248 = vpack.c.bf16 %v5216, %v5216
        %v5249 = vpack.c.bf16 %v5217, %v5217
        %v5250 = vpack.c.bf16 %v5218, %v5218
        %v5251 = vpack.c.bf16 %v5219, %v5219
        %v5252 = vpack.c.bf16 %v5220, %v5220
        %v5253 = vpack.c.bf16 %v5221, %v5221
        %v5254 = vpack.c.bf16 %v5222, %v5222
        %v5255 = vpack.c.bf16 %v5223, %v5223
        %v5256 = vpack.c.bf16 %v5224, %v5224
        %v5257 = vpack.c.bf16 %v5225, %v5225
        %v5258 = vpack.c.bf16 %v5226, %v5226
        %v5259 = vpack.c.bf16 %v5227, %v5227
        %v5260 = vpack.c.bf16 %v5228, %v5228
        %v5261 = vpack.c.bf16 %v5229, %v5229
        %v5262 = vpack.c.bf16 %v5230, %v5230
        %v5263 = vpack.c.bf16 %v5231, %v5231
        %v5264 = vpack.c.bf16 %v5232, %v5232
        %v5265 = vpack.c.bf16 %v5233, %v5233
        %v5266 = vpack.c.bf16 %v5234, %v5234
        %v5267 = vpack.c.bf16 %v5235, %v5235
        %v5268 = vpack.c.bf16 %v5236, %v5236
        %v5269 = vpack.c.bf16 %v5237, %v5237
        %v5270 = vpack.c.bf16 %v5238, %v5238
        %v5271 = vpack.c.bf16 %v5239, %v5239
        %v5272 = vpack.c.bf16 %v5240, %v5240
        %v5273 = vpack.c.bf16 %v5241, %v5241
        %v5274 = vpack.c.bf16 %v5242, %v5242
        %v5275 = vpack.c.bf16 %v5243, %v5243
        %5276 = vrot.lane.b32.xlu0 %v2607, 104
        %v5277 = vpop.permute.xlu0 %5276
        %5278 = vrot.lane.b32.xlu0 %v2608, 104
        %v5279 = vpop.permute.xlu0 %5278
        %5280 = vrot.lane.b32.xlu0 %v2609, 104
        %v5281 = vpop.permute.xlu0 %5280
        %5282 = vrot.lane.b32.xlu0 %v2610, 104
        %v5283 = vpop.permute.xlu0 %5282
        %5284 = vrot.lane.b32.xlu0 %v2611, 104
        %v5285 = vpop.permute.xlu0 %5284
        %5286 = vrot.lane.b32.xlu0 %v2612, 104
        %v5287 = vpop.permute.xlu0 %5286
        %5288 = vrot.lane.b32.xlu0 %v2613, 104
        %v5289 = vpop.permute.xlu0 %5288
        %5290 = vrot.lane.b32.xlu0 %v2614, 104
        %v5291 = vpop.permute.xlu0 %5290
        %5292 = vrot.lane.b32.xlu0 %v2647, 104
        %v5293 = vpop.permute.xlu0 %5292
        %5294 = vrot.lane.b32.xlu0 %v2648, 104
        %v5295 = vpop.permute.xlu0 %5294
        %5296 = vrot.lane.b32.xlu0 %v2649, 104
        %v5297 = vpop.permute.xlu0 %5296
        %5298 = vrot.lane.b32.xlu0 %v2650, 104
        %v5299 = vpop.permute.xlu0 %5298
        %5300 = vrot.lane.b32.xlu0 %v2651, 104
        %v5301 = vpop.permute.xlu0 %5300
        %5302 = vrot.lane.b32.xlu0 %v2652, 104
        %v5303 = vpop.permute.xlu0 %5302
        %5304 = vrot.lane.b32.xlu0 %v2653, 104
        %v5305 = vpop.permute.xlu0 %5304
        %5306 = vrot.lane.b32.xlu0 %v2654, 104
        %v5307 = vpop.permute.xlu0 %5306
        %v5309 = vsel %vm2655, %v5277, 0
        %v5312 = vsel %vm2655, %v5279, 0
        %v5315 = vsel %vm2655, %v5281, 0
        %v5318 = vsel %vm2655, %v5283, 0
        %v5321 = vsel %vm2655, %v5285, 0
        %v5324 = vsel %vm2655, %v5287, 0
        %v5327 = vsel %vm2655, %v5289, 0
        %v5330 = vsel %vm2655, %v5291, 0
        %v5333 = vsel %vm2655, %v5293, 0
        %v5336 = vsel %vm2655, %v5295, 0
        %v5339 = vsel %vm2655, %v5297, 0
        %v5342 = vsel %vm2655, %v5299, 0
        %v5345 = vsel %vm2655, %v5301, 0
        %v5348 = vsel %vm2655, %v5303, 0
        %v5351 = vsel %vm2655, %v5305, 0
        %v5354 = vsel %vm2655, %v5307, 0
        %5356 = vmatpush.bf16.xpose.msra.mxu0 %v5354
        %5357 = vmatpush.bf16.xpose.msra.mxu0 %v5351
        %5358 = vmatpush.bf16.xpose.msra.mxu0 %v5348
        %5359 = vmatpush.bf16.xpose.msra.mxu0 %v5345
        %5360 = vmatpush.bf16.xpose.msra.mxu0 %v5342
        %5361 = vmatpush.bf16.xpose.msra.mxu0 %v5339
        %5362 = vmatpush.bf16.xpose.msra.mxu0 %v5336
        %5363 = vmatpush.bf16.xpose.msra.mxu0 %v5333
        %5364 = vmatmul.bf16.gmra.mxu0 %v5309
        %v5365 = vpop.f32.mrf.mxu0
        %v5366 = vadd.f32 %v2543, %v5365
        %v5367 = vpop.f32.mrf.mxu0
        %v5368 = vadd.f32 %v2544, %v5367
        %5369 = vmatmul.bf16.gmra.mxu0 %v5312
        %v5370 = vpop.f32.mrf.mxu0
        %v5371 = vadd.f32 %v2545, %v5370
        %v5372 = vpop.f32.mrf.mxu0
        %v5373 = vadd.f32 %v2546, %v5372
        %5374 = vmatmul.bf16.gmra.mxu0 %v5315
        %v5375 = vpop.f32.mrf.mxu0
        %v5376 = vadd.f32 %v2547, %v5375
        %v5377 = vpop.f32.mrf.mxu0
        %v5378 = vadd.f32 %v2548, %v5377
        %5379 = vmatmul.bf16.gmra.mxu0 %v5318
        %v5380 = vpop.f32.mrf.mxu0
        %v5381 = vadd.f32 %v2549, %v5380
        %v5382 = vpop.f32.mrf.mxu0
        %v5383 = vadd.f32 %v2550, %v5382
        %5384 = vmatmul.bf16.gmra.mxu0 %v5321
        %v5385 = vpop.f32.mrf.mxu0
        %v5386 = vadd.f32 %v2551, %v5385
        %v5387 = vpop.f32.mrf.mxu0
        %v5388 = vadd.f32 %v2552, %v5387
        %5389 = vmatmul.bf16.gmra.mxu0 %v5324
        %v5390 = vpop.f32.mrf.mxu0
        %v5391 = vadd.f32 %v2553, %v5390
        %v5392 = vpop.f32.mrf.mxu0
        %v5393 = vadd.f32 %v2554, %v5392
        %5394 = vmatmul.bf16.gmra.mxu0 %v5327
        %v5395 = vpop.f32.mrf.mxu0
        %v5396 = vadd.f32 %v2555, %v5395
        %v5397 = vpop.f32.mrf.mxu0
        %v5398 = vadd.f32 %v2556, %v5397
        %5399 = vmatmul.bf16.gmra.mxu0 %v5330
        %v5400 = vpop.f32.mrf.mxu0
        %v5401 = vadd.f32 %v2557, %v5400
        %v5402 = vpop.f32.mrf.mxu0
        %v5403 = vadd.f32 %v2558, %v5402
        %5404 = vdwg.mxu0
        %5405 = vrot.lane.b32.xlu0 %v2785, 104
        %v5406 = vpop.permute.xlu0 %5405
        %5407 = vrot.lane.b32.xlu0 %v2786, 104
        %v5408 = vpop.permute.xlu0 %5407
        %5409 = vrot.lane.b32.xlu0 %v2787, 104
        %v5410 = vpop.permute.xlu0 %5409
        %5411 = vrot.lane.b32.xlu0 %v2788, 104
        %v5412 = vpop.permute.xlu0 %5411
        %5413 = vrot.lane.b32.xlu0 %v2789, 104
        %v5414 = vpop.permute.xlu0 %5413
        %5415 = vrot.lane.b32.xlu0 %v2790, 104
        %v5416 = vpop.permute.xlu0 %5415
        %5417 = vrot.lane.b32.xlu0 %v2791, 104
        %v5418 = vpop.permute.xlu0 %5417
        %5419 = vrot.lane.b32.xlu0 %v2792, 104
        %v5420 = vpop.permute.xlu0 %5419
        %5421 = vrot.lane.b32.xlu0 %v2825, 104
        %v5422 = vpop.permute.xlu0 %5421
        %5423 = vrot.lane.b32.xlu0 %v2826, 104
        %v5424 = vpop.permute.xlu0 %5423
        %5425 = vrot.lane.b32.xlu0 %v2827, 104
        %v5426 = vpop.permute.xlu0 %5425
        %5427 = vrot.lane.b32.xlu0 %v2828, 104
        %v5428 = vpop.permute.xlu0 %5427
        %5429 = vrot.lane.b32.xlu0 %v2829, 104
        %v5430 = vpop.permute.xlu0 %5429
        %5431 = vrot.lane.b32.xlu0 %v2830, 104
        %v5432 = vpop.permute.xlu0 %5431
        %5433 = vrot.lane.b32.xlu0 %v2831, 104
        %v5434 = vpop.permute.xlu0 %5433
        %5435 = vrot.lane.b32.xlu0 %v2832, 104
        %v5436 = vpop.permute.xlu0 %5435
        %v5438 = vsel %vm2655, %v5406, 0
        %v5441 = vsel %vm2655, %v5408, 0
        %v5444 = vsel %vm2655, %v5410, 0
        %v5447 = vsel %vm2655, %v5412, 0
        %v5450 = vsel %vm2655, %v5414, 0
        %v5453 = vsel %vm2655, %v5416, 0
        %v5456 = vsel %vm2655, %v5418, 0
        %v5459 = vsel %vm2655, %v5420, 0
        %v5462 = vsel %vm2655, %v5422, 0
        %v5465 = vsel %vm2655, %v5424, 0
        %v5468 = vsel %vm2655, %v5426, 0
        %v5471 = vsel %vm2655, %v5428, 0
        %v5474 = vsel %vm2655, %v5430, 0
        %v5477 = vsel %vm2655, %v5432, 0
        %v5480 = vsel %vm2655, %v5434, 0
        %v5483 = vsel %vm2655, %v5436, 0
        %5485 = vmatpush.bf16.xpose.msra.mxu0 %v5483
        %5486 = vmatpush.bf16.xpose.msra.mxu0 %v5480
        %5487 = vmatpush.bf16.xpose.msra.mxu0 %v5477
        %5488 = vmatpush.bf16.xpose.msra.mxu0 %v5474
        %5489 = vmatpush.bf16.xpose.msra.mxu0 %v5471
        %5490 = vmatpush.bf16.xpose.msra.mxu0 %v5468
        %5491 = vmatpush.bf16.xpose.msra.mxu0 %v5465
        %5492 = vmatpush.bf16.xpose.msra.mxu0 %v5462
        %5493 = vmatmul.bf16.gmra.mxu0 %v5438
        %v5494 = vpop.f32.mrf.mxu0
        %v5495 = vadd.f32 %v2559, %v5494
        %v5496 = vpop.f32.mrf.mxu0
        %v5497 = vadd.f32 %v2560, %v5496
        %5498 = vmatmul.bf16.gmra.mxu0 %v5441
        %v5499 = vpop.f32.mrf.mxu0
        %v5500 = vadd.f32 %v2561, %v5499
        %v5501 = vpop.f32.mrf.mxu0
        %v5502 = vadd.f32 %v2562, %v5501
        %5503 = vmatmul.bf16.gmra.mxu0 %v5444
        %v5504 = vpop.f32.mrf.mxu0
        %v5505 = vadd.f32 %v2563, %v5504
        %v5506 = vpop.f32.mrf.mxu0
        %v5507 = vadd.f32 %v2564, %v5506
        %5508 = vmatmul.bf16.gmra.mxu0 %v5447
        %v5509 = vpop.f32.mrf.mxu0
        %v5510 = vadd.f32 %v2565, %v5509
        %v5511 = vpop.f32.mrf.mxu0
        %v5512 = vadd.f32 %v2566, %v5511
        %5513 = vmatmul.bf16.gmra.mxu0 %v5450
        %v5514 = vpop.f32.mrf.mxu0
        %v5515 = vadd.f32 %v2567, %v5514
        %v5516 = vpop.f32.mrf.mxu0
        %v5517 = vadd.f32 %v2568, %v5516
        %5518 = vmatmul.bf16.gmra.mxu0 %v5453
        %v5519 = vpop.f32.mrf.mxu0
        %v5520 = vadd.f32 %v2569, %v5519
        %v5521 = vpop.f32.mrf.mxu0
        %v5522 = vadd.f32 %v2570, %v5521
        %5523 = vmatmul.bf16.gmra.mxu0 %v5456
        %v5524 = vpop.f32.mrf.mxu0
        %v5525 = vadd.f32 %v2571, %v5524
        %v5526 = vpop.f32.mrf.mxu0
        %v5527 = vadd.f32 %v2572, %v5526
        %5528 = vmatmul.bf16.gmra.mxu0 %v5459
        %v5529 = vpop.f32.mrf.mxu0
        %v5530 = vadd.f32 %v2573, %v5529
        %v5531 = vpop.f32.mrf.mxu0
        %v5532 = vadd.f32 %v2574, %v5531
        %5533 = vdwg.mxu0
        %5534 = vmax.xlane.f32.xlu0 %v5366
        %v5535 = vpop.xlane.xlu0 %5534
        %5536 = vmax.xlane.f32.xlu0 %v5368
        %v5537 = vpop.xlane.xlu0 %5536
        %5538 = vmax.xlane.f32.xlu0 %v5371
        %v5539 = vpop.xlane.xlu0 %5538
        %5540 = vmax.xlane.f32.xlu0 %v5373
        %v5541 = vpop.xlane.xlu0 %5540
        %5542 = vmax.xlane.f32.xlu0 %v5376
        %v5543 = vpop.xlane.xlu0 %5542
        %5544 = vmax.xlane.f32.xlu0 %v5378
        %v5545 = vpop.xlane.xlu0 %5544
        %5546 = vmax.xlane.f32.xlu0 %v5381
        %v5547 = vpop.xlane.xlu0 %5546
        %5548 = vmax.xlane.f32.xlu0 %v5383
        %v5549 = vpop.xlane.xlu0 %5548
        %5550 = vmax.xlane.f32.xlu0 %v5386
        %v5551 = vpop.xlane.xlu0 %5550
        %5552 = vmax.xlane.f32.xlu0 %v5388
        %v5553 = vpop.xlane.xlu0 %5552
        %5554 = vmax.xlane.f32.xlu0 %v5391
        %v5555 = vpop.xlane.xlu0 %5554
        %5556 = vmax.xlane.f32.xlu0 %v5393
        %v5557 = vpop.xlane.xlu0 %5556
        %5558 = vmax.xlane.f32.xlu0 %v5396
        %v5559 = vpop.xlane.xlu0 %5558
        %5560 = vmax.xlane.f32.xlu0 %v5398
        %v5561 = vpop.xlane.xlu0 %5560
        %5562 = vmax.xlane.f32.xlu0 %v5401
        %v5563 = vpop.xlane.xlu0 %5562
        %5564 = vmax.xlane.f32.xlu0 %v5403
        %v5565 = vpop.xlane.xlu0 %5564
        %5566 = vmax.xlane.f32.xlu0 %v5495
        %v5567 = vpop.xlane.xlu0 %5566
        %5568 = vmax.xlane.f32.xlu0 %v5497
        %v5569 = vpop.xlane.xlu0 %5568
        %5570 = vmax.xlane.f32.xlu0 %v5500
        %v5571 = vpop.xlane.xlu0 %5570
        %5572 = vmax.xlane.f32.xlu0 %v5502
        %v5573 = vpop.xlane.xlu0 %5572
        %5574 = vmax.xlane.f32.xlu0 %v5505
        %v5575 = vpop.xlane.xlu0 %5574
        %5576 = vmax.xlane.f32.xlu0 %v5507
        %v5577 = vpop.xlane.xlu0 %5576
        %5578 = vmax.xlane.f32.xlu0 %v5510
        %v5579 = vpop.xlane.xlu0 %5578
        %5580 = vmax.xlane.f32.xlu0 %v5512
        %v5581 = vpop.xlane.xlu0 %5580
        %5582 = vmax.xlane.f32.xlu0 %v5515
        %v5583 = vpop.xlane.xlu0 %5582
        %5584 = vmax.xlane.f32.xlu0 %v5517
        %v5585 = vpop.xlane.xlu0 %5584
        %5586 = vmax.xlane.f32.xlu0 %v5520
        %v5587 = vpop.xlane.xlu0 %5586
        %5588 = vmax.xlane.f32.xlu0 %v5522
        %v5589 = vpop.xlane.xlu0 %5588
        %5590 = vmax.xlane.f32.xlu0 %v5525
        %v5591 = vpop.xlane.xlu0 %5590
        %5592 = vmax.xlane.f32.xlu0 %v5527
        %v5593 = vpop.xlane.xlu0 %5592
        %5594 = vmax.xlane.f32.xlu0 %v5530
        %v5595 = vpop.xlane.xlu0 %5594
        %5596 = vmax.xlane.f32.xlu0 %v5532
        %v5597 = vpop.xlane.xlu0 %5596
        %v5598 = vsub.f32 %v5366, %v5535
        %v5599 = vsub.f32 %v5368, %v5537
        %v5600 = vsub.f32 %v5371, %v5539
        %v5601 = vsub.f32 %v5373, %v5541
        %v5602 = vsub.f32 %v5376, %v5543
        %v5603 = vsub.f32 %v5378, %v5545
        %v5604 = vsub.f32 %v5381, %v5547
        %v5605 = vsub.f32 %v5383, %v5549
        %v5606 = vsub.f32 %v5386, %v5551
        %v5607 = vsub.f32 %v5388, %v5553
        %v5608 = vsub.f32 %v5391, %v5555
        %v5609 = vsub.f32 %v5393, %v5557
        %v5610 = vsub.f32 %v5396, %v5559
        %v5611 = vsub.f32 %v5398, %v5561
        %v5612 = vsub.f32 %v5401, %v5563
        %v5613 = vsub.f32 %v5403, %v5565
        %v5614 = vsub.f32 %v5495, %v5567
        %v5615 = vsub.f32 %v5497, %v5569
        %v5616 = vsub.f32 %v5500, %v5571
        %v5617 = vsub.f32 %v5502, %v5573
        %v5618 = vsub.f32 %v5505, %v5575
        %v5619 = vsub.f32 %v5507, %v5577
        %v5620 = vsub.f32 %v5510, %v5579
        %v5621 = vsub.f32 %v5512, %v5581
        %v5622 = vsub.f32 %v5515, %v5583
        %v5623 = vsub.f32 %v5517, %v5585
        %v5624 = vsub.f32 %v5520, %v5587
        %v5625 = vsub.f32 %v5522, %v5589
        %v5626 = vsub.f32 %v5525, %v5591
        %v5627 = vsub.f32 %v5527, %v5593
        %v5628 = vsub.f32 %v5530, %v5595
        %v5629 = vsub.f32 %v5532, %v5597
        %v5630 = vmul.f32 %v5598, 1.442695
        %v5631 = vpow.pop %v5630
        %v5632 = vmul.f32 %v5599, 1.442695
        %v5633 = vpow.pop %v5632
        %v5634 = vmul.f32 %v5600, 1.442695
        %v5635 = vpow.pop %v5634
        %v5636 = vmul.f32 %v5601, 1.442695
        %v5637 = vpow.pop %v5636
        %v5638 = vmul.f32 %v5602, 1.442695
        %v5639 = vpow.pop %v5638
        %v5640 = vmul.f32 %v5603, 1.442695
        %v5641 = vpow.pop %v5640
        %v5642 = vmul.f32 %v5604, 1.442695
        %v5643 = vpow.pop %v5642
        %v5644 = vmul.f32 %v5605, 1.442695
        %v5645 = vpow.pop %v5644
        %v5646 = vmul.f32 %v5606, 1.442695
        %v5647 = vpow.pop %v5646
        %v5648 = vmul.f32 %v5607, 1.442695
        %v5649 = vpow.pop %v5648
        %v5650 = vmul.f32 %v5608, 1.442695
        %v5651 = vpow.pop %v5650
        %v5652 = vmul.f32 %v5609, 1.442695
        %v5653 = vpow.pop %v5652
        %v5654 = vmul.f32 %v5610, 1.442695
        %v5655 = vpow.pop %v5654
        %v5656 = vmul.f32 %v5611, 1.442695
        %v5657 = vpow.pop %v5656
        %v5658 = vmul.f32 %v5612, 1.442695
        %v5659 = vpow.pop %v5658
        %v5660 = vmul.f32 %v5613, 1.442695
        %v5661 = vpow.pop %v5660
        %v5662 = vmul.f32 %v5614, 1.442695
        %v5663 = vpow.pop %v5662
        %v5664 = vmul.f32 %v5615, 1.442695
        %v5665 = vpow.pop %v5664
        %v5666 = vmul.f32 %v5616, 1.442695
        %v5667 = vpow.pop %v5666
        %v5668 = vmul.f32 %v5617, 1.442695
        %v5669 = vpow.pop %v5668
        %v5670 = vmul.f32 %v5618, 1.442695
        %v5671 = vpow.pop %v5670
        %v5672 = vmul.f32 %v5619, 1.442695
        %v5673 = vpow.pop %v5672
        %v5674 = vmul.f32 %v5620, 1.442695
        %v5675 = vpow.pop %v5674
        %v5676 = vmul.f32 %v5621, 1.442695
        %v5677 = vpow.pop %v5676
        %v5678 = vmul.f32 %v5622, 1.442695
        %v5679 = vpow.pop %v5678
        %v5680 = vmul.f32 %v5623, 1.442695
        %v5681 = vpow.pop %v5680
        %v5682 = vmul.f32 %v5624, 1.442695
        %v5683 = vpow.pop %v5682
        %v5684 = vmul.f32 %v5625, 1.442695
        %v5685 = vpow.pop %v5684
        %v5686 = vmul.f32 %v5626, 1.442695
        %v5687 = vpow.pop %v5686
        %v5688 = vmul.f32 %v5627, 1.442695
        %v5689 = vpow.pop %v5688
        %v5690 = vmul.f32 %v5628, 1.442695
        %v5691 = vpow.pop %v5690
        %v5692 = vmul.f32 %v5629, 1.442695
        %v5693 = vpow.pop %v5692
        %5694 = vadd.xlane.f32.xlu0 %v5631
        %v5695 = vpop.xlane.xlu0 %5694
        %5696 = vadd.xlane.f32.xlu0 %v5633
        %v5697 = vpop.xlane.xlu0 %5696
        %5698 = vadd.xlane.f32.xlu0 %v5635
        %v5699 = vpop.xlane.xlu0 %5698
        %5700 = vadd.xlane.f32.xlu0 %v5637
        %v5701 = vpop.xlane.xlu0 %5700
        %5702 = vadd.xlane.f32.xlu0 %v5639
        %v5703 = vpop.xlane.xlu0 %5702
        %5704 = vadd.xlane.f32.xlu0 %v5641
        %v5705 = vpop.xlane.xlu0 %5704
        %5706 = vadd.xlane.f32.xlu0 %v5643
        %v5707 = vpop.xlane.xlu0 %5706
        %5708 = vadd.xlane.f32.xlu0 %v5645
        %v5709 = vpop.xlane.xlu0 %5708
        %5710 = vadd.xlane.f32.xlu0 %v5647
        %v5711 = vpop.xlane.xlu0 %5710
        %5712 = vadd.xlane.f32.xlu0 %v5649
        %v5713 = vpop.xlane.xlu0 %5712
        %5714 = vadd.xlane.f32.xlu0 %v5651
        %v5715 = vpop.xlane.xlu0 %5714
        %5716 = vadd.xlane.f32.xlu0 %v5653
        %v5717 = vpop.xlane.xlu0 %5716
        %5718 = vadd.xlane.f32.xlu0 %v5655
        %v5719 = vpop.xlane.xlu0 %5718
        %5720 = vadd.xlane.f32.xlu0 %v5657
        %v5721 = vpop.xlane.xlu0 %5720
        %5722 = vadd.xlane.f32.xlu0 %v5659
        %v5723 = vpop.xlane.xlu0 %5722
        %5724 = vadd.xlane.f32.xlu0 %v5661
        %v5725 = vpop.xlane.xlu0 %5724
        %5726 = vadd.xlane.f32.xlu0 %v5663
        %v5727 = vpop.xlane.xlu0 %5726
        %5728 = vadd.xlane.f32.xlu0 %v5665
        %v5729 = vpop.xlane.xlu0 %5728
        %5730 = vadd.xlane.f32.xlu0 %v5667
        %v5731 = vpop.xlane.xlu0 %5730
        %5732 = vadd.xlane.f32.xlu0 %v5669
        %v5733 = vpop.xlane.xlu0 %5732
        %5734 = vadd.xlane.f32.xlu0 %v5671
        %v5735 = vpop.xlane.xlu0 %5734
        %5736 = vadd.xlane.f32.xlu0 %v5673
        %v5737 = vpop.xlane.xlu0 %5736
        %5738 = vadd.xlane.f32.xlu0 %v5675
        %v5739 = vpop.xlane.xlu0 %5738
        %5740 = vadd.xlane.f32.xlu0 %v5677
        %v5741 = vpop.xlane.xlu0 %5740
        %5742 = vadd.xlane.f32.xlu0 %v5679
        %v5743 = vpop.xlane.xlu0 %5742
        %5744 = vadd.xlane.f32.xlu0 %v5681
        %v5745 = vpop.xlane.xlu0 %5744
        %5746 = vadd.xlane.f32.xlu0 %v5683
        %v5747 = vpop.xlane.xlu0 %5746
        %5748 = vadd.xlane.f32.xlu0 %v5685
        %v5749 = vpop.xlane.xlu0 %5748
        %5750 = vadd.xlane.f32.xlu0 %v5687
        %v5751 = vpop.xlane.xlu0 %5750
        %5752 = vadd.xlane.f32.xlu0 %v5689
        %v5753 = vpop.xlane.xlu0 %5752
        %5754 = vadd.xlane.f32.xlu0 %v5691
        %v5755 = vpop.xlane.xlu0 %5754
        %5756 = vadd.xlane.f32.xlu0 %v5693
        %v5757 = vpop.xlane.xlu0 %5756
        %v5758 = vrcp.pop %v5695
        %v5759 = vrcp.pop %v5697
        %v5760 = vrcp.pop %v5699
        %v5761 = vrcp.pop %v5701
        %v5762 = vrcp.pop %v5703
        %v5763 = vrcp.pop %v5705
        %v5764 = vrcp.pop %v5707
        %v5765 = vrcp.pop %v5709
        %v5766 = vrcp.pop %v5711
        %v5767 = vrcp.pop %v5713
        %v5768 = vrcp.pop %v5715
        %v5769 = vrcp.pop %v5717
        %v5770 = vrcp.pop %v5719
        %v5771 = vrcp.pop %v5721
        %v5772 = vrcp.pop %v5723
        %v5773 = vrcp.pop %v5725
        %v5774 = vrcp.pop %v5727
        %v5775 = vrcp.pop %v5729
        %v5776 = vrcp.pop %v5731
        %v5777 = vrcp.pop %v5733
        %v5778 = vrcp.pop %v5735
        %v5779 = vrcp.pop %v5737
        %v5780 = vrcp.pop %v5739
        %v5781 = vrcp.pop %v5741
        %v5782 = vrcp.pop %v5743
        %v5783 = vrcp.pop %v5745
        %v5784 = vrcp.pop %v5747
        %v5785 = vrcp.pop %v5749
        %v5786 = vrcp.pop %v5751
        %v5787 = vrcp.pop %v5753
        %v5788 = vrcp.pop %v5755
        %v5789 = vrcp.pop %v5757
        %v5790 = vpack.c.bf16 %v5631, %v5631
        %v5791 = vpack.c.bf16 %v5633, %v5633
        %v5792 = vpack.c.bf16 %v5635, %v5635
        %v5793 = vpack.c.bf16 %v5637, %v5637
        %v5794 = vpack.c.bf16 %v5639, %v5639
        %v5795 = vpack.c.bf16 %v5641, %v5641
        %v5796 = vpack.c.bf16 %v5643, %v5643
        %v5797 = vpack.c.bf16 %v5645, %v5645
        %v5798 = vpack.c.bf16 %v5647, %v5647
        %v5799 = vpack.c.bf16 %v5649, %v5649
        %v5800 = vpack.c.bf16 %v5651, %v5651
        %v5801 = vpack.c.bf16 %v5653, %v5653
        %v5802 = vpack.c.bf16 %v5655, %v5655
        %v5803 = vpack.c.bf16 %v5657, %v5657
        %v5804 = vpack.c.bf16 %v5659, %v5659
        %v5805 = vpack.c.bf16 %v5661, %v5661
        %v5806 = vpack.c.bf16 %v5663, %v5663
        %v5807 = vpack.c.bf16 %v5665, %v5665
        %v5808 = vpack.c.bf16 %v5667, %v5667
        %v5809 = vpack.c.bf16 %v5669, %v5669
        %v5810 = vpack.c.bf16 %v5671, %v5671
        %v5811 = vpack.c.bf16 %v5673, %v5673
        %v5812 = vpack.c.bf16 %v5675, %v5675
        %v5813 = vpack.c.bf16 %v5677, %v5677
        %v5814 = vpack.c.bf16 %v5679, %v5679
        %v5815 = vpack.c.bf16 %v5681, %v5681
        %v5816 = vpack.c.bf16 %v5683, %v5683
        %v5817 = vpack.c.bf16 %v5685, %v5685
        %v5818 = vpack.c.bf16 %v5687, %v5687
        %v5819 = vpack.c.bf16 %v5689, %v5689
        %v5820 = vpack.c.bf16 %v5691, %v5691
        %v5821 = vpack.c.bf16 %v5693, %v5693
        %v5838 = vunpack.c.l.b16 %v5790
        %v5839 = vunpack.c.l.b16 %v5791
        %v5840 = vunpack.c.l.b16 %v5792
        %v5841 = vunpack.c.l.b16 %v5793
        %v5842 = vunpack.c.l.b16 %v5794
        %v5843 = vunpack.c.l.b16 %v5795
        %v5844 = vunpack.c.l.b16 %v5796
        %v5845 = vunpack.c.l.b16 %v5797
        %v5846 = vunpack.c.l.b16 %v5798
        %v5847 = vunpack.c.l.b16 %v5799
        %v5848 = vunpack.c.l.b16 %v5800
        %v5849 = vunpack.c.l.b16 %v5801
        %v5850 = vunpack.c.l.b16 %v5802
        %v5851 = vunpack.c.l.b16 %v5803
        %v5852 = vunpack.c.l.b16 %v5804
        %v5853 = vunpack.c.l.b16 %v5805
        %v5854 = vpack.c.b16 %v5839, %v5838
        %v5855 = vpack.c.b16 %v5841, %v5840
        %v5856 = vpack.c.b16 %v5843, %v5842
        %v5857 = vpack.c.b16 %v5845, %v5844
        %v5858 = vpack.c.b16 %v5847, %v5846
        %v5859 = vpack.c.b16 %v5849, %v5848
        %v5860 = vpack.c.b16 %v5851, %v5850
        %v5861 = vpack.c.b16 %v5853, %v5852
        %5870 = vrot.lane.b32.xlu0 %v3298, 104
        %v5871 = vpop.permute.xlu0 %5870
        %5872 = vrot.lane.b32.xlu0 %v3299, 104
        %v5873 = vpop.permute.xlu0 %5872
        %5874 = vrot.lane.b32.xlu0 %v3300, 104
        %v5875 = vpop.permute.xlu0 %5874
        %5876 = vrot.lane.b32.xlu0 %v3301, 104
        %v5877 = vpop.permute.xlu0 %5876
        %5878 = vrot.lane.b32.xlu0 %v3302, 104
        %v5879 = vpop.permute.xlu0 %5878
        %5880 = vrot.lane.b32.xlu0 %v3303, 104
        %v5881 = vpop.permute.xlu0 %5880
        %5882 = vrot.lane.b32.xlu0 %v3304, 104
        %v5883 = vpop.permute.xlu0 %5882
        %5884 = vrot.lane.b32.xlu0 %v3305, 104
        %v5885 = vpop.permute.xlu0 %5884
        %5894 = vmatpush.bf16.msra.mxu0 %v5885
        %5895 = vmatpush.bf16.msra.mxu0 %v5883
        %5896 = vmatpush.bf16.msra.mxu0 %v5881
        %5897 = vmatpush.bf16.msra.mxu0 %v5879
        %5898 = vmatpush.bf16.msra.mxu0 %v5877
        %5899 = vmatpush.bf16.msra.mxu0 %v5875
        %5900 = vmatpush.bf16.msra.mxu0 %v5873
        %5901 = vmatpush.bf16.msra.mxu0 %v5871
        %5902 = vmatmul.bf16.gmra.mxu0 %v5854
        %v5903 = vpop.f32.mrf.mxu0
        %v5904 = vadd.f32 0.0, %v5903
        %v5905 = vpop.f32.mrf.mxu0
        %v5906 = vadd.f32 0.0, %v5905
        %5907 = vmatmul.bf16.gmra.mxu0 %v5855
        %v5908 = vpop.f32.mrf.mxu0
        %v5909 = vadd.f32 0.0, %v5908
        %v5910 = vpop.f32.mrf.mxu0
        %v5911 = vadd.f32 0.0, %v5910
        %5912 = vmatmul.bf16.gmra.mxu0 %v5856
        %v5913 = vpop.f32.mrf.mxu0
        %v5914 = vadd.f32 0.0, %v5913
        %v5915 = vpop.f32.mrf.mxu0
        %v5916 = vadd.f32 0.0, %v5915
        %5917 = vmatmul.bf16.gmra.mxu0 %v5857
        %v5918 = vpop.f32.mrf.mxu0
        %v5919 = vadd.f32 0.0, %v5918
        %v5920 = vpop.f32.mrf.mxu0
        %v5921 = vadd.f32 0.0, %v5920
        %5922 = vmatmul.bf16.gmra.mxu0 %v5858
        %v5923 = vpop.f32.mrf.mxu0
        %v5924 = vadd.f32 0.0, %v5923
        %v5925 = vpop.f32.mrf.mxu0
        %v5926 = vadd.f32 0.0, %v5925
        %5927 = vmatmul.bf16.gmra.mxu0 %v5859
        %v5928 = vpop.f32.mrf.mxu0
        %v5929 = vadd.f32 0.0, %v5928
        %v5930 = vpop.f32.mrf.mxu0
        %v5931 = vadd.f32 0.0, %v5930
        %5932 = vmatmul.bf16.gmra.mxu0 %v5860
        %v5933 = vpop.f32.mrf.mxu0
        %v5934 = vadd.f32 0.0, %v5933
        %v5935 = vpop.f32.mrf.mxu0
        %v5936 = vadd.f32 0.0, %v5935
        %5937 = vmatmul.bf16.gmra.mxu0 %v5861
        %v5938 = vpop.f32.mrf.mxu0
        %v5939 = vadd.f32 0.0, %v5938
        %v5940 = vpop.f32.mrf.mxu0
        %v5941 = vadd.f32 0.0, %v5940
        %5942 = vdwg.mxu0
        %v5959 = vunpack.c.l.b16 %v5806
        %v5960 = vunpack.c.l.b16 %v5807
        %v5961 = vunpack.c.l.b16 %v5808
        %v5962 = vunpack.c.l.b16 %v5809
        %v5963 = vunpack.c.l.b16 %v5810
        %v5964 = vunpack.c.l.b16 %v5811
        %v5965 = vunpack.c.l.b16 %v5812
        %v5966 = vunpack.c.l.b16 %v5813
        %v5967 = vunpack.c.l.b16 %v5814
        %v5968 = vunpack.c.l.b16 %v5815
        %v5969 = vunpack.c.l.b16 %v5816
        %v5970 = vunpack.c.l.b16 %v5817
        %v5971 = vunpack.c.l.b16 %v5818
        %v5972 = vunpack.c.l.b16 %v5819
        %v5973 = vunpack.c.l.b16 %v5820
        %v5974 = vunpack.c.l.b16 %v5821
        %v5975 = vpack.c.b16 %v5960, %v5959
        %v5976 = vpack.c.b16 %v5962, %v5961
        %v5977 = vpack.c.b16 %v5964, %v5963
        %v5978 = vpack.c.b16 %v5966, %v5965
        %v5979 = vpack.c.b16 %v5968, %v5967
        %v5980 = vpack.c.b16 %v5970, %v5969
        %v5981 = vpack.c.b16 %v5972, %v5971
        %v5982 = vpack.c.b16 %v5974, %v5973
        %5991 = vrot.lane.b32.xlu0 %v3443, 104
        %v5992 = vpop.permute.xlu0 %5991
        %5993 = vrot.lane.b32.xlu0 %v3444, 104
        %v5994 = vpop.permute.xlu0 %5993
        %5995 = vrot.lane.b32.xlu0 %v3445, 104
        %v5996 = vpop.permute.xlu0 %5995
        %5997 = vrot.lane.b32.xlu0 %v3446, 104
        %v5998 = vpop.permute.xlu0 %5997
        %5999 = vrot.lane.b32.xlu0 %v3447, 104
        %v6000 = vpop.permute.xlu0 %5999
        %6001 = vrot.lane.b32.xlu0 %v3448, 104
        %v6002 = vpop.permute.xlu0 %6001
        %6003 = vrot.lane.b32.xlu0 %v3449, 104
        %v6004 = vpop.permute.xlu0 %6003
        %6005 = vrot.lane.b32.xlu0 %v3450, 104
        %v6006 = vpop.permute.xlu0 %6005
        %6015 = vmatpush.bf16.msra.mxu0 %v6006
        %6016 = vmatpush.bf16.msra.mxu0 %v6004
        %6017 = vmatpush.bf16.msra.mxu0 %v6002
        %6018 = vmatpush.bf16.msra.mxu0 %v6000
        %6019 = vmatpush.bf16.msra.mxu0 %v5998
        %6020 = vmatpush.bf16.msra.mxu0 %v5996
        %6021 = vmatpush.bf16.msra.mxu0 %v5994
        %6022 = vmatpush.bf16.msra.mxu0 %v5992
        %6023 = vmatmul.bf16.gmra.mxu0 %v5975
        %v6024 = vpop.f32.mrf.mxu0
        %v6025 = vadd.f32 0.0, %v6024
        %v6026 = vpop.f32.mrf.mxu0
        %v6027 = vadd.f32 0.0, %v6026
        %6028 = vmatmul.bf16.gmra.mxu0 %v5976
        %v6029 = vpop.f32.mrf.mxu0
        %v6030 = vadd.f32 0.0, %v6029
        %v6031 = vpop.f32.mrf.mxu0
        %v6032 = vadd.f32 0.0, %v6031
        %6033 = vmatmul.bf16.gmra.mxu0 %v5977
        %v6034 = vpop.f32.mrf.mxu0
        %v6035 = vadd.f32 0.0, %v6034
        %v6036 = vpop.f32.mrf.mxu0
        %v6037 = vadd.f32 0.0, %v6036
        %6038 = vmatmul.bf16.gmra.mxu0 %v5978
        %v6039 = vpop.f32.mrf.mxu0
        %v6040 = vadd.f32 0.0, %v6039
        %v6041 = vpop.f32.mrf.mxu0
        %v6042 = vadd.f32 0.0, %v6041
        %6043 = vmatmul.bf16.gmra.mxu0 %v5979
        %v6044 = vpop.f32.mrf.mxu0
        %v6045 = vadd.f32 0.0, %v6044
        %v6046 = vpop.f32.mrf.mxu0
        %v6047 = vadd.f32 0.0, %v6046
        %6048 = vmatmul.bf16.gmra.mxu0 %v5980
        %v6049 = vpop.f32.mrf.mxu0
        %v6050 = vadd.f32 0.0, %v6049
        %v6051 = vpop.f32.mrf.mxu0
        %v6052 = vadd.f32 0.0, %v6051
        %6053 = vmatmul.bf16.gmra.mxu0 %v5981
        %v6054 = vpop.f32.mrf.mxu0
        %v6055 = vadd.f32 0.0, %v6054
        %v6056 = vpop.f32.mrf.mxu0
        %v6057 = vadd.f32 0.0, %v6056
        %6058 = vmatmul.bf16.gmra.mxu0 %v5982
        %v6059 = vpop.f32.mrf.mxu0
        %v6060 = vadd.f32 0.0, %v6059
        %v6061 = vpop.f32.mrf.mxu0
        %v6062 = vadd.f32 0.0, %v6061
        %6063 = vdwg.mxu0
        %v6064 = vmul.f32 %v5904, %v5758
        %v6065 = vmul.f32 %v5906, %v5759
        %v6066 = vmul.f32 %v5909, %v5760
        %v6067 = vmul.f32 %v5911, %v5761
        %v6068 = vmul.f32 %v5914, %v5762
        %v6069 = vmul.f32 %v5916, %v5763
        %v6070 = vmul.f32 %v5919, %v5764
        %v6071 = vmul.f32 %v5921, %v5765
        %v6072 = vmul.f32 %v5924, %v5766
        %v6073 = vmul.f32 %v5926, %v5767
        %v6074 = vmul.f32 %v5929, %v5768
        %v6075 = vmul.f32 %v5931, %v5769
        %v6076 = vmul.f32 %v5934, %v5770
        %v6077 = vmul.f32 %v5936, %v5771
        %v6078 = vmul.f32 %v5939, %v5772
        %v6079 = vmul.f32 %v5941, %v5773
        %v6080 = vmul.f32 %v6025, %v5774
        %v6081 = vmul.f32 %v6027, %v5775
        %v6082 = vmul.f32 %v6030, %v5776
        %v6083 = vmul.f32 %v6032, %v5777
        %v6084 = vmul.f32 %v6035, %v5778
        %v6085 = vmul.f32 %v6037, %v5779
        %v6086 = vmul.f32 %v6040, %v5780
        %v6087 = vmul.f32 %v6042, %v5781
        %v6088 = vmul.f32 %v6045, %v5782
        %v6089 = vmul.f32 %v6047, %v5783
        %v6090 = vmul.f32 %v6050, %v5784
        %v6091 = vmul.f32 %v6052, %v5785
        %v6092 = vmul.f32 %v6055, %v5786
        %v6093 = vmul.f32 %v6057, %v5787
        %v6094 = vmul.f32 %v6060, %v5788
        %v6095 = vmul.f32 %v6062, %v5789
        %v6096 = vpack.c.bf16 %v6064, %v6064
        %v6097 = vpack.c.bf16 %v6065, %v6065
        %v6098 = vpack.c.bf16 %v6066, %v6066
        %v6099 = vpack.c.bf16 %v6067, %v6067
        %v6100 = vpack.c.bf16 %v6068, %v6068
        %v6101 = vpack.c.bf16 %v6069, %v6069
        %v6102 = vpack.c.bf16 %v6070, %v6070
        %v6103 = vpack.c.bf16 %v6071, %v6071
        %v6104 = vpack.c.bf16 %v6072, %v6072
        %v6105 = vpack.c.bf16 %v6073, %v6073
        %v6106 = vpack.c.bf16 %v6074, %v6074
        %v6107 = vpack.c.bf16 %v6075, %v6075
        %v6108 = vpack.c.bf16 %v6076, %v6076
        %v6109 = vpack.c.bf16 %v6077, %v6077
        %v6110 = vpack.c.bf16 %v6078, %v6078
        %v6111 = vpack.c.bf16 %v6079, %v6079
        %v6112 = vpack.c.bf16 %v6080, %v6080
        %v6113 = vpack.c.bf16 %v6081, %v6081
        %v6114 = vpack.c.bf16 %v6082, %v6082
        %v6115 = vpack.c.bf16 %v6083, %v6083
        %v6116 = vpack.c.bf16 %v6084, %v6084
        %v6117 = vpack.c.bf16 %v6085, %v6085
        %v6118 = vpack.c.bf16 %v6086, %v6086
        %v6119 = vpack.c.bf16 %v6087, %v6087
        %v6120 = vpack.c.bf16 %v6088, %v6088
        %v6121 = vpack.c.bf16 %v6089, %v6089
        %v6122 = vpack.c.bf16 %v6090, %v6090
        %v6123 = vpack.c.bf16 %v6091, %v6091
        %v6124 = vpack.c.bf16 %v6092, %v6092
        %v6125 = vpack.c.bf16 %v6093, %v6093
        %v6126 = vpack.c.bf16 %v6094, %v6094
        %v6127 = vpack.c.bf16 %v6095, %v6095
        %v6160 = vunpack.c.l.b16 %v3540
        %v6161 = vunpack.c.l.b16 %v3541
        %v6162 = vunpack.c.l.b16 %v3542
        %v6163 = vunpack.c.l.b16 %v3543
        %v6164 = vunpack.c.l.b16 %v3544
        %v6165 = vunpack.c.l.b16 %v3545
        %v6166 = vunpack.c.l.b16 %v3546
        %v6167 = vunpack.c.l.b16 %v3547
        %v6168 = vunpack.c.l.b16 %v3548
        %v6169 = vunpack.c.l.b16 %v3549
        %v6170 = vunpack.c.l.b16 %v3550
        %v6171 = vunpack.c.l.b16 %v3551
        %v6172 = vunpack.c.l.b16 %v3552
        %v6173 = vunpack.c.l.b16 %v3553
        %v6174 = vunpack.c.l.b16 %v3554
        %v6175 = vunpack.c.l.b16 %v3555
        %v6176 = vunpack.c.l.b16 %v3556
        %v6177 = vunpack.c.l.b16 %v3557
        %v6178 = vunpack.c.l.b16 %v3558
        %v6179 = vunpack.c.l.b16 %v3559
        %v6180 = vunpack.c.l.b16 %v3560
        %v6181 = vunpack.c.l.b16 %v3561
        %v6182 = vunpack.c.l.b16 %v3562
        %v6183 = vunpack.c.l.b16 %v3563
        %v6184 = vunpack.c.l.b16 %v3564
        %v6185 = vunpack.c.l.b16 %v3565
        %v6186 = vunpack.c.l.b16 %v3566
        %v6187 = vunpack.c.l.b16 %v3567
        %v6188 = vunpack.c.l.b16 %v3568
        %v6189 = vunpack.c.l.b16 %v3569
        %v6190 = vunpack.c.l.b16 %v3570
        %v6191 = vunpack.c.l.b16 %v3571
        %v6192 = vpack.c.b16 %v6161, %v6160
        %v6193 = vpack.c.b16 %v6163, %v6162
        %v6194 = vpack.c.b16 %v6165, %v6164
        %v6195 = vpack.c.b16 %v6167, %v6166
        %v6196 = vpack.c.b16 %v6169, %v6168
        %v6197 = vpack.c.b16 %v6171, %v6170
        %v6198 = vpack.c.b16 %v6173, %v6172
        %v6199 = vpack.c.b16 %v6175, %v6174
        %v6200 = vpack.c.b16 %v6177, %v6176
        %v6201 = vpack.c.b16 %v6179, %v6178
        %v6202 = vpack.c.b16 %v6181, %v6180
        %v6203 = vpack.c.b16 %v6183, %v6182
        %v6204 = vpack.c.b16 %v6185, %v6184
        %v6205 = vpack.c.b16 %v6187, %v6186
        %v6206 = vpack.c.b16 %v6189, %v6188
        %v6207 = vpack.c.b16 %v6191, %v6190
        %v6240 = vunpack.c.l.b16 %v4392
        %v6241 = vunpack.c.l.b16 %v4393
        %v6242 = vunpack.c.l.b16 %v4394
        %v6243 = vunpack.c.l.b16 %v4395
        %v6244 = vunpack.c.l.b16 %v4396
        %v6245 = vunpack.c.l.b16 %v4397
        %v6246 = vunpack.c.l.b16 %v4398
        %v6247 = vunpack.c.l.b16 %v4399
        %v6248 = vunpack.c.l.b16 %v4400
        %v6249 = vunpack.c.l.b16 %v4401
        %v6250 = vunpack.c.l.b16 %v4402
        %v6251 = vunpack.c.l.b16 %v4403
        %v6252 = vunpack.c.l.b16 %v4404
        %v6253 = vunpack.c.l.b16 %v4405
        %v6254 = vunpack.c.l.b16 %v4406
        %v6255 = vunpack.c.l.b16 %v4407
        %v6256 = vunpack.c.l.b16 %v4408
        %v6257 = vunpack.c.l.b16 %v4409
        %v6258 = vunpack.c.l.b16 %v4410
        %v6259 = vunpack.c.l.b16 %v4411
        %v6260 = vunpack.c.l.b16 %v4412
        %v6261 = vunpack.c.l.b16 %v4413
        %v6262 = vunpack.c.l.b16 %v4414
        %v6263 = vunpack.c.l.b16 %v4415
        %v6264 = vunpack.c.l.b16 %v4416
        %v6265 = vunpack.c.l.b16 %v4417
        %v6266 = vunpack.c.l.b16 %v4418
        %v6267 = vunpack.c.l.b16 %v4419
        %v6268 = vunpack.c.l.b16 %v4420
        %v6269 = vunpack.c.l.b16 %v4421
        %v6270 = vunpack.c.l.b16 %v4422
        %v6271 = vunpack.c.l.b16 %v4423
        %v6272 = vpack.c.b16 %v6241, %v6240
        %v6273 = vpack.c.b16 %v6243, %v6242
        %v6274 = vpack.c.b16 %v6245, %v6244
        %v6275 = vpack.c.b16 %v6247, %v6246
        %v6276 = vpack.c.b16 %v6249, %v6248
        %v6277 = vpack.c.b16 %v6251, %v6250
        %v6278 = vpack.c.b16 %v6253, %v6252
        %v6279 = vpack.c.b16 %v6255, %v6254
        %v6280 = vpack.c.b16 %v6257, %v6256
        %v6281 = vpack.c.b16 %v6259, %v6258
        %v6282 = vpack.c.b16 %v6261, %v6260
        %v6283 = vpack.c.b16 %v6263, %v6262
        %v6284 = vpack.c.b16 %v6265, %v6264
        %v6285 = vpack.c.b16 %v6267, %v6266
        %v6286 = vpack.c.b16 %v6269, %v6268
        %v6287 = vpack.c.b16 %v6271, %v6270
        %6288 = vrot.lane.b32.xlu0 %v6272, 8
        %v6289 = vpop.permute.xlu0 %6288
        %6290 = vrot.lane.b32.xlu0 %v6273, 8
        %v6291 = vpop.permute.xlu0 %6290
        %6292 = vrot.lane.b32.xlu0 %v6274, 8
        %v6293 = vpop.permute.xlu0 %6292
        %6294 = vrot.lane.b32.xlu0 %v6275, 8
        %v6295 = vpop.permute.xlu0 %6294
        %6296 = vrot.lane.b32.xlu0 %v6276, 8
        %v6297 = vpop.permute.xlu0 %6296
        %6298 = vrot.lane.b32.xlu0 %v6277, 8
        %v6299 = vpop.permute.xlu0 %6298
        %6300 = vrot.lane.b32.xlu0 %v6278, 8
        %v6301 = vpop.permute.xlu0 %6300
        %6302 = vrot.lane.b32.xlu0 %v6279, 8
        %v6303 = vpop.permute.xlu0 %6302
        %6304 = vrot.lane.b32.xlu0 %v6280, 8
        %v6305 = vpop.permute.xlu0 %6304
        %6306 = vrot.lane.b32.xlu0 %v6281, 8
        %v6307 = vpop.permute.xlu0 %6306
        %6308 = vrot.lane.b32.xlu0 %v6282, 8
        %v6309 = vpop.permute.xlu0 %6308
        %6310 = vrot.lane.b32.xlu0 %v6283, 8
        %v6311 = vpop.permute.xlu0 %6310
        %6312 = vrot.lane.b32.xlu0 %v6284, 8
        %v6313 = vpop.permute.xlu0 %6312
        %6314 = vrot.lane.b32.xlu0 %v6285, 8
        %v6315 = vpop.permute.xlu0 %6314
        %6316 = vrot.lane.b32.xlu0 %v6286, 8
        %v6317 = vpop.permute.xlu0 %6316
        %6318 = vrot.lane.b32.xlu0 %v6287, 8
        %v6319 = vpop.permute.xlu0 %6318
        %v6352 = vunpack.c.l.b16 %v5244
        %v6353 = vunpack.c.l.b16 %v5245
        %v6354 = vunpack.c.l.b16 %v5246
        %v6355 = vunpack.c.l.b16 %v5247
        %v6356 = vunpack.c.l.b16 %v5248
        %v6357 = vunpack.c.l.b16 %v5249
        %v6358 = vunpack.c.l.b16 %v5250
        %v6359 = vunpack.c.l.b16 %v5251
        %v6360 = vunpack.c.l.b16 %v5252
        %v6361 = vunpack.c.l.b16 %v5253
        %v6362 = vunpack.c.l.b16 %v5254
        %v6363 = vunpack.c.l.b16 %v5255
        %v6364 = vunpack.c.l.b16 %v5256
        %v6365 = vunpack.c.l.b16 %v5257
        %v6366 = vunpack.c.l.b16 %v5258
        %v6367 = vunpack.c.l.b16 %v5259
        %v6368 = vunpack.c.l.b16 %v5260
        %v6369 = vunpack.c.l.b16 %v5261
        %v6370 = vunpack.c.l.b16 %v5262
        %v6371 = vunpack.c.l.b16 %v5263
        %v6372 = vunpack.c.l.b16 %v5264
        %v6373 = vunpack.c.l.b16 %v5265
        %v6374 = vunpack.c.l.b16 %v5266
        %v6375 = vunpack.c.l.b16 %v5267
        %v6376 = vunpack.c.l.b16 %v5268
        %v6377 = vunpack.c.l.b16 %v5269
        %v6378 = vunpack.c.l.b16 %v5270
        %v6379 = vunpack.c.l.b16 %v5271
        %v6380 = vunpack.c.l.b16 %v5272
        %v6381 = vunpack.c.l.b16 %v5273
        %v6382 = vunpack.c.l.b16 %v5274
        %v6383 = vunpack.c.l.b16 %v5275
        %v6384 = vpack.c.b16 %v6353, %v6352
        %v6385 = vpack.c.b16 %v6355, %v6354
        %v6386 = vpack.c.b16 %v6357, %v6356
        %v6387 = vpack.c.b16 %v6359, %v6358
        %v6388 = vpack.c.b16 %v6361, %v6360
        %v6389 = vpack.c.b16 %v6363, %v6362
        %v6390 = vpack.c.b16 %v6365, %v6364
        %v6391 = vpack.c.b16 %v6367, %v6366
        %v6392 = vpack.c.b16 %v6369, %v6368
        %v6393 = vpack.c.b16 %v6371, %v6370
        %v6394 = vpack.c.b16 %v6373, %v6372
        %v6395 = vpack.c.b16 %v6375, %v6374
        %v6396 = vpack.c.b16 %v6377, %v6376
        %v6397 = vpack.c.b16 %v6379, %v6378
        %v6398 = vpack.c.b16 %v6381, %v6380
        %v6399 = vpack.c.b16 %v6383, %v6382
        %6400 = vrot.lane.b32.xlu0 %v6384, 16
        %v6401 = vpop.permute.xlu0 %6400
        %6402 = vrot.lane.b32.xlu0 %v6385, 16
        %v6403 = vpop.permute.xlu0 %6402
        %6404 = vrot.lane.b32.xlu0 %v6386, 16
        %v6405 = vpop.permute.xlu0 %6404
        %6406 = vrot.lane.b32.xlu0 %v6387, 16
        %v6407 = vpop.permute.xlu0 %6406
        %6408 = vrot.lane.b32.xlu0 %v6388, 16
        %v6409 = vpop.permute.xlu0 %6408
        %6410 = vrot.lane.b32.xlu0 %v6389, 16
        %v6411 = vpop.permute.xlu0 %6410
        %6412 = vrot.lane.b32.xlu0 %v6390, 16
        %v6413 = vpop.permute.xlu0 %6412
        %6414 = vrot.lane.b32.xlu0 %v6391, 16
        %v6415 = vpop.permute.xlu0 %6414
        %6416 = vrot.lane.b32.xlu0 %v6392, 16
        %v6417 = vpop.permute.xlu0 %6416
        %6418 = vrot.lane.b32.xlu0 %v6393, 16
        %v6419 = vpop.permute.xlu0 %6418
        %6420 = vrot.lane.b32.xlu0 %v6394, 16
        %v6421 = vpop.permute.xlu0 %6420
        %6422 = vrot.lane.b32.xlu0 %v6395, 16
        %v6423 = vpop.permute.xlu0 %6422
        %6424 = vrot.lane.b32.xlu0 %v6396, 16
        %v6425 = vpop.permute.xlu0 %6424
        %6426 = vrot.lane.b32.xlu0 %v6397, 16
        %v6427 = vpop.permute.xlu0 %6426
        %6428 = vrot.lane.b32.xlu0 %v6398, 16
        %v6429 = vpop.permute.xlu0 %6428
        %6430 = vrot.lane.b32.xlu0 %v6399, 16
        %v6431 = vpop.permute.xlu0 %6430
        %v6464 = vunpack.c.l.b16 %v6096
        %v6465 = vunpack.c.l.b16 %v6097
        %v6466 = vunpack.c.l.b16 %v6098
        %v6467 = vunpack.c.l.b16 %v6099
        %v6468 = vunpack.c.l.b16 %v6100
        %v6469 = vunpack.c.l.b16 %v6101
        %v6470 = vunpack.c.l.b16 %v6102
        %v6471 = vunpack.c.l.b16 %v6103
        %v6472 = vunpack.c.l.b16 %v6104
        %v6473 = vunpack.c.l.b16 %v6105
        %v6474 = vunpack.c.l.b16 %v6106
        %v6475 = vunpack.c.l.b16 %v6107
        %v6476 = vunpack.c.l.b16 %v6108
        %v6477 = vunpack.c.l.b16 %v6109
        %v6478 = vunpack.c.l.b16 %v6110
        %v6479 = vunpack.c.l.b16 %v6111
        %v6480 = vunpack.c.l.b16 %v6112
        %v6481 = vunpack.c.l.b16 %v6113
        %v6482 = vunpack.c.l.b16 %v6114
        %v6483 = vunpack.c.l.b16 %v6115
        %v6484 = vunpack.c.l.b16 %v6116
        %v6485 = vunpack.c.l.b16 %v6117
        %v6486 = vunpack.c.l.b16 %v6118
        %v6487 = vunpack.c.l.b16 %v6119
        %v6488 = vunpack.c.l.b16 %v6120
        %v6489 = vunpack.c.l.b16 %v6121
        %v6490 = vunpack.c.l.b16 %v6122
        %v6491 = vunpack.c.l.b16 %v6123
        %v6492 = vunpack.c.l.b16 %v6124
        %v6493 = vunpack.c.l.b16 %v6125
        %v6494 = vunpack.c.l.b16 %v6126
        %v6495 = vunpack.c.l.b16 %v6127
        %v6496 = vpack.c.b16 %v6465, %v6464
        %v6497 = vpack.c.b16 %v6467, %v6466
        %v6498 = vpack.c.b16 %v6469, %v6468
        %v6499 = vpack.c.b16 %v6471, %v6470
        %v6500 = vpack.c.b16 %v6473, %v6472
        %v6501 = vpack.c.b16 %v6475, %v6474
        %v6502 = vpack.c.b16 %v6477, %v6476
        %v6503 = vpack.c.b16 %v6479, %v6478
        %v6504 = vpack.c.b16 %v6481, %v6480
        %v6505 = vpack.c.b16 %v6483, %v6482
        %v6506 = vpack.c.b16 %v6485, %v6484
        %v6507 = vpack.c.b16 %v6487, %v6486
        %v6508 = vpack.c.b16 %v6489, %v6488
        %v6509 = vpack.c.b16 %v6491, %v6490
        %v6510 = vpack.c.b16 %v6493, %v6492
        %v6511 = vpack.c.b16 %v6495, %v6494
        %6512 = vrot.lane.b32.xlu0 %v6496, 24
        %v6513 = vpop.permute.xlu0 %6512
        %6514 = vrot.lane.b32.xlu0 %v6497, 24
        %v6515 = vpop.permute.xlu0 %6514
        %6516 = vrot.lane.b32.xlu0 %v6498, 24
        %v6517 = vpop.permute.xlu0 %6516
        %6518 = vrot.lane.b32.xlu0 %v6499, 24
        %v6519 = vpop.permute.xlu0 %6518
        %6520 = vrot.lane.b32.xlu0 %v6500, 24
        %v6521 = vpop.permute.xlu0 %6520
        %6522 = vrot.lane.b32.xlu0 %v6501, 24
        %v6523 = vpop.permute.xlu0 %6522
        %6524 = vrot.lane.b32.xlu0 %v6502, 24
        %v6525 = vpop.permute.xlu0 %6524
        %6526 = vrot.lane.b32.xlu0 %v6503, 24
        %v6527 = vpop.permute.xlu0 %6526
        %6528 = vrot.lane.b32.xlu0 %v6504, 24
        %v6529 = vpop.permute.xlu0 %6528
        %6530 = vrot.lane.b32.xlu0 %v6505, 24
        %v6531 = vpop.permute.xlu0 %6530
        %6532 = vrot.lane.b32.xlu0 %v6506, 24
        %v6533 = vpop.permute.xlu0 %6532
        %6534 = vrot.lane.b32.xlu0 %v6507, 24
        %v6535 = vpop.permute.xlu0 %6534
        %6536 = vrot.lane.b32.xlu0 %v6508, 24
        %v6537 = vpop.permute.xlu0 %6536
        %6538 = vrot.lane.b32.xlu0 %v6509, 24
        %v6539 = vpop.permute.xlu0 %6538
        %6540 = vrot.lane.b32.xlu0 %v6510, 24
        %v6541 = vpop.permute.xlu0 %6540
        %6542 = vrot.lane.b32.xlu0 %v6511, 24
        %v6543 = vpop.permute.xlu0 %6542
        %v6546 = vsel %vm2655, %v6192, %v6289
        %v6549 = vsel %vm2655, %v6193, %v6291
        %v6552 = vsel %vm2655, %v6194, %v6293
        %v6555 = vsel %vm2655, %v6195, %v6295
        %v6558 = vsel %vm2655, %v6196, %v6297
        %v6561 = vsel %vm2655, %v6197, %v6299
        %v6564 = vsel %vm2655, %v6198, %v6301
        %v6567 = vsel %vm2655, %v6199, %v6303
        %v6570 = vsel %vm2655, %v6200, %v6305
        %v6573 = vsel %vm2655, %v6201, %v6307
        %v6576 = vsel %vm2655, %v6202, %v6309
        %v6579 = vsel %vm2655, %v6203, %v6311
        %v6582 = vsel %vm2655, %v6204, %v6313
        %v6585 = vsel %vm2655, %v6205, %v6315
        %v6588 = vsel %vm2655, %v6206, %v6317
        %v6591 = vsel %vm2655, %v6207, %v6319
        %vm6592 = vcmask 130048
        %v6594 = vsel %vm6592, %v6546, %v6401
        %v6596 = vsel %vm6592, %v6549, %v6403
        %v6598 = vsel %vm6592, %v6552, %v6405
        %v6600 = vsel %vm6592, %v6555, %v6407
        %v6602 = vsel %vm6592, %v6558, %v6409
        %v6604 = vsel %vm6592, %v6561, %v6411
        %v6606 = vsel %vm6592, %v6564, %v6413
        %v6608 = vsel %vm6592, %v6567, %v6415
        %v6610 = vsel %vm6592, %v6570, %v6417
        %v6612 = vsel %vm6592, %v6573, %v6419
        %v6614 = vsel %vm6592, %v6576, %v6421
        %v6616 = vsel %vm6592, %v6579, %v6423
        %v6618 = vsel %vm6592, %v6582, %v6425
        %v6620 = vsel %vm6592, %v6585, %v6427
        %v6622 = vsel %vm6592, %v6588, %v6429
        %v6624 = vsel %vm6592, %v6591, %v6431
        %vm6625 = vcmask 195584
        %v6627 = vsel %vm6625, %v6594, %v6513
        %v6629 = vsel %vm6625, %v6596, %v6515
        %v6631 = vsel %vm6625, %v6598, %v6517
        %v6633 = vsel %vm6625, %v6600, %v6519
        %v6635 = vsel %vm6625, %v6602, %v6521
        %v6637 = vsel %vm6625, %v6604, %v6523
        %v6639 = vsel %vm6625, %v6606, %v6525
        %v6641 = vsel %vm6625, %v6608, %v6527
        %v6643 = vsel %vm6625, %v6610, %v6529
        %v6645 = vsel %vm6625, %v6612, %v6531
        %v6647 = vsel %vm6625, %v6614, %v6533
        %v6649 = vsel %vm6625, %v6616, %v6535
        %v6651 = vsel %vm6625, %v6618, %v6537
        %v6653 = vsel %vm6625, %v6620, %v6539
        %v6655 = vsel %vm6625, %v6622, %v6541
        %v6657 = vsel %vm6625, %v6624, %v6543
        %v6658 = vld [vmem:[%s1158] sm:$0xf]
        %v6659 = vld [vmem:[%s1158 + $0x4] sm:$0xf]
        %v6660 = vld [vmem:[%s1158 + $0x8] sm:$0xf]
        %v6661 = vld [vmem:[%s1158 + $0xc] sm:$0xf]
        %v6662 = vld [vmem:[%s947] sm:$0x1]
        %v6664 = vperm.slane %v6662, 0
        %v6670 = vunpack.c.l.b16 %v6658
        %v6671 = vunpack.c.l.b16 %v6659
        %v6672 = vunpack.c.l.b16 %v6660
        %v6673 = vunpack.c.l.b16 %v6661
        %v6674 = vpack.c.b16 %v6671, %v6670
        %v6675 = vpack.c.b16 %v6673, %v6672
        %v6678 = vsel %vm1274, %v6627, 0
        %v6680 = vsel %vm1274, %v6629, 0
        %v6682 = vsel %vm1274, %v6631, 0
        %v6684 = vsel %vm1274, %v6633, 0
        %v6686 = vsel %vm1274, %v6635, 0
        %v6688 = vsel %vm1274, %v6637, 0
        %v6690 = vsel %vm1274, %v6639, 0
        %v6692 = vsel %vm1274, %v6641, 0
        %v6694 = vsel %vm1274, %v6643, 0
        %v6696 = vsel %vm1274, %v6645, 0
        %v6698 = vsel %vm1274, %v6647, 0
        %v6700 = vsel %vm1274, %v6649, 0
        %v6702 = vsel %vm1274, %v6651, 0
        %v6704 = vsel %vm1274, %v6653, 0
        %v6706 = vsel %vm1274, %v6655, 0
        %v6708 = vsel %vm1274, %v6657, 0
        %6710 = vmatpush.bf16.msra.mxu0 0
        %6711 = vmatpush.bf16.msra.mxu0 0
        %6712 = vmatpush.bf16.msra.mxu0 0
        %6713 = vmatpush.bf16.msra.mxu0 0
        %6714 = vmatpush.bf16.msra.mxu0 0
        %6715 = vmatpush.bf16.msra.mxu0 0
        %6716 = vmatpush.bf16.msra.mxu0 %v6675
        %6717 = vmatpush.bf16.msra.mxu0 %v6674
        %6718 = vmatmul.bf16.gmra.mxu0 %v6678
        %v6719 = vpop.f32.mrf.mxu0
        %v6720 = vadd.f32 %v6664, %v6719
        %v6721 = vpop.f32.mrf.mxu0
        %v6722 = vadd.f32 %v6664, %v6721
        %6723 = vmatmul.bf16.gmra.mxu0 %v6680
        %v6724 = vpop.f32.mrf.mxu0
        %v6725 = vadd.f32 %v6664, %v6724
        %v6726 = vpop.f32.mrf.mxu0
        %v6727 = vadd.f32 %v6664, %v6726
        %6728 = vmatmul.bf16.gmra.mxu0 %v6682
        %v6729 = vpop.f32.mrf.mxu0
        %v6730 = vadd.f32 %v6664, %v6729
        %v6731 = vpop.f32.mrf.mxu0
        %v6732 = vadd.f32 %v6664, %v6731
        %6733 = vmatmul.bf16.gmra.mxu0 %v6684
        %v6734 = vpop.f32.mrf.mxu0
        %v6735 = vadd.f32 %v6664, %v6734
        %v6736 = vpop.f32.mrf.mxu0
        %v6737 = vadd.f32 %v6664, %v6736
        %6738 = vmatmul.bf16.gmra.mxu0 %v6686
        %v6739 = vpop.f32.mrf.mxu0
        %v6740 = vadd.f32 %v6664, %v6739
        %v6741 = vpop.f32.mrf.mxu0
        %v6742 = vadd.f32 %v6664, %v6741
        %6743 = vmatmul.bf16.gmra.mxu0 %v6688
        %v6744 = vpop.f32.mrf.mxu0
        %v6745 = vadd.f32 %v6664, %v6744
        %v6746 = vpop.f32.mrf.mxu0
        %v6747 = vadd.f32 %v6664, %v6746
        %6748 = vmatmul.bf16.gmra.mxu0 %v6690
        %v6749 = vpop.f32.mrf.mxu0
        %v6750 = vadd.f32 %v6664, %v6749
        %v6751 = vpop.f32.mrf.mxu0
        %v6752 = vadd.f32 %v6664, %v6751
        %6753 = vmatmul.bf16.gmra.mxu0 %v6692
        %v6754 = vpop.f32.mrf.mxu0
        %v6755 = vadd.f32 %v6664, %v6754
        %v6756 = vpop.f32.mrf.mxu0
        %v6757 = vadd.f32 %v6664, %v6756
        %6758 = vmatmul.bf16.gmra.mxu0 %v6694
        %v6759 = vpop.f32.mrf.mxu0
        %v6760 = vadd.f32 %v6664, %v6759
        %v6761 = vpop.f32.mrf.mxu0
        %v6762 = vadd.f32 %v6664, %v6761
        %6763 = vmatmul.bf16.gmra.mxu0 %v6696
        %v6764 = vpop.f32.mrf.mxu0
        %v6765 = vadd.f32 %v6664, %v6764
        %v6766 = vpop.f32.mrf.mxu0
        %v6767 = vadd.f32 %v6664, %v6766
        %6768 = vmatmul.bf16.gmra.mxu0 %v6698
        %v6769 = vpop.f32.mrf.mxu0
        %v6770 = vadd.f32 %v6664, %v6769
        %v6771 = vpop.f32.mrf.mxu0
        %v6772 = vadd.f32 %v6664, %v6771
        %6773 = vmatmul.bf16.gmra.mxu0 %v6700
        %v6774 = vpop.f32.mrf.mxu0
        %v6775 = vadd.f32 %v6664, %v6774
        %v6776 = vpop.f32.mrf.mxu0
        %v6777 = vadd.f32 %v6664, %v6776
        %6778 = vmatmul.bf16.gmra.mxu0 %v6702
        %v6779 = vpop.f32.mrf.mxu0
        %v6780 = vadd.f32 %v6664, %v6779
        %v6781 = vpop.f32.mrf.mxu0
        %v6782 = vadd.f32 %v6664, %v6781
        %6783 = vmatmul.bf16.gmra.mxu0 %v6704
        %v6784 = vpop.f32.mrf.mxu0
        %v6785 = vadd.f32 %v6664, %v6784
        %v6786 = vpop.f32.mrf.mxu0
        %v6787 = vadd.f32 %v6664, %v6786
        %6788 = vmatmul.bf16.gmra.mxu0 %v6706
        %v6789 = vpop.f32.mrf.mxu0
        %v6790 = vadd.f32 %v6664, %v6789
        %v6791 = vpop.f32.mrf.mxu0
        %v6792 = vadd.f32 %v6664, %v6791
        %6793 = vmatmul.bf16.gmra.mxu0 %v6708
        %v6794 = vpop.f32.mrf.mxu0
        %v6795 = vadd.f32 %v6664, %v6794
        %v6796 = vpop.f32.mrf.mxu0
        %v6797 = vadd.f32 %v6664, %v6796
        %6798 = vdwg.mxu0
        %v6799 = vadd.f32 %v1240, %v6720
        %v6800 = vadd.f32 %v1241, %v6722
        %v6801 = vadd.f32 %v1242, %v6725
        %v6802 = vadd.f32 %v1243, %v6727
        %v6803 = vadd.f32 %v1244, %v6730
        %v6804 = vadd.f32 %v1245, %v6732
        %v6805 = vadd.f32 %v1246, %v6735
        %v6806 = vadd.f32 %v1247, %v6737
        %v6807 = vadd.f32 %v1248, %v6740
        %v6808 = vadd.f32 %v1249, %v6742
        %v6809 = vadd.f32 %v1250, %v6745
        %v6810 = vadd.f32 %v1251, %v6747
        %v6811 = vadd.f32 %v1252, %v6750
        %v6812 = vadd.f32 %v1253, %v6752
        %v6813 = vadd.f32 %v1254, %v6755
        %v6814 = vadd.f32 %v1255, %v6757
        %v6815 = vadd.f32 %v1256, %v6760
        %v6816 = vadd.f32 %v1257, %v6762
        %v6817 = vadd.f32 %v1258, %v6765
        %v6818 = vadd.f32 %v1259, %v6767
        %v6819 = vadd.f32 %v1260, %v6770
        %v6820 = vadd.f32 %v1261, %v6772
        %v6821 = vadd.f32 %v1262, %v6775
        %v6822 = vadd.f32 %v1263, %v6777
        %v6823 = vadd.f32 %v1264, %v6780
        %v6824 = vadd.f32 %v1265, %v6782
        %v6825 = vadd.f32 %v1266, %v6785
        %v6826 = vadd.f32 %v1267, %v6787
        %v6827 = vadd.f32 %v1268, %v6790
        %v6828 = vadd.f32 %v1269, %v6792
        %v6829 = vadd.f32 %v1270, %v6795
        %v6830 = vadd.f32 %v1271, %v6797
        %v6831 = vld [vmem:[%s956] sm:$0x1]
        %v6832 = vld [vmem:[%s965] sm:$0x1]
        %v6833 = vsel %vm1274, %v6799, 0.0
        %6834 = vadd.xlane.f32.xlu0 %v6833
        %v6835 = vpop.xlane.xlu0 %6834
        %v6836 = vsel %vm1274, %v6800, 0.0
        %6837 = vadd.xlane.f32.xlu0 %v6836
        %v6838 = vpop.xlane.xlu0 %6837
        %v6839 = vsel %vm1274, %v6801, 0.0
        %6840 = vadd.xlane.f32.xlu0 %v6839
        %v6841 = vpop.xlane.xlu0 %6840
        %v6842 = vsel %vm1274, %v6802, 0.0
        %6843 = vadd.xlane.f32.xlu0 %v6842
        %v6844 = vpop.xlane.xlu0 %6843
        %v6845 = vsel %vm1274, %v6803, 0.0
        %6846 = vadd.xlane.f32.xlu0 %v6845
        %v6847 = vpop.xlane.xlu0 %6846
        %v6848 = vsel %vm1274, %v6804, 0.0
        %6849 = vadd.xlane.f32.xlu0 %v6848
        %v6850 = vpop.xlane.xlu0 %6849
        %v6851 = vsel %vm1274, %v6805, 0.0
        %6852 = vadd.xlane.f32.xlu0 %v6851
        %v6853 = vpop.xlane.xlu0 %6852
        %v6854 = vsel %vm1274, %v6806, 0.0
        %6855 = vadd.xlane.f32.xlu0 %v6854
        %v6856 = vpop.xlane.xlu0 %6855
        %v6857 = vsel %vm1274, %v6807, 0.0
        %6858 = vadd.xlane.f32.xlu0 %v6857
        %v6859 = vpop.xlane.xlu0 %6858
        %v6860 = vsel %vm1274, %v6808, 0.0
        %6861 = vadd.xlane.f32.xlu0 %v6860
        %v6862 = vpop.xlane.xlu0 %6861
        %v6863 = vsel %vm1274, %v6809, 0.0
        %6864 = vadd.xlane.f32.xlu0 %v6863
        %v6865 = vpop.xlane.xlu0 %6864
        %v6866 = vsel %vm1274, %v6810, 0.0
        %6867 = vadd.xlane.f32.xlu0 %v6866
        %v6868 = vpop.xlane.xlu0 %6867
        %v6869 = vsel %vm1274, %v6811, 0.0
        %6870 = vadd.xlane.f32.xlu0 %v6869
        %v6871 = vpop.xlane.xlu0 %6870
        %v6872 = vsel %vm1274, %v6812, 0.0
        %6873 = vadd.xlane.f32.xlu0 %v6872
        %v6874 = vpop.xlane.xlu0 %6873
        %v6875 = vsel %vm1274, %v6813, 0.0
        %6876 = vadd.xlane.f32.xlu0 %v6875
        %v6877 = vpop.xlane.xlu0 %6876
        %v6878 = vsel %vm1274, %v6814, 0.0
        %6879 = vadd.xlane.f32.xlu0 %v6878
        %v6880 = vpop.xlane.xlu0 %6879
        %v6881 = vsel %vm1274, %v6815, 0.0
        %6882 = vadd.xlane.f32.xlu0 %v6881
        %v6883 = vpop.xlane.xlu0 %6882
        %v6884 = vsel %vm1274, %v6816, 0.0
        %6885 = vadd.xlane.f32.xlu0 %v6884
        %v6886 = vpop.xlane.xlu0 %6885
        %v6887 = vsel %vm1274, %v6817, 0.0
        %6888 = vadd.xlane.f32.xlu0 %v6887
        %v6889 = vpop.xlane.xlu0 %6888
        %v6890 = vsel %vm1274, %v6818, 0.0
        %6891 = vadd.xlane.f32.xlu0 %v6890
        %v6892 = vpop.xlane.xlu0 %6891
        %v6893 = vsel %vm1274, %v6819, 0.0
        %6894 = vadd.xlane.f32.xlu0 %v6893
        %v6895 = vpop.xlane.xlu0 %6894
        %v6896 = vsel %vm1274, %v6820, 0.0
        %6897 = vadd.xlane.f32.xlu0 %v6896
        %v6898 = vpop.xlane.xlu0 %6897
        %v6899 = vsel %vm1274, %v6821, 0.0
        %6900 = vadd.xlane.f32.xlu0 %v6899
        %v6901 = vpop.xlane.xlu0 %6900
        %v6902 = vsel %vm1274, %v6822, 0.0
        %6903 = vadd.xlane.f32.xlu0 %v6902
        %v6904 = vpop.xlane.xlu0 %6903
        %v6905 = vsel %vm1274, %v6823, 0.0
        %6906 = vadd.xlane.f32.xlu0 %v6905
        %v6907 = vpop.xlane.xlu0 %6906
        %v6908 = vsel %vm1274, %v6824, 0.0
        %6909 = vadd.xlane.f32.xlu0 %v6908
        %v6910 = vpop.xlane.xlu0 %6909
        %v6911 = vsel %vm1274, %v6825, 0.0
        %6912 = vadd.xlane.f32.xlu0 %v6911
        %v6913 = vpop.xlane.xlu0 %6912
        %v6914 = vsel %vm1274, %v6826, 0.0
        %6915 = vadd.xlane.f32.xlu0 %v6914
        %v6916 = vpop.xlane.xlu0 %6915
        %v6917 = vsel %vm1274, %v6827, 0.0
        %6918 = vadd.xlane.f32.xlu0 %v6917
        %v6919 = vpop.xlane.xlu0 %6918
        %v6920 = vsel %vm1274, %v6828, 0.0
        %6921 = vadd.xlane.f32.xlu0 %v6920
        %v6922 = vpop.xlane.xlu0 %6921
        %v6923 = vsel %vm1274, %v6829, 0.0
        %6924 = vadd.xlane.f32.xlu0 %v6923
        %v6925 = vpop.xlane.xlu0 %6924
        %v6926 = vsel %vm1274, %v6830, 0.0
        %6927 = vadd.xlane.f32.xlu0 %v6926
        %v6928 = vpop.xlane.xlu0 %6927
        %v6929 = vmul.f32 %v6835, %v1377
        %v6930 = vmul.f32 %v6838, %v1377
        %v6931 = vmul.f32 %v6841, %v1377
        %v6932 = vmul.f32 %v6844, %v1377
        %v6933 = vmul.f32 %v6847, %v1377
        %v6934 = vmul.f32 %v6850, %v1377
        %v6935 = vmul.f32 %v6853, %v1377
        %v6936 = vmul.f32 %v6856, %v1377
        %v6937 = vmul.f32 %v6859, %v1377
        %v6938 = vmul.f32 %v6862, %v1377
        %v6939 = vmul.f32 %v6865, %v1377
        %v6940 = vmul.f32 %v6868, %v1377
        %v6941 = vmul.f32 %v6871, %v1377
        %v6942 = vmul.f32 %v6874, %v1377
        %v6943 = vmul.f32 %v6877, %v1377
        %v6944 = vmul.f32 %v6880, %v1377
        %v6945 = vmul.f32 %v6883, %v1377
        %v6946 = vmul.f32 %v6886, %v1377
        %v6947 = vmul.f32 %v6889, %v1377
        %v6948 = vmul.f32 %v6892, %v1377
        %v6949 = vmul.f32 %v6895, %v1377
        %v6950 = vmul.f32 %v6898, %v1377
        %v6951 = vmul.f32 %v6901, %v1377
        %v6952 = vmul.f32 %v6904, %v1377
        %v6953 = vmul.f32 %v6907, %v1377
        %v6954 = vmul.f32 %v6910, %v1377
        %v6955 = vmul.f32 %v6913, %v1377
        %v6956 = vmul.f32 %v6916, %v1377
        %v6957 = vmul.f32 %v6919, %v1377
        %v6958 = vmul.f32 %v6922, %v1377
        %v6959 = vmul.f32 %v6925, %v1377
        %v6960 = vmul.f32 %v6928, %v1377
        %v6961 = vsub.f32 %v6799, %v6929
        %v6962 = vsub.f32 %v6800, %v6930
        %v6963 = vsub.f32 %v6801, %v6931
        %v6964 = vsub.f32 %v6802, %v6932
        %v6965 = vsub.f32 %v6803, %v6933
        %v6966 = vsub.f32 %v6804, %v6934
        %v6967 = vsub.f32 %v6805, %v6935
        %v6968 = vsub.f32 %v6806, %v6936
        %v6969 = vsub.f32 %v6807, %v6937
        %v6970 = vsub.f32 %v6808, %v6938
        %v6971 = vsub.f32 %v6809, %v6939
        %v6972 = vsub.f32 %v6810, %v6940
        %v6973 = vsub.f32 %v6811, %v6941
        %v6974 = vsub.f32 %v6812, %v6942
        %v6975 = vsub.f32 %v6813, %v6943
        %v6976 = vsub.f32 %v6814, %v6944
        %v6977 = vsub.f32 %v6815, %v6945
        %v6978 = vsub.f32 %v6816, %v6946
        %v6979 = vsub.f32 %v6817, %v6947
        %v6980 = vsub.f32 %v6818, %v6948
        %v6981 = vsub.f32 %v6819, %v6949
        %v6982 = vsub.f32 %v6820, %v6950
        %v6983 = vsub.f32 %v6821, %v6951
        %v6984 = vsub.f32 %v6822, %v6952
        %v6985 = vsub.f32 %v6823, %v6953
        %v6986 = vsub.f32 %v6824, %v6954
        %v6987 = vsub.f32 %v6825, %v6955
        %v6988 = vsub.f32 %v6826, %v6956
        %v6989 = vsub.f32 %v6827, %v6957
        %v6990 = vsub.f32 %v6828, %v6958
        %v6991 = vsub.f32 %v6829, %v6959
        %v6992 = vsub.f32 %v6830, %v6960
        %v6993 = vmul.f32 %v6961, %v6961
        %v6994 = vmul.f32 %v6962, %v6962
        %v6995 = vmul.f32 %v6963, %v6963
        %v6996 = vmul.f32 %v6964, %v6964
        %v6997 = vmul.f32 %v6965, %v6965
        %v6998 = vmul.f32 %v6966, %v6966
        %v6999 = vmul.f32 %v6967, %v6967
        %v7000 = vmul.f32 %v6968, %v6968
        %v7001 = vmul.f32 %v6969, %v6969
        %v7002 = vmul.f32 %v6970, %v6970
        %v7003 = vmul.f32 %v6971, %v6971
        %v7004 = vmul.f32 %v6972, %v6972
        %v7005 = vmul.f32 %v6973, %v6973
        %v7006 = vmul.f32 %v6974, %v6974
        %v7007 = vmul.f32 %v6975, %v6975
        %v7008 = vmul.f32 %v6976, %v6976
        %v7009 = vmul.f32 %v6977, %v6977
        %v7010 = vmul.f32 %v6978, %v6978
        %v7011 = vmul.f32 %v6979, %v6979
        %v7012 = vmul.f32 %v6980, %v6980
        %v7013 = vmul.f32 %v6981, %v6981
        %v7014 = vmul.f32 %v6982, %v6982
        %v7015 = vmul.f32 %v6983, %v6983
        %v7016 = vmul.f32 %v6984, %v6984
        %v7017 = vmul.f32 %v6985, %v6985
        %v7018 = vmul.f32 %v6986, %v6986
        %v7019 = vmul.f32 %v6987, %v6987
        %v7020 = vmul.f32 %v6988, %v6988
        %v7021 = vmul.f32 %v6989, %v6989
        %v7022 = vmul.f32 %v6990, %v6990
        %v7023 = vmul.f32 %v6991, %v6991
        %v7024 = vmul.f32 %v6992, %v6992
        %v7025 = vsel %vm1274, %v6993, 0.0
        %7026 = vadd.xlane.f32.xlu0 %v7025
        %v7027 = vpop.xlane.xlu0 %7026
        %v7028 = vsel %vm1274, %v6994, 0.0
        %7029 = vadd.xlane.f32.xlu0 %v7028
        %v7030 = vpop.xlane.xlu0 %7029
        %v7031 = vsel %vm1274, %v6995, 0.0
        %7032 = vadd.xlane.f32.xlu0 %v7031
        %v7033 = vpop.xlane.xlu0 %7032
        %v7034 = vsel %vm1274, %v6996, 0.0
        %7035 = vadd.xlane.f32.xlu0 %v7034
        %v7036 = vpop.xlane.xlu0 %7035
        %v7037 = vsel %vm1274, %v6997, 0.0
        %7038 = vadd.xlane.f32.xlu0 %v7037
        %v7039 = vpop.xlane.xlu0 %7038
        %v7040 = vsel %vm1274, %v6998, 0.0
        %7041 = vadd.xlane.f32.xlu0 %v7040
        %v7042 = vpop.xlane.xlu0 %7041
        %v7043 = vsel %vm1274, %v6999, 0.0
        %7044 = vadd.xlane.f32.xlu0 %v7043
        %v7045 = vpop.xlane.xlu0 %7044
        %v7046 = vsel %vm1274, %v7000, 0.0
        %7047 = vadd.xlane.f32.xlu0 %v7046
        %v7048 = vpop.xlane.xlu0 %7047
        %v7049 = vsel %vm1274, %v7001, 0.0
        %7050 = vadd.xlane.f32.xlu0 %v7049
        %v7051 = vpop.xlane.xlu0 %7050
        %v7052 = vsel %vm1274, %v7002, 0.0
        %7053 = vadd.xlane.f32.xlu0 %v7052
        %v7054 = vpop.xlane.xlu0 %7053
        %v7055 = vsel %vm1274, %v7003, 0.0
        %7056 = vadd.xlane.f32.xlu0 %v7055
        %v7057 = vpop.xlane.xlu0 %7056
        %v7058 = vsel %vm1274, %v7004, 0.0
        %7059 = vadd.xlane.f32.xlu0 %v7058
        %v7060 = vpop.xlane.xlu0 %7059
        %v7061 = vsel %vm1274, %v7005, 0.0
        %7062 = vadd.xlane.f32.xlu0 %v7061
        %v7063 = vpop.xlane.xlu0 %7062
        %v7064 = vsel %vm1274, %v7006, 0.0
        %7065 = vadd.xlane.f32.xlu0 %v7064
        %v7066 = vpop.xlane.xlu0 %7065
        %v7067 = vsel %vm1274, %v7007, 0.0
        %7068 = vadd.xlane.f32.xlu0 %v7067
        %v7069 = vpop.xlane.xlu0 %7068
        %v7070 = vsel %vm1274, %v7008, 0.0
        %7071 = vadd.xlane.f32.xlu0 %v7070
        %v7072 = vpop.xlane.xlu0 %7071
        %v7073 = vsel %vm1274, %v7009, 0.0
        %7074 = vadd.xlane.f32.xlu0 %v7073
        %v7075 = vpop.xlane.xlu0 %7074
        %v7076 = vsel %vm1274, %v7010, 0.0
        %7077 = vadd.xlane.f32.xlu0 %v7076
        %v7078 = vpop.xlane.xlu0 %7077
        %v7079 = vsel %vm1274, %v7011, 0.0
        %7080 = vadd.xlane.f32.xlu0 %v7079
        %v7081 = vpop.xlane.xlu0 %7080
        %v7082 = vsel %vm1274, %v7012, 0.0
        %7083 = vadd.xlane.f32.xlu0 %v7082
        %v7084 = vpop.xlane.xlu0 %7083
        %v7085 = vsel %vm1274, %v7013, 0.0
        %7086 = vadd.xlane.f32.xlu0 %v7085
        %v7087 = vpop.xlane.xlu0 %7086
        %v7088 = vsel %vm1274, %v7014, 0.0
        %7089 = vadd.xlane.f32.xlu0 %v7088
        %v7090 = vpop.xlane.xlu0 %7089
        %v7091 = vsel %vm1274, %v7015, 0.0
        %7092 = vadd.xlane.f32.xlu0 %v7091
        %v7093 = vpop.xlane.xlu0 %7092
        %v7094 = vsel %vm1274, %v7016, 0.0
        %7095 = vadd.xlane.f32.xlu0 %v7094
        %v7096 = vpop.xlane.xlu0 %7095
        %v7097 = vsel %vm1274, %v7017, 0.0
        %7098 = vadd.xlane.f32.xlu0 %v7097
        %v7099 = vpop.xlane.xlu0 %7098
        %v7100 = vsel %vm1274, %v7018, 0.0
        %7101 = vadd.xlane.f32.xlu0 %v7100
        %v7102 = vpop.xlane.xlu0 %7101
        %v7103 = vsel %vm1274, %v7019, 0.0
        %7104 = vadd.xlane.f32.xlu0 %v7103
        %v7105 = vpop.xlane.xlu0 %7104
        %v7106 = vsel %vm1274, %v7020, 0.0
        %7107 = vadd.xlane.f32.xlu0 %v7106
        %v7108 = vpop.xlane.xlu0 %7107
        %v7109 = vsel %vm1274, %v7021, 0.0
        %7110 = vadd.xlane.f32.xlu0 %v7109
        %v7111 = vpop.xlane.xlu0 %7110
        %v7112 = vsel %vm1274, %v7022, 0.0
        %7113 = vadd.xlane.f32.xlu0 %v7112
        %v7114 = vpop.xlane.xlu0 %7113
        %v7115 = vsel %vm1274, %v7023, 0.0
        %7116 = vadd.xlane.f32.xlu0 %v7115
        %v7117 = vpop.xlane.xlu0 %7116
        %v7118 = vsel %vm1274, %v7024, 0.0
        %7119 = vadd.xlane.f32.xlu0 %v7118
        %v7120 = vpop.xlane.xlu0 %7119
        %v7121 = vmul.f32 %v7027, %v1377
        %v7122 = vmul.f32 %v7030, %v1377
        %v7123 = vmul.f32 %v7033, %v1377
        %v7124 = vmul.f32 %v7036, %v1377
        %v7125 = vmul.f32 %v7039, %v1377
        %v7126 = vmul.f32 %v7042, %v1377
        %v7127 = vmul.f32 %v7045, %v1377
        %v7128 = vmul.f32 %v7048, %v1377
        %v7129 = vmul.f32 %v7051, %v1377
        %v7130 = vmul.f32 %v7054, %v1377
        %v7131 = vmul.f32 %v7057, %v1377
        %v7132 = vmul.f32 %v7060, %v1377
        %v7133 = vmul.f32 %v7063, %v1377
        %v7134 = vmul.f32 %v7066, %v1377
        %v7135 = vmul.f32 %v7069, %v1377
        %v7136 = vmul.f32 %v7072, %v1377
        %v7137 = vmul.f32 %v7075, %v1377
        %v7138 = vmul.f32 %v7078, %v1377
        %v7139 = vmul.f32 %v7081, %v1377
        %v7140 = vmul.f32 %v7084, %v1377
        %v7141 = vmul.f32 %v7087, %v1377
        %v7142 = vmul.f32 %v7090, %v1377
        %v7143 = vmul.f32 %v7093, %v1377
        %v7144 = vmul.f32 %v7096, %v1377
        %v7145 = vmul.f32 %v7099, %v1377
        %v7146 = vmul.f32 %v7102, %v1377
        %v7147 = vmul.f32 %v7105, %v1377
        %v7148 = vmul.f32 %v7108, %v1377
        %v7149 = vmul.f32 %v7111, %v1377
        %v7150 = vmul.f32 %v7114, %v1377
        %v7151 = vmul.f32 %v7117, %v1377
        %v7152 = vmul.f32 %v7120, %v1377
        %v7153 = vadd.f32 %v7121, 1e-05
        %v7154 = vadd.f32 %v7122, 1e-05
        %v7155 = vadd.f32 %v7123, 1e-05
        %v7156 = vadd.f32 %v7124, 1e-05
        %v7157 = vadd.f32 %v7125, 1e-05
        %v7158 = vadd.f32 %v7126, 1e-05
        %v7159 = vadd.f32 %v7127, 1e-05
        %v7160 = vadd.f32 %v7128, 1e-05
        %v7161 = vadd.f32 %v7129, 1e-05
        %v7162 = vadd.f32 %v7130, 1e-05
        %v7163 = vadd.f32 %v7131, 1e-05
        %v7164 = vadd.f32 %v7132, 1e-05
        %v7165 = vadd.f32 %v7133, 1e-05
        %v7166 = vadd.f32 %v7134, 1e-05
        %v7167 = vadd.f32 %v7135, 1e-05
        %v7168 = vadd.f32 %v7136, 1e-05
        %v7169 = vadd.f32 %v7137, 1e-05
        %v7170 = vadd.f32 %v7138, 1e-05
        %v7171 = vadd.f32 %v7139, 1e-05
        %v7172 = vadd.f32 %v7140, 1e-05
        %v7173 = vadd.f32 %v7141, 1e-05
        %v7174 = vadd.f32 %v7142, 1e-05
        %v7175 = vadd.f32 %v7143, 1e-05
        %v7176 = vadd.f32 %v7144, 1e-05
        %v7177 = vadd.f32 %v7145, 1e-05
        %v7178 = vadd.f32 %v7146, 1e-05
        %v7179 = vadd.f32 %v7147, 1e-05
        %v7180 = vadd.f32 %v7148, 1e-05
        %v7181 = vadd.f32 %v7149, 1e-05
        %v7182 = vadd.f32 %v7150, 1e-05
        %v7183 = vadd.f32 %v7151, 1e-05
        %v7184 = vadd.f32 %v7152, 1e-05
        %v7185 = vrsqrt.pop %v7153
        %v7186 = vmul.f32 %v7185, %v7153
        %v7187 = vmul.f32 %v7186, %v7185
        %v7188 = vmul.f32 0.5, %v7187
        %v7189 = vsub.f32 1.5, %v7188
        %v7190 = vmul.f32 %v7185, %v7189
        %vm7191 = vweird.f32 %v7153
        %vm7192 = vweird.f32 %v7185
        %vm7193 = vmor %vm7191, %vm7192
        %v7194 = vsel %vm7193, %v7185, %v7190
        %v7195 = vrsqrt.pop %v7154
        %v7196 = vmul.f32 %v7195, %v7154
        %v7197 = vmul.f32 %v7196, %v7195
        %v7198 = vmul.f32 0.5, %v7197
        %v7199 = vsub.f32 1.5, %v7198
        %v7200 = vmul.f32 %v7195, %v7199
        %vm7201 = vweird.f32 %v7154
        %vm7202 = vweird.f32 %v7195
        %vm7203 = vmor %vm7201, %vm7202
        %v7204 = vsel %vm7203, %v7195, %v7200
        %v7205 = vrsqrt.pop %v7155
        %v7206 = vmul.f32 %v7205, %v7155
        %v7207 = vmul.f32 %v7206, %v7205
        %v7208 = vmul.f32 0.5, %v7207
        %v7209 = vsub.f32 1.5, %v7208
        %v7210 = vmul.f32 %v7205, %v7209
        %vm7211 = vweird.f32 %v7155
        %vm7212 = vweird.f32 %v7205
        %vm7213 = vmor %vm7211, %vm7212
        %v7214 = vsel %vm7213, %v7205, %v7210
        %v7215 = vrsqrt.pop %v7156
        %v7216 = vmul.f32 %v7215, %v7156
        %v7217 = vmul.f32 %v7216, %v7215
        %v7218 = vmul.f32 0.5, %v7217
        %v7219 = vsub.f32 1.5, %v7218
        %v7220 = vmul.f32 %v7215, %v7219
        %vm7221 = vweird.f32 %v7156
        %vm7222 = vweird.f32 %v7215
        %vm7223 = vmor %vm7221, %vm7222
        %v7224 = vsel %vm7223, %v7215, %v7220
        %v7225 = vrsqrt.pop %v7157
        %v7226 = vmul.f32 %v7225, %v7157
        %v7227 = vmul.f32 %v7226, %v7225
        %v7228 = vmul.f32 0.5, %v7227
        %v7229 = vsub.f32 1.5, %v7228
        %v7230 = vmul.f32 %v7225, %v7229
        %vm7231 = vweird.f32 %v7157
        %vm7232 = vweird.f32 %v7225
        %vm7233 = vmor %vm7231, %vm7232
        %v7234 = vsel %vm7233, %v7225, %v7230
        %v7235 = vrsqrt.pop %v7158
        %v7236 = vmul.f32 %v7235, %v7158
        %v7237 = vmul.f32 %v7236, %v7235
        %v7238 = vmul.f32 0.5, %v7237
        %v7239 = vsub.f32 1.5, %v7238
        %v7240 = vmul.f32 %v7235, %v7239
        %vm7241 = vweird.f32 %v7158
        %vm7242 = vweird.f32 %v7235
        %vm7243 = vmor %vm7241, %vm7242
        %v7244 = vsel %vm7243, %v7235, %v7240
        %v7245 = vrsqrt.pop %v7159
        %v7246 = vmul.f32 %v7245, %v7159
        %v7247 = vmul.f32 %v7246, %v7245
        %v7248 = vmul.f32 0.5, %v7247
        %v7249 = vsub.f32 1.5, %v7248
        %v7250 = vmul.f32 %v7245, %v7249
        %vm7251 = vweird.f32 %v7159
        %vm7252 = vweird.f32 %v7245
        %vm7253 = vmor %vm7251, %vm7252
        %v7254 = vsel %vm7253, %v7245, %v7250
        %v7255 = vrsqrt.pop %v7160
        %v7256 = vmul.f32 %v7255, %v7160
        %v7257 = vmul.f32 %v7256, %v7255
        %v7258 = vmul.f32 0.5, %v7257
        %v7259 = vsub.f32 1.5, %v7258
        %v7260 = vmul.f32 %v7255, %v7259
        %vm7261 = vweird.f32 %v7160
        %vm7262 = vweird.f32 %v7255
        %vm7263 = vmor %vm7261, %vm7262
        %v7264 = vsel %vm7263, %v7255, %v7260
        %v7265 = vrsqrt.pop %v7161
        %v7266 = vmul.f32 %v7265, %v7161
        %v7267 = vmul.f32 %v7266, %v7265
        %v7268 = vmul.f32 0.5, %v7267
        %v7269 = vsub.f32 1.5, %v7268
        %v7270 = vmul.f32 %v7265, %v7269
        %vm7271 = vweird.f32 %v7161
        %vm7272 = vweird.f32 %v7265
        %vm7273 = vmor %vm7271, %vm7272
        %v7274 = vsel %vm7273, %v7265, %v7270
        %v7275 = vrsqrt.pop %v7162
        %v7276 = vmul.f32 %v7275, %v7162
        %v7277 = vmul.f32 %v7276, %v7275
        %v7278 = vmul.f32 0.5, %v7277
        %v7279 = vsub.f32 1.5, %v7278
        %v7280 = vmul.f32 %v7275, %v7279
        %vm7281 = vweird.f32 %v7162
        %vm7282 = vweird.f32 %v7275
        %vm7283 = vmor %vm7281, %vm7282
        %v7284 = vsel %vm7283, %v7275, %v7280
        %v7285 = vrsqrt.pop %v7163
        %v7286 = vmul.f32 %v7285, %v7163
        %v7287 = vmul.f32 %v7286, %v7285
        %v7288 = vmul.f32 0.5, %v7287
        %v7289 = vsub.f32 1.5, %v7288
        %v7290 = vmul.f32 %v7285, %v7289
        %vm7291 = vweird.f32 %v7163
        %vm7292 = vweird.f32 %v7285
        %vm7293 = vmor %vm7291, %vm7292
        %v7294 = vsel %vm7293, %v7285, %v7290
        %v7295 = vrsqrt.pop %v7164
        %v7296 = vmul.f32 %v7295, %v7164
        %v7297 = vmul.f32 %v7296, %v7295
        %v7298 = vmul.f32 0.5, %v7297
        %v7299 = vsub.f32 1.5, %v7298
        %v7300 = vmul.f32 %v7295, %v7299
        %vm7301 = vweird.f32 %v7164
        %vm7302 = vweird.f32 %v7295
        %vm7303 = vmor %vm7301, %vm7302
        %v7304 = vsel %vm7303, %v7295, %v7300
        %v7305 = vrsqrt.pop %v7165
        %v7306 = vmul.f32 %v7305, %v7165
        %v7307 = vmul.f32 %v7306, %v7305
        %v7308 = vmul.f32 0.5, %v7307
        %v7309 = vsub.f32 1.5, %v7308
        %v7310 = vmul.f32 %v7305, %v7309
        %vm7311 = vweird.f32 %v7165
        %vm7312 = vweird.f32 %v7305
        %vm7313 = vmor %vm7311, %vm7312
        %v7314 = vsel %vm7313, %v7305, %v7310
        %v7315 = vrsqrt.pop %v7166
        %v7316 = vmul.f32 %v7315, %v7166
        %v7317 = vmul.f32 %v7316, %v7315
        %v7318 = vmul.f32 0.5, %v7317
        %v7319 = vsub.f32 1.5, %v7318
        %v7320 = vmul.f32 %v7315, %v7319
        %vm7321 = vweird.f32 %v7166
        %vm7322 = vweird.f32 %v7315
        %vm7323 = vmor %vm7321, %vm7322
        %v7324 = vsel %vm7323, %v7315, %v7320
        %v7325 = vrsqrt.pop %v7167
        %v7326 = vmul.f32 %v7325, %v7167
        %v7327 = vmul.f32 %v7326, %v7325
        %v7328 = vmul.f32 0.5, %v7327
        %v7329 = vsub.f32 1.5, %v7328
        %v7330 = vmul.f32 %v7325, %v7329
        %vm7331 = vweird.f32 %v7167
        %vm7332 = vweird.f32 %v7325
        %vm7333 = vmor %vm7331, %vm7332
        %v7334 = vsel %vm7333, %v7325, %v7330
        %v7335 = vrsqrt.pop %v7168
        %v7336 = vmul.f32 %v7335, %v7168
        %v7337 = vmul.f32 %v7336, %v7335
        %v7338 = vmul.f32 0.5, %v7337
        %v7339 = vsub.f32 1.5, %v7338
        %v7340 = vmul.f32 %v7335, %v7339
        %vm7341 = vweird.f32 %v7168
        %vm7342 = vweird.f32 %v7335
        %vm7343 = vmor %vm7341, %vm7342
        %v7344 = vsel %vm7343, %v7335, %v7340
        %v7345 = vrsqrt.pop %v7169
        %v7346 = vmul.f32 %v7345, %v7169
        %v7347 = vmul.f32 %v7346, %v7345
        %v7348 = vmul.f32 0.5, %v7347
        %v7349 = vsub.f32 1.5, %v7348
        %v7350 = vmul.f32 %v7345, %v7349
        %vm7351 = vweird.f32 %v7169
        %vm7352 = vweird.f32 %v7345
        %vm7353 = vmor %vm7351, %vm7352
        %v7354 = vsel %vm7353, %v7345, %v7350
        %v7355 = vrsqrt.pop %v7170
        %v7356 = vmul.f32 %v7355, %v7170
        %v7357 = vmul.f32 %v7356, %v7355
        %v7358 = vmul.f32 0.5, %v7357
        %v7359 = vsub.f32 1.5, %v7358
        %v7360 = vmul.f32 %v7355, %v7359
        %vm7361 = vweird.f32 %v7170
        %vm7362 = vweird.f32 %v7355
        %vm7363 = vmor %vm7361, %vm7362
        %v7364 = vsel %vm7363, %v7355, %v7360
        %v7365 = vrsqrt.pop %v7171
        %v7366 = vmul.f32 %v7365, %v7171
        %v7367 = vmul.f32 %v7366, %v7365
        %v7368 = vmul.f32 0.5, %v7367
        %v7369 = vsub.f32 1.5, %v7368
        %v7370 = vmul.f32 %v7365, %v7369
        %vm7371 = vweird.f32 %v7171
        %vm7372 = vweird.f32 %v7365
        %vm7373 = vmor %vm7371, %vm7372
        %v7374 = vsel %vm7373, %v7365, %v7370
        %v7375 = vrsqrt.pop %v7172
        %v7376 = vmul.f32 %v7375, %v7172
        %v7377 = vmul.f32 %v7376, %v7375
        %v7378 = vmul.f32 0.5, %v7377
        %v7379 = vsub.f32 1.5, %v7378
        %v7380 = vmul.f32 %v7375, %v7379
        %vm7381 = vweird.f32 %v7172
        %vm7382 = vweird.f32 %v7375
        %vm7383 = vmor %vm7381, %vm7382
        %v7384 = vsel %vm7383, %v7375, %v7380
        %v7385 = vrsqrt.pop %v7173
        %v7386 = vmul.f32 %v7385, %v7173
        %v7387 = vmul.f32 %v7386, %v7385
        %v7388 = vmul.f32 0.5, %v7387
        %v7389 = vsub.f32 1.5, %v7388
        %v7390 = vmul.f32 %v7385, %v7389
        %vm7391 = vweird.f32 %v7173
        %vm7392 = vweird.f32 %v7385
        %vm7393 = vmor %vm7391, %vm7392
        %v7394 = vsel %vm7393, %v7385, %v7390
        %v7395 = vrsqrt.pop %v7174
        %v7396 = vmul.f32 %v7395, %v7174
        %v7397 = vmul.f32 %v7396, %v7395
        %v7398 = vmul.f32 0.5, %v7397
        %v7399 = vsub.f32 1.5, %v7398
        %v7400 = vmul.f32 %v7395, %v7399
        %vm7401 = vweird.f32 %v7174
        %vm7402 = vweird.f32 %v7395
        %vm7403 = vmor %vm7401, %vm7402
        %v7404 = vsel %vm7403, %v7395, %v7400
        %v7405 = vrsqrt.pop %v7175
        %v7406 = vmul.f32 %v7405, %v7175
        %v7407 = vmul.f32 %v7406, %v7405
        %v7408 = vmul.f32 0.5, %v7407
        %v7409 = vsub.f32 1.5, %v7408
        %v7410 = vmul.f32 %v7405, %v7409
        %vm7411 = vweird.f32 %v7175
        %vm7412 = vweird.f32 %v7405
        %vm7413 = vmor %vm7411, %vm7412
        %v7414 = vsel %vm7413, %v7405, %v7410
        %v7415 = vrsqrt.pop %v7176
        %v7416 = vmul.f32 %v7415, %v7176
        %v7417 = vmul.f32 %v7416, %v7415
        %v7418 = vmul.f32 0.5, %v7417
        %v7419 = vsub.f32 1.5, %v7418
        %v7420 = vmul.f32 %v7415, %v7419
        %vm7421 = vweird.f32 %v7176
        %vm7422 = vweird.f32 %v7415
        %vm7423 = vmor %vm7421, %vm7422
        %v7424 = vsel %vm7423, %v7415, %v7420
        %v7425 = vrsqrt.pop %v7177
        %v7426 = vmul.f32 %v7425, %v7177
        %v7427 = vmul.f32 %v7426, %v7425
        %v7428 = vmul.f32 0.5, %v7427
        %v7429 = vsub.f32 1.5, %v7428
        %v7430 = vmul.f32 %v7425, %v7429
        %vm7431 = vweird.f32 %v7177
        %vm7432 = vweird.f32 %v7425
        %vm7433 = vmor %vm7431, %vm7432
        %v7434 = vsel %vm7433, %v7425, %v7430
        %v7435 = vrsqrt.pop %v7178
        %v7436 = vmul.f32 %v7435, %v7178
        %v7437 = vmul.f32 %v7436, %v7435
        %v7438 = vmul.f32 0.5, %v7437
        %v7439 = vsub.f32 1.5, %v7438
        %v7440 = vmul.f32 %v7435, %v7439
        %vm7441 = vweird.f32 %v7178
        %vm7442 = vweird.f32 %v7435
        %vm7443 = vmor %vm7441, %vm7442
        %v7444 = vsel %vm7443, %v7435, %v7440
        %v7445 = vrsqrt.pop %v7179
        %v7446 = vmul.f32 %v7445, %v7179
        %v7447 = vmul.f32 %v7446, %v7445
        %v7448 = vmul.f32 0.5, %v7447
        %v7449 = vsub.f32 1.5, %v7448
        %v7450 = vmul.f32 %v7445, %v7449
        %vm7451 = vweird.f32 %v7179
        %vm7452 = vweird.f32 %v7445
        %vm7453 = vmor %vm7451, %vm7452
        %v7454 = vsel %vm7453, %v7445, %v7450
        %v7455 = vrsqrt.pop %v7180
        %v7456 = vmul.f32 %v7455, %v7180
        %v7457 = vmul.f32 %v7456, %v7455
        %v7458 = vmul.f32 0.5, %v7457
        %v7459 = vsub.f32 1.5, %v7458
        %v7460 = vmul.f32 %v7455, %v7459
        %vm7461 = vweird.f32 %v7180
        %vm7462 = vweird.f32 %v7455
        %vm7463 = vmor %vm7461, %vm7462
        %v7464 = vsel %vm7463, %v7455, %v7460
        %v7465 = vrsqrt.pop %v7181
        %v7466 = vmul.f32 %v7465, %v7181
        %v7467 = vmul.f32 %v7466, %v7465
        %v7468 = vmul.f32 0.5, %v7467
        %v7469 = vsub.f32 1.5, %v7468
        %v7470 = vmul.f32 %v7465, %v7469
        %vm7471 = vweird.f32 %v7181
        %vm7472 = vweird.f32 %v7465
        %vm7473 = vmor %vm7471, %vm7472
        %v7474 = vsel %vm7473, %v7465, %v7470
        %v7475 = vrsqrt.pop %v7182
        %v7476 = vmul.f32 %v7475, %v7182
        %v7477 = vmul.f32 %v7476, %v7475
        %v7478 = vmul.f32 0.5, %v7477
        %v7479 = vsub.f32 1.5, %v7478
        %v7480 = vmul.f32 %v7475, %v7479
        %vm7481 = vweird.f32 %v7182
        %vm7482 = vweird.f32 %v7475
        %vm7483 = vmor %vm7481, %vm7482
        %v7484 = vsel %vm7483, %v7475, %v7480
        %v7485 = vrsqrt.pop %v7183
        %v7486 = vmul.f32 %v7485, %v7183
        %v7487 = vmul.f32 %v7486, %v7485
        %v7488 = vmul.f32 0.5, %v7487
        %v7489 = vsub.f32 1.5, %v7488
        %v7490 = vmul.f32 %v7485, %v7489
        %vm7491 = vweird.f32 %v7183
        %vm7492 = vweird.f32 %v7485
        %vm7493 = vmor %vm7491, %vm7492
        %v7494 = vsel %vm7493, %v7485, %v7490
        %v7495 = vrsqrt.pop %v7184
        %v7496 = vmul.f32 %v7495, %v7184
        %v7497 = vmul.f32 %v7496, %v7495
        %v7498 = vmul.f32 0.5, %v7497
        %v7499 = vsub.f32 1.5, %v7498
        %v7500 = vmul.f32 %v7495, %v7499
        %vm7501 = vweird.f32 %v7184
        %vm7502 = vweird.f32 %v7495
        %vm7503 = vmor %vm7501, %vm7502
        %v7504 = vsel %vm7503, %v7495, %v7500
        %v7505 = vmul.f32 %v6961, %v7194
        %v7506 = vmul.f32 %v6962, %v7204
        %v7507 = vmul.f32 %v6963, %v7214
        %v7508 = vmul.f32 %v6964, %v7224
        %v7509 = vmul.f32 %v6965, %v7234
        %v7510 = vmul.f32 %v6966, %v7244
        %v7511 = vmul.f32 %v6967, %v7254
        %v7512 = vmul.f32 %v6968, %v7264
        %v7513 = vmul.f32 %v6969, %v7274
        %v7514 = vmul.f32 %v6970, %v7284
        %v7515 = vmul.f32 %v6971, %v7294
        %v7516 = vmul.f32 %v6972, %v7304
        %v7517 = vmul.f32 %v6973, %v7314
        %v7518 = vmul.f32 %v6974, %v7324
        %v7519 = vmul.f32 %v6975, %v7334
        %v7520 = vmul.f32 %v6976, %v7344
        %v7521 = vmul.f32 %v6977, %v7354
        %v7522 = vmul.f32 %v6978, %v7364
        %v7523 = vmul.f32 %v6979, %v7374
        %v7524 = vmul.f32 %v6980, %v7384
        %v7525 = vmul.f32 %v6981, %v7394
        %v7526 = vmul.f32 %v6982, %v7404
        %v7527 = vmul.f32 %v6983, %v7414
        %v7528 = vmul.f32 %v6984, %v7424
        %v7529 = vmul.f32 %v6985, %v7434
        %v7530 = vmul.f32 %v6986, %v7444
        %v7531 = vmul.f32 %v6987, %v7454
        %v7532 = vmul.f32 %v6988, %v7464
        %v7533 = vmul.f32 %v6989, %v7474
        %v7534 = vmul.f32 %v6990, %v7484
        %v7535 = vmul.f32 %v6991, %v7494
        %v7536 = vmul.f32 %v6992, %v7504
        %v7538 = vperm.slane %v6831, 0
        %v7540 = vmul.f32 %v7505, %v7538
        %v7541 = vmul.f32 %v7506, %v7538
        %v7542 = vmul.f32 %v7507, %v7538
        %v7543 = vmul.f32 %v7508, %v7538
        %v7544 = vmul.f32 %v7509, %v7538
        %v7545 = vmul.f32 %v7510, %v7538
        %v7546 = vmul.f32 %v7511, %v7538
        %v7547 = vmul.f32 %v7512, %v7538
        %v7548 = vmul.f32 %v7513, %v7538
        %v7549 = vmul.f32 %v7514, %v7538
        %v7550 = vmul.f32 %v7515, %v7538
        %v7551 = vmul.f32 %v7516, %v7538
        %v7552 = vmul.f32 %v7517, %v7538
        %v7553 = vmul.f32 %v7518, %v7538
        %v7554 = vmul.f32 %v7519, %v7538
        %v7555 = vmul.f32 %v7520, %v7538
        %v7556 = vmul.f32 %v7521, %v7538
        %v7557 = vmul.f32 %v7522, %v7538
        %v7558 = vmul.f32 %v7523, %v7538
        %v7559 = vmul.f32 %v7524, %v7538
        %v7560 = vmul.f32 %v7525, %v7538
        %v7561 = vmul.f32 %v7526, %v7538
        %v7562 = vmul.f32 %v7527, %v7538
        %v7563 = vmul.f32 %v7528, %v7538
        %v7564 = vmul.f32 %v7529, %v7538
        %v7565 = vmul.f32 %v7530, %v7538
        %v7566 = vmul.f32 %v7531, %v7538
        %v7567 = vmul.f32 %v7532, %v7538
        %v7568 = vmul.f32 %v7533, %v7538
        %v7569 = vmul.f32 %v7534, %v7538
        %v7570 = vmul.f32 %v7535, %v7538
        %v7571 = vmul.f32 %v7536, %v7538
        %v7573 = vperm.slane %v6832, 0
        %v7575 = vadd.f32 %v7540, %v7573
        %v7576 = vadd.f32 %v7541, %v7573
        %v7577 = vadd.f32 %v7542, %v7573
        %v7578 = vadd.f32 %v7543, %v7573
        %v7579 = vadd.f32 %v7544, %v7573
        %v7580 = vadd.f32 %v7545, %v7573
        %v7581 = vadd.f32 %v7546, %v7573
        %v7582 = vadd.f32 %v7547, %v7573
        %v7583 = vadd.f32 %v7548, %v7573
        %v7584 = vadd.f32 %v7549, %v7573
        %v7585 = vadd.f32 %v7550, %v7573
        %v7586 = vadd.f32 %v7551, %v7573
        %v7587 = vadd.f32 %v7552, %v7573
        %v7588 = vadd.f32 %v7553, %v7573
        %v7589 = vadd.f32 %v7554, %v7573
        %v7590 = vadd.f32 %v7555, %v7573
        %v7591 = vadd.f32 %v7556, %v7573
        %v7592 = vadd.f32 %v7557, %v7573
        %v7593 = vadd.f32 %v7558, %v7573
        %v7594 = vadd.f32 %v7559, %v7573
        %v7595 = vadd.f32 %v7560, %v7573
        %v7596 = vadd.f32 %v7561, %v7573
        %v7597 = vadd.f32 %v7562, %v7573
        %v7598 = vadd.f32 %v7563, %v7573
        %v7599 = vadd.f32 %v7564, %v7573
        %v7600 = vadd.f32 %v7565, %v7573
        %v7601 = vadd.f32 %v7566, %v7573
        %v7602 = vadd.f32 %v7567, %v7573
        %v7603 = vadd.f32 %v7568, %v7573
        %v7604 = vadd.f32 %v7569, %v7573
        %v7605 = vadd.f32 %v7570, %v7573
        %v7606 = vadd.f32 %v7571, %v7573
        %v7607 = vpack.c.bf16 %v7576, %v7575
        %v7608 = vpack.c.bf16 %v7578, %v7577
        %v7609 = vpack.c.bf16 %v7580, %v7579
        %v7610 = vpack.c.bf16 %v7582, %v7581
        %v7611 = vpack.c.bf16 %v7584, %v7583
        %v7612 = vpack.c.bf16 %v7586, %v7585
        %v7613 = vpack.c.bf16 %v7588, %v7587
        %v7614 = vpack.c.bf16 %v7590, %v7589
        %v7615 = vpack.c.bf16 %v7592, %v7591
        %v7616 = vpack.c.bf16 %v7594, %v7593
        %v7617 = vpack.c.bf16 %v7596, %v7595
        %v7618 = vpack.c.bf16 %v7598, %v7597
        %v7619 = vpack.c.bf16 %v7600, %v7599
        %v7620 = vpack.c.bf16 %v7602, %v7601
        %v7621 = vpack.c.bf16 %v7604, %v7603
        %v7622 = vpack.c.bf16 %v7606, %v7605
        %v7623 = vld [vmem:[%s1163] sm:$0xf]
        %v7624 = vld [vmem:[%s1163 + $0x4] sm:$0xf]
        %v7625 = vld [vmem:[%s1163 + $0x8] sm:$0xf]
        %v7626 = vld [vmem:[%s1163 + $0xc] sm:$0xf]
        %v7627 = vld [vmem:[%s974] sm:$0x1]
        %v7629 = vperm.slane %v7627, 0
        %v7635 = vunpack.c.l.b16 %v7623
        %v7636 = vunpack.c.l.b16 %v7624
        %v7637 = vunpack.c.l.b16 %v7625
        %v7638 = vunpack.c.l.b16 %v7626
        %v7639 = vpack.c.b16 %v7636, %v7635
        %v7640 = vpack.c.b16 %v7638, %v7637
        %v7644 = vsel %vm1274, %v7607, 0
        %v7647 = vsel %vm1274, %v7608, 0
        %v7650 = vsel %vm1274, %v7609, 0
        %v7653 = vsel %vm1274, %v7610, 0
        %v7656 = vsel %vm1274, %v7611, 0
        %v7659 = vsel %vm1274, %v7612, 0
        %v7662 = vsel %vm1274, %v7613, 0
        %v7665 = vsel %vm1274, %v7614, 0
        %v7668 = vsel %vm1274, %v7615, 0
        %v7671 = vsel %vm1274, %v7616, 0
        %v7674 = vsel %vm1274, %v7617, 0
        %v7677 = vsel %vm1274, %v7618, 0
        %v7680 = vsel %vm1274, %v7619, 0
        %v7683 = vsel %vm1274, %v7620, 0
        %v7686 = vsel %vm1274, %v7621, 0
        %v7689 = vsel %vm1274, %v7622, 0
        %7691 = vmatpush.bf16.msra.mxu0 0
        %7692 = vmatpush.bf16.msra.mxu0 0
        %7693 = vmatpush.bf16.msra.mxu0 0
        %7694 = vmatpush.bf16.msra.mxu0 0
        %7695 = vmatpush.bf16.msra.mxu0 0
        %7696 = vmatpush.bf16.msra.mxu0 0
        %7697 = vmatpush.bf16.msra.mxu0 %v7640
        %7698 = vmatpush.bf16.msra.mxu0 %v7639
        %7699 = vmatmul.bf16.gmra.mxu0 %v7644
        %v7700 = vpop.f32.mrf.mxu0
        %v7701 = vadd.f32 %v7629, %v7700
        %v7702 = vpop.f32.mrf.mxu0
        %v7703 = vadd.f32 %v7629, %v7702
        %7704 = vmatmul.bf16.gmra.mxu0 %v7647
        %v7705 = vpop.f32.mrf.mxu0
        %v7706 = vadd.f32 %v7629, %v7705
        %v7707 = vpop.f32.mrf.mxu0
        %v7708 = vadd.f32 %v7629, %v7707
        %7709 = vmatmul.bf16.gmra.mxu0 %v7650
        %v7710 = vpop.f32.mrf.mxu0
        %v7711 = vadd.f32 %v7629, %v7710
        %v7712 = vpop.f32.mrf.mxu0
        %v7713 = vadd.f32 %v7629, %v7712
        %7714 = vmatmul.bf16.gmra.mxu0 %v7653
        %v7715 = vpop.f32.mrf.mxu0
        %v7716 = vadd.f32 %v7629, %v7715
        %v7717 = vpop.f32.mrf.mxu0
        %v7718 = vadd.f32 %v7629, %v7717
        %7719 = vmatmul.bf16.gmra.mxu0 %v7656
        %v7720 = vpop.f32.mrf.mxu0
        %v7721 = vadd.f32 %v7629, %v7720
        %v7722 = vpop.f32.mrf.mxu0
        %v7723 = vadd.f32 %v7629, %v7722
        %7724 = vmatmul.bf16.gmra.mxu0 %v7659
        %v7725 = vpop.f32.mrf.mxu0
        %v7726 = vadd.f32 %v7629, %v7725
        %v7727 = vpop.f32.mrf.mxu0
        %v7728 = vadd.f32 %v7629, %v7727
        %7729 = vmatmul.bf16.gmra.mxu0 %v7662
        %v7730 = vpop.f32.mrf.mxu0
        %v7731 = vadd.f32 %v7629, %v7730
        %v7732 = vpop.f32.mrf.mxu0
        %v7733 = vadd.f32 %v7629, %v7732
        %7734 = vmatmul.bf16.gmra.mxu0 %v7665
        %v7735 = vpop.f32.mrf.mxu0
        %v7736 = vadd.f32 %v7629, %v7735
        %v7737 = vpop.f32.mrf.mxu0
        %v7738 = vadd.f32 %v7629, %v7737
        %7739 = vmatmul.bf16.gmra.mxu0 %v7668
        %v7740 = vpop.f32.mrf.mxu0
        %v7741 = vadd.f32 %v7629, %v7740
        %v7742 = vpop.f32.mrf.mxu0
        %v7743 = vadd.f32 %v7629, %v7742
        %7744 = vmatmul.bf16.gmra.mxu0 %v7671
        %v7745 = vpop.f32.mrf.mxu0
        %v7746 = vadd.f32 %v7629, %v7745
        %v7747 = vpop.f32.mrf.mxu0
        %v7748 = vadd.f32 %v7629, %v7747
        %7749 = vmatmul.bf16.gmra.mxu0 %v7674
        %v7750 = vpop.f32.mrf.mxu0
        %v7751 = vadd.f32 %v7629, %v7750
        %v7752 = vpop.f32.mrf.mxu0
        %v7753 = vadd.f32 %v7629, %v7752
        %7754 = vmatmul.bf16.gmra.mxu0 %v7677
        %v7755 = vpop.f32.mrf.mxu0
        %v7756 = vadd.f32 %v7629, %v7755
        %v7757 = vpop.f32.mrf.mxu0
        %v7758 = vadd.f32 %v7629, %v7757
        %7759 = vmatmul.bf16.gmra.mxu0 %v7680
        %v7760 = vpop.f32.mrf.mxu0
        %v7761 = vadd.f32 %v7629, %v7760
        %v7762 = vpop.f32.mrf.mxu0
        %v7763 = vadd.f32 %v7629, %v7762
        %7764 = vmatmul.bf16.gmra.mxu0 %v7683
        %v7765 = vpop.f32.mrf.mxu0
        %v7766 = vadd.f32 %v7629, %v7765
        %v7767 = vpop.f32.mrf.mxu0
        %v7768 = vadd.f32 %v7629, %v7767
        %7769 = vmatmul.bf16.gmra.mxu0 %v7686
        %v7770 = vpop.f32.mrf.mxu0
        %v7771 = vadd.f32 %v7629, %v7770
        %v7772 = vpop.f32.mrf.mxu0
        %v7773 = vadd.f32 %v7629, %v7772
        %7774 = vmatmul.bf16.gmra.mxu0 %v7689
        %v7775 = vpop.f32.mrf.mxu0
        %v7776 = vadd.f32 %v7629, %v7775
        %v7777 = vpop.f32.mrf.mxu0
        %v7778 = vadd.f32 %v7629, %v7777
        %7779 = vdwg.mxu0
        %v7780 = vmul.f32 %v7701, 0.5
        %v7781 = vmul.f32 %v7703, 0.5
        %v7782 = vmul.f32 %v7706, 0.5
        %v7783 = vmul.f32 %v7708, 0.5
        %v7784 = vmul.f32 %v7711, 0.5
        %v7785 = vmul.f32 %v7713, 0.5
        %v7786 = vmul.f32 %v7716, 0.5
        %v7787 = vmul.f32 %v7718, 0.5
        %v7788 = vmul.f32 %v7721, 0.5
        %v7789 = vmul.f32 %v7723, 0.5
        %v7790 = vmul.f32 %v7726, 0.5
        %v7791 = vmul.f32 %v7728, 0.5
        %v7792 = vmul.f32 %v7731, 0.5
        %v7793 = vmul.f32 %v7733, 0.5
        %v7794 = vmul.f32 %v7736, 0.5
        %v7795 = vmul.f32 %v7738, 0.5
        %v7796 = vmul.f32 %v7741, 0.5
        %v7797 = vmul.f32 %v7743, 0.5
        %v7798 = vmul.f32 %v7746, 0.5
        %v7799 = vmul.f32 %v7748, 0.5
        %v7800 = vmul.f32 %v7751, 0.5
        %v7801 = vmul.f32 %v7753, 0.5
        %v7802 = vmul.f32 %v7756, 0.5
        %v7803 = vmul.f32 %v7758, 0.5
        %v7804 = vmul.f32 %v7761, 0.5
        %v7805 = vmul.f32 %v7763, 0.5
        %v7806 = vmul.f32 %v7766, 0.5
        %v7807 = vmul.f32 %v7768, 0.5
        %v7808 = vmul.f32 %v7771, 0.5
        %v7809 = vmul.f32 %v7773, 0.5
        %v7810 = vmul.f32 %v7776, 0.5
        %v7811 = vmul.f32 %v7778, 0.5
        %v7812 = vmul.f32 %v7701, 0.044715
        %v7813 = vmul.f32 %v7703, 0.044715
        %v7814 = vmul.f32 %v7706, 0.044715
        %v7815 = vmul.f32 %v7708, 0.044715
        %v7816 = vmul.f32 %v7711, 0.044715
        %v7817 = vmul.f32 %v7713, 0.044715
        %v7818 = vmul.f32 %v7716, 0.044715
        %v7819 = vmul.f32 %v7718, 0.044715
        %v7820 = vmul.f32 %v7721, 0.044715
        %v7821 = vmul.f32 %v7723, 0.044715
        %v7822 = vmul.f32 %v7726, 0.044715
        %v7823 = vmul.f32 %v7728, 0.044715
        %v7824 = vmul.f32 %v7731, 0.044715
        %v7825 = vmul.f32 %v7733, 0.044715
        %v7826 = vmul.f32 %v7736, 0.044715
        %v7827 = vmul.f32 %v7738, 0.044715
        %v7828 = vmul.f32 %v7741, 0.044715
        %v7829 = vmul.f32 %v7743, 0.044715
        %v7830 = vmul.f32 %v7746, 0.044715
        %v7831 = vmul.f32 %v7748, 0.044715
        %v7832 = vmul.f32 %v7751, 0.044715
        %v7833 = vmul.f32 %v7753, 0.044715
        %v7834 = vmul.f32 %v7756, 0.044715
        %v7835 = vmul.f32 %v7758, 0.044715
        %v7836 = vmul.f32 %v7761, 0.044715
        %v7837 = vmul.f32 %v7763, 0.044715
        %v7838 = vmul.f32 %v7766, 0.044715
        %v7839 = vmul.f32 %v7768, 0.044715
        %v7840 = vmul.f32 %v7771, 0.044715
        %v7841 = vmul.f32 %v7773, 0.044715
        %v7842 = vmul.f32 %v7776, 0.044715
        %v7843 = vmul.f32 %v7778, 0.044715
        %v7844 = vmul.f32 %v7812, %v7701
        %v7845 = vmul.f32 %v7813, %v7703
        %v7846 = vmul.f32 %v7814, %v7706
        %v7847 = vmul.f32 %v7815, %v7708
        %v7848 = vmul.f32 %v7816, %v7711
        %v7849 = vmul.f32 %v7817, %v7713
        %v7850 = vmul.f32 %v7818, %v7716
        %v7851 = vmul.f32 %v7819, %v7718
        %v7852 = vmul.f32 %v7820, %v7721
        %v7853 = vmul.f32 %v7821, %v7723
        %v7854 = vmul.f32 %v7822, %v7726
        %v7855 = vmul.f32 %v7823, %v7728
        %v7856 = vmul.f32 %v7824, %v7731
        %v7857 = vmul.f32 %v7825, %v7733
        %v7858 = vmul.f32 %v7826, %v7736
        %v7859 = vmul.f32 %v7827, %v7738
        %v7860 = vmul.f32 %v7828, %v7741
        %v7861 = vmul.f32 %v7829, %v7743
        %v7862 = vmul.f32 %v7830, %v7746
        %v7863 = vmul.f32 %v7831, %v7748
        %v7864 = vmul.f32 %v7832, %v7751
        %v7865 = vmul.f32 %v7833, %v7753
        %v7866 = vmul.f32 %v7834, %v7756
        %v7867 = vmul.f32 %v7835, %v7758
        %v7868 = vmul.f32 %v7836, %v7761
        %v7869 = vmul.f32 %v7837, %v7763
        %v7870 = vmul.f32 %v7838, %v7766
        %v7871 = vmul.f32 %v7839, %v7768
        %v7872 = vmul.f32 %v7840, %v7771
        %v7873 = vmul.f32 %v7841, %v7773
        %v7874 = vmul.f32 %v7842, %v7776
        %v7875 = vmul.f32 %v7843, %v7778
        %v7876 = vmul.f32 %v7844, %v7701
        %v7877 = vmul.f32 %v7845, %v7703
        %v7878 = vmul.f32 %v7846, %v7706
        %v7879 = vmul.f32 %v7847, %v7708
        %v7880 = vmul.f32 %v7848, %v7711
        %v7881 = vmul.f32 %v7849, %v7713
        %v7882 = vmul.f32 %v7850, %v7716
        %v7883 = vmul.f32 %v7851, %v7718
        %v7884 = vmul.f32 %v7852, %v7721
        %v7885 = vmul.f32 %v7853, %v7723
        %v7886 = vmul.f32 %v7854, %v7726
        %v7887 = vmul.f32 %v7855, %v7728
        %v7888 = vmul.f32 %v7856, %v7731
        %v7889 = vmul.f32 %v7857, %v7733
        %v7890 = vmul.f32 %v7858, %v7736
        %v7891 = vmul.f32 %v7859, %v7738
        %v7892 = vmul.f32 %v7860, %v7741
        %v7893 = vmul.f32 %v7861, %v7743
        %v7894 = vmul.f32 %v7862, %v7746
        %v7895 = vmul.f32 %v7863, %v7748
        %v7896 = vmul.f32 %v7864, %v7751
        %v7897 = vmul.f32 %v7865, %v7753
        %v7898 = vmul.f32 %v7866, %v7756
        %v7899 = vmul.f32 %v7867, %v7758
        %v7900 = vmul.f32 %v7868, %v7761
        %v7901 = vmul.f32 %v7869, %v7763
        %v7902 = vmul.f32 %v7870, %v7766
        %v7903 = vmul.f32 %v7871, %v7768
        %v7904 = vmul.f32 %v7872, %v7771
        %v7905 = vmul.f32 %v7873, %v7773
        %v7906 = vmul.f32 %v7874, %v7776
        %v7907 = vmul.f32 %v7875, %v7778
        %v7908 = vadd.f32 %v7701, %v7876
        %v7909 = vadd.f32 %v7703, %v7877
        %v7910 = vadd.f32 %v7706, %v7878
        %v7911 = vadd.f32 %v7708, %v7879
        %v7912 = vadd.f32 %v7711, %v7880
        %v7913 = vadd.f32 %v7713, %v7881
        %v7914 = vadd.f32 %v7716, %v7882
        %v7915 = vadd.f32 %v7718, %v7883
        %v7916 = vadd.f32 %v7721, %v7884
        %v7917 = vadd.f32 %v7723, %v7885
        %v7918 = vadd.f32 %v7726, %v7886
        %v7919 = vadd.f32 %v7728, %v7887
        %v7920 = vadd.f32 %v7731, %v7888
        %v7921 = vadd.f32 %v7733, %v7889
        %v7922 = vadd.f32 %v7736, %v7890
        %v7923 = vadd.f32 %v7738, %v7891
        %v7924 = vadd.f32 %v7741, %v7892
        %v7925 = vadd.f32 %v7743, %v7893
        %v7926 = vadd.f32 %v7746, %v7894
        %v7927 = vadd.f32 %v7748, %v7895
        %v7928 = vadd.f32 %v7751, %v7896
        %v7929 = vadd.f32 %v7753, %v7897
        %v7930 = vadd.f32 %v7756, %v7898
        %v7931 = vadd.f32 %v7758, %v7899
        %v7932 = vadd.f32 %v7761, %v7900
        %v7933 = vadd.f32 %v7763, %v7901
        %v7934 = vadd.f32 %v7766, %v7902
        %v7935 = vadd.f32 %v7768, %v7903
        %v7936 = vadd.f32 %v7771, %v7904
        %v7937 = vadd.f32 %v7773, %v7905
        %v7938 = vadd.f32 %v7776, %v7906
        %v7939 = vadd.f32 %v7778, %v7907
        %v7940 = vmul.f32 %v7908, 0.7978846
        %v7941 = vmul.f32 %v7909, 0.7978846
        %v7942 = vmul.f32 %v7910, 0.7978846
        %v7943 = vmul.f32 %v7911, 0.7978846
        %v7944 = vmul.f32 %v7912, 0.7978846
        %v7945 = vmul.f32 %v7913, 0.7978846
        %v7946 = vmul.f32 %v7914, 0.7978846
        %v7947 = vmul.f32 %v7915, 0.7978846
        %v7948 = vmul.f32 %v7916, 0.7978846
        %v7949 = vmul.f32 %v7917, 0.7978846
        %v7950 = vmul.f32 %v7918, 0.7978846
        %v7951 = vmul.f32 %v7919, 0.7978846
        %v7952 = vmul.f32 %v7920, 0.7978846
        %v7953 = vmul.f32 %v7921, 0.7978846
        %v7954 = vmul.f32 %v7922, 0.7978846
        %v7955 = vmul.f32 %v7923, 0.7978846
        %v7956 = vmul.f32 %v7924, 0.7978846
        %v7957 = vmul.f32 %v7925, 0.7978846
        %v7958 = vmul.f32 %v7926, 0.7978846
        %v7959 = vmul.f32 %v7927, 0.7978846
        %v7960 = vmul.f32 %v7928, 0.7978846
        %v7961 = vmul.f32 %v7929, 0.7978846
        %v7962 = vmul.f32 %v7930, 0.7978846
        %v7963 = vmul.f32 %v7931, 0.7978846
        %v7964 = vmul.f32 %v7932, 0.7978846
        %v7965 = vmul.f32 %v7933, 0.7978846
        %v7966 = vmul.f32 %v7934, 0.7978846
        %v7967 = vmul.f32 %v7935, 0.7978846
        %v7968 = vmul.f32 %v7936, 0.7978846
        %v7969 = vmul.f32 %v7937, 0.7978846
        %v7970 = vmul.f32 %v7938, 0.7978846
        %v7971 = vmul.f32 %v7939, 0.7978846
        %v7972 = vtanh.pop %v7940
        %v7973 = vtanh.pop %v7941
        %v7974 = vtanh.pop %v7942
        %v7975 = vtanh.pop %v7943
        %v7976 = vtanh.pop %v7944
        %v7977 = vtanh.pop %v7945
        %v7978 = vtanh.pop %v7946
        %v7979 = vtanh.pop %v7947
        %v7980 = vtanh.pop %v7948
        %v7981 = vtanh.pop %v7949
        %v7982 = vtanh.pop %v7950
        %v7983 = vtanh.pop %v7951
        %v7984 = vtanh.pop %v7952
        %v7985 = vtanh.pop %v7953
        %v7986 = vtanh.pop %v7954
        %v7987 = vtanh.pop %v7955
        %v7988 = vtanh.pop %v7956
        %v7989 = vtanh.pop %v7957
        %v7990 = vtanh.pop %v7958
        %v7991 = vtanh.pop %v7959
        %v7992 = vtanh.pop %v7960
        %v7993 = vtanh.pop %v7961
        %v7994 = vtanh.pop %v7962
        %v7995 = vtanh.pop %v7963
        %v7996 = vtanh.pop %v7964
        %v7997 = vtanh.pop %v7965
        %v7998 = vtanh.pop %v7966
        %v7999 = vtanh.pop %v7967
        %v8000 = vtanh.pop %v7968
        %v8001 = vtanh.pop %v7969
        %v8002 = vtanh.pop %v7970
        %v8003 = vtanh.pop %v7971
        %v8004 = vadd.f32 %v7972, 1.0
        %v8005 = vadd.f32 %v7973, 1.0
        %v8006 = vadd.f32 %v7974, 1.0
        %v8007 = vadd.f32 %v7975, 1.0
        %v8008 = vadd.f32 %v7976, 1.0
        %v8009 = vadd.f32 %v7977, 1.0
        %v8010 = vadd.f32 %v7978, 1.0
        %v8011 = vadd.f32 %v7979, 1.0
        %v8012 = vadd.f32 %v7980, 1.0
        %v8013 = vadd.f32 %v7981, 1.0
        %v8014 = vadd.f32 %v7982, 1.0
        %v8015 = vadd.f32 %v7983, 1.0
        %v8016 = vadd.f32 %v7984, 1.0
        %v8017 = vadd.f32 %v7985, 1.0
        %v8018 = vadd.f32 %v7986, 1.0
        %v8019 = vadd.f32 %v7987, 1.0
        %v8020 = vadd.f32 %v7988, 1.0
        %v8021 = vadd.f32 %v7989, 1.0
        %v8022 = vadd.f32 %v7990, 1.0
        %v8023 = vadd.f32 %v7991, 1.0
        %v8024 = vadd.f32 %v7992, 1.0
        %v8025 = vadd.f32 %v7993, 1.0
        %v8026 = vadd.f32 %v7994, 1.0
        %v8027 = vadd.f32 %v7995, 1.0
        %v8028 = vadd.f32 %v7996, 1.0
        %v8029 = vadd.f32 %v7997, 1.0
        %v8030 = vadd.f32 %v7998, 1.0
        %v8031 = vadd.f32 %v7999, 1.0
        %v8032 = vadd.f32 %v8000, 1.0
        %v8033 = vadd.f32 %v8001, 1.0
        %v8034 = vadd.f32 %v8002, 1.0
        %v8035 = vadd.f32 %v8003, 1.0
        %v8036 = vmul.f32 %v7780, %v8004
        %v8037 = vmul.f32 %v7781, %v8005
        %v8038 = vmul.f32 %v7782, %v8006
        %v8039 = vmul.f32 %v7783, %v8007
        %v8040 = vmul.f32 %v7784, %v8008
        %v8041 = vmul.f32 %v7785, %v8009
        %v8042 = vmul.f32 %v7786, %v8010
        %v8043 = vmul.f32 %v7787, %v8011
        %v8044 = vmul.f32 %v7788, %v8012
        %v8045 = vmul.f32 %v7789, %v8013
        %v8046 = vmul.f32 %v7790, %v8014
        %v8047 = vmul.f32 %v7791, %v8015
        %v8048 = vmul.f32 %v7792, %v8016
        %v8049 = vmul.f32 %v7793, %v8017
        %v8050 = vmul.f32 %v7794, %v8018
        %v8051 = vmul.f32 %v7795, %v8019
        %v8052 = vmul.f32 %v7796, %v8020
        %v8053 = vmul.f32 %v7797, %v8021
        %v8054 = vmul.f32 %v7798, %v8022
        %v8055 = vmul.f32 %v7799, %v8023
        %v8056 = vmul.f32 %v7800, %v8024
        %v8057 = vmul.f32 %v7801, %v8025
        %v8058 = vmul.f32 %v7802, %v8026
        %v8059 = vmul.f32 %v7803, %v8027
        %v8060 = vmul.f32 %v7804, %v8028
        %v8061 = vmul.f32 %v7805, %v8029
        %v8062 = vmul.f32 %v7806, %v8030
        %v8063 = vmul.f32 %v7807, %v8031
        %v8064 = vmul.f32 %v7808, %v8032
        %v8065 = vmul.f32 %v7809, %v8033
        %v8066 = vmul.f32 %v7810, %v8034
        %v8067 = vmul.f32 %v7811, %v8035
        %v8068 = vpack.c.bf16 %v8037, %v8036
        %v8069 = vpack.c.bf16 %v8039, %v8038
        %v8070 = vpack.c.bf16 %v8041, %v8040
        %v8071 = vpack.c.bf16 %v8043, %v8042
        %v8072 = vpack.c.bf16 %v8045, %v8044
        %v8073 = vpack.c.bf16 %v8047, %v8046
        %v8074 = vpack.c.bf16 %v8049, %v8048
        %v8075 = vpack.c.bf16 %v8051, %v8050
        %v8076 = vpack.c.bf16 %v8053, %v8052
        %v8077 = vpack.c.bf16 %v8055, %v8054
        %v8078 = vpack.c.bf16 %v8057, %v8056
        %v8079 = vpack.c.bf16 %v8059, %v8058
        %v8080 = vpack.c.bf16 %v8061, %v8060
        %v8081 = vpack.c.bf16 %v8063, %v8062
        %v8082 = vpack.c.bf16 %v8065, %v8064
        %v8083 = vpack.c.bf16 %v8067, %v8066
        %v8084 = vld [vmem:[%s1168] sm:$0xf]
        %v8085 = vld [vmem:[%s1168 + $0x4] sm:$0xf]
        %v8086 = vld [vmem:[%s1168 + $0x8] sm:$0xf]
        %v8087 = vld [vmem:[%s1168 + $0xc] sm:$0xf]
        %v8088 = vld [vmem:[%s1168 + $0x10] sm:$0xf]
        %v8089 = vld [vmem:[%s1168 + $0x14] sm:$0xf]
        %v8090 = vld [vmem:[%s1168 + $0x18] sm:$0xf]
        %v8091 = vld [vmem:[%s1168 + $0x1c] sm:$0xf]
        %v8092 = vld [vmem:[%s1168 + $0x20] sm:$0xf]
        %v8093 = vld [vmem:[%s1168 + $0x24] sm:$0xf]
        %v8094 = vld [vmem:[%s1168 + $0x28] sm:$0xf]
        %v8095 = vld [vmem:[%s1168 + $0x2c] sm:$0xf]
        %v8096 = vld [vmem:[%s1168 + $0x30] sm:$0xf]
        %v8097 = vld [vmem:[%s1168 + $0x34] sm:$0xf]
        %v8098 = vld [vmem:[%s1168 + $0x38] sm:$0xf]
        %v8099 = vld [vmem:[%s1168 + $0x3c] sm:$0xf]
        %v8100 = vld [vmem:[%s983] sm:$0x1]
        %v8102 = vperm.slane %v8100, 0
        %v8120 = vunpack.c.l.b16 %v8084
        %v8121 = vunpack.c.l.b16 %v8085
        %v8122 = vunpack.c.l.b16 %v8086
        %v8123 = vunpack.c.l.b16 %v8087
        %v8124 = vunpack.c.l.b16 %v8088
        %v8125 = vunpack.c.l.b16 %v8089
        %v8126 = vunpack.c.l.b16 %v8090
        %v8127 = vunpack.c.l.b16 %v8091
        %v8128 = vunpack.c.l.b16 %v8092
        %v8129 = vunpack.c.l.b16 %v8093
        %v8130 = vunpack.c.l.b16 %v8094
        %v8131 = vunpack.c.l.b16 %v8095
        %v8132 = vunpack.c.l.b16 %v8096
        %v8133 = vunpack.c.l.b16 %v8097
        %v8134 = vunpack.c.l.b16 %v8098
        %v8135 = vunpack.c.l.b16 %v8099
        %v8136 = vpack.c.b16 %v8121, %v8120
        %v8137 = vpack.c.b16 %v8123, %v8122
        %v8138 = vpack.c.b16 %v8125, %v8124
        %v8139 = vpack.c.b16 %v8127, %v8126
        %v8140 = vpack.c.b16 %v8129, %v8128
        %v8141 = vpack.c.b16 %v8131, %v8130
        %v8142 = vpack.c.b16 %v8133, %v8132
        %v8143 = vpack.c.b16 %v8135, %v8134
        %8152 = vmatpush.bf16.msra.mxu0 %v8143
        %8153 = vmatpush.bf16.msra.mxu0 %v8142
        %8154 = vmatpush.bf16.msra.mxu0 %v8141
        %8155 = vmatpush.bf16.msra.mxu0 %v8140
        %8156 = vmatpush.bf16.msra.mxu0 %v8139
        %8157 = vmatpush.bf16.msra.mxu0 %v8138
        %8158 = vmatpush.bf16.msra.mxu0 %v8137
        %8159 = vmatpush.bf16.msra.mxu0 %v8136
        %8160 = vmatmul.bf16.gmra.mxu0 %v8068
        %v8161 = vpop.f32.mrf.mxu0
        %v8162 = vadd.f32 %v8102, %v8161
        %v8163 = vpop.f32.mrf.mxu0
        %v8164 = vadd.f32 %v8102, %v8163
        %8165 = vmatmul.bf16.gmra.mxu0 %v8069
        %v8166 = vpop.f32.mrf.mxu0
        %v8167 = vadd.f32 %v8102, %v8166
        %v8168 = vpop.f32.mrf.mxu0
        %v8169 = vadd.f32 %v8102, %v8168
        %8170 = vmatmul.bf16.gmra.mxu0 %v8070
        %v8171 = vpop.f32.mrf.mxu0
        %v8172 = vadd.f32 %v8102, %v8171
        %v8173 = vpop.f32.mrf.mxu0
        %v8174 = vadd.f32 %v8102, %v8173
        %8175 = vmatmul.bf16.gmra.mxu0 %v8071
        %v8176 = vpop.f32.mrf.mxu0
        %v8177 = vadd.f32 %v8102, %v8176
        %v8178 = vpop.f32.mrf.mxu0
        %v8179 = vadd.f32 %v8102, %v8178
        %8180 = vmatmul.bf16.gmra.mxu0 %v8072
        %v8181 = vpop.f32.mrf.mxu0
        %v8182 = vadd.f32 %v8102, %v8181
        %v8183 = vpop.f32.mrf.mxu0
        %v8184 = vadd.f32 %v8102, %v8183
        %8185 = vmatmul.bf16.gmra.mxu0 %v8073
        %v8186 = vpop.f32.mrf.mxu0
        %v8187 = vadd.f32 %v8102, %v8186
        %v8188 = vpop.f32.mrf.mxu0
        %v8189 = vadd.f32 %v8102, %v8188
        %8190 = vmatmul.bf16.gmra.mxu0 %v8074
        %v8191 = vpop.f32.mrf.mxu0
        %v8192 = vadd.f32 %v8102, %v8191
        %v8193 = vpop.f32.mrf.mxu0
        %v8194 = vadd.f32 %v8102, %v8193
        %8195 = vmatmul.bf16.gmra.mxu0 %v8075
        %v8196 = vpop.f32.mrf.mxu0
        %v8197 = vadd.f32 %v8102, %v8196
        %v8198 = vpop.f32.mrf.mxu0
        %v8199 = vadd.f32 %v8102, %v8198
        %8200 = vmatmul.bf16.gmra.mxu0 %v8076
        %v8201 = vpop.f32.mrf.mxu0
        %v8202 = vadd.f32 %v8102, %v8201
        %v8203 = vpop.f32.mrf.mxu0
        %v8204 = vadd.f32 %v8102, %v8203
        %8205 = vmatmul.bf16.gmra.mxu0 %v8077
        %v8206 = vpop.f32.mrf.mxu0
        %v8207 = vadd.f32 %v8102, %v8206
        %v8208 = vpop.f32.mrf.mxu0
        %v8209 = vadd.f32 %v8102, %v8208
        %8210 = vmatmul.bf16.gmra.mxu0 %v8078
        %v8211 = vpop.f32.mrf.mxu0
        %v8212 = vadd.f32 %v8102, %v8211
        %v8213 = vpop.f32.mrf.mxu0
        %v8214 = vadd.f32 %v8102, %v8213
        %8215 = vmatmul.bf16.gmra.mxu0 %v8079
        %v8216 = vpop.f32.mrf.mxu0
        %v8217 = vadd.f32 %v8102, %v8216
        %v8218 = vpop.f32.mrf.mxu0
        %v8219 = vadd.f32 %v8102, %v8218
        %8220 = vmatmul.bf16.gmra.mxu0 %v8080
        %v8221 = vpop.f32.mrf.mxu0
        %v8222 = vadd.f32 %v8102, %v8221
        %v8223 = vpop.f32.mrf.mxu0
        %v8224 = vadd.f32 %v8102, %v8223
        %8225 = vmatmul.bf16.gmra.mxu0 %v8081
        %v8226 = vpop.f32.mrf.mxu0
        %v8227 = vadd.f32 %v8102, %v8226
        %v8228 = vpop.f32.mrf.mxu0
        %v8229 = vadd.f32 %v8102, %v8228
        %8230 = vmatmul.bf16.gmra.mxu0 %v8082
        %v8231 = vpop.f32.mrf.mxu0
        %v8232 = vadd.f32 %v8102, %v8231
        %v8233 = vpop.f32.mrf.mxu0
        %v8234 = vadd.f32 %v8102, %v8233
        %8235 = vmatmul.bf16.gmra.mxu0 %v8083
        %v8236 = vpop.f32.mrf.mxu0
        %v8237 = vadd.f32 %v8102, %v8236
        %v8238 = vpop.f32.mrf.mxu0
        %v8239 = vadd.f32 %v8102, %v8238
        %8240 = vdwg.mxu0
        %v8241 = vadd.f32 %v6799, %v8162
        %v8242 = vadd.f32 %v6800, %v8164
        %v8243 = vadd.f32 %v6801, %v8167
        %v8244 = vadd.f32 %v6802, %v8169
        %v8245 = vadd.f32 %v6803, %v8172
        %v8246 = vadd.f32 %v6804, %v8174
        %v8247 = vadd.f32 %v6805, %v8177
        %v8248 = vadd.f32 %v6806, %v8179
        %v8249 = vadd.f32 %v6807, %v8182
        %v8250 = vadd.f32 %v6808, %v8184
        %v8251 = vadd.f32 %v6809, %v8187
        %v8252 = vadd.f32 %v6810, %v8189
        %v8253 = vadd.f32 %v6811, %v8192
        %v8254 = vadd.f32 %v6812, %v8194
        %v8255 = vadd.f32 %v6813, %v8197
        %v8256 = vadd.f32 %v6814, %v8199
        %v8257 = vadd.f32 %v6815, %v8202
        %v8258 = vadd.f32 %v6816, %v8204
        %v8259 = vadd.f32 %v6817, %v8207
        %v8260 = vadd.f32 %v6818, %v8209
        %v8261 = vadd.f32 %v6819, %v8212
        %v8262 = vadd.f32 %v6820, %v8214
        %v8263 = vadd.f32 %v6821, %v8217
        %v8264 = vadd.f32 %v6822, %v8219
        %v8265 = vadd.f32 %v6823, %v8222
        %v8266 = vadd.f32 %v6824, %v8224
        %v8267 = vadd.f32 %v6825, %v8227
        %v8268 = vadd.f32 %v6826, %v8229
        %v8269 = vadd.f32 %v6827, %v8232
        %v8270 = vadd.f32 %v6828, %v8234
        %v8271 = vadd.f32 %v6829, %v8237
        %v8272 = vadd.f32 %v6830, %v8239
        %8273 = vst.msk [vmem:[#allocation2] sm:$0xff] %vm1274, %v8241
        %8274 = vst.msk [vmem:[#allocation2 + $0x8] sm:$0xff] %vm1274, %v8242
        %8275 = vst.msk [vmem:[#allocation2 + $0x10] sm:$0xff] %vm1274, %v8243
        %8276 = vst.msk [vmem:[#allocation2 + $0x18] sm:$0xff] %vm1274, %v8244
        %8277 = vst.msk [vmem:[#allocation2 + $0x20] sm:$0xff] %vm1274, %v8245
        %8278 = vst.msk [vmem:[#allocation2 + $0x28] sm:$0xff] %vm1274, %v8246
        %8279 = vst.msk [vmem:[#allocation2 + $0x30] sm:$0xff] %vm1274, %v8247
        %8280 = vst.msk [vmem:[#allocation2 + $0x38] sm:$0xff] %vm1274, %v8248
        %8281 = vst.msk [vmem:[#allocation2 + $0x40] sm:$0xff] %vm1274, %v8249
        %8282 = vst.msk [vmem:[#allocation2 + $0x48] sm:$0xff] %vm1274, %v8250
        %8283 = vst.msk [vmem:[#allocation2 + $0x50] sm:$0xff] %vm1274, %v8251
        %8284 = vst.msk [vmem:[#allocation2 + $0x58] sm:$0xff] %vm1274, %v8252
        %8285 = vst.msk [vmem:[#allocation2 + $0x60] sm:$0xff] %vm1274, %v8253
        %8286 = vst.msk [vmem:[#allocation2 + $0x68] sm:$0xff] %vm1274, %v8254
        %8287 = vst.msk [vmem:[#allocation2 + $0x70] sm:$0xff] %vm1274, %v8255
        %8288 = vst.msk [vmem:[#allocation2 + $0x78] sm:$0xff] %vm1274, %v8256
        %8289 = vst.msk [vmem:[#allocation2 + $0x80] sm:$0xff] %vm1274, %v8257
        %8290 = vst.msk [vmem:[#allocation2 + $0x88] sm:$0xff] %vm1274, %v8258
        %8291 = vst.msk [vmem:[#allocation2 + $0x90] sm:$0xff] %vm1274, %v8259
        %8292 = vst.msk [vmem:[#allocation2 + $0x98] sm:$0xff] %vm1274, %v8260
        %8293 = vst.msk [vmem:[#allocation2 + $0xa0] sm:$0xff] %vm1274, %v8261
        %8294 = vst.msk [vmem:[#allocation2 + $0xa8] sm:$0xff] %vm1274, %v8262
        %8295 = vst.msk [vmem:[#allocation2 + $0xb0] sm:$0xff] %vm1274, %v8263
        %8296 = vst.msk [vmem:[#allocation2 + $0xb8] sm:$0xff] %vm1274, %v8264
        %8297 = vst.msk [vmem:[#allocation2 + $0xc0] sm:$0xff] %vm1274, %v8265
        %8298 = vst.msk [vmem:[#allocation2 + $0xc8] sm:$0xff] %vm1274, %v8266
        %8299 = vst.msk [vmem:[#allocation2 + $0xd0] sm:$0xff] %vm1274, %v8267
        %8300 = vst.msk [vmem:[#allocation2 + $0xd8] sm:$0xff] %vm1274, %v8268
        %8301 = vst.msk [vmem:[#allocation2 + $0xe0] sm:$0xff] %vm1274, %v8269
        %8302 = vst.msk [vmem:[#allocation2 + $0xe8] sm:$0xff] %vm1274, %v8270
        %8303 = vst.msk [vmem:[#allocation2 + $0xf0] sm:$0xff] %vm1274, %v8271
        %8304 = vst.msk [vmem:[#allocation2 + $0xf8] sm:$0xff] %vm1274, %v8272
        %p8305 = scmp.eq.s32.totalorder %s58, 1
        // Predicated region
        $region153: #{tpu_custom_call.1} parent=103 // pred_check
          %p8306 = pneg %p8305
        $region154: #{tpu_custom_call.1} parent=103 // pred_check_branch
          %8308 = sbr.rel (%p8306) target = $region156
        $region155: #{tpu_custom_call.1} parent=103 // pred_region
          %v8309 = vld [vmem:[%s18] sm:$0x1]
          %v8310 = vld [vmem:[#allocation20] sm:$0x1]
          %v8313 = vrot.slane %v8257, 7
          %vm8316 = vcmask 261127
          %v8317 = vsel %vm8316, %v8241, 0.0
          %8318 = vadd.xlane.f32.xlu0 %v8317
          %v8319 = vpop.xlane.xlu0 %8318
          %vm8320 = vcmask 253952
          %v8321 = vsel %vm8320, %v8313, 0.0
          %8322 = vadd.xlane.f32.xlu0 %v8321
          %v8323 = vpop.xlane.xlu0 %8322
          %v8324 = vmul.f32 %v8319, %v1377
          %v8325 = vmul.f32 %v8323, %v1377
          %v8328 = vrot.slane %v8325, 1
          %v8331 = vsub.f32 %v8241, %v8324
          %v8332 = vsub.f32 %v8257, %v8328
          %v8333 = vmul.f32 %v8331, %v8331
          %v8334 = vmul.f32 %v8332, %v8332
          %v8337 = vrot.slane %v8334, 7
          %v8340 = vsel %vm8316, %v8333, 0.0
          %8341 = vadd.xlane.f32.xlu0 %v8340
          %v8342 = vpop.xlane.xlu0 %8341
          %v8343 = vsel %vm8320, %v8337, 0.0
          %8344 = vadd.xlane.f32.xlu0 %v8343
          %v8345 = vpop.xlane.xlu0 %8344
          %v8346 = vmul.f32 %v8342, %v1377
          %v8347 = vmul.f32 %v8345, %v1377
          %v8348 = vadd.f32 %v8346, 1e-05
          %v8349 = vadd.f32 %v8347, 1e-05
          %v8350 = vrsqrt.pop %v8348
          %v8351 = vmul.f32 %v8350, %v8348
          %v8352 = vmul.f32 %v8351, %v8350
          %v8353 = vmul.f32 0.5, %v8352
          %v8354 = vsub.f32 1.5, %v8353
          %v8355 = vmul.f32 %v8350, %v8354
          %vm8356 = vweird.f32 %v8348
          %vm8357 = vweird.f32 %v8350
          %vm8358 = vmor %vm8356, %vm8357
          %v8359 = vsel %vm8358, %v8350, %v8355
          %v8360 = vrsqrt.pop %v8349
          %v8361 = vmul.f32 %v8360, %v8349
          %v8362 = vmul.f32 %v8361, %v8360
          %v8363 = vmul.f32 0.5, %v8362
          %v8364 = vsub.f32 1.5, %v8363
          %v8365 = vmul.f32 %v8360, %v8364
          %vm8366 = vweird.f32 %v8349
          %vm8367 = vweird.f32 %v8360
          %vm8368 = vmor %vm8366, %vm8367
          %v8369 = vsel %vm8368, %v8360, %v8365
          %v8372 = vrot.slane %v8369, 1
          %v8375 = vmul.f32 %v8331, %v8359
          %v8376 = vmul.f32 %v8332, %v8372
          %v8378 = vperm.slane %v8309, 0
          %v8380 = vmul.f32 %v8375, %v8378
          %v8381 = vmul.f32 %v8376, %v8378
          %v8383 = vperm.slane %v8310, 0
          %v8385 = vadd.f32 %v8380, %v8383
          %v8386 = vadd.f32 %v8381, %v8383
          %v8387 = vpack.c.bf16 %v8385, %v8385
          %v8388 = vpack.c.bf16 %v8386, %v8386
          %v8389 = vld [vmem:[%s20] sm:$0xf]
          %v8390 = vld [vmem:[%s20 + $0x4] sm:$0xf]
          %v8391 = vld [vmem:[%s20 + $0x8] sm:$0xf]
          %v8392 = vld [vmem:[%s20 + $0xc] sm:$0xf]
          %v8395 = vunpack.c.l.b16 %v8387
          %v8396 = vunpack.c.l.b16 %v8388
          %v8397 = vrot.slane %v8395, 7
          %v8398 = vrot.slane %v8396, 6
          %vm8399 = vcmask 1041409
          %v8400 = vsel %vm8399, %v8398, %v8397
          %v8401 = vpack.c.b16 %v8400, %v8400
          %v8406 = vunpack.c.l.b16 %v8389
          %v8407 = vunpack.c.l.b16 %v8390
          %v8408 = vunpack.c.l.b16 %v8391
          %v8409 = vunpack.c.l.b16 %v8392
          %v8410 = vpack.c.b16 %v8407, %v8406
          %v8411 = vpack.c.b16 %v8409, %v8408
          %v8415 = vsel %vm1274, %v8401, 0
          %8417 = vmatpush.bf16.msra.mxu0 0
          %8418 = vmatpush.bf16.msra.mxu0 0
          %8419 = vmatpush.bf16.msra.mxu0 0
          %8420 = vmatpush.bf16.msra.mxu0 0
          %8421 = vmatpush.bf16.msra.mxu0 0
          %8422 = vmatpush.bf16.msra.mxu0 0
          %8423 = vmatpush.bf16.msra.mxu0 %v8411
          %8424 = vmatpush.bf16.msra.mxu0 %v8410
          %8425 = vmatmul.bf16.gmra.mxu0 %v8415
          %v8426 = vpop.f32.mrf.mxu0
          %v8427 = vadd.f32 0.0, %v8426
          %v8428 = vpop.f32.mrf.mxu0
          %8429 = vdwg.mxu0
          %v8430 = vmul.f32 %v8427, %v8427
          %vm8431 = vcmask 123904
          %v8432 = vsel %vm8431, %v8430, 0.0
          %8433 = vadd.xlane.f32.xlu0 %v8432
          %v8434 = vpop.xlane.xlu0 %8433
          %v8435 = vrsqrt.pop %v8434
          %v8436 = vmul.f32 %v8435, %v8434
          %v8437 = vmul.f32 %v8436, %v8435
          %v8438 = vmul.f32 0.5, %v8437
          %v8439 = vsub.f32 1.5, %v8438
          %v8440 = vmul.f32 %v8435, %v8439
          %v8441 = vmul.f32 %v8434, %v8440
          %vm8442 = vcmp.eq.f32.partialorder %v8434, inf
          %v8443 = vsel %vm8442, %v8434, %v8441
          %vm8444 = vcmp.eq.f32.partialorder %v8434, 0.0
          %v8445 = vand.u32 %v8434, 2147483648
          %v8446 = vsel %vm8444, %v8445, %v8443
          %v8447 = vmax.f32 %v8446, 1e-12
          %v8448 = vrcp.pop %v8447
          %v8449 = vmul.f32 %v8447, %v8448
          %v8450 = vsub.f32 1.0, %v8449
          %v8451 = vmul.f32 %v8448, %v8450
          %v8452 = vadd.f32 %v8448, %v8451
          %vm8453 = vweird.f32 %v8447
          %vm8454 = vweird.f32 %v8448
          %vm8455 = vmor %vm8453, %vm8454
          %v8456 = vsel %vm8455, %v8448, %v8452
          %v8457 = vand.u32 2147483647, %v8447
          %vm8458 = vcmp.eq.f32.partialorder %v8457, 8.507059e+37
          %v8459 = vand.u32 %v8447, 2147483648
          %v8460 = vor.u32 1.1754944e-38, %v8459
          %v8461 = vsel %vm8458, %v8460, %v8456
          %v8462 = vmul.f32 %v8427, %v8461
          %v8464 = vrot.slane %v8462, 1
          %vm8466 = vcmask 122880
          %8467 = vst.msk [vmem:[%s1124] sm:$0x1] %vm8466, %v8462
          %8468 = vst.msk [vmem:[%s1124 + $0x1] sm:$0x1] %vm8466, %v8464
        $region156: #{tpu_custom_call.1} parent=103 // pred_fallthru
          _
        %s8469 = sand.u32 %s604, 1
        %s8470 = scalar_lea.sflag [#allocation5], %s8469
        %s8471 = sand.u32 %s604, 1
        %s8472 = smul.addr %s8471, 2
        %s8473 = scalar_lea.vmem [#allocation21], %s8472
        // Predicated region
        $region157: #{tpu_custom_call.1} parent=103 // pred_check
          %p8474 = pneg %p614
        $region158: #{tpu_custom_call.1} parent=103 // pred_check_branch
          %8476 = sbr.rel (%p8474) target = $region160
        $region159: #{tpu_custom_call.1} parent=103 // pred_region
          %s8477 = smul.u32 2, %s57
          %8479 = vsyncadd %s8470, 0
          %s8480 = scalar_lea.hbm %s21, %s8477
          %s8481 = sshll.u32 %s8473, 4
          %s8482 = int_to_ptr.vmem [resolvable:$true] %s8481
          %s8483 = sshll.u32 %s8480, 4
          %s8484 = int_to_ptr.hbm [resolvable:$true] %s8483
          %8489 = dma.vmem_to_hbm [thread:$0]  %s8482, 32, %s8484, %s8470, 16, 16, 1
        $region160: #{tpu_custom_call.1} parent=103 // pred_fallthru
          _
      $region104: #{tpu_custom_call.1} parent=5 // pred_fallthru
        _
      %p8490 = scmp.le.s32.totalorder 2, %s48
      // Predicated region
      $region161: #{tpu_custom_call.1} parent=5 // pred_check
        %p8491 = pneg %p8490
      $region162: #{tpu_custom_call.1} parent=5 // pred_check_branch
        %8493 = sbr.rel (%p8491) target = $region164
      $region163: #{tpu_custom_call.1} parent=5 // pred_region
        %s8494 = ssub.s32 %s48, 2
        // Predicated region
        $region165: #{tpu_custom_call.1} parent=163 // pred_check
          %p8495 = pneg %p620
        $region166: #{tpu_custom_call.1} parent=163 // pred_check_branch
          %8497 = sbr.rel (%p8495) target = $region168
        $region167: #{tpu_custom_call.1} parent=163 // pred_region
          %s8498 = sand.u32 %s605, 1
          %s8499 = scalar_lea.sflag [#allocation5], %s8498
          %s8500 = sand.u32 %s605, 1
          %s8501 = smul.addr %s8500, 2
          %s8502 = scalar_lea.vmem [#allocation21], %s8501
          %8504 = dma.done %s8499, 32
        $region168: #{tpu_custom_call.1} parent=163 // pred_fallthru
          _
      $region164: #{tpu_custom_call.1} parent=5 // pred_fallthru
        _
    $region6: #{tpu_custom_call.1} parent=1 // loop_footer
      %s52 = sadd.s32 1, %s48
    $region7: #{tpu_custom_call.1} parent=1 // loop_footer_branch
      %47 = sbr.rel target = $region3
    $region8: #{tpu_custom_call.1} parent=1 // loop_exit
      _
    %8505 = vsyncpa [#allocation4], 1
    %s8506 = scalar_lea.sflag [#allocation4], 1
    %8507 = vsyncpa %s8506, 1
    %8508 = vsyncpa [#allocation7], 1
    %s8509 = scalar_lea.sflag [#allocation7], 1
    %8510 = vsyncpa %s8509, 1
    %8511 = vsyncpa [#allocation10], 1
    %s8512 = scalar_lea.sflag [#allocation10], 1
    %8513 = vsyncpa %s8512, 1
    %8514 = vsyncpa [#allocation13], 1
    %s8515 = scalar_lea.sflag [#allocation13], 1
    %8516 = vsyncpa %s8515, 1
    %8517 = vsyncpa [#allocation16], 1
    %s8518 = scalar_lea.sflag [#allocation16], 1
    %8519 = vsyncpa %s8518, 1
    %8520 = vsyncpa [#allocation19], 1
    %s8521 = scalar_lea.sflag [#allocation19], 1
    %8522 = vsyncpa %s8521, 1
    %8523 = vsyncpa [#allocation5], 1
    %s8524 = scalar_lea.sflag [#allocation5], 1
    %8525 = vsyncpa %s8524, 1

</llo_original>
